<compile_context>
chip_gen: v7x
topology: tpu7x:2x2x1
jax: 0.10.0
libtpu: 0.0.40
codegen_flags: <defaults>
</compile_context>

<pallas_src>
import jax
import jax.numpy as jnp
from jax.experimental import pallas as pl
from jax.experimental.pallas import tpu as pltpu

TB = 128  # batch tile = one full lane width


def _compiler_params():
    return pltpu.CompilerParams(
        dimension_semantics=("parallel",),
        vmem_limit_bytes=32 * 1024 * 1024,  # explicit, v7x-safe
    )


# ----------------------------- Pallas kernels ------------------------------

def _conv1_pool_relu_kernel(x_ref, w_ref, b_ref, o_ref):
    # x_ref: (4, 28, 7, tb)  -- input columns split by (col mod 4), batch on lanes
    # w_ref: (10, 25) SMEM   -- conv1 weight, col = i*5 + j
    # b_ref: (10,)    SMEM
    # o_ref: (2, 10, 12, 6, tb) -- [pooled-col parity, co, h, w//2, batch]
    tb = x_ref.shape[-1]

    def per_out_channel(co, carry):
        bias = b_ref[co]
        for rx in range(2):                       # parity of the pooled output column
            acc0 = jnp.zeros((24, 6, tb), jnp.float32)
            acc1 = jnp.zeros((24, 6, tb), jnp.float32)
            for i in range(5):
                for j in range(5):
                    w = w_ref[co, i * 5 + j]
                    for px in range(2):           # column parity inside the pool window
                        t = 2 * rx + px + j       # raw input column offset class
                        q, s = t % 4, t // 4
                        sl = x_ref[q, i:i + 24, s:s + 6, :]      # (24, 6, tb)
                        if px == 0:
                            acc0 = acc0 + sl * w
                        else:
                            acc1 = acc1 + sl * w
            z = jnp.maximum(acc0, acc1)                           # pool over W
            z = jnp.max(z.reshape(12, 2, 6, tb), axis=1)          # pool over H (free)
            o_ref[rx, co] = jnp.maximum(z + bias, 0.0)            # bias + ReLU
        return carry

    jax.lax.fori_loop(0, 10, per_out_channel, 0)


def _conv2_pool_relu_kernel(h_ref, w_ref, b_ref, o_ref):
    # h_ref: (2, 10, 12, 6, tb) -- conv1 output, W split by parity
    # w_ref: (20, 250) SMEM     -- conv2 weight, col = ci*25 + i*5 + j
    # b_ref: (20,)     SMEM
    # o_ref: (20, 4, 4, tb)
    tb = h_ref.shape[-1]

    def per_out_channel(co, carry):
        def per_in_channel(ci, accs):
            acc0, acc1 = accs
            for i in range(5):
                for j in range(5):
                    w = w_ref[co, ci * 25 + i * 5 + j]
                    for px in range(2):
                        t = px + j
                        q, s = t % 2, t // 2
                        sl = h_ref[q, ci, i:i + 8, s:s + 4, :]    # (8, 4, tb)
                        if px == 0:
                            acc0 = acc0 + sl * w
                        else:
                            acc1 = acc1 + sl * w
            return acc0, acc1

        acc0, acc1 = jax.lax.fori_loop(
            0, 10, per_in_channel,
            (jnp.zeros((8, 4, tb), jnp.float32),
             jnp.zeros((8, 4, tb), jnp.float32)))
        bias = b_ref[co]
        z = jnp.maximum(acc0, acc1)                               # pool over W
        z = jnp.max(z.reshape(4, 2, 4, tb), axis=1)               # pool over H (free)
        o_ref[co] = jnp.maximum(z + bias, 0.0)                    # bias + ReLU
        return carry

    jax.lax.fori_loop(0, 20, per_out_channel, 0)


def _fc_tail_kernel(x_ref, w1_ref, b1_ref, w2_ref, b2_ref, o_ref):
    # x_ref: (320, tb) -- flattened (C,H,W) features, batch on lanes
    # Fused fc1 + ReLU + fc2 + log_softmax; the (50, tb) intermediate stays in VMEM.
    x = x_ref[...]
    z1 = jnp.dot(w1_ref[...], x, preferred_element_type=jnp.float32)   # (50, tb)
    z1 = jnp.maximum(z1 + b1_ref[...], 0.0)
    # TODO(synk): training-mode F.dropout not implemented (eval semantics).
    z2 = jnp.dot(w2_ref[...], z1, preferred_element_type=jnp.float32)  # (10, tb)
    z2 = z2 + b2_ref[...]
    m = jnp.max(z2, axis=0, keepdims=True)
    e = jnp.exp(z2 - m)
    s = jnp.sum(e, axis=0, keepdims=True)
    o_ref[...] = z2 - m - jnp.log(s)                                   # log_softmax


# ----------------------------- Pallas wrappers ------------------------------

def conv1_pool_relu(xq, w1, b1):
    Bp = xq.shape[-1]
    nb = Bp // TB
    return pl.pallas_call(
        _conv1_pool_relu_kernel,
        out_shape=jax.ShapeDtypeStruct((2, 10, 12, 6, Bp), jnp.float32),
        grid=(nb,),
        in_specs=[
            pl.BlockSpec((4, 28, 7, TB), lambda b: (0, 0, 0, b)),
            pl.BlockSpec(memory_space=pltpu.MemorySpace.SMEM),
            pl.BlockSpec(memory_space=pltpu.MemorySpace.SMEM),
        ],
        out_specs=pl.BlockSpec((2, 10, 12, 6, TB), lambda b: (0, 0, 0, 0, b)),
        compiler_params=_compiler_params(),
    )(xq, w1, b1)


def conv2_pool_relu(h1, w2, b2):
    Bp = h1.shape[-1]
    nb = Bp // TB
    return pl.pallas_call(
        _conv2_pool_relu_kernel,
        out_shape=jax.ShapeDtypeStruct((20, 4, 4, Bp), jnp.float32),
        grid=(nb,),
        in_specs=[
            pl.BlockSpec((2, 10, 12, 6, TB), lambda b: (0, 0, 0, 0, b)),
            pl.BlockSpec(memory_space=pltpu.MemorySpace.SMEM),
            pl.BlockSpec(memory_space=pltpu.MemorySpace.SMEM),
        ],
        out_specs=pl.BlockSpec((20, 4, 4, TB), lambda b: (0, 0, 0, b)),
        compiler_params=_compiler_params(),
    )(h1, w2, b2)


def fc_tail(h2, fc1_w, fc1_b, fc2_w, fc2_b):
    Bp = h2.shape[-1]
    nb = Bp // TB
    return pl.pallas_call(
        _fc_tail_kernel,
        out_shape=jax.ShapeDtypeStruct((10, Bp), jnp.float32),
        grid=(nb,),
        in_specs=[
            pl.BlockSpec((320, TB), lambda b: (0, b)),
            pl.BlockSpec((50, 320), lambda b: (0, 0)),
            pl.BlockSpec((50, 1), lambda b: (0, 0)),
            pl.BlockSpec((10, 50), lambda b: (0, 0)),
            pl.BlockSpec((10, 1), lambda b: (0, 0)),
        ],
        out_specs=pl.BlockSpec((10, TB), lambda b: (0, b)),
        compiler_params=_compiler_params(),
    )(h2, fc1_w, fc1_b, fc2_w, fc2_b)


# ------------------------------- JAX glue -----------------------------------

def init_params():
    # Deterministic synthetic init (PyTorch-like uniform(-1/sqrt(fan_in), +)),
    # stored in the original torch layouts.
    key = jax.random.PRNGKey(0)
    ks = jax.random.split(key, 8)

    def u(k, shape, fan_in):
        bound = 1.0 / jnp.sqrt(float(fan_in))
        return jax.random.uniform(k, shape, jnp.float32, -bound, bound)

    return {
        "conv1_w": u(ks[0], (10, 1, 5, 5), 1 * 5 * 5),
        "conv1_b": u(ks[1], (10,), 1 * 5 * 5),
        "conv2_w": u(ks[2], (20, 10, 5, 5), 10 * 5 * 5),
        "conv2_b": u(ks[3], (20,), 10 * 5 * 5),
        "fc1_w": u(ks[4], (50, 320), 320),
        "fc1_b": u(ks[5], (50,), 320),
        "fc2_w": u(ks[6], (10, 50), 50),
        "fc2_b": u(ks[7], (10,), 50),
    }


def prepare_params(params):
    # torch layout -> kernel layout, ONCE, outside the jitted forward.
    return {
        "w1": params["conv1_w"].reshape(10, 25).astype(jnp.float32),
        "b1": params["conv1_b"].astype(jnp.float32),
        "w2": params["conv2_w"].reshape(20, 250).astype(jnp.float32),
        "b2": params["conv2_b"].astype(jnp.float32),
        "fc1_w": params["fc1_w"].astype(jnp.float32),                # (50, 320)
        "fc1_b": params["fc1_b"].reshape(50, 1).astype(jnp.float32),
        "fc2_w": params["fc2_w"].astype(jnp.float32),                # (10, 50)
        "fc2_b": params["fc2_b"].reshape(10, 1).astype(jnp.float32),
    }


@jax.jit
def lenet1_forward(x, kp):
    # x: (B, 1, 28, 28) float32, NCHW
    B = x.shape[0]
    Bp = ((B + TB - 1) // TB) * TB
    xs = x[:, 0]                                                    # (B, 28, 28)
    if Bp != B:
        xs = jnp.pad(xs, ((0, Bp - B), (0, 0), (0, 0)))
    # Batch-minor layout + column-parity (mod 4) split.  Cheap XLA glue on the
    # raw 28x28 input only -- replaces the old HBM im2col blow-up entirely.
    xt = jnp.transpose(xs, (1, 2, 0))                               # (28, 28, Bp)
    xq = jnp.stack([xt[:, q::4, :] for q in range(4)], axis=0)      # (4, 28, 7, Bp)

    h1 = conv1_pool_relu(xq, kp["w1"], kp["b1"])                    # (2,10,12,6,Bp)
    # conv2_drop (Dropout2d) is identity in eval mode.
    h2 = conv2_pool_relu(h1, kp["w2"], kp["b2"])                    # (20,4,4,Bp)
    h2 = h2.reshape(320, Bp)       # free leading-dim flatten; matches .view(-1, 320) order
    # F.dropout is identity in eval mode.
    logp = fc_tail(h2, kp["fc1_w"], kp["fc1_b"], kp["fc2_w"], kp["fc2_b"])  # (10, Bp)
    return logp[:, :B].T                                            # (B, 10)


if __name__ == "__main__":
    key = jax.random.PRNGKey(0)
    x = jax.random.normal(key, (2, 1, 28, 28), jnp.float32)
    params = prepare_params(init_params())
    out = jax.block_until_ready(lenet1_forward(x, params))
    assert out.shape == (2, 10)
    assert bool(jnp.all(jnp.isfinite(out)))
    # log_softmax rows must exponentiate-sum to ~1
    assert bool(jnp.all(jnp.abs(jnp.sum(jnp.exp(out), axis=1) - 1.0) < 1e-3))
    print("KERNEL_OK")
</pallas_src>

<mosaic_0001>
module attributes {stable_mosaic.version = 11 : i64} {
  func.func @_conv1_pool_relu_kernel(%arg0: i32, %arg1: memref<4x28x7x128xf32, #tpu.memory_space<vmem>>, %arg2: memref<10x25xf32, #tpu.memory_space<smem>>, %arg3: memref<10xf32, #tpu.memory_space<smem>>, %arg4: memref<2x10x12x6x128xf32, #tpu.memory_space<vmem>>) attributes {dimension_semantics = [#tpu.dimension_semantics<parallel>], iteration_bounds = array<i64: 1>, scalar_prefetch = 0 : i64, scratch_operands = 0 : i64, tpu.core_type = #tpu.core_type<tc>, window_params = [{transform_indices = @transform_0, window_bounds = array<i64: 4, 28, 7, 128>}, {transform_indices = @transform_1, window_bounds = array<i64: 10, 25>}, {transform_indices = @transform_2, window_bounds = array<i64: 10>}, {transform_indices = @transform_3, window_bounds = array<i64: 2, 10, 12, 6, 128>}]} {
    %c0_i32 = arith.constant 0 : i32
    %c10_i32 = arith.constant 10 : i32
    %0 = arith.addi %c0_i32, %c10_i32 : i32
    %c1_i32 = arith.constant 1 : i32
    scf.for %arg5 = %c0_i32 to %0 step %c1_i32  : i32 {
      %1 = arith.index_cast %arg5 : i32 to index
      %2 = memref.load %arg3[%1] : memref<10xf32, #tpu.memory_space<smem>>
      %cst = arith.constant 0.000000e+00 : f32
      %3 = vector.broadcast %cst : f32 to vector<24x6x128xf32>
      %cst_1 = arith.constant 0.000000e+00 : f32
      %4 = vector.broadcast %cst_1 : f32 to vector<24x6x128xf32>
      %5 = arith.index_cast %arg5 : i32 to index
      %c0 = arith.constant 0 : index
      %6 = memref.load %arg2[%5, %c0] : memref<10x25xf32, #tpu.memory_space<smem>>
      %c0_2 = arith.constant 0 : index
      %c0_3 = arith.constant 0 : index
      %c0_4 = arith.constant 0 : index
      %c0_5 = arith.constant 0 : index
      %7 = vector.load %arg1[%c0_2, %c0_3, %c0_4, %c0_5] : memref<4x28x7x128xf32, #tpu.memory_space<vmem>>, vector<1x24x6x128xf32>
      %8 = vector.shape_cast %7 : vector<1x24x6x128xf32> to vector<24x6x128xf32>
      %9 = vector.broadcast %6 : f32 to vector<24x6x128xf32>
      %10 = arith.mulf %8, %9 : vector<24x6x128xf32>
      %11 = arith.addf %3, %10 : vector<24x6x128xf32>
      %c1 = arith.constant 1 : index
      %c0_6 = arith.constant 0 : index
      %c0_7 = arith.constant 0 : index
      %c0_8 = arith.constant 0 : index
      %12 = vector.load %arg1[%c1, %c0_6, %c0_7, %c0_8] : memref<4x28x7x128xf32, #tpu.memory_space<vmem>>, vector<1x24x6x128xf32>
      %13 = vector.shape_cast %12 : vector<1x24x6x128xf32> to vector<24x6x128xf32>
      %14 = vector.broadcast %6 : f32 to vector<24x6x128xf32>
      %15 = arith.mulf %13, %14 : vector<24x6x128xf32>
      %16 = arith.addf %4, %15 : vector<24x6x128xf32>
      %17 = arith.index_cast %arg5 : i32 to index
      %c1_9 = arith.constant 1 : index
      %18 = memref.load %arg2[%17, %c1_9] : memref<10x25xf32, #tpu.memory_space<smem>>
      %c1_10 = arith.constant 1 : index
      %c0_11 = arith.constant 0 : index
      %c0_12 = arith.constant 0 : index
      %c0_13 = arith.constant 0 : index
      %19 = vector.load %arg1[%c1_10, %c0_11, %c0_12, %c0_13] : memref<4x28x7x128xf32, #tpu.memory_space<vmem>>, vector<1x24x6x128xf32>
      %20 = vector.shape_cast %19 : vector<1x24x6x128xf32> to vector<24x6x128xf32>
      %21 = vector.broadcast %18 : f32 to vector<24x6x128xf32>
      %22 = arith.mulf %20, %21 : vector<24x6x128xf32>
      %23 = arith.addf %11, %22 : vector<24x6x128xf32>
      %c2 = arith.constant 2 : index
      %c0_14 = arith.constant 0 : index
      %c0_15 = arith.constant 0 : index
      %c0_16 = arith.constant 0 : index
      %24 = vector.load %arg1[%c2, %c0_14, %c0_15, %c0_16] : memref<4x28x7x128xf32, #tpu.memory_space<vmem>>, vector<1x24x6x128xf32>
      %25 = vector.shape_cast %24 : vector<1x24x6x128xf32> to vector<24x6x128xf32>
      %26 = vector.broadcast %18 : f32 to vector<24x6x128xf32>
      %27 = arith.mulf %25, %26 : vector<24x6x128xf32>
      %28 = arith.addf %16, %27 : vector<24x6x128xf32>
      %29 = arith.index_cast %arg5 : i32 to index
      %c2_17 = arith.constant 2 : index
      %30 = memref.load %arg2[%29, %c2_17] : memref<10x25xf32, #tpu.memory_space<smem>>
      %c2_18 = arith.constant 2 : index
      %c0_19 = arith.constant 0 : index
      %c0_20 = arith.constant 0 : index
      %c0_21 = arith.constant 0 : index
      %31 = vector.load %arg1[%c2_18, %c0_19, %c0_20, %c0_21] : memref<4x28x7x128xf32, #tpu.memory_space<vmem>>, vector<1x24x6x128xf32>
      %32 = vector.shape_cast %31 : vector<1x24x6x128xf32> to vector<24x6x128xf32>
      %33 = vector.broadcast %30 : f32 to vector<24x6x128xf32>
      %34 = arith.mulf %32, %33 : vector<24x6x128xf32>
      %35 = arith.addf %23, %34 : vector<24x6x128xf32>
      %c3 = arith.constant 3 : index
      %c0_22 = arith.constant 0 : index
      %c0_23 = arith.constant 0 : index
      %c0_24 = arith.constant 0 : index
      %36 = vector.load %arg1[%c3, %c0_22, %c0_23, %c0_24] : memref<4x28x7x128xf32, #tpu.memory_space<vmem>>, vector<1x24x6x128xf32>
      %37 = vector.shape_cast %36 : vector<1x24x6x128xf32> to vector<24x6x128xf32>
      %38 = vector.broadcast %30 : f32 to vector<24x6x128xf32>
      %39 = arith.mulf %37, %38 : vector<24x6x128xf32>
      %40 = arith.addf %28, %39 : vector<24x6x128xf32>
      %41 = arith.index_cast %arg5 : i32 to index
      %c3_25 = arith.constant 3 : index
      %42 = memref.load %arg2[%41, %c3_25] : memref<10x25xf32, #tpu.memory_space<smem>>
      %c3_26 = arith.constant 3 : index
      %c0_27 = arith.constant 0 : index
      %c0_28 = arith.constant 0 : index
      %c0_29 = arith.constant 0 : index
      %43 = vector.load %arg1[%c3_26, %c0_27, %c0_28, %c0_29] : memref<4x28x7x128xf32, #tpu.memory_space<vmem>>, vector<1x24x6x128xf32>
      %44 = vector.shape_cast %43 : vector<1x24x6x128xf32> to vector<24x6x128xf32>
      %45 = vector.broadcast %42 : f32 to vector<24x6x128xf32>
      %46 = arith.mulf %44, %45 : vector<24x6x128xf32>
      %47 = arith.addf %35, %46 : vector<24x6x128xf32>
      %c0_30 = arith.constant 0 : index
      %c0_31 = arith.constant 0 : index
      %c1_32 = arith.constant 1 : index
      %c0_33 = arith.constant 0 : index
      %48 = vector.load %arg1[%c0_30, %c0_31, %c1_32, %c0_33] : memref<4x28x7x128xf32, #tpu.memory_space<vmem>>, vector<1x24x6x128xf32>
      %49 = vector.shape_cast %48 : vector<1x24x6x128xf32> to vector<24x6x128xf32>
      %50 = vector.broadcast %42 : f32 to vector<24x6x128xf32>
      %51 = arith.mulf %49, %50 : vector<24x6x128xf32>
      %52 = arith.addf %40, %51 : vector<24x6x128xf32>
      %53 = arith.index_cast %arg5 : i32 to index
      %c4 = arith.constant 4 : index
      %54 = memref.load %arg2[%53, %c4] : memref<10x25xf32, #tpu.memory_space<smem>>
      %c0_34 = arith.constant 0 : index
      %c0_35 = arith.constant 0 : index
      %c1_36 = arith.constant 1 : index
      %c0_37 = arith.constant 0 : index
      %55 = vector.load %arg1[%c0_34, %c0_35, %c1_36, %c0_37] : memref<4x28x7x128xf32, #tpu.memory_space<vmem>>, vector<1x24x6x128xf32>
      %56 = vector.shape_cast %55 : vector<1x24x6x128xf32> to vector<24x6x128xf32>
      %57 = vector.broadcast %54 : f32 to vector<24x6x128xf32>
      %58 = arith.mulf %56, %57 : vector<24x6x128xf32>
      %59 = arith.addf %47, %58 : vector<24x6x128xf32>
      %c1_38 = arith.constant 1 : index
      %c0_39 = arith.constant 0 : index
      %c1_40 = arith.constant 1 : index
      %c0_41 = arith.constant 0 : index
      %60 = vector.load %arg1[%c1_38, %c0_39, %c1_40, %c0_41] : memref<4x28x7x128xf32, #tpu.memory_space<vmem>>, vector<1x24x6x128xf32>
      %61 = vector.shape_cast %60 : vector<1x24x6x128xf32> to vector<24x6x128xf32>
      %62 = vector.broadcast %54 : f32 to vector<24x6x128xf32>
      %63 = arith.mulf %61, %62 : vector<24x6x128xf32>
      %64 = arith.addf %52, %63 : vector<24x6x128xf32>
      %65 = arith.index_cast %arg5 : i32 to index
      %c5 = arith.constant 5 : index
      %66 = memref.load %arg2[%65, %c5] : memref<10x25xf32, #tpu.memory_space<smem>>
      %c0_42 = arith.constant 0 : index
      %c1_43 = arith.constant 1 : index
      %c0_44 = arith.constant 0 : index
      %c0_45 = arith.constant 0 : index
      %67 = vector.load %arg1[%c0_42, %c1_43, %c0_44, %c0_45] : memref<4x28x7x128xf32, #tpu.memory_space<vmem>>, vector<1x24x6x128xf32>
      %68 = vector.shape_cast %67 : vector<1x24x6x128xf32> to vector<24x6x128xf32>
      %69 = vector.broadcast %66 : f32 to vector<24x6x128xf32>
      %70 = arith.mulf %68, %69 : vector<24x6x128xf32>
      %71 = arith.addf %59, %70 : vector<24x6x128xf32>
      %c1_46 = arith.constant 1 : index
      %c1_47 = arith.constant 1 : index
      %c0_48 = arith.constant 0 : index
      %c0_49 = arith.constant 0 : index
      %72 = vector.load %arg1[%c1_46, %c1_47, %c0_48, %c0_49] : memref<4x28x7x128xf32, #tpu.memory_space<vmem>>, vector<1x24x6x128xf32>
      %73 = vector.shape_cast %72 : vector<1x24x6x128xf32> to vector<24x6x128xf32>
      %74 = vector.broadcast %66 : f32 to vector<24x6x128xf32>
      %75 = arith.mulf %73, %74 : vector<24x6x128xf32>
      %76 = arith.addf %64, %75 : vector<24x6x128xf32>
      %77 = arith.index_cast %arg5 : i32 to index
      %c6 = arith.constant 6 : index
      %78 = memref.load %arg2[%77, %c6] : memref<10x25xf32, #tpu.memory_space<smem>>
      %c1_50 = arith.constant 1 : index
      %c1_51 = arith.constant 1 : index
      %c0_52 = arith.constant 0 : index
      %c0_53 = arith.constant 0 : index
      %79 = vector.load %arg1[%c1_50, %c1_51, %c0_52, %c0_53] : memref<4x28x7x128xf32, #tpu.memory_space<vmem>>, vector<1x24x6x128xf32>
      %80 = vector.shape_cast %79 : vector<1x24x6x128xf32> to vector<24x6x128xf32>
      %81 = vector.broadcast %78 : f32 to vector<24x6x128xf32>
      %82 = arith.mulf %80, %81 : vector<24x6x128xf32>
      %83 = arith.addf %71, %82 : vector<24x6x128xf32>
      %c2_54 = arith.constant 2 : index
      %c1_55 = arith.constant 1 : index
      %c0_56 = arith.constant 0 : index
      %c0_57 = arith.constant 0 : index
      %84 = vector.load %arg1[%c2_54, %c1_55, %c0_56, %c0_57] : memref<4x28x7x128xf32, #tpu.memory_space<vmem>>, vector<1x24x6x128xf32>
      %85 = vector.shape_cast %84 : vector<1x24x6x128xf32> to vector<24x6x128xf32>
      %86 = vector.broadcast %78 : f32 to vector<24x6x128xf32>
      %87 = arith.mulf %85, %86 : vector<24x6x128xf32>
      %88 = arith.addf %76, %87 : vector<24x6x128xf32>
      %89 = arith.index_cast %arg5 : i32 to index
      %c7 = arith.constant 7 : index
      %90 = memref.load %arg2[%89, %c7] : memref<10x25xf32, #tpu.memory_space<smem>>
      %c2_58 = arith.constant 2 : index
      %c1_59 = arith.constant 1 : index
      %c0_60 = arith.constant 0 : index
      %c0_61 = arith.constant 0 : index
      %91 = vector.load %arg1[%c2_58, %c1_59, %c0_60, %c0_61] : memref<4x28x7x128xf32, #tpu.memory_space<vmem>>, vector<1x24x6x128xf32>
      %92 = vector.shape_cast %91 : vector<1x24x6x128xf32> to vector<24x6x128xf32>
      %93 = vector.broadcast %90 : f32 to vector<24x6x128xf32>
      %94 = arith.mulf %92, %93 : vector<24x6x128xf32>
      %95 = arith.addf %83, %94 : vector<24x6x128xf32>
      %c3_62 = arith.constant 3 : index
      %c1_63 = arith.constant 1 : index
      %c0_64 = arith.constant 0 : index
      %c0_65 = arith.constant 0 : index
      %96 = vector.load %arg1[%c3_62, %c1_63, %c0_64, %c0_65] : memref<4x28x7x128xf32, #tpu.memory_space<vmem>>, vector<1x24x6x128xf32>
      %97 = vector.shape_cast %96 : vector<1x24x6x128xf32> to vector<24x6x128xf32>
      %98 = vector.broadcast %90 : f32 to vector<24x6x128xf32>
      %99 = arith.mulf %97, %98 : vector<24x6x128xf32>
      %100 = arith.addf %88, %99 : vector<24x6x128xf32>
      %101 = arith.index_cast %arg5 : i32 to index
      %c8 = arith.constant 8 : index
      %102 = memref.load %arg2[%101, %c8] : memref<10x25xf32, #tpu.memory_space<smem>>
      %c3_66 = arith.constant 3 : index
      %c1_67 = arith.constant 1 : index
      %c0_68 = arith.constant 0 : index
      %c0_69 = arith.constant 0 : index
      %103 = vector.load %arg1[%c3_66, %c1_67, %c0_68, %c0_69] : memref<4x28x7x128xf32, #tpu.memory_space<vmem>>, vector<1x24x6x128xf32>
      %104 = vector.shape_cast %103 : vector<1x24x6x128xf32> to vector<24x6x128xf32>
      %105 = vector.broadcast %102 : f32 to vector<24x6x128xf32>
      %106 = arith.mulf %104, %105 : vector<24x6x128xf32>
      %107 = arith.addf %95, %106 : vector<24x6x128xf32>
      %c0_70 = arith.constant 0 : index
      %c1_71 = arith.constant 1 : index
      %c1_72 = arith.constant 1 : index
      %c0_73 = arith.constant 0 : index
      %108 = vector.load %arg1[%c0_70, %c1_71, %c1_72, %c0_73] : memref<4x28x7x128xf32, #tpu.memory_space<vmem>>, vector<1x24x6x128xf32>
      %109 = vector.shape_cast %108 : vector<1x24x6x128xf32> to vector<24x6x128xf32>
      %110 = vector.broadcast %102 : f32 to vector<24x6x128xf32>
      %111 = arith.mulf %109, %110 : vector<24x6x128xf32>
      %112 = arith.addf %100, %111 : vector<24x6x128xf32>
      %113 = arith.index_cast %arg5 : i32 to index
      %c9 = arith.constant 9 : index
      %114 = memref.load %arg2[%113, %c9] : memref<10x25xf32, #tpu.memory_space<smem>>
      %c0_74 = arith.constant 0 : index
      %c1_75 = arith.constant 1 : index
      %c1_76 = arith.constant 1 : index
      %c0_77 = arith.constant 0 : index
      %115 = vector.load %arg1[%c0_74, %c1_75, %c1_76, %c0_77] : memref<4x28x7x128xf32, #tpu.memory_space<vmem>>, vector<1x24x6x128xf32>
      %116 = vector.shape_cast %115 : vector<1x24x6x128xf32> to vector<24x6x128xf32>
      %117 = vector.broadcast %114 : f32 to vector<24x6x128xf32>
      %118 = arith.mulf %116, %117 : vector<24x6x128xf32>
      %119 = arith.addf %107, %118 : vector<24x6x128xf32>
      %c1_78 = arith.constant 1 : index
      %c1_79 = arith.constant 1 : index
      %c1_80 = arith.constant 1 : index
      %c0_81 = arith.constant 0 : index
      %120 = vector.load %arg1[%c1_78, %c1_79, %c1_80, %c0_81] : memref<4x28x7x128xf32, #tpu.memory_space<vmem>>, vector<1x24x6x128xf32>
      %121 = vector.shape_cast %120 : vector<1x24x6x128xf32> to vector<24x6x128xf32>
      %122 = vector.broadcast %114 : f32 to vector<24x6x128xf32>
      %123 = arith.mulf %121, %122 : vector<24x6x128xf32>
      %124 = arith.addf %112, %123 : vector<24x6x128xf32>
      %125 = arith.index_cast %arg5 : i32 to index
      %c10 = arith.constant 10 : index
      %126 = memref.load %arg2[%125, %c10] : memref<10x25xf32, #tpu.memory_space<smem>>
      %c0_82 = arith.constant 0 : index
      %c2_83 = arith.constant 2 : index
      %c0_84 = arith.constant 0 : index
      %c0_85 = arith.constant 0 : index
      %127 = vector.load %arg1[%c0_82, %c2_83, %c0_84, %c0_85] : memref<4x28x7x128xf32, #tpu.memory_space<vmem>>, vector<1x24x6x128xf32>
      %128 = vector.shape_cast %127 : vector<1x24x6x128xf32> to vector<24x6x128xf32>
      %129 = vector.broadcast %126 : f32 to vector<24x6x128xf32>
      %130 = arith.mulf %128, %129 : vector<24x6x128xf32>
      %131 = arith.addf %119, %130 : vector<24x6x128xf32>
      %c1_86 = arith.constant 1 : index
      %c2_87 = arith.constant 2 : index
      %c0_88 = arith.constant 0 : index
      %c0_89 = arith.constant 0 : index
      %132 = vector.load %arg1[%c1_86, %c2_87, %c0_88, %c0_89] : memref<4x28x7x128xf32, #tpu.memory_space<vmem>>, vector<1x24x6x128xf32>
      %133 = vector.shape_cast %132 : vector<1x24x6x128xf32> to vector<24x6x128xf32>
      %134 = vector.broadcast %126 : f32 to vector<24x6x128xf32>
      %135 = arith.mulf %133, %134 : vector<24x6x128xf32>
      %136 = arith.addf %124, %135 : vector<24x6x128xf32>
      %137 = arith.index_cast %arg5 : i32 to index
      %c11 = arith.constant 11 : index
      %138 = memref.load %arg2[%137, %c11] : memref<10x25xf32, #tpu.memory_space<smem>>
      %c1_90 = arith.constant 1 : index
      %c2_91 = arith.constant 2 : index
      %c0_92 = arith.constant 0 : index
      %c0_93 = arith.constant 0 : index
      %139 = vector.load %arg1[%c1_90, %c2_91, %c0_92, %c0_93] : memref<4x28x7x128xf32, #tpu.memory_space<vmem>>, vector<1x24x6x128xf32>
      %140 = vector.shape_cast %139 : vector<1x24x6x128xf32> to vector<24x6x128xf32>
      %141 = vector.broadcast %138 : f32 to vector<24x6x128xf32>
      %142 = arith.mulf %140, %141 : vector<24x6x128xf32>
      %143 = arith.addf %131, %142 : vector<24x6x128xf32>
      %c2_94 = arith.constant 2 : index
      %c2_95 = arith.constant 2 : index
      %c0_96 = arith.constant 0 : index
      %c0_97 = arith.constant 0 : index
      %144 = vector.load %arg1[%c2_94, %c2_95, %c0_96, %c0_97] : memref<4x28x7x128xf32, #tpu.memory_space<vmem>>, vector<1x24x6x128xf32>
      %145 = vector.shape_cast %144 : vector<1x24x6x128xf32> to vector<24x6x128xf32>
      %146 = vector.broadcast %138 : f32 to vector<24x6x128xf32>
      %147 = arith.mulf %145, %146 : vector<24x6x128xf32>
      %148 = arith.addf %136, %147 : vector<24x6x128xf32>
      %149 = arith.index_cast %arg5 : i32 to index
      %c12 = arith.constant 12 : index
      %150 = memref.load %arg2[%149, %c12] : memref<10x25xf32, #tpu.memory_space<smem>>
      %c2_98 = arith.constant 2 : index
      %c2_99 = arith.constant 2 : index
      %c0_100 = arith.constant 0 : index
      %c0_101 = arith.constant 0 : index
      %151 = vector.load %arg1[%c2_98, %c2_99, %c0_100, %c0_101] : memref<4x28x7x128xf32, #tpu.memory_space<vmem>>, vector<1x24x6x128xf32>
      %152 = vector.shape_cast %151 : vector<1x24x6x128xf32> to vector<24x6x128xf32>
      %153 = vector.broadcast %150 : f32 to vector<24x6x128xf32>
      %154 = arith.mulf %152, %153 : vector<24x6x128xf32>
      %155 = arith.addf %143, %154 : vector<24x6x128xf32>
      %c3_102 = arith.constant 3 : index
      %c2_103 = arith.constant 2 : index
      %c0_104 = arith.constant 0 : index
      %c0_105 = arith.constant 0 : index
      %156 = vector.load %arg1[%c3_102, %c2_103, %c0_104, %c0_105] : memref<4x28x7x128xf32, #tpu.memory_space<vmem>>, vector<1x24x6x128xf32>
      %157 = vector.shape_cast %156 : vector<1x24x6x128xf32> to vector<24x6x128xf32>
      %158 = vector.broadcast %150 : f32 to vector<24x6x128xf32>
      %159 = arith.mulf %157, %158 : vector<24x6x128xf32>
      %160 = arith.addf %148, %159 : vector<24x6x128xf32>
      %161 = arith.index_cast %arg5 : i32 to index
      %c13 = arith.constant 13 : index
      %162 = memref.load %arg2[%161, %c13] : memref<10x25xf32, #tpu.memory_space<smem>>
      %c3_106 = arith.constant 3 : index
      %c2_107 = arith.constant 2 : index
      %c0_108 = arith.constant 0 : index
      %c0_109 = arith.constant 0 : index
      %163 = vector.load %arg1[%c3_106, %c2_107, %c0_108, %c0_109] : memref<4x28x7x128xf32, #tpu.memory_space<vmem>>, vector<1x24x6x128xf32>
      %164 = vector.shape_cast %163 : vector<1x24x6x128xf32> to vector<24x6x128xf32>
      %165 = vector.broadcast %162 : f32 to vector<24x6x128xf32>
      %166 = arith.mulf %164, %165 : vector<24x6x128xf32>
      %167 = arith.addf %155, %166 : vector<24x6x128xf32>
      %c0_110 = arith.constant 0 : index
      %c2_111 = arith.constant 2 : index
      %c1_112 = arith.constant 1 : index
      %c0_113 = arith.constant 0 : index
      %168 = vector.load %arg1[%c0_110, %c2_111, %c1_112, %c0_113] : memref<4x28x7x128xf32, #tpu.memory_space<vmem>>, vector<1x24x6x128xf32>
      %169 = vector.shape_cast %168 : vector<1x24x6x128xf32> to vector<24x6x128xf32>
      %170 = vector.broadcast %162 : f32 to vector<24x6x128xf32>
      %171 = arith.mulf %169, %170 : vector<24x6x128xf32>
      %172 = arith.addf %160, %171 : vector<24x6x128xf32>
      %173 = arith.index_cast %arg5 : i32 to index
      %c14 = arith.constant 14 : index
      %174 = memref.load %arg2[%173, %c14] : memref<10x25xf32, #tpu.memory_space<smem>>
      %c0_114 = arith.constant 0 : index
      %c2_115 = arith.constant 2 : index
      %c1_116 = arith.constant 1 : index
      %c0_117 = arith.constant 0 : index
      %175 = vector.load %arg1[%c0_114, %c2_115, %c1_116, %c0_117] : memref<4x28x7x128xf32, #tpu.memory_space<vmem>>, vector<1x24x6x128xf32>
      %176 = vector.shape_cast %175 : vector<1x24x6x128xf32> to vector<24x6x128xf32>
      %177 = vector.broadcast %174 : f32 to vector<24x6x128xf32>
      %178 = arith.mulf %176, %177 : vector<24x6x128xf32>
      %179 = arith.addf %167, %178 : vector<24x6x128xf32>
      %c1_118 = arith.constant 1 : index
      %c2_119 = arith.constant 2 : index
      %c1_120 = arith.constant 1 : index
      %c0_121 = arith.constant 0 : index
      %180 = vector.load %arg1[%c1_118, %c2_119, %c1_120, %c0_121] : memref<4x28x7x128xf32, #tpu.memory_space<vmem>>, vector<1x24x6x128xf32>
      %181 = vector.shape_cast %180 : vector<1x24x6x128xf32> to vector<24x6x128xf32>
      %182 = vector.broadcast %174 : f32 to vector<24x6x128xf32>
      %183 = arith.mulf %181, %182 : vector<24x6x128xf32>
      %184 = arith.addf %172, %183 : vector<24x6x128xf32>
      %185 = arith.index_cast %arg5 : i32 to index
      %c15 = arith.constant 15 : index
      %186 = memref.load %arg2[%185, %c15] : memref<10x25xf32, #tpu.memory_space<smem>>
      %c0_122 = arith.constant 0 : index
      %c3_123 = arith.constant 3 : index
      %c0_124 = arith.constant 0 : index
      %c0_125 = arith.constant 0 : index
      %187 = vector.load %arg1[%c0_122, %c3_123, %c0_124, %c0_125] : memref<4x28x7x128xf32, #tpu.memory_space<vmem>>, vector<1x24x6x128xf32>
      %188 = vector.shape_cast %187 : vector<1x24x6x128xf32> to vector<24x6x128xf32>
      %189 = vector.broadcast %186 : f32 to vector<24x6x128xf32>
      %190 = arith.mulf %188, %189 : vector<24x6x128xf32>
      %191 = arith.addf %179, %190 : vector<24x6x128xf32>
      %c1_126 = arith.constant 1 : index
      %c3_127 = arith.constant 3 : index
      %c0_128 = arith.constant 0 : index
      %c0_129 = arith.constant 0 : index
      %192 = vector.load %arg1[%c1_126, %c3_127, %c0_128, %c0_129] : memref<4x28x7x128xf32, #tpu.memory_space<vmem>>, vector<1x24x6x128xf32>
      %193 = vector.shape_cast %192 : vector<1x24x6x128xf32> to vector<24x6x128xf32>
      %194 = vector.broadcast %186 : f32 to vector<24x6x128xf32>
      %195 = arith.mulf %193, %194 : vector<24x6x128xf32>
      %196 = arith.addf %184, %195 : vector<24x6x128xf32>
      %197 = arith.index_cast %arg5 : i32 to index
      %c16 = arith.constant 16 : index
      %198 = memref.load %arg2[%197, %c16] : memref<10x25xf32, #tpu.memory_space<smem>>
      %c1_130 = arith.constant 1 : index
      %c3_131 = arith.constant 3 : index
      %c0_132 = arith.constant 0 : index
      %c0_133 = arith.constant 0 : index
      %199 = vector.load %arg1[%c1_130, %c3_131, %c0_132, %c0_133] : memref<4x28x7x128xf32, #tpu.memory_space<vmem>>, vector<1x24x6x128xf32>
      %200 = vector.shape_cast %199 : vector<1x24x6x128xf32> to vector<24x6x128xf32>
      %201 = vector.broadcast %198 : f32 to vector<24x6x128xf32>
      %202 = arith.mulf %200, %201 : vector<24x6x128xf32>
      %203 = arith.addf %191, %202 : vector<24x6x128xf32>
      %c2_134 = arith.constant 2 : index
      %c3_135 = arith.constant 3 : index
      %c0_136 = arith.constant 0 : index
      %c0_137 = arith.constant 0 : index
      %204 = vector.load %arg1[%c2_134, %c3_135, %c0_136, %c0_137] : memref<4x28x7x128xf32, #tpu.memory_space<vmem>>, vector<1x24x6x128xf32>
      %205 = vector.shape_cast %204 : vector<1x24x6x128xf32> to vector<24x6x128xf32>
      %206 = vector.broadcast %198 : f32 to vector<24x6x128xf32>
      %207 = arith.mulf %205, %206 : vector<24x6x128xf32>
      %208 = arith.addf %196, %207 : vector<24x6x128xf32>
      %209 = arith.index_cast %arg5 : i32 to index
      %c17 = arith.constant 17 : index
      %210 = memref.load %arg2[%209, %c17] : memref<10x25xf32, #tpu.memory_space<smem>>
      %c2_138 = arith.constant 2 : index
      %c3_139 = arith.constant 3 : index
      %c0_140 = arith.constant 0 : index
      %c0_141 = arith.constant 0 : index
      %211 = vector.load %arg1[%c2_138, %c3_139, %c0_140, %c0_141] : memref<4x28x7x128xf32, #tpu.memory_space<vmem>>, vector<1x24x6x128xf32>
      %212 = vector.shape_cast %211 : vector<1x24x6x128xf32> to vector<24x6x128xf32>
      %213 = vector.broadcast %210 : f32 to vector<24x6x128xf32>
      %214 = arith.mulf %212, %213 : vector<24x6x128xf32>
      %215 = arith.addf %203, %214 : vector<24x6x128xf32>
      %c3_142 = arith.constant 3 : index
      %c3_143 = arith.constant 3 : index
      %c0_144 = arith.constant 0 : index
      %c0_145 = arith.constant 0 : index
      %216 = vector.load %arg1[%c3_142, %c3_143, %c0_144, %c0_145] : memref<4x28x7x128xf32, #tpu.memory_space<vmem>>, vector<1x24x6x128xf32>
      %217 = vector.shape_cast %216 : vector<1x24x6x128xf32> to vector<24x6x128xf32>
      %218 = vector.broadcast %210 : f32 to vector<24x6x128xf32>
      %219 = arith.mulf %217, %218 : vector<24x6x128xf32>
      %220 = arith.addf %208, %219 : vector<24x6x128xf32>
      %221 = arith.index_cast %arg5 : i32 to index
      %c18 = arith.constant 18 : index
      %222 = memref.load %arg2[%221, %c18] : memref<10x25xf32, #tpu.memory_space<smem>>
      %c3_146 = arith.constant 3 : index
      %c3_147 = arith.constant 3 : index
      %c0_148 = arith.constant 0 : index
      %c0_149 = arith.constant 0 : index
      %223 = vector.load %arg1[%c3_146, %c3_147, %c0_148, %c0_149] : memref<4x28x7x128xf32, #tpu.memory_space<vmem>>, vector<1x24x6x128xf32>
      %224 = vector.shape_cast %223 : vector<1x24x6x128xf32> to vector<24x6x128xf32>
      %225 = vector.broadcast %222 : f32 to vector<24x6x128xf32>
      %226 = arith.mulf %224, %225 : vector<24x6x128xf32>
      %227 = arith.addf %215, %226 : vector<24x6x128xf32>
      %c0_150 = arith.constant 0 : index
      %c3_151 = arith.constant 3 : index
      %c1_152 = arith.constant 1 : index
      %c0_153 = arith.constant 0 : index
      %228 = vector.load %arg1[%c0_150, %c3_151, %c1_152, %c0_153] : memref<4x28x7x128xf32, #tpu.memory_space<vmem>>, vector<1x24x6x128xf32>
      %229 = vector.shape_cast %228 : vector<1x24x6x128xf32> to vector<24x6x128xf32>
      %230 = vector.broadcast %222 : f32 to vector<24x6x128xf32>
      %231 = arith.mulf %229, %230 : vector<24x6x128xf32>
      %232 = arith.addf %220, %231 : vector<24x6x128xf32>
      %233 = arith.index_cast %arg5 : i32 to index
      %c19 = arith.constant 19 : index
      %234 = memref.load %arg2[%233, %c19] : memref<10x25xf32, #tpu.memory_space<smem>>
      %c0_154 = arith.constant 0 : index
      %c3_155 = arith.constant 3 : index
      %c1_156 = arith.constant 1 : index
      %c0_157 = arith.constant 0 : index
      %235 = vector.load %arg1[%c0_154, %c3_155, %c1_156, %c0_157] : memref<4x28x7x128xf32, #tpu.memory_space<vmem>>, vector<1x24x6x128xf32>
      %236 = vector.shape_cast %235 : vector<1x24x6x128xf32> to vector<24x6x128xf32>
      %237 = vector.broadcast %234 : f32 to vector<24x6x128xf32>
      %238 = arith.mulf %236, %237 : vector<24x6x128xf32>
      %239 = arith.addf %227, %238 : vector<24x6x128xf32>
      %c1_158 = arith.constant 1 : index
      %c3_159 = arith.constant 3 : index
      %c1_160 = arith.constant 1 : index
      %c0_161 = arith.constant 0 : index
      %240 = vector.load %arg1[%c1_158, %c3_159, %c1_160, %c0_161] : memref<4x28x7x128xf32, #tpu.memory_space<vmem>>, vector<1x24x6x128xf32>
      %241 = vector.shape_cast %240 : vector<1x24x6x128xf32> to vector<24x6x128xf32>
      %242 = vector.broadcast %234 : f32 to vector<24x6x128xf32>
      %243 = arith.mulf %241, %242 : vector<24x6x128xf32>
      %244 = arith.addf %232, %243 : vector<24x6x128xf32>
      %245 = arith.index_cast %arg5 : i32 to index
      %c20 = arith.constant 20 : index
      %246 = memref.load %arg2[%245, %c20] : memref<10x25xf32, #tpu.memory_space<smem>>
      %c0_162 = arith.constant 0 : index
      %c4_163 = arith.constant 4 : index
      %c0_164 = arith.constant 0 : index
      %c0_165 = arith.constant 0 : index
      %247 = vector.load %arg1[%c0_162, %c4_163, %c0_164, %c0_165] : memref<4x28x7x128xf32, #tpu.memory_space<vmem>>, vector<1x24x6x128xf32>
      %248 = vector.shape_cast %247 : vector<1x24x6x128xf32> to vector<24x6x128xf32>
      %249 = vector.broadcast %246 : f32 to vector<24x6x128xf32>
      %250 = arith.mulf %248, %249 : vector<24x6x128xf32>
      %251 = arith.addf %239, %250 : vector<24x6x128xf32>
      %c1_166 = arith.constant 1 : index
      %c4_167 = arith.constant 4 : index
      %c0_168 = arith.constant 0 : index
      %c0_169 = arith.constant 0 : index
      %252 = vector.load %arg1[%c1_166, %c4_167, %c0_168, %c0_169] : memref<4x28x7x128xf32, #tpu.memory_space<vmem>>, vector<1x24x6x128xf32>
      %253 = vector.shape_cast %252 : vector<1x24x6x128xf32> to vector<24x6x128xf32>
      %254 = vector.broadcast %246 : f32 to vector<24x6x128xf32>
      %255 = arith.mulf %253, %254 : vector<24x6x128xf32>
      %256 = arith.addf %244, %255 : vector<24x6x128xf32>
      %257 = arith.index_cast %arg5 : i32 to index
      %c21 = arith.constant 21 : index
      %258 = memref.load %arg2[%257, %c21] : memref<10x25xf32, #tpu.memory_space<smem>>
      %c1_170 = arith.constant 1 : index
      %c4_171 = arith.constant 4 : index
      %c0_172 = arith.constant 0 : index
      %c0_173 = arith.constant 0 : index
      %259 = vector.load %arg1[%c1_170, %c4_171, %c0_172, %c0_173] : memref<4x28x7x128xf32, #tpu.memory_space<vmem>>, vector<1x24x6x128xf32>
      %260 = vector.shape_cast %259 : vector<1x24x6x128xf32> to vector<24x6x128xf32>
      %261 = vector.broadcast %258 : f32 to vector<24x6x128xf32>
      %262 = arith.mulf %260, %261 : vector<24x6x128xf32>
      %263 = arith.addf %251, %262 : vector<24x6x128xf32>
      %c2_174 = arith.constant 2 : index
      %c4_175 = arith.constant 4 : index
      %c0_176 = arith.constant 0 : index
      %c0_177 = arith.constant 0 : index
      %264 = vector.load %arg1[%c2_174, %c4_175, %c0_176, %c0_177] : memref<4x28x7x128xf32, #tpu.memory_space<vmem>>, vector<1x24x6x128xf32>
      %265 = vector.shape_cast %264 : vector<1x24x6x128xf32> to vector<24x6x128xf32>
      %266 = vector.broadcast %258 : f32 to vector<24x6x128xf32>
      %267 = arith.mulf %265, %266 : vector<24x6x128xf32>
      %268 = arith.addf %256, %267 : vector<24x6x128xf32>
      %269 = arith.index_cast %arg5 : i32 to index
      %c22 = arith.constant 22 : index
      %270 = memref.load %arg2[%269, %c22] : memref<10x25xf32, #tpu.memory_space<smem>>
      %c2_178 = arith.constant 2 : index
      %c4_179 = arith.constant 4 : index
      %c0_180 = arith.constant 0 : index
      %c0_181 = arith.constant 0 : index
      %271 = vector.load %arg1[%c2_178, %c4_179, %c0_180, %c0_181] : memref<4x28x7x128xf32, #tpu.memory_space<vmem>>, vector<1x24x6x128xf32>
      %272 = vector.shape_cast %271 : vector<1x24x6x128xf32> to vector<24x6x128xf32>
      %273 = vector.broadcast %270 : f32 to vector<24x6x128xf32>
      %274 = arith.mulf %272, %273 : vector<24x6x128xf32>
      %275 = arith.addf %263, %274 : vector<24x6x128xf32>
      %c3_182 = arith.constant 3 : index
      %c4_183 = arith.constant 4 : index
      %c0_184 = arith.constant 0 : index
      %c0_185 = arith.constant 0 : index
      %276 = vector.load %arg1[%c3_182, %c4_183, %c0_184, %c0_185] : memref<4x28x7x128xf32, #tpu.memory_space<vmem>>, vector<1x24x6x128xf32>
      %277 = vector.shape_cast %276 : vector<1x24x6x128xf32> to vector<24x6x128xf32>
      %278 = vector.broadcast %270 : f32 to vector<24x6x128xf32>
      %279 = arith.mulf %277, %278 : vector<24x6x128xf32>
      %280 = arith.addf %268, %279 : vector<24x6x128xf32>
      %281 = arith.index_cast %arg5 : i32 to index
      %c23 = arith.constant 23 : index
      %282 = memref.load %arg2[%281, %c23] : memref<10x25xf32, #tpu.memory_space<smem>>
      %c3_186 = arith.constant 3 : index
      %c4_187 = arith.constant 4 : index
      %c0_188 = arith.constant 0 : index
      %c0_189 = arith.constant 0 : index
      %283 = vector.load %arg1[%c3_186, %c4_187, %c0_188, %c0_189] : memref<4x28x7x128xf32, #tpu.memory_space<vmem>>, vector<1x24x6x128xf32>
      %284 = vector.shape_cast %283 : vector<1x24x6x128xf32> to vector<24x6x128xf32>
      %285 = vector.broadcast %282 : f32 to vector<24x6x128xf32>
      %286 = arith.mulf %284, %285 : vector<24x6x128xf32>
      %287 = arith.addf %275, %286 : vector<24x6x128xf32>
      %c0_190 = arith.constant 0 : index
      %c4_191 = arith.constant 4 : index
      %c1_192 = arith.constant 1 : index
      %c0_193 = arith.constant 0 : index
      %288 = vector.load %arg1[%c0_190, %c4_191, %c1_192, %c0_193] : memref<4x28x7x128xf32, #tpu.memory_space<vmem>>, vector<1x24x6x128xf32>
      %289 = vector.shape_cast %288 : vector<1x24x6x128xf32> to vector<24x6x128xf32>
      %290 = vector.broadcast %282 : f32 to vector<24x6x128xf32>
      %291 = arith.mulf %289, %290 : vector<24x6x128xf32>
      %292 = arith.addf %280, %291 : vector<24x6x128xf32>
      %293 = arith.index_cast %arg5 : i32 to index
      %c24 = arith.constant 24 : index
      %294 = memref.load %arg2[%293, %c24] : memref<10x25xf32, #tpu.memory_space<smem>>
      %c0_194 = arith.constant 0 : index
      %c4_195 = arith.constant 4 : index
      %c1_196 = arith.constant 1 : index
      %c0_197 = arith.constant 0 : index
      %295 = vector.load %arg1[%c0_194, %c4_195, %c1_196, %c0_197] : memref<4x28x7x128xf32, #tpu.memory_space<vmem>>, vector<1x24x6x128xf32>
      %296 = vector.shape_cast %295 : vector<1x24x6x128xf32> to vector<24x6x128xf32>
      %297 = vector.broadcast %294 : f32 to vector<24x6x128xf32>
      %298 = arith.mulf %296, %297 : vector<24x6x128xf32>
      %299 = arith.addf %287, %298 : vector<24x6x128xf32>
      %c1_198 = arith.constant 1 : index
      %c4_199 = arith.constant 4 : index
      %c1_200 = arith.constant 1 : index
      %c0_201 = arith.constant 0 : index
      %300 = vector.load %arg1[%c1_198, %c4_199, %c1_200, %c0_201] : memref<4x28x7x128xf32, #tpu.memory_space<vmem>>, vector<1x24x6x128xf32>
      %301 = vector.shape_cast %300 : vector<1x24x6x128xf32> to vector<24x6x128xf32>
      %302 = vector.broadcast %294 : f32 to vector<24x6x128xf32>
      %303 = arith.mulf %301, %302 : vector<24x6x128xf32>
      %304 = arith.addf %292, %303 : vector<24x6x128xf32>
      %305 = arith.maximumf %299, %304 : vector<24x6x128xf32>
      %306 = vector.shape_cast %305 : vector<24x6x128xf32> to vector<12x2x6x128xf32>
      %cst_202 = arith.constant dense<0xFF800000> : vector<12x6x128xf32>
      %307 = vector.multi_reduction <maximumf>, %306, %cst_202 [1] : vector<12x2x6x128xf32> to vector<12x6x128xf32>
      %308 = vector.broadcast %2 : f32 to vector<12x6x128xf32>
      %309 = arith.addf %307, %308 : vector<12x6x128xf32>
      %cst_203 = arith.constant 0.000000e+00 : f32
      %310 = vector.broadcast %cst_203 : f32 to vector<12x6x128xf32>
      %311 = arith.maximumf %309, %310 : vector<12x6x128xf32>
      %c0_204 = arith.constant 0 : index
      %312 = arith.index_cast %arg5 : i32 to index
      %c0_205 = arith.constant 0 : index
      %c0_206 = arith.constant 0 : index
      %c0_207 = arith.constant 0 : index
      %313 = vector.load %arg4[%c0_204, %312, %c0_205, %c0_206, %c0_207] : memref<2x10x12x6x128xf32, #tpu.memory_space<vmem>>, vector<1x1x12x6x128xf32>
      %314 = vector.shape_cast %313 : vector<1x1x12x6x128xf32> to vector<12x6x128xf32>
      %315 = vector.shape_cast %311 : vector<12x6x128xf32> to vector<1x1x12x6x128xf32>
      tpu.vector_store %arg4[%c0_204, %312, %c0_205, %c0_206, %c0_207], %315 {strides = array<i32>} : memref<2x10x12x6x128xf32, #tpu.memory_space<vmem>>, vector<1x1x12x6x128xf32>,
      %cst_208 = arith.constant 0.000000e+00 : f32
      %316 = vector.broadcast %cst_208 : f32 to vector<24x6x128xf32>
      %cst_209 = arith.constant 0.000000e+00 : f32
      %317 = vector.broadcast %cst_209 : f32 to vector<24x6x128xf32>
      %318 = arith.index_cast %arg5 : i32 to index
      %c0_210 = arith.constant 0 : index
      %319 = memref.load %arg2[%318, %c0_210] : memref<10x25xf32, #tpu.memory_space<smem>>
      %c2_211 = arith.constant 2 : index
      %c0_212 = arith.constant 0 : index
      %c0_213 = arith.constant 0 : index
      %c0_214 = arith.constant 0 : index
      %320 = vector.load %arg1[%c2_211, %c0_212, %c0_213, %c0_214] : memref<4x28x7x128xf32, #tpu.memory_space<vmem>>, vector<1x24x6x128xf32>
      %321 = vector.shape_cast %320 : vector<1x24x6x128xf32> to vector<24x6x128xf32>
      %322 = vector.broadcast %319 : f32 to vector<24x6x128xf32>
      %323 = arith.mulf %321, %322 : vector<24x6x128xf32>
      %324 = arith.addf %316, %323 : vector<24x6x128xf32>
      %c3_215 = arith.constant 3 : index
      %c0_216 = arith.constant 0 : index
      %c0_217 = arith.constant 0 : index
      %c0_218 = arith.constant 0 : index
      %325 = vector.load %arg1[%c3_215, %c0_216, %c0_217, %c0_218] : memref<4x28x7x128xf32, #tpu.memory_space<vmem>>, vector<1x24x6x128xf32>
      %326 = vector.shape_cast %325 : vector<1x24x6x128xf32> to vector<24x6x128xf32>
      %327 = vector.broadcast %319 : f32 to vector<24x6x128xf32>
      %328 = arith.mulf %326, %327 : vector<24x6x128xf32>
      %329 = arith.addf %317, %328 : vector<24x6x128xf32>
      %330 = arith.index_cast %arg5 : i32 to index
      %c1_219 = arith.constant 1 : index
      %331 = memref.load %arg2[%330, %c1_219] : memref<10x25xf32, #tpu.memory_space<smem>>
      %c3_220 = arith.constant 3 : index
      %c0_221 = arith.constant 0 : index
      %c0_222 = arith.constant 0 : index
      %c0_223 = arith.constant 0 : index
      %332 = vector.load %arg1[%c3_220, %c0_221, %c0_222, %c0_223] : memref<4x28x7x128xf32, #tpu.memory_space<vmem>>, vector<1x24x6x128xf32>
      %333 = vector.shape_cast %332 : vector<1x24x6x128xf32> to vector<24x6x128xf32>
      %334 = vector.broadcast %331 : f32 to vector<24x6x128xf32>
      %335 = arith.mulf %333, %334 : vector<24x6x128xf32>
      %336 = arith.addf %324, %335 : vector<24x6x128xf32>
      %c0_224 = arith.constant 0 : index
      %c0_225 = arith.constant 0 : index
      %c1_226 = arith.constant 1 : index
      %c0_227 = arith.constant 0 : index
      %337 = vector.load %arg1[%c0_224, %c0_225, %c1_226, %c0_227] : memref<4x28x7x128xf32, #tpu.memory_space<vmem>>, vector<1x24x6x128xf32>
      %338 = vector.shape_cast %337 : vector<1x24x6x128xf32> to vector<24x6x128xf32>
      %339 = vector.broadcast %331 : f32 to vector<24x6x128xf32>
      %340 = arith.mulf %338, %339 : vector<24x6x128xf32>
      %341 = arith.addf %329, %340 : vector<24x6x128xf32>
      %342 = arith.index_cast %arg5 : i32 to index
      %c2_228 = arith.constant 2 : index
      %343 = memref.load %arg2[%342, %c2_228] : memref<10x25xf32, #tpu.memory_space<smem>>
      %c0_229 = arith.constant 0 : index
      %c0_230 = arith.constant 0 : index
      %c1_231 = arith.constant 1 : index
      %c0_232 = arith.constant 0 : index
      %344 = vector.load %arg1[%c0_229, %c0_230, %c1_231, %c0_232] : memref<4x28x7x128xf32, #tpu.memory_space<vmem>>, vector<1x24x6x128xf32>
      %345 = vector.shape_cast %344 : vector<1x24x6x128xf32> to vector<24x6x128xf32>
      %346 = vector.broadcast %343 : f32 to vector<24x6x128xf32>
      %347 = arith.mulf %345, %346 : vector<24x6x128xf32>
      %348 = arith.addf %336, %347 : vector<24x6x128xf32>
      %c1_233 = arith.constant 1 : index
      %c0_234 = arith.constant 0 : index
      %c1_235 = arith.constant 1 : index
      %c0_236 = arith.constant 0 : index
      %349 = vector.load %arg1[%c1_233, %c0_234, %c1_235, %c0_236] : memref<4x28x7x128xf32, #tpu.memory_space<vmem>>, vector<1x24x6x128xf32>
      %350 = vector.shape_cast %349 : vector<1x24x6x128xf32> to vector<24x6x128xf32>
      %351 = vector.broadcast %343 : f32 to vector<24x6x128xf32>
      %352 = arith.mulf %350, %351 : vector<24x6x128xf32>
      %353 = arith.addf %341, %352 : vector<24x6x128xf32>
      %354 = arith.index_cast %arg5 : i32 to index
      %c3_237 = arith.constant 3 : index
      %355 = memref.load %arg2[%354, %c3_237] : memref<10x25xf32, #tpu.memory_space<smem>>
      %c1_238 = arith.constant 1 : index
      %c0_239 = arith.constant 0 : index
      %c1_240 = arith.constant 1 : index
      %c0_241 = arith.constant 0 : index
      %356 = vector.load %arg1[%c1_238, %c0_239, %c1_240, %c0_241] : memref<4x28x7x128xf32, #tpu.memory_space<vmem>>, vector<1x24x6x128xf32>
      %357 = vector.shape_cast %356 : vector<1x24x6x128xf32> to vector<24x6x128xf32>
      %358 = vector.broadcast %355 : f32 to vector<24x6x128xf32>
      %359 = arith.mulf %357, %358 : vector<24x6x128xf32>
      %360 = arith.addf %348, %359 : vector<24x6x128xf32>
      %c2_242 = arith.constant 2 : index
      %c0_243 = arith.constant 0 : index
      %c1_244 = arith.constant 1 : index
      %c0_245 = arith.constant 0 : index
      %361 = vector.load %arg1[%c2_242, %c0_243, %c1_244, %c0_245] : memref<4x28x7x128xf32, #tpu.memory_space<vmem>>, vector<1x24x6x128xf32>
      %362 = vector.shape_cast %361 : vector<1x24x6x128xf32> to vector<24x6x128xf32>
      %363 = vector.broadcast %355 : f32 to vector<24x6x128xf32>
      %364 = arith.mulf %362, %363 : vector<24x6x128xf32>
      %365 = arith.addf %353, %364 : vector<24x6x128xf32>
      %366 = arith.index_cast %arg5 : i32 to index
      %c4_246 = arith.constant 4 : index
      %367 = memref.load %arg2[%366, %c4_246] : memref<10x25xf32, #tpu.memory_space<smem>>
      %c2_247 = arith.constant 2 : index
      %c0_248 = arith.constant 0 : index
      %c1_249 = arith.constant 1 : index
      %c0_250 = arith.constant 0 : index
      %368 = vector.load %arg1[%c2_247, %c0_248, %c1_249, %c0_250] : memref<4x28x7x128xf32, #tpu.memory_space<vmem>>, vector<1x24x6x128xf32>
      %369 = vector.shape_cast %368 : vector<1x24x6x128xf32> to vector<24x6x128xf32>
      %370 = vector.broadcast %367 : f32 to vector<24x6x128xf32>
      %371 = arith.mulf %369, %370 : vector<24x6x128xf32>
      %372 = arith.addf %360, %371 : vector<24x6x128xf32>
      %c3_251 = arith.constant 3 : index
      %c0_252 = arith.constant 0 : index
      %c1_253 = arith.constant 1 : index
      %c0_254 = arith.constant 0 : index
      %373 = vector.load %arg1[%c3_251, %c0_252, %c1_253, %c0_254] : memref<4x28x7x128xf32, #tpu.memory_space<vmem>>, vector<1x24x6x128xf32>
      %374 = vector.shape_cast %373 : vector<1x24x6x128xf32> to vector<24x6x128xf32>
      %375 = vector.broadcast %367 : f32 to vector<24x6x128xf32>
      %376 = arith.mulf %374, %375 : vector<24x6x128xf32>
      %377 = arith.addf %365, %376 : vector<24x6x128xf32>
      %378 = arith.index_cast %arg5 : i32 to index
      %c5_255 = arith.constant 5 : index
      %379 = memref.load %arg2[%378, %c5_255] : memref<10x25xf32, #tpu.memory_space<smem>>
      %c2_256 = arith.constant 2 : index
      %c1_257 = arith.constant 1 : index
      %c0_258 = arith.constant 0 : index
      %c0_259 = arith.constant 0 : index
      %380 = vector.load %arg1[%c2_256, %c1_257, %c0_258, %c0_259] : memref<4x28x7x128xf32, #tpu.memory_space<vmem>>, vector<1x24x6x128xf32>
      %381 = vector.shape_cast %380 : vector<1x24x6x128xf32> to vector<24x6x128xf32>
      %382 = vector.broadcast %379 : f32 to vector<24x6x128xf32>
      %383 = arith.mulf %381, %382 : vector<24x6x128xf32>
      %384 = arith.addf %372, %383 : vector<24x6x128xf32>
      %c3_260 = arith.constant 3 : index
      %c1_261 = arith.constant 1 : index
      %c0_262 = arith.constant 0 : index
      %c0_263 = arith.constant 0 : index
      %385 = vector.load %arg1[%c3_260, %c1_261, %c0_262, %c0_263] : memref<4x28x7x128xf32, #tpu.memory_space<vmem>>, vector<1x24x6x128xf32>
      %386 = vector.shape_cast %385 : vector<1x24x6x128xf32> to vector<24x6x128xf32>
      %387 = vector.broadcast %379 : f32 to vector<24x6x128xf32>
      %388 = arith.mulf %386, %387 : vector<24x6x128xf32>
      %389 = arith.addf %377, %388 : vector<24x6x128xf32>
      %390 = arith.index_cast %arg5 : i32 to index
      %c6_264 = arith.constant 6 : index
      %391 = memref.load %arg2[%390, %c6_264] : memref<10x25xf32, #tpu.memory_space<smem>>
      %c3_265 = arith.constant 3 : index
      %c1_266 = arith.constant 1 : index
      %c0_267 = arith.constant 0 : index
      %c0_268 = arith.constant 0 : index
      %392 = vector.load %arg1[%c3_265, %c1_266, %c0_267, %c0_268] : memref<4x28x7x128xf32, #tpu.memory_space<vmem>>, vector<1x24x6x128xf32>
      %393 = vector.shape_cast %392 : vector<1x24x6x128xf32> to vector<24x6x128xf32>
      %394 = vector.broadcast %391 : f32 to vector<24x6x128xf32>
      %395 = arith.mulf %393, %394 : vector<24x6x128xf32>
      %396 = arith.addf %384, %395 : vector<24x6x128xf32>
      %c0_269 = arith.constant 0 : index
      %c1_270 = arith.constant 1 : index
      %c1_271 = arith.constant 1 : index
      %c0_272 = arith.constant 0 : index
      %397 = vector.load %arg1[%c0_269, %c1_270, %c1_271, %c0_272] : memref<4x28x7x128xf32, #tpu.memory_space<vmem>>, vector<1x24x6x128xf32>
      %398 = vector.shape_cast %397 : vector<1x24x6x128xf32> to vector<24x6x128xf32>
      %399 = vector.broadcast %391 : f32 to vector<24x6x128xf32>
      %400 = arith.mulf %398, %399 : vector<24x6x128xf32>
      %401 = arith.addf %389, %400 : vector<24x6x128xf32>
      %402 = arith.index_cast %arg5 : i32 to index
      %c7_273 = arith.constant 7 : index
      %403 = memref.load %arg2[%402, %c7_273] : memref<10x25xf32, #tpu.memory_space<smem>>
      %c0_274 = arith.constant 0 : index
      %c1_275 = arith.constant 1 : index
      %c1_276 = arith.constant 1 : index
      %c0_277 = arith.constant 0 : index
      %404 = vector.load %arg1[%c0_274, %c1_275, %c1_276, %c0_277] : memref<4x28x7x128xf32, #tpu.memory_space<vmem>>, vector<1x24x6x128xf32>
      %405 = vector.shape_cast %404 : vector<1x24x6x128xf32> to vector<24x6x128xf32>
      %406 = vector.broadcast %403 : f32 to vector<24x6x128xf32>
      %407 = arith.mulf %405, %406 : vector<24x6x128xf32>
      %408 = arith.addf %396, %407 : vector<24x6x128xf32>
      %c1_278 = arith.constant 1 : index
      %c1_279 = arith.constant 1 : index
      %c1_280 = arith.constant 1 : index
      %c0_281 = arith.constant 0 : index
      %409 = vector.load %arg1[%c1_278, %c1_279, %c1_280, %c0_281] : memref<4x28x7x128xf32, #tpu.memory_space<vmem>>, vector<1x24x6x128xf32>
      %410 = vector.shape_cast %409 : vector<1x24x6x128xf32> to vector<24x6x128xf32>
      %411 = vector.broadcast %403 : f32 to vector<24x6x128xf32>
      %412 = arith.mulf %410, %411 : vector<24x6x128xf32>
      %413 = arith.addf %401, %412 : vector<24x6x128xf32>
      %414 = arith.index_cast %arg5 : i32 to index
      %c8_282 = arith.constant 8 : index
      %415 = memref.load %arg2[%414, %c8_282] : memref<10x25xf32, #tpu.memory_space<smem>>
      %c1_283 = arith.constant 1 : index
      %c1_284 = arith.constant 1 : index
      %c1_285 = arith.constant 1 : index
      %c0_286 = arith.constant 0 : index
      %416 = vector.load %arg1[%c1_283, %c1_284, %c1_285, %c0_286] : memref<4x28x7x128xf32, #tpu.memory_space<vmem>>, vector<1x24x6x128xf32>
      %417 = vector.shape_cast %416 : vector<1x24x6x128xf32> to vector<24x6x128xf32>
      %418 = vector.broadcast %415 : f32 to vector<24x6x128xf32>
      %419 = arith.mulf %417, %418 : vector<24x6x128xf32>
      %420 = arith.addf %408, %419 : vector<24x6x128xf32>
      %c2_287 = arith.constant 2 : index
      %c1_288 = arith.constant 1 : index
      %c1_289 = arith.constant 1 : index
      %c0_290 = arith.constant 0 : index
      %421 = vector.load %arg1[%c2_287, %c1_288, %c1_289, %c0_290] : memref<4x28x7x128xf32, #tpu.memory_space<vmem>>, vector<1x24x6x128xf32>
      %422 = vector.shape_cast %421 : vector<1x24x6x128xf32> to vector<24x6x128xf32>
      %423 = vector.broadcast %415 : f32 to vector<24x6x128xf32>
      %424 = arith.mulf %422, %423 : vector<24x6x128xf32>
      %425 = arith.addf %413, %424 : vector<24x6x128xf32>
      %426 = arith.index_cast %arg5 : i32 to index
      %c9_291 = arith.constant 9 : index
      %427 = memref.load %arg2[%426, %c9_291] : memref<10x25xf32, #tpu.memory_space<smem>>
      %c2_292 = arith.constant 2 : index
      %c1_293 = arith.constant 1 : index
      %c1_294 = arith.constant 1 : index
      %c0_295 = arith.constant 0 : index
      %428 = vector.load %arg1[%c2_292, %c1_293, %c1_294, %c0_295] : memref<4x28x7x128xf32, #tpu.memory_space<vmem>>, vector<1x24x6x128xf32>
      %429 = vector.shape_cast %428 : vector<1x24x6x128xf32> to vector<24x6x128xf32>
      %430 = vector.broadcast %427 : f32 to vector<24x6x128xf32>
      %431 = arith.mulf %429, %430 : vector<24x6x128xf32>
      %432 = arith.addf %420, %431 : vector<24x6x128xf32>
      %c3_296 = arith.constant 3 : index
      %c1_297 = arith.constant 1 : index
      %c1_298 = arith.constant 1 : index
      %c0_299 = arith.constant 0 : index
      %433 = vector.load %arg1[%c3_296, %c1_297, %c1_298, %c0_299] : memref<4x28x7x128xf32, #tpu.memory_space<vmem>>, vector<1x24x6x128xf32>
      %434 = vector.shape_cast %433 : vector<1x24x6x128xf32> to vector<24x6x128xf32>
      %435 = vector.broadcast %427 : f32 to vector<24x6x128xf32>
      %436 = arith.mulf %434, %435 : vector<24x6x128xf32>
      %437 = arith.addf %425, %436 : vector<24x6x128xf32>
      %438 = arith.index_cast %arg5 : i32 to index
      %c10_300 = arith.constant 10 : index
      %439 = memref.load %arg2[%438, %c10_300] : memref<10x25xf32, #tpu.memory_space<smem>>
      %c2_301 = arith.constant 2 : index
      %c2_302 = arith.constant 2 : index
      %c0_303 = arith.constant 0 : index
      %c0_304 = arith.constant 0 : index
      %440 = vector.load %arg1[%c2_301, %c2_302, %c0_303, %c0_304] : memref<4x28x7x128xf32, #tpu.memory_space<vmem>>, vector<1x24x6x128xf32>
      %441 = vector.shape_cast %440 : vector<1x24x6x128xf32> to vector<24x6x128xf32>
      %442 = vector.broadcast %439 : f32 to vector<24x6x128xf32>
      %443 = arith.mulf %441, %442 : vector<24x6x128xf32>
      %444 = arith.addf %432, %443 : vector<24x6x128xf32>
      %c3_305 = arith.constant 3 : index
      %c2_306 = arith.constant 2 : index
      %c0_307 = arith.constant 0 : index
      %c0_308 = arith.constant 0 : index
      %445 = vector.load %arg1[%c3_305, %c2_306, %c0_307, %c0_308] : memref<4x28x7x128xf32, #tpu.memory_space<vmem>>, vector<1x24x6x128xf32>
      %446 = vector.shape_cast %445 : vector<1x24x6x128xf32> to vector<24x6x128xf32>
      %447 = vector.broadcast %439 : f32 to vector<24x6x128xf32>
      %448 = arith.mulf %446, %447 : vector<24x6x128xf32>
      %449 = arith.addf %437, %448 : vector<24x6x128xf32>
      %450 = arith.index_cast %arg5 : i32 to index
      %c11_309 = arith.constant 11 : index
      %451 = memref.load %arg2[%450, %c11_309] : memref<10x25xf32, #tpu.memory_space<smem>>
      %c3_310 = arith.constant 3 : index
      %c2_311 = arith.constant 2 : index
      %c0_312 = arith.constant 0 : index
      %c0_313 = arith.constant 0 : index
      %452 = vector.load %arg1[%c3_310, %c2_311, %c0_312, %c0_313] : memref<4x28x7x128xf32, #tpu.memory_space<vmem>>, vector<1x24x6x128xf32>
      %453 = vector.shape_cast %452 : vector<1x24x6x128xf32> to vector<24x6x128xf32>
      %454 = vector.broadcast %451 : f32 to vector<24x6x128xf32>
      %455 = arith.mulf %453, %454 : vector<24x6x128xf32>
      %456 = arith.addf %444, %455 : vector<24x6x128xf32>
      %c0_314 = arith.constant 0 : index
      %c2_315 = arith.constant 2 : index
      %c1_316 = arith.constant 1 : index
      %c0_317 = arith.constant 0 : index
      %457 = vector.load %arg1[%c0_314, %c2_315, %c1_316, %c0_317] : memref<4x28x7x128xf32, #tpu.memory_space<vmem>>, vector<1x24x6x128xf32>
      %458 = vector.shape_cast %457 : vector<1x24x6x128xf32> to vector<24x6x128xf32>
      %459 = vector.broadcast %451 : f32 to vector<24x6x128xf32>
      %460 = arith.mulf %458, %459 : vector<24x6x128xf32>
      %461 = arith.addf %449, %460 : vector<24x6x128xf32>
      %462 = arith.index_cast %arg5 : i32 to index
      %c12_318 = arith.constant 12 : index
      %463 = memref.load %arg2[%462, %c12_318] : memref<10x25xf32, #tpu.memory_space<smem>>
      %c0_319 = arith.constant 0 : index
      %c2_320 = arith.constant 2 : index
      %c1_321 = arith.constant 1 : index
      %c0_322 = arith.constant 0 : index
      %464 = vector.load %arg1[%c0_319, %c2_320, %c1_321, %c0_322] : memref<4x28x7x128xf32, #tpu.memory_space<vmem>>, vector<1x24x6x128xf32>
      %465 = vector.shape_cast %464 : vector<1x24x6x128xf32> to vector<24x6x128xf32>
      %466 = vector.broadcast %463 : f32 to vector<24x6x128xf32>
      %467 = arith.mulf %465, %466 : vector<24x6x128xf32>
      %468 = arith.addf %456, %467 : vector<24x6x128xf32>
      %c1_323 = arith.constant 1 : index
      %c2_324 = arith.constant 2 : index
      %c1_325 = arith.constant 1 : index
      %c0_326 = arith.constant 0 : index
      %469 = vector.load %arg1[%c1_323, %c2_324, %c1_325, %c0_326] : memref<4x28x7x128xf32, #tpu.memory_space<vmem>>, vector<1x24x6x128xf32>
      %470 = vector.shape_cast %469 : vector<1x24x6x128xf32> to vector<24x6x128xf32>
      %471 = vector.broadcast %463 : f32 to vector<24x6x128xf32>
      %472 = arith.mulf %470, %471 : vector<24x6x128xf32>
      %473 = arith.addf %461, %472 : vector<24x6x128xf32>
      %474 = arith.index_cast %arg5 : i32 to index
      %c13_327 = arith.constant 13 : index
      %475 = memref.load %arg2[%474, %c13_327] : memref<10x25xf32, #tpu.memory_space<smem>>
      %c1_328 = arith.constant 1 : index
      %c2_329 = arith.constant 2 : index
      %c1_330 = arith.constant 1 : index
      %c0_331 = arith.constant 0 : index
      %476 = vector.load %arg1[%c1_328, %c2_329, %c1_330, %c0_331] : memref<4x28x7x128xf32, #tpu.memory_space<vmem>>, vector<1x24x6x128xf32>
      %477 = vector.shape_cast %476 : vector<1x24x6x128xf32> to vector<24x6x128xf32>
      %478 = vector.broadcast %475 : f32 to vector<24x6x128xf32>
      %479 = arith.mulf %477, %478 : vector<24x6x128xf32>
      %480 = arith.addf %468, %479 : vector<24x6x128xf32>
      %c2_332 = arith.constant 2 : index
      %c2_333 = arith.constant 2 : index
      %c1_334 = arith.constant 1 : index
      %c0_335 = arith.constant 0 : index
      %481 = vector.load %arg1[%c2_332, %c2_333, %c1_334, %c0_335] : memref<4x28x7x128xf32, #tpu.memory_space<vmem>>, vector<1x24x6x128xf32>
      %482 = vector.shape_cast %481 : vector<1x24x6x128xf32> to vector<24x6x128xf32>
      %483 = vector.broadcast %475 : f32 to vector<24x6x128xf32>
      %484 = arith.mulf %482, %483 : vector<24x6x128xf32>
      %485 = arith.addf %473, %484 : vector<24x6x128xf32>
      %486 = arith.index_cast %arg5 : i32 to index
      %c14_336 = arith.constant 14 : index
      %487 = memref.load %arg2[%486, %c14_336] : memref<10x25xf32, #tpu.memory_space<smem>>
      %c2_337 = arith.constant 2 : index
      %c2_338 = arith.constant 2 : index
      %c1_339 = arith.constant 1 : index
      %c0_340 = arith.constant 0 : index
      %488 = vector.load %arg1[%c2_337, %c2_338, %c1_339, %c0_340] : memref<4x28x7x128xf32, #tpu.memory_space<vmem>>, vector<1x24x6x128xf32>
      %489 = vector.shape_cast %488 : vector<1x24x6x128xf32> to vector<24x6x128xf32>
      %490 = vector.broadcast %487 : f32 to vector<24x6x128xf32>
      %491 = arith.mulf %489, %490 : vector<24x6x128xf32>
      %492 = arith.addf %480, %491 : vector<24x6x128xf32>
      %c3_341 = arith.constant 3 : index
      %c2_342 = arith.constant 2 : index
      %c1_343 = arith.constant 1 : index
      %c0_344 = arith.constant 0 : index
      %493 = vector.load %arg1[%c3_341, %c2_342, %c1_343, %c0_344] : memref<4x28x7x128xf32, #tpu.memory_space<vmem>>, vector<1x24x6x128xf32>
      %494 = vector.shape_cast %493 : vector<1x24x6x128xf32> to vector<24x6x128xf32>
      %495 = vector.broadcast %487 : f32 to vector<24x6x128xf32>
      %496 = arith.mulf %494, %495 : vector<24x6x128xf32>
      %497 = arith.addf %485, %496 : vector<24x6x128xf32>
      %498 = arith.index_cast %arg5 : i32 to index
      %c15_345 = arith.constant 15 : index
      %499 = memref.load %arg2[%498, %c15_345] : memref<10x25xf32, #tpu.memory_space<smem>>
      %c2_346 = arith.constant 2 : index
      %c3_347 = arith.constant 3 : index
      %c0_348 = arith.constant 0 : index
      %c0_349 = arith.constant 0 : index
      %500 = vector.load %arg1[%c2_346, %c3_347, %c0_348, %c0_349] : memref<4x28x7x128xf32, #tpu.memory_space<vmem>>, vector<1x24x6x128xf32>
      %501 = vector.shape_cast %500 : vector<1x24x6x128xf32> to vector<24x6x128xf32>
      %502 = vector.broadcast %499 : f32 to vector<24x6x128xf32>
      %503 = arith.mulf %501, %502 : vector<24x6x128xf32>
      %504 = arith.addf %492, %503 : vector<24x6x128xf32>
      %c3_350 = arith.constant 3 : index
      %c3_351 = arith.constant 3 : index
      %c0_352 = arith.constant 0 : index
      %c0_353 = arith.constant 0 : index
      %505 = vector.load %arg1[%c3_350, %c3_351, %c0_352, %c0_353] : memref<4x28x7x128xf32, #tpu.memory_space<vmem>>, vector<1x24x6x128xf32>
      %506 = vector.shape_cast %505 : vector<1x24x6x128xf32> to vector<24x6x128xf32>
      %507 = vector.broadcast %499 : f32 to vector<24x6x128xf32>
      %508 = arith.mulf %506, %507 : vector<24x6x128xf32>
      %509 = arith.addf %497, %508 : vector<24x6x128xf32>
      %510 = arith.index_cast %arg5 : i32 to index
      %c16_354 = arith.constant 16 : index
      %511 = memref.load %arg2[%510, %c16_354] : memref<10x25xf32, #tpu.memory_space<smem>>
      %c3_355 = arith.constant 3 : index
      %c3_356 = arith.constant 3 : index
      %c0_357 = arith.constant 0 : index
      %c0_358 = arith.constant 0 : index
      %512 = vector.load %arg1[%c3_355, %c3_356, %c0_357, %c0_358] : memref<4x28x7x128xf32, #tpu.memory_space<vmem>>, vector<1x24x6x128xf32>
      %513 = vector.shape_cast %512 : vector<1x24x6x128xf32> to vector<24x6x128xf32>
      %514 = vector.broadcast %511 : f32 to vector<24x6x128xf32>
      %515 = arith.mulf %513, %514 : vector<24x6x128xf32>
      %516 = arith.addf %504, %515 : vector<24x6x128xf32>
      %c0_359 = arith.constant 0 : index
      %c3_360 = arith.constant 3 : index
      %c1_361 = arith.constant 1 : index
      %c0_362 = arith.constant 0 : index
      %517 = vector.load %arg1[%c0_359, %c3_360, %c1_361, %c0_362] : memref<4x28x7x128xf32, #tpu.memory_space<vmem>>, vector<1x24x6x128xf32>
      %518 = vector.shape_cast %517 : vector<1x24x6x128xf32> to vector<24x6x128xf32>
      %519 = vector.broadcast %511 : f32 to vector<24x6x128xf32>
      %520 = arith.mulf %518, %519 : vector<24x6x128xf32>
      %521 = arith.addf %509, %520 : vector<24x6x128xf32>
      %522 = arith.index_cast %arg5 : i32 to index
      %c17_363 = arith.constant 17 : index
      %523 = memref.load %arg2[%522, %c17_363] : memref<10x25xf32, #tpu.memory_space<smem>>
      %c0_364 = arith.constant 0 : index
      %c3_365 = arith.constant 3 : index
      %c1_366 = arith.constant 1 : index
      %c0_367 = arith.constant 0 : index
      %524 = vector.load %arg1[%c0_364, %c3_365, %c1_366, %c0_367] : memref<4x28x7x128xf32, #tpu.memory_space<vmem>>, vector<1x24x6x128xf32>
      %525 = vector.shape_cast %524 : vector<1x24x6x128xf32> to vector<24x6x128xf32>
      %526 = vector.broadcast %523 : f32 to vector<24x6x128xf32>
      %527 = arith.mulf %525, %526 : vector<24x6x128xf32>
      %528 = arith.addf %516, %527 : vector<24x6x128xf32>
      %c1_368 = arith.constant 1 : index
      %c3_369 = arith.constant 3 : index
      %c1_370 = arith.constant 1 : index
      %c0_371 = arith.constant 0 : index
      %529 = vector.load %arg1[%c1_368, %c3_369, %c1_370, %c0_371] : memref<4x28x7x128xf32, #tpu.memory_space<vmem>>, vector<1x24x6x128xf32>
      %530 = vector.shape_cast %529 : vector<1x24x6x128xf32> to vector<24x6x128xf32>
      %531 = vector.broadcast %523 : f32 to vector<24x6x128xf32>
      %532 = arith.mulf %530, %531 : vector<24x6x128xf32>
      %533 = arith.addf %521, %532 : vector<24x6x128xf32>
      %534 = arith.index_cast %arg5 : i32 to index
      %c18_372 = arith.constant 18 : index
      %535 = memref.load %arg2[%534, %c18_372] : memref<10x25xf32, #tpu.memory_space<smem>>
      %c1_373 = arith.constant 1 : index
      %c3_374 = arith.constant 3 : index
      %c1_375 = arith.constant 1 : index
      %c0_376 = arith.constant 0 : index
      %536 = vector.load %arg1[%c1_373, %c3_374, %c1_375, %c0_376] : memref<4x28x7x128xf32, #tpu.memory_space<vmem>>, vector<1x24x6x128xf32>
      %537 = vector.shape_cast %536 : vector<1x24x6x128xf32> to vector<24x6x128xf32>
      %538 = vector.broadcast %535 : f32 to vector<24x6x128xf32>
      %539 = arith.mulf %537, %538 : vector<24x6x128xf32>
      %540 = arith.addf %528, %539 : vector<24x6x128xf32>
      %c2_377 = arith.constant 2 : index
      %c3_378 = arith.constant 3 : index
      %c1_379 = arith.constant 1 : index
      %c0_380 = arith.constant 0 : index
      %541 = vector.load %arg1[%c2_377, %c3_378, %c1_379, %c0_380] : memref<4x28x7x128xf32, #tpu.memory_space<vmem>>, vector<1x24x6x128xf32>
      %542 = vector.shape_cast %541 : vector<1x24x6x128xf32> to vector<24x6x128xf32>
      %543 = vector.broadcast %535 : f32 to vector<24x6x128xf32>
      %544 = arith.mulf %542, %543 : vector<24x6x128xf32>
      %545 = arith.addf %533, %544 : vector<24x6x128xf32>
      %546 = arith.index_cast %arg5 : i32 to index
      %c19_381 = arith.constant 19 : index
      %547 = memref.load %arg2[%546, %c19_381] : memref<10x25xf32, #tpu.memory_space<smem>>
      %c2_382 = arith.constant 2 : index
      %c3_383 = arith.constant 3 : index
      %c1_384 = arith.constant 1 : index
      %c0_385 = arith.constant 0 : index
      %548 = vector.load %arg1[%c2_382, %c3_383, %c1_384, %c0_385] : memref<4x28x7x128xf32, #tpu.memory_space<vmem>>, vector<1x24x6x128xf32>
      %549 = vector.shape_cast %548 : vector<1x24x6x128xf32> to vector<24x6x128xf32>
      %550 = vector.broadcast %547 : f32 to vector<24x6x128xf32>
      %551 = arith.mulf %549, %550 : vector<24x6x128xf32>
      %552 = arith.addf %540, %551 : vector<24x6x128xf32>
      %c3_386 = arith.constant 3 : index
      %c3_387 = arith.constant 3 : index
      %c1_388 = arith.constant 1 : index
      %c0_389 = arith.constant 0 : index
      %553 = vector.load %arg1[%c3_386, %c3_387, %c1_388, %c0_389] : memref<4x28x7x128xf32, #tpu.memory_space<vmem>>, vector<1x24x6x128xf32>
      %554 = vector.shape_cast %553 : vector<1x24x6x128xf32> to vector<24x6x128xf32>
      %555 = vector.broadcast %547 : f32 to vector<24x6x128xf32>
      %556 = arith.mulf %554, %555 : vector<24x6x128xf32>
      %557 = arith.addf %545, %556 : vector<24x6x128xf32>
      %558 = arith.index_cast %arg5 : i32 to index
      %c20_390 = arith.constant 20 : index
      %559 = memref.load %arg2[%558, %c20_390] : memref<10x25xf32, #tpu.memory_space<smem>>
      %c2_391 = arith.constant 2 : index
      %c4_392 = arith.constant 4 : index
      %c0_393 = arith.constant 0 : index
      %c0_394 = arith.constant 0 : index
      %560 = vector.load %arg1[%c2_391, %c4_392, %c0_393, %c0_394] : memref<4x28x7x128xf32, #tpu.memory_space<vmem>>, vector<1x24x6x128xf32>
      %561 = vector.shape_cast %560 : vector<1x24x6x128xf32> to vector<24x6x128xf32>
      %562 = vector.broadcast %559 : f32 to vector<24x6x128xf32>
      %563 = arith.mulf %561, %562 : vector<24x6x128xf32>
      %564 = arith.addf %552, %563 : vector<24x6x128xf32>
      %c3_395 = arith.constant 3 : index
      %c4_396 = arith.constant 4 : index
      %c0_397 = arith.constant 0 : index
      %c0_398 = arith.constant 0 : index
      %565 = vector.load %arg1[%c3_395, %c4_396, %c0_397, %c0_398] : memref<4x28x7x128xf32, #tpu.memory_space<vmem>>, vector<1x24x6x128xf32>
      %566 = vector.shape_cast %565 : vector<1x24x6x128xf32> to vector<24x6x128xf32>
      %567 = vector.broadcast %559 : f32 to vector<24x6x128xf32>
      %568 = arith.mulf %566, %567 : vector<24x6x128xf32>
      %569 = arith.addf %557, %568 : vector<24x6x128xf32>
      %570 = arith.index_cast %arg5 : i32 to index
      %c21_399 = arith.constant 21 : index
      %571 = memref.load %arg2[%570, %c21_399] : memref<10x25xf32, #tpu.memory_space<smem>>
      %c3_400 = arith.constant 3 : index
      %c4_401 = arith.constant 4 : index
      %c0_402 = arith.constant 0 : index
      %c0_403 = arith.constant 0 : index
      %572 = vector.load %arg1[%c3_400, %c4_401, %c0_402, %c0_403] : memref<4x28x7x128xf32, #tpu.memory_space<vmem>>, vector<1x24x6x128xf32>
      %573 = vector.shape_cast %572 : vector<1x24x6x128xf32> to vector<24x6x128xf32>
      %574 = vector.broadcast %571 : f32 to vector<24x6x128xf32>
      %575 = arith.mulf %573, %574 : vector<24x6x128xf32>
      %576 = arith.addf %564, %575 : vector<24x6x128xf32>
      %c0_404 = arith.constant 0 : index
      %c4_405 = arith.constant 4 : index
      %c1_406 = arith.constant 1 : index
      %c0_407 = arith.constant 0 : index
      %577 = vector.load %arg1[%c0_404, %c4_405, %c1_406, %c0_407] : memref<4x28x7x128xf32, #tpu.memory_space<vmem>>, vector<1x24x6x128xf32>
      %578 = vector.shape_cast %577 : vector<1x24x6x128xf32> to vector<24x6x128xf32>
      %579 = vector.broadcast %571 : f32 to vector<24x6x128xf32>
      %580 = arith.mulf %578, %579 : vector<24x6x128xf32>
      %581 = arith.addf %569, %580 : vector<24x6x128xf32>
      %582 = arith.index_cast %arg5 : i32 to index
      %c22_408 = arith.constant 22 : index
      %583 = memref.load %arg2[%582, %c22_408] : memref<10x25xf32, #tpu.memory_space<smem>>
      %c0_409 = arith.constant 0 : index
      %c4_410 = arith.constant 4 : index
      %c1_411 = arith.constant 1 : index
      %c0_412 = arith.constant 0 : index
      %584 = vector.load %arg1[%c0_409, %c4_410, %c1_411, %c0_412] : memref<4x28x7x128xf32, #tpu.memory_space<vmem>>, vector<1x24x6x128xf32>
      %585 = vector.shape_cast %584 : vector<1x24x6x128xf32> to vector<24x6x128xf32>
      %586 = vector.broadcast %583 : f32 to vector<24x6x128xf32>
      %587 = arith.mulf %585, %586 : vector<24x6x128xf32>
      %588 = arith.addf %576, %587 : vector<24x6x128xf32>
      %c1_413 = arith.constant 1 : index
      %c4_414 = arith.constant 4 : index
      %c1_415 = arith.constant 1 : index
      %c0_416 = arith.constant 0 : index
      %589 = vector.load %arg1[%c1_413, %c4_414, %c1_415, %c0_416] : memref<4x28x7x128xf32, #tpu.memory_space<vmem>>, vector<1x24x6x128xf32>
      %590 = vector.shape_cast %589 : vector<1x24x6x128xf32> to vector<24x6x128xf32>
      %591 = vector.broadcast %583 : f32 to vector<24x6x128xf32>
      %592 = arith.mulf %590, %591 : vector<24x6x128xf32>
      %593 = arith.addf %581, %592 : vector<24x6x128xf32>
      %594 = arith.index_cast %arg5 : i32 to index
      %c23_417 = arith.constant 23 : index
      %595 = memref.load %arg2[%594, %c23_417] : memref<10x25xf32, #tpu.memory_space<smem>>
      %c1_418 = arith.constant 1 : index
      %c4_419 = arith.constant 4 : index
      %c1_420 = arith.constant 1 : index
      %c0_421 = arith.constant 0 : index
      %596 = vector.load %arg1[%c1_418, %c4_419, %c1_420, %c0_421] : memref<4x28x7x128xf32, #tpu.memory_space<vmem>>, vector<1x24x6x128xf32>
      %597 = vector.shape_cast %596 : vector<1x24x6x128xf32> to vector<24x6x128xf32>
      %598 = vector.broadcast %595 : f32 to vector<24x6x128xf32>
      %599 = arith.mulf %597, %598 : vector<24x6x128xf32>
      %600 = arith.addf %588, %599 : vector<24x6x128xf32>
      %c2_422 = arith.constant 2 : index
      %c4_423 = arith.constant 4 : index
      %c1_424 = arith.constant 1 : index
      %c0_425 = arith.constant 0 : index
      %601 = vector.load %arg1[%c2_422, %c4_423, %c1_424, %c0_425] : memref<4x28x7x128xf32, #tpu.memory_space<vmem>>, vector<1x24x6x128xf32>
      %602 = vector.shape_cast %601 : vector<1x24x6x128xf32> to vector<24x6x128xf32>
      %603 = vector.broadcast %595 : f32 to vector<24x6x128xf32>
      %604 = arith.mulf %602, %603 : vector<24x6x128xf32>
      %605 = arith.addf %593, %604 : vector<24x6x128xf32>
      %606 = arith.index_cast %arg5 : i32 to index
      %c24_426 = arith.constant 24 : index
      %607 = memref.load %arg2[%606, %c24_426] : memref<10x25xf32, #tpu.memory_space<smem>>
      %c2_427 = arith.constant 2 : index
      %c4_428 = arith.constant 4 : index
      %c1_429 = arith.constant 1 : index
      %c0_430 = arith.constant 0 : index
      %608 = vector.load %arg1[%c2_427, %c4_428, %c1_429, %c0_430] : memref<4x28x7x128xf32, #tpu.memory_space<vmem>>, vector<1x24x6x128xf32>
      %609 = vector.shape_cast %608 : vector<1x24x6x128xf32> to vector<24x6x128xf32>
      %610 = vector.broadcast %607 : f32 to vector<24x6x128xf32>
      %611 = arith.mulf %609, %610 : vector<24x6x128xf32>
      %612 = arith.addf %600, %611 : vector<24x6x128xf32>
      %c3_431 = arith.constant 3 : index
      %c4_432 = arith.constant 4 : index
      %c1_433 = arith.constant 1 : index
      %c0_434 = arith.constant 0 : index
      %613 = vector.load %arg1[%c3_431, %c4_432, %c1_433, %c0_434] : memref<4x28x7x128xf32, #tpu.memory_space<vmem>>, vector<1x24x6x128xf32>
      %614 = vector.shape_cast %613 : vector<1x24x6x128xf32> to vector<24x6x128xf32>
      %615 = vector.broadcast %607 : f32 to vector<24x6x128xf32>
      %616 = arith.mulf %614, %615 : vector<24x6x128xf32>
      %617 = arith.addf %605, %616 : vector<24x6x128xf32>
      %618 = arith.maximumf %612, %617 : vector<24x6x128xf32>
      %619 = vector.shape_cast %618 : vector<24x6x128xf32> to vector<12x2x6x128xf32>
      %cst_435 = arith.constant dense<0xFF800000> : vector<12x6x128xf32>
      %620 = vector.multi_reduction <maximumf>, %619, %cst_435 [1] : vector<12x2x6x128xf32> to vector<12x6x128xf32>
      %621 = vector.broadcast %2 : f32 to vector<12x6x128xf32>
      %622 = arith.addf %620, %621 : vector<12x6x128xf32>
      %cst_436 = arith.constant 0.000000e+00 : f32
      %623 = vector.broadcast %cst_436 : f32 to vector<12x6x128xf32>
      %624 = arith.maximumf %622, %623 : vector<12x6x128xf32>
      %c1_437 = arith.constant 1 : index
      %625 = arith.index_cast %arg5 : i32 to index
      %c0_438 = arith.constant 0 : index
      %c0_439 = arith.constant 0 : index
      %c0_440 = arith.constant 0 : index
      %626 = vector.load %arg4[%c1_437, %625, %c0_438, %c0_439, %c0_440] : memref<2x10x12x6x128xf32, #tpu.memory_space<vmem>>, vector<1x1x12x6x128xf32>
      %627 = vector.shape_cast %626 : vector<1x1x12x6x128xf32> to vector<12x6x128xf32>
      %628 = vector.shape_cast %624 : vector<12x6x128xf32> to vector<1x1x12x6x128xf32>
      tpu.vector_store %arg4[%c1_437, %625, %c0_438, %c0_439, %c0_440], %628 {strides = array<i32>} : memref<2x10x12x6x128xf32, #tpu.memory_space<vmem>>, vector<1x1x12x6x128xf32>,
    }
    %c10_i32_0 = arith.constant 10 : i32
    return
  }
  func.func @transform_0(%arg0: i32) -> (i32, i32, i32, i32) {
    %c0_i32 = arith.constant 0 : i32
    %c0_i32_0 = arith.constant 0 : i32
    %c0_i32_1 = arith.constant 0 : i32
    %c0_i32_2 = arith.constant 0 : i32
    return %c0_i32, %c0_i32_0, %c0_i32_1, %arg0 : i32, i32, i32, i32
  }
  func.func @transform_1(%arg0: i32) -> (i32, i32) {
    %c0_i32 = arith.constant 0 : i32
    %c0_i32_0 = arith.constant 0 : i32
    %c0_i32_1 = arith.constant 0 : i32
    return %c0_i32, %c0_i32_0 : i32, i32
  }
  func.func @transform_2(%arg0: i32) -> i32 {
    %c0_i32 = arith.constant 0 : i32
    %c0_i32_0 = arith.constant 0 : i32
    return %c0_i32 : i32
  }
  func.func @transform_3(%arg0: i32) -> (i32, i32, i32, i32, i32) {
    %c0_i32 = arith.constant 0 : i32
    %c0_i32_0 = arith.constant 0 : i32
    %c0_i32_1 = arith.constant 0 : i32
    %c0_i32_2 = arith.constant 0 : i32
    %c0_i32_3 = arith.constant 0 : i32
    return %c0_i32, %c0_i32_0, %c0_i32_1, %c0_i32_2, %arg0 : i32, i32, i32, i32, i32
  }
}

module attributes {stable_mosaic.version = 11 : i64} {
  func.func @_fc_tail_kernel(%arg0: i32, %arg1: memref<320x128xf32, #tpu.memory_space<vmem>>, %arg2: memref<50x320xf32, #tpu.memory_space<vmem>>, %arg3: memref<50x1xf32, #tpu.memory_space<vmem>>, %arg4: memref<10x50xf32, #tpu.memory_space<vmem>>, %arg5: memref<10x1xf32, #tpu.memory_space<vmem>>, %arg6: memref<10x128xf32, #tpu.memory_space<vmem>>) attributes {dimension_semantics = [#tpu.dimension_semantics<parallel>], iteration_bounds = array<i64: 1>, scalar_prefetch = 0 : i64, scratch_operands = 0 : i64, tpu.core_type = #tpu.core_type<tc>, window_params = [{transform_indices = @transform_0, window_bounds = array<i64: 320, 128>}, {pipeline_mode = #tpu.pipeline_mode<synchronous>, transform_indices = @transform_1, window_bounds = array<i64: 50, 320>}, {pipeline_mode = #tpu.pipeline_mode<synchronous>, transform_indices = @transform_2, window_bounds = array<i64: 50, 1>}, {pipeline_mode = #tpu.pipeline_mode<synchronous>, transform_indices = @transform_3, window_bounds = array<i64: 10, 50>}, {pipeline_mode = #tpu.pipeline_mode<synchronous>, transform_indices = @transform_4, window_bounds = array<i64: 10, 1>}, {transform_indices = @transform_5, window_bounds = array<i64: 10, 128>}]} {
    %c0 = arith.constant 0 : index
    %c0_0 = arith.constant 0 : index
    %0 = vector.load %arg1[%c0, %c0_0] : memref<320x128xf32, #tpu.memory_space<vmem>>, vector<320x128xf32>
    %c0_1 = arith.constant 0 : index
    %c0_2 = arith.constant 0 : index
    %1 = vector.load %arg2[%c0_1, %c0_2] : memref<50x320xf32, #tpu.memory_space<vmem>>, vector<50x320xf32>
    %cst = arith.constant dense<0.000000e+00> : vector<50x128xf32>
    %2 = tpu.matmul %1, %0, %cst {dimension_numbers = #tpu.dot_dimension_numbers<[1], [0], [0], [1], [0, 0, 1, 1], [], []>} : vector<50x320xf32>, vector<320x128xf32>, vector<50x128xf32> -> vector<50x128xf32>
    %c0_3 = arith.constant 0 : index
    %c0_4 = arith.constant 0 : index
    %3 = vector.load %arg3[%c0_3, %c0_4] : memref<50x1xf32, #tpu.memory_space<vmem>>, vector<50x1xf32>
    %4 = vector.broadcast %3 : vector<50x1xf32> to vector<50x128xf32>
    %5 = arith.addf %2, %4 : vector<50x128xf32>
    %cst_5 = arith.constant 0.000000e+00 : f32
    %6 = vector.broadcast %cst_5 : f32 to vector<50x128xf32>
    %7 = arith.maximumf %5, %6 : vector<50x128xf32>
    %c0_6 = arith.constant 0 : index
    %c0_7 = arith.constant 0 : index
    %8 = vector.load %arg4[%c0_6, %c0_7] : memref<10x50xf32, #tpu.memory_space<vmem>>, vector<10x50xf32>
    %cst_8 = arith.constant dense<0.000000e+00> : vector<10x128xf32>
    %9 = tpu.matmul %8, %7, %cst_8 {dimension_numbers = #tpu.dot_dimension_numbers<[1], [0], [0], [1], [0, 0, 1, 1], [], []>} : vector<10x50xf32>, vector<50x128xf32>, vector<10x128xf32> -> vector<10x128xf32>
    %c0_9 = arith.constant 0 : index
    %c0_10 = arith.constant 0 : index
    %10 = vector.load %arg5[%c0_9, %c0_10] : memref<10x1xf32, #tpu.memory_space<vmem>>, vector<10x1xf32>
    %11 = vector.broadcast %10 : vector<10x1xf32> to vector<10x128xf32>
    %12 = arith.addf %9, %11 : vector<10x128xf32>
    %cst_11 = arith.constant dense<0xFF800000> : vector<128xf32>
    %13 = vector.multi_reduction <maximumf>, %12, %cst_11 [0] : vector<10x128xf32> to vector<128xf32>
    %14 = vector.shape_cast %13 : vector<128xf32> to vector<1x128xf32>
    %15 = vector.broadcast %14 : vector<1x128xf32> to vector<10x128xf32>
    %16 = arith.subf %12, %15 : vector<10x128xf32>
    %17 = math.exp %16 : vector<10x128xf32>
    %cst_12 = arith.constant dense<0.000000e+00> : vector<128xf32>
    %18 = vector.multi_reduction <add>, %17, %cst_12 [0] : vector<10x128xf32> to vector<128xf32>
    %19 = vector.shape_cast %18 : vector<128xf32> to vector<1x128xf32>
    %20 = vector.broadcast %14 : vector<1x128xf32> to vector<10x128xf32>
    %21 = arith.subf %12, %20 : vector<10x128xf32>
    %22 = math.log %19 : vector<1x128xf32>
    %23 = vector.broadcast %22 : vector<1x128xf32> to vector<10x128xf32>
    %24 = arith.subf %21, %23 : vector<10x128xf32>
    %c0_13 = arith.constant 0 : index
    %c0_14 = arith.constant 0 : index
    %25 = vector.load %arg6[%c0_13, %c0_14] : memref<10x128xf32, #tpu.memory_space<vmem>>, vector<10x128xf32>
    tpu.vector_store %arg6[%c0_13, %c0_14], %24 {strides = array<i32>} : memref<10x128xf32, #tpu.memory_space<vmem>>, vector<10x128xf32>,
    return
  }
  func.func @transform_0(%arg0: i32) -> (i32, i32) {
    %c0_i32 = arith.constant 0 : i32
    %c0_i32_0 = arith.constant 0 : i32
    return %c0_i32, %arg0 : i32, i32
  }
  func.func @transform_1(%arg0: i32) -> (i32, i32) {
    %c0_i32 = arith.constant 0 : i32
    %c0_i32_0 = arith.constant 0 : i32
    %c0_i32_1 = arith.constant 0 : i32
    return %c0_i32, %c0_i32_0 : i32, i32
  }
  func.func @transform_2(%arg0: i32) -> (i32, i32) {
    %c0_i32 = arith.constant 0 : i32
    %c0_i32_0 = arith.constant 0 : i32
    %c0_i32_1 = arith.constant 0 : i32
    return %c0_i32, %c0_i32_0 : i32, i32
  }
  func.func @transform_3(%arg0: i32) -> (i32, i32) {
    %c0_i32 = arith.constant 0 : i32
    %c0_i32_0 = arith.constant 0 : i32
    %c0_i32_1 = arith.constant 0 : i32
    return %c0_i32, %c0_i32_0 : i32, i32
  }
  func.func @transform_4(%arg0: i32) -> (i32, i32) {
    %c0_i32 = arith.constant 0 : i32
    %c0_i32_0 = arith.constant 0 : i32
    %c0_i32_1 = arith.constant 0 : i32
    return %c0_i32, %c0_i32_0 : i32, i32
  }
  func.func @transform_5(%arg0: i32) -> (i32, i32) {
    %c0_i32 = arith.constant 0 : i32
    %c0_i32_0 = arith.constant 0 : i32
    return %c0_i32, %arg0 : i32, i32
  }
}

module attributes {stable_mosaic.version = 11 : i64} {
  func.func @_conv2_pool_relu_kernel(%arg0: i32, %arg1: memref<2x10x12x6x128xf32, #tpu.memory_space<vmem>>, %arg2: memref<20x250xf32, #tpu.memory_space<smem>>, %arg3: memref<20xf32, #tpu.memory_space<smem>>, %arg4: memref<20x4x4x128xf32, #tpu.memory_space<vmem>>) attributes {dimension_semantics = [#tpu.dimension_semantics<parallel>], iteration_bounds = array<i64: 1>, scalar_prefetch = 0 : i64, scratch_operands = 0 : i64, tpu.core_type = #tpu.core_type<tc>, window_params = [{transform_indices = @transform_0, window_bounds = array<i64: 2, 10, 12, 6, 128>}, {transform_indices = @transform_1, window_bounds = array<i64: 20, 250>}, {transform_indices = @transform_2, window_bounds = array<i64: 20>}, {transform_indices = @transform_3, window_bounds = array<i64: 20, 4, 4, 128>}]} {
    %c0_i32 = arith.constant 0 : i32
    %c20_i32 = arith.constant 20 : i32
    %0 = arith.addi %c0_i32, %c20_i32 : i32
    %c1_i32 = arith.constant 1 : i32
    scf.for %arg5 = %c0_i32 to %0 step %c1_i32  : i32 {
      %cst = arith.constant 0.000000e+00 : f32
      %1 = vector.broadcast %cst : f32 to vector<8x4x128xf32>
      %cst_1 = arith.constant 0.000000e+00 : f32
      %2 = vector.broadcast %cst_1 : f32 to vector<8x4x128xf32>
      %c0_i32_2 = arith.constant 0 : i32
      %c10_i32 = arith.constant 10 : i32
      %3 = arith.addi %c0_i32_2, %c10_i32 : i32
      %c1_i32_3 = arith.constant 1 : i32
      %4:2 = scf.for %arg6 = %c0_i32_2 to %3 step %c1_i32_3 iter_args(%arg7 = %1, %arg8 = %2) -> (vector<8x4x128xf32>, vector<8x4x128xf32>)  : i32 {
        %c25_i32 = arith.constant 25 : i32
        %18 = arith.muli %arg6, %c25_i32 : i32
        %c0_i32_9 = arith.constant 0 : i32
        %19 = arith.addi %18, %c0_i32_9 : i32
        %c0_i32_10 = arith.constant 0 : i32
        %20 = arith.addi %19, %c0_i32_10 : i32
        %21 = arith.index_cast %arg5 : i32 to index
        %22 = arith.index_cast %20 : i32 to index
        %23 = memref.load %arg2[%21, %22] : memref<20x250xf32, #tpu.memory_space<smem>>
        %c0_11 = arith.constant 0 : index
        %24 = arith.index_cast %arg6 : i32 to index
        %c0_12 = arith.constant 0 : index
        %c0_13 = arith.constant 0 : index
        %c0_14 = arith.constant 0 : index
        %25 = vector.load %arg1[%c0_11, %24, %c0_12, %c0_13, %c0_14] : memref<2x10x12x6x128xf32, #tpu.memory_space<vmem>>, vector<1x1x8x4x128xf32>
        %26 = vector.shape_cast %25 : vector<1x1x8x4x128xf32> to vector<8x4x128xf32>
        %27 = vector.broadcast %23 : f32 to vector<8x4x128xf32>
        %28 = arith.mulf %26, %27 : vector<8x4x128xf32>
        %29 = arith.addf %arg7, %28 : vector<8x4x128xf32>
        %c1 = arith.constant 1 : index
        %30 = arith.index_cast %arg6 : i32 to index
        %c0_15 = arith.constant 0 : index
        %c0_16 = arith.constant 0 : index
        %c0_17 = arith.constant 0 : index
        %31 = vector.load %arg1[%c1, %30, %c0_15, %c0_16, %c0_17] : memref<2x10x12x6x128xf32, #tpu.memory_space<vmem>>, vector<1x1x8x4x128xf32>
        %32 = vector.shape_cast %31 : vector<1x1x8x4x128xf32> to vector<8x4x128xf32>
        %33 = vector.broadcast %23 : f32 to vector<8x4x128xf32>
        %34 = arith.mulf %32, %33 : vector<8x4x128xf32>
        %35 = arith.addf %arg8, %34 : vector<8x4x128xf32>
        %c25_i32_18 = arith.constant 25 : i32
        %36 = arith.muli %arg6, %c25_i32_18 : i32
        %c0_i32_19 = arith.constant 0 : i32
        %37 = arith.addi %36, %c0_i32_19 : i32
        %c1_i32_20 = arith.constant 1 : i32
        %38 = arith.addi %37, %c1_i32_20 : i32
        %39 = arith.index_cast %arg5 : i32 to index
        %40 = arith.index_cast %38 : i32 to index
        %41 = memref.load %arg2[%39, %40] : memref<20x250xf32, #tpu.memory_space<smem>>
        %c1_21 = arith.constant 1 : index
        %42 = arith.index_cast %arg6 : i32 to index
        %c0_22 = arith.constant 0 : index
        %c0_23 = arith.constant 0 : index
        %c0_24 = arith.constant 0 : index
        %43 = vector.load %arg1[%c1_21, %42, %c0_22, %c0_23, %c0_24] : memref<2x10x12x6x128xf32, #tpu.memory_space<vmem>>, vector<1x1x8x4x128xf32>
        %44 = vector.shape_cast %43 : vector<1x1x8x4x128xf32> to vector<8x4x128xf32>
        %45 = vector.broadcast %41 : f32 to vector<8x4x128xf32>
        %46 = arith.mulf %44, %45 : vector<8x4x128xf32>
        %47 = arith.addf %29, %46 : vector<8x4x128xf32>
        %c0_25 = arith.constant 0 : index
        %48 = arith.index_cast %arg6 : i32 to index
        %c0_26 = arith.constant 0 : index
        %c1_27 = arith.constant 1 : index
        %c0_28 = arith.constant 0 : index
        %49 = vector.load %arg1[%c0_25, %48, %c0_26, %c1_27, %c0_28] : memref<2x10x12x6x128xf32, #tpu.memory_space<vmem>>, vector<1x1x8x4x128xf32>
        %50 = vector.shape_cast %49 : vector<1x1x8x4x128xf32> to vector<8x4x128xf32>
        %51 = vector.broadcast %41 : f32 to vector<8x4x128xf32>
        %52 = arith.mulf %50, %51 : vector<8x4x128xf32>
        %53 = arith.addf %35, %52 : vector<8x4x128xf32>
        %c25_i32_29 = arith.constant 25 : i32
        %54 = arith.muli %arg6, %c25_i32_29 : i32
        %c0_i32_30 = arith.constant 0 : i32
        %55 = arith.addi %54, %c0_i32_30 : i32
        %c2_i32 = arith.constant 2 : i32
        %56 = arith.addi %55, %c2_i32 : i32
        %57 = arith.index_cast %arg5 : i32 to index
        %58 = arith.index_cast %56 : i32 to index
        %59 = memref.load %arg2[%57, %58] : memref<20x250xf32, #tpu.memory_space<smem>>
        %c0_31 = arith.constant 0 : index
        %60 = arith.index_cast %arg6 : i32 to index
        %c0_32 = arith.constant 0 : index
        %c1_33 = arith.constant 1 : index
        %c0_34 = arith.constant 0 : index
        %61 = vector.load %arg1[%c0_31, %60, %c0_32, %c1_33, %c0_34] : memref<2x10x12x6x128xf32, #tpu.memory_space<vmem>>, vector<1x1x8x4x128xf32>
        %62 = vector.shape_cast %61 : vector<1x1x8x4x128xf32> to vector<8x4x128xf32>
        %63 = vector.broadcast %59 : f32 to vector<8x4x128xf32>
        %64 = arith.mulf %62, %63 : vector<8x4x128xf32>
        %65 = arith.addf %47, %64 : vector<8x4x128xf32>
        %c1_35 = arith.constant 1 : index
        %66 = arith.index_cast %arg6 : i32 to index
        %c0_36 = arith.constant 0 : index
        %c1_37 = arith.constant 1 : index
        %c0_38 = arith.constant 0 : index
        %67 = vector.load %arg1[%c1_35, %66, %c0_36, %c1_37, %c0_38] : memref<2x10x12x6x128xf32, #tpu.memory_space<vmem>>, vector<1x1x8x4x128xf32>
        %68 = vector.shape_cast %67 : vector<1x1x8x4x128xf32> to vector<8x4x128xf32>
        %69 = vector.broadcast %59 : f32 to vector<8x4x128xf32>
        %70 = arith.mulf %68, %69 : vector<8x4x128xf32>
        %71 = arith.addf %53, %70 : vector<8x4x128xf32>
        %c25_i32_39 = arith.constant 25 : i32
        %72 = arith.muli %arg6, %c25_i32_39 : i32
        %c0_i32_40 = arith.constant 0 : i32
        %73 = arith.addi %72, %c0_i32_40 : i32
        %c3_i32 = arith.constant 3 : i32
        %74 = arith.addi %73, %c3_i32 : i32
        %75 = arith.index_cast %arg5 : i32 to index
        %76 = arith.index_cast %74 : i32 to index
        %77 = memref.load %arg2[%75, %76] : memref<20x250xf32, #tpu.memory_space<smem>>
        %c1_41 = arith.constant 1 : index
        %78 = arith.index_cast %arg6 : i32 to index
        %c0_42 = arith.constant 0 : index
        %c1_43 = arith.constant 1 : index
        %c0_44 = arith.constant 0 : index
        %79 = vector.load %arg1[%c1_41, %78, %c0_42, %c1_43, %c0_44] : memref<2x10x12x6x128xf32, #tpu.memory_space<vmem>>, vector<1x1x8x4x128xf32>
        %80 = vector.shape_cast %79 : vector<1x1x8x4x128xf32> to vector<8x4x128xf32>
        %81 = vector.broadcast %77 : f32 to vector<8x4x128xf32>
        %82 = arith.mulf %80, %81 : vector<8x4x128xf32>
        %83 = arith.addf %65, %82 : vector<8x4x128xf32>
        %c0_45 = arith.constant 0 : index
        %84 = arith.index_cast %arg6 : i32 to index
        %c0_46 = arith.constant 0 : index
        %c2 = arith.constant 2 : index
        %c0_47 = arith.constant 0 : index
        %85 = vector.load %arg1[%c0_45, %84, %c0_46, %c2, %c0_47] : memref<2x10x12x6x128xf32, #tpu.memory_space<vmem>>, vector<1x1x8x4x128xf32>
        %86 = vector.shape_cast %85 : vector<1x1x8x4x128xf32> to vector<8x4x128xf32>
        %87 = vector.broadcast %77 : f32 to vector<8x4x128xf32>
        %88 = arith.mulf %86, %87 : vector<8x4x128xf32>
        %89 = arith.addf %71, %88 : vector<8x4x128xf32>
        %c25_i32_48 = arith.constant 25 : i32
        %90 = arith.muli %arg6, %c25_i32_48 : i32
        %c0_i32_49 = arith.constant 0 : i32
        %91 = arith.addi %90, %c0_i32_49 : i32
        %c4_i32 = arith.constant 4 : i32
        %92 = arith.addi %91, %c4_i32 : i32
        %93 = arith.index_cast %arg5 : i32 to index
        %94 = arith.index_cast %92 : i32 to index
        %95 = memref.load %arg2[%93, %94] : memref<20x250xf32, #tpu.memory_space<smem>>
        %c0_50 = arith.constant 0 : index
        %96 = arith.index_cast %arg6 : i32 to index
        %c0_51 = arith.constant 0 : index
        %c2_52 = arith.constant 2 : index
        %c0_53 = arith.constant 0 : index
        %97 = vector.load %arg1[%c0_50, %96, %c0_51, %c2_52, %c0_53] : memref<2x10x12x6x128xf32, #tpu.memory_space<vmem>>, vector<1x1x8x4x128xf32>
        %98 = vector.shape_cast %97 : vector<1x1x8x4x128xf32> to vector<8x4x128xf32>
        %99 = vector.broadcast %95 : f32 to vector<8x4x128xf32>
        %100 = arith.mulf %98, %99 : vector<8x4x128xf32>
        %101 = arith.addf %83, %100 : vector<8x4x128xf32>
        %c1_54 = arith.constant 1 : index
        %102 = arith.index_cast %arg6 : i32 to index
        %c0_55 = arith.constant 0 : index
        %c2_56 = arith.constant 2 : index
        %c0_57 = arith.constant 0 : index
        %103 = vector.load %arg1[%c1_54, %102, %c0_55, %c2_56, %c0_57] : memref<2x10x12x6x128xf32, #tpu.memory_space<vmem>>, vector<1x1x8x4x128xf32>
        %104 = vector.shape_cast %103 : vector<1x1x8x4x128xf32> to vector<8x4x128xf32>
        %105 = vector.broadcast %95 : f32 to vector<8x4x128xf32>
        %106 = arith.mulf %104, %105 : vector<8x4x128xf32>
        %107 = arith.addf %89, %106 : vector<8x4x128xf32>
        %c25_i32_58 = arith.constant 25 : i32
        %108 = arith.muli %arg6, %c25_i32_58 : i32
        %c5_i32 = arith.constant 5 : i32
        %109 = arith.addi %108, %c5_i32 : i32
        %c0_i32_59 = arith.constant 0 : i32
        %110 = arith.addi %109, %c0_i32_59 : i32
        %111 = arith.index_cast %arg5 : i32 to index
        %112 = arith.index_cast %110 : i32 to index
        %113 = memref.load %arg2[%111, %112] : memref<20x250xf32, #tpu.memory_space<smem>>
        %c0_60 = arith.constant 0 : index
        %114 = arith.index_cast %arg6 : i32 to index
        %c1_61 = arith.constant 1 : index
        %c0_62 = arith.constant 0 : index
        %c0_63 = arith.constant 0 : index
        %115 = vector.load %arg1[%c0_60, %114, %c1_61, %c0_62, %c0_63] : memref<2x10x12x6x128xf32, #tpu.memory_space<vmem>>, vector<1x1x8x4x128xf32>
        %116 = vector.shape_cast %115 : vector<1x1x8x4x128xf32> to vector<8x4x128xf32>
        %117 = vector.broadcast %113 : f32 to vector<8x4x128xf32>
        %118 = arith.mulf %116, %117 : vector<8x4x128xf32>
        %119 = arith.addf %101, %118 : vector<8x4x128xf32>
        %c1_64 = arith.constant 1 : index
        %120 = arith.index_cast %arg6 : i32 to index
        %c1_65 = arith.constant 1 : index
        %c0_66 = arith.constant 0 : index
        %c0_67 = arith.constant 0 : index
        %121 = vector.load %arg1[%c1_64, %120, %c1_65, %c0_66, %c0_67] : memref<2x10x12x6x128xf32, #tpu.memory_space<vmem>>, vector<1x1x8x4x128xf32>
        %122 = vector.shape_cast %121 : vector<1x1x8x4x128xf32> to vector<8x4x128xf32>
        %123 = vector.broadcast %113 : f32 to vector<8x4x128xf32>
        %124 = arith.mulf %122, %123 : vector<8x4x128xf32>
        %125 = arith.addf %107, %124 : vector<8x4x128xf32>
        %c25_i32_68 = arith.constant 25 : i32
        %126 = arith.muli %arg6, %c25_i32_68 : i32
        %c5_i32_69 = arith.constant 5 : i32
        %127 = arith.addi %126, %c5_i32_69 : i32
        %c1_i32_70 = arith.constant 1 : i32
        %128 = arith.addi %127, %c1_i32_70 : i32
        %129 = arith.index_cast %arg5 : i32 to index
        %130 = arith.index_cast %128 : i32 to index
        %131 = memref.load %arg2[%129, %130] : memref<20x250xf32, #tpu.memory_space<smem>>
        %c1_71 = arith.constant 1 : index
        %132 = arith.index_cast %arg6 : i32 to index
        %c1_72 = arith.constant 1 : index
        %c0_73 = arith.constant 0 : index
        %c0_74 = arith.constant 0 : index
        %133 = vector.load %arg1[%c1_71, %132, %c1_72, %c0_73, %c0_74] : memref<2x10x12x6x128xf32, #tpu.memory_space<vmem>>, vector<1x1x8x4x128xf32>
        %134 = vector.shape_cast %133 : vector<1x1x8x4x128xf32> to vector<8x4x128xf32>
        %135 = vector.broadcast %131 : f32 to vector<8x4x128xf32>
        %136 = arith.mulf %134, %135 : vector<8x4x128xf32>
        %137 = arith.addf %119, %136 : vector<8x4x128xf32>
        %c0_75 = arith.constant 0 : index
        %138 = arith.index_cast %arg6 : i32 to index
        %c1_76 = arith.constant 1 : index
        %c1_77 = arith.constant 1 : index
        %c0_78 = arith.constant 0 : index
        %139 = vector.load %arg1[%c0_75, %138, %c1_76, %c1_77, %c0_78] : memref<2x10x12x6x128xf32, #tpu.memory_space<vmem>>, vector<1x1x8x4x128xf32>
        %140 = vector.shape_cast %139 : vector<1x1x8x4x128xf32> to vector<8x4x128xf32>
        %141 = vector.broadcast %131 : f32 to vector<8x4x128xf32>
        %142 = arith.mulf %140, %141 : vector<8x4x128xf32>
        %143 = arith.addf %125, %142 : vector<8x4x128xf32>
        %c25_i32_79 = arith.constant 25 : i32
        %144 = arith.muli %arg6, %c25_i32_79 : i32
        %c5_i32_80 = arith.constant 5 : i32
        %145 = arith.addi %144, %c5_i32_80 : i32
        %c2_i32_81 = arith.constant 2 : i32
        %146 = arith.addi %145, %c2_i32_81 : i32
        %147 = arith.index_cast %arg5 : i32 to index
        %148 = arith.index_cast %146 : i32 to index
        %149 = memref.load %arg2[%147, %148] : memref<20x250xf32, #tpu.memory_space<smem>>
        %c0_82 = arith.constant 0 : index
        %150 = arith.index_cast %arg6 : i32 to index
        %c1_83 = arith.constant 1 : index
        %c1_84 = arith.constant 1 : index
        %c0_85 = arith.constant 0 : index
        %151 = vector.load %arg1[%c0_82, %150, %c1_83, %c1_84, %c0_85] : memref<2x10x12x6x128xf32, #tpu.memory_space<vmem>>, vector<1x1x8x4x128xf32>
        %152 = vector.shape_cast %151 : vector<1x1x8x4x128xf32> to vector<8x4x128xf32>
        %153 = vector.broadcast %149 : f32 to vector<8x4x128xf32>
        %154 = arith.mulf %152, %153 : vector<8x4x128xf32>
        %155 = arith.addf %137, %154 : vector<8x4x128xf32>
        %c1_86 = arith.constant 1 : index
        %156 = arith.index_cast %arg6 : i32 to index
        %c1_87 = arith.constant 1 : index
        %c1_88 = arith.constant 1 : index
        %c0_89 = arith.constant 0 : index
        %157 = vector.load %arg1[%c1_86, %156, %c1_87, %c1_88, %c0_89] : memref<2x10x12x6x128xf32, #tpu.memory_space<vmem>>, vector<1x1x8x4x128xf32>
        %158 = vector.shape_cast %157 : vector<1x1x8x4x128xf32> to vector<8x4x128xf32>
        %159 = vector.broadcast %149 : f32 to vector<8x4x128xf32>
        %160 = arith.mulf %158, %159 : vector<8x4x128xf32>
        %161 = arith.addf %143, %160 : vector<8x4x128xf32>
        %c25_i32_90 = arith.constant 25 : i32
        %162 = arith.muli %arg6, %c25_i32_90 : i32
        %c5_i32_91 = arith.constant 5 : i32
        %163 = arith.addi %162, %c5_i32_91 : i32
        %c3_i32_92 = arith.constant 3 : i32
        %164 = arith.addi %163, %c3_i32_92 : i32
        %165 = arith.index_cast %arg5 : i32 to index
        %166 = arith.index_cast %164 : i32 to index
        %167 = memref.load %arg2[%165, %166] : memref<20x250xf32, #tpu.memory_space<smem>>
        %c1_93 = arith.constant 1 : index
        %168 = arith.index_cast %arg6 : i32 to index
        %c1_94 = arith.constant 1 : index
        %c1_95 = arith.constant 1 : index
        %c0_96 = arith.constant 0 : index
        %169 = vector.load %arg1[%c1_93, %168, %c1_94, %c1_95, %c0_96] : memref<2x10x12x6x128xf32, #tpu.memory_space<vmem>>, vector<1x1x8x4x128xf32>
        %170 = vector.shape_cast %169 : vector<1x1x8x4x128xf32> to vector<8x4x128xf32>
        %171 = vector.broadcast %167 : f32 to vector<8x4x128xf32>
        %172 = arith.mulf %170, %171 : vector<8x4x128xf32>
        %173 = arith.addf %155, %172 : vector<8x4x128xf32>
        %c0_97 = arith.constant 0 : index
        %174 = arith.index_cast %arg6 : i32 to index
        %c1_98 = arith.constant 1 : index
        %c2_99 = arith.constant 2 : index
        %c0_100 = arith.constant 0 : index
        %175 = vector.load %arg1[%c0_97, %174, %c1_98, %c2_99, %c0_100] : memref<2x10x12x6x128xf32, #tpu.memory_space<vmem>>, vector<1x1x8x4x128xf32>
        %176 = vector.shape_cast %175 : vector<1x1x8x4x128xf32> to vector<8x4x128xf32>
        %177 = vector.broadcast %167 : f32 to vector<8x4x128xf32>
        %178 = arith.mulf %176, %177 : vector<8x4x128xf32>
        %179 = arith.addf %161, %178 : vector<8x4x128xf32>
        %c25_i32_101 = arith.constant 25 : i32
        %180 = arith.muli %arg6, %c25_i32_101 : i32
        %c5_i32_102 = arith.constant 5 : i32
        %181 = arith.addi %180, %c5_i32_102 : i32
        %c4_i32_103 = arith.constant 4 : i32
        %182 = arith.addi %181, %c4_i32_103 : i32
        %183 = arith.index_cast %arg5 : i32 to index
        %184 = arith.index_cast %182 : i32 to index
        %185 = memref.load %arg2[%183, %184] : memref<20x250xf32, #tpu.memory_space<smem>>
        %c0_104 = arith.constant 0 : index
        %186 = arith.index_cast %arg6 : i32 to index
        %c1_105 = arith.constant 1 : index
        %c2_106 = arith.constant 2 : index
        %c0_107 = arith.constant 0 : index
        %187 = vector.load %arg1[%c0_104, %186, %c1_105, %c2_106, %c0_107] : memref<2x10x12x6x128xf32, #tpu.memory_space<vmem>>, vector<1x1x8x4x128xf32>
        %188 = vector.shape_cast %187 : vector<1x1x8x4x128xf32> to vector<8x4x128xf32>
        %189 = vector.broadcast %185 : f32 to vector<8x4x128xf32>
        %190 = arith.mulf %188, %189 : vector<8x4x128xf32>
        %191 = arith.addf %173, %190 : vector<8x4x128xf32>
        %c1_108 = arith.constant 1 : index
        %192 = arith.index_cast %arg6 : i32 to index
        %c1_109 = arith.constant 1 : index
        %c2_110 = arith.constant 2 : index
        %c0_111 = arith.constant 0 : index
        %193 = vector.load %arg1[%c1_108, %192, %c1_109, %c2_110, %c0_111] : memref<2x10x12x6x128xf32, #tpu.memory_space<vmem>>, vector<1x1x8x4x128xf32>
        %194 = vector.shape_cast %193 : vector<1x1x8x4x128xf32> to vector<8x4x128xf32>
        %195 = vector.broadcast %185 : f32 to vector<8x4x128xf32>
        %196 = arith.mulf %194, %195 : vector<8x4x128xf32>
        %197 = arith.addf %179, %196 : vector<8x4x128xf32>
        %c25_i32_112 = arith.constant 25 : i32
        %198 = arith.muli %arg6, %c25_i32_112 : i32
        %c10_i32_113 = arith.constant 10 : i32
        %199 = arith.addi %198, %c10_i32_113 : i32
        %c0_i32_114 = arith.constant 0 : i32
        %200 = arith.addi %199, %c0_i32_114 : i32
        %201 = arith.index_cast %arg5 : i32 to index
        %202 = arith.index_cast %200 : i32 to index
        %203 = memref.load %arg2[%201, %202] : memref<20x250xf32, #tpu.memory_space<smem>>
        %c0_115 = arith.constant 0 : index
        %204 = arith.index_cast %arg6 : i32 to index
        %c2_116 = arith.constant 2 : index
        %c0_117 = arith.constant 0 : index
        %c0_118 = arith.constant 0 : index
        %205 = vector.load %arg1[%c0_115, %204, %c2_116, %c0_117, %c0_118] : memref<2x10x12x6x128xf32, #tpu.memory_space<vmem>>, vector<1x1x8x4x128xf32>
        %206 = vector.shape_cast %205 : vector<1x1x8x4x128xf32> to vector<8x4x128xf32>
        %207 = vector.broadcast %203 : f32 to vector<8x4x128xf32>
        %208 = arith.mulf %206, %207 : vector<8x4x128xf32>
        %209 = arith.addf %191, %208 : vector<8x4x128xf32>
        %c1_119 = arith.constant 1 : index
        %210 = arith.index_cast %arg6 : i32 to index
        %c2_120 = arith.constant 2 : index
        %c0_121 = arith.constant 0 : index
        %c0_122 = arith.constant 0 : index
        %211 = vector.load %arg1[%c1_119, %210, %c2_120, %c0_121, %c0_122] : memref<2x10x12x6x128xf32, #tpu.memory_space<vmem>>, vector<1x1x8x4x128xf32>
        %212 = vector.shape_cast %211 : vector<1x1x8x4x128xf32> to vector<8x4x128xf32>
        %213 = vector.broadcast %203 : f32 to vector<8x4x128xf32>
        %214 = arith.mulf %212, %213 : vector<8x4x128xf32>
        %215 = arith.addf %197, %214 : vector<8x4x128xf32>
        %c25_i32_123 = arith.constant 25 : i32
        %216 = arith.muli %arg6, %c25_i32_123 : i32
        %c10_i32_124 = arith.constant 10 : i32
        %217 = arith.addi %216, %c10_i32_124 : i32
        %c1_i32_125 = arith.constant 1 : i32
        %218 = arith.addi %217, %c1_i32_125 : i32
        %219 = arith.index_cast %arg5 : i32 to index
        %220 = arith.index_cast %218 : i32 to index
        %221 = memref.load %arg2[%219, %220] : memref<20x250xf32, #tpu.memory_space<smem>>
        %c1_126 = arith.constant 1 : index
        %222 = arith.index_cast %arg6 : i32 to index
        %c2_127 = arith.constant 2 : index
        %c0_128 = arith.constant 0 : index
        %c0_129 = arith.constant 0 : index
        %223 = vector.load %arg1[%c1_126, %222, %c2_127, %c0_128, %c0_129] : memref<2x10x12x6x128xf32, #tpu.memory_space<vmem>>, vector<1x1x8x4x128xf32>
        %224 = vector.shape_cast %223 : vector<1x1x8x4x128xf32> to vector<8x4x128xf32>
        %225 = vector.broadcast %221 : f32 to vector<8x4x128xf32>
        %226 = arith.mulf %224, %225 : vector<8x4x128xf32>
        %227 = arith.addf %209, %226 : vector<8x4x128xf32>
        %c0_130 = arith.constant 0 : index
        %228 = arith.index_cast %arg6 : i32 to index
        %c2_131 = arith.constant 2 : index
        %c1_132 = arith.constant 1 : index
        %c0_133 = arith.constant 0 : index
        %229 = vector.load %arg1[%c0_130, %228, %c2_131, %c1_132, %c0_133] : memref<2x10x12x6x128xf32, #tpu.memory_space<vmem>>, vector<1x1x8x4x128xf32>
        %230 = vector.shape_cast %229 : vector<1x1x8x4x128xf32> to vector<8x4x128xf32>
        %231 = vector.broadcast %221 : f32 to vector<8x4x128xf32>
        %232 = arith.mulf %230, %231 : vector<8x4x128xf32>
        %233 = arith.addf %215, %232 : vector<8x4x128xf32>
        %c25_i32_134 = arith.constant 25 : i32
        %234 = arith.muli %arg6, %c25_i32_134 : i32
        %c10_i32_135 = arith.constant 10 : i32
        %235 = arith.addi %234, %c10_i32_135 : i32
        %c2_i32_136 = arith.constant 2 : i32
        %236 = arith.addi %235, %c2_i32_136 : i32
        %237 = arith.index_cast %arg5 : i32 to index
        %238 = arith.index_cast %236 : i32 to index
        %239 = memref.load %arg2[%237, %238] : memref<20x250xf32, #tpu.memory_space<smem>>
        %c0_137 = arith.constant 0 : index
        %240 = arith.index_cast %arg6 : i32 to index
        %c2_138 = arith.constant 2 : index
        %c1_139 = arith.constant 1 : index
        %c0_140 = arith.constant 0 : index
        %241 = vector.load %arg1[%c0_137, %240, %c2_138, %c1_139, %c0_140] : memref<2x10x12x6x128xf32, #tpu.memory_space<vmem>>, vector<1x1x8x4x128xf32>
        %242 = vector.shape_cast %241 : vector<1x1x8x4x128xf32> to vector<8x4x128xf32>
        %243 = vector.broadcast %239 : f32 to vector<8x4x128xf32>
        %244 = arith.mulf %242, %243 : vector<8x4x128xf32>
        %245 = arith.addf %227, %244 : vector<8x4x128xf32>
        %c1_141 = arith.constant 1 : index
        %246 = arith.index_cast %arg6 : i32 to index
        %c2_142 = arith.constant 2 : index
        %c1_143 = arith.constant 1 : index
        %c0_144 = arith.constant 0 : index
        %247 = vector.load %arg1[%c1_141, %246, %c2_142, %c1_143, %c0_144] : memref<2x10x12x6x128xf32, #tpu.memory_space<vmem>>, vector<1x1x8x4x128xf32>
        %248 = vector.shape_cast %247 : vector<1x1x8x4x128xf32> to vector<8x4x128xf32>
        %249 = vector.broadcast %239 : f32 to vector<8x4x128xf32>
        %250 = arith.mulf %248, %249 : vector<8x4x128xf32>
        %251 = arith.addf %233, %250 : vector<8x4x128xf32>
        %c25_i32_145 = arith.constant 25 : i32
        %252 = arith.muli %arg6, %c25_i32_145 : i32
        %c10_i32_146 = arith.constant 10 : i32
        %253 = arith.addi %252, %c10_i32_146 : i32
        %c3_i32_147 = arith.constant 3 : i32
        %254 = arith.addi %253, %c3_i32_147 : i32
        %255 = arith.index_cast %arg5 : i32 to index
        %256 = arith.index_cast %254 : i32 to index
        %257 = memref.load %arg2[%255, %256] : memref<20x250xf32, #tpu.memory_space<smem>>
        %c1_148 = arith.constant 1 : index
        %258 = arith.index_cast %arg6 : i32 to index
        %c2_149 = arith.constant 2 : index
        %c1_150 = arith.constant 1 : index
        %c0_151 = arith.constant 0 : index
        %259 = vector.load %arg1[%c1_148, %258, %c2_149, %c1_150, %c0_151] : memref<2x10x12x6x128xf32, #tpu.memory_space<vmem>>, vector<1x1x8x4x128xf32>
        %260 = vector.shape_cast %259 : vector<1x1x8x4x128xf32> to vector<8x4x128xf32>
        %261 = vector.broadcast %257 : f32 to vector<8x4x128xf32>
        %262 = arith.mulf %260, %261 : vector<8x4x128xf32>
        %263 = arith.addf %245, %262 : vector<8x4x128xf32>
        %c0_152 = arith.constant 0 : index
        %264 = arith.index_cast %arg6 : i32 to index
        %c2_153 = arith.constant 2 : index
        %c2_154 = arith.constant 2 : index
        %c0_155 = arith.constant 0 : index
        %265 = vector.load %arg1[%c0_152, %264, %c2_153, %c2_154, %c0_155] : memref<2x10x12x6x128xf32, #tpu.memory_space<vmem>>, vector<1x1x8x4x128xf32>
        %266 = vector.shape_cast %265 : vector<1x1x8x4x128xf32> to vector<8x4x128xf32>
        %267 = vector.broadcast %257 : f32 to vector<8x4x128xf32>
        %268 = arith.mulf %266, %267 : vector<8x4x128xf32>
        %269 = arith.addf %251, %268 : vector<8x4x128xf32>
        %c25_i32_156 = arith.constant 25 : i32
        %270 = arith.muli %arg6, %c25_i32_156 : i32
        %c10_i32_157 = arith.constant 10 : i32
        %271 = arith.addi %270, %c10_i32_157 : i32
        %c4_i32_158 = arith.constant 4 : i32
        %272 = arith.addi %271, %c4_i32_158 : i32
        %273 = arith.index_cast %arg5 : i32 to index
        %274 = arith.index_cast %272 : i32 to index
        %275 = memref.load %arg2[%273, %274] : memref<20x250xf32, #tpu.memory_space<smem>>
        %c0_159 = arith.constant 0 : index
        %276 = arith.index_cast %arg6 : i32 to index
        %c2_160 = arith.constant 2 : index
        %c2_161 = arith.constant 2 : index
        %c0_162 = arith.constant 0 : index
        %277 = vector.load %arg1[%c0_159, %276, %c2_160, %c2_161, %c0_162] : memref<2x10x12x6x128xf32, #tpu.memory_space<vmem>>, vector<1x1x8x4x128xf32>
        %278 = vector.shape_cast %277 : vector<1x1x8x4x128xf32> to vector<8x4x128xf32>
        %279 = vector.broadcast %275 : f32 to vector<8x4x128xf32>
        %280 = arith.mulf %278, %279 : vector<8x4x128xf32>
        %281 = arith.addf %263, %280 : vector<8x4x128xf32>
        %c1_163 = arith.constant 1 : index
        %282 = arith.index_cast %arg6 : i32 to index
        %c2_164 = arith.constant 2 : index
        %c2_165 = arith.constant 2 : index
        %c0_166 = arith.constant 0 : index
        %283 = vector.load %arg1[%c1_163, %282, %c2_164, %c2_165, %c0_166] : memref<2x10x12x6x128xf32, #tpu.memory_space<vmem>>, vector<1x1x8x4x128xf32>
        %284 = vector.shape_cast %283 : vector<1x1x8x4x128xf32> to vector<8x4x128xf32>
        %285 = vector.broadcast %275 : f32 to vector<8x4x128xf32>
        %286 = arith.mulf %284, %285 : vector<8x4x128xf32>
        %287 = arith.addf %269, %286 : vector<8x4x128xf32>
        %c25_i32_167 = arith.constant 25 : i32
        %288 = arith.muli %arg6, %c25_i32_167 : i32
        %c15_i32 = arith.constant 15 : i32
        %289 = arith.addi %288, %c15_i32 : i32
        %c0_i32_168 = arith.constant 0 : i32
        %290 = arith.addi %289, %c0_i32_168 : i32
        %291 = arith.index_cast %arg5 : i32 to index
        %292 = arith.index_cast %290 : i32 to index
        %293 = memref.load %arg2[%291, %292] : memref<20x250xf32, #tpu.memory_space<smem>>
        %c0_169 = arith.constant 0 : index
        %294 = arith.index_cast %arg6 : i32 to index
        %c3 = arith.constant 3 : index
        %c0_170 = arith.constant 0 : index
        %c0_171 = arith.constant 0 : index
        %295 = vector.load %arg1[%c0_169, %294, %c3, %c0_170, %c0_171] : memref<2x10x12x6x128xf32, #tpu.memory_space<vmem>>, vector<1x1x8x4x128xf32>
        %296 = vector.shape_cast %295 : vector<1x1x8x4x128xf32> to vector<8x4x128xf32>
        %297 = vector.broadcast %293 : f32 to vector<8x4x128xf32>
        %298 = arith.mulf %296, %297 : vector<8x4x128xf32>
        %299 = arith.addf %281, %298 : vector<8x4x128xf32>
        %c1_172 = arith.constant 1 : index
        %300 = arith.index_cast %arg6 : i32 to index
        %c3_173 = arith.constant 3 : index
        %c0_174 = arith.constant 0 : index
        %c0_175 = arith.constant 0 : index
        %301 = vector.load %arg1[%c1_172, %300, %c3_173, %c0_174, %c0_175] : memref<2x10x12x6x128xf32, #tpu.memory_space<vmem>>, vector<1x1x8x4x128xf32>
        %302 = vector.shape_cast %301 : vector<1x1x8x4x128xf32> to vector<8x4x128xf32>
        %303 = vector.broadcast %293 : f32 to vector<8x4x128xf32>
        %304 = arith.mulf %302, %303 : vector<8x4x128xf32>
        %305 = arith.addf %287, %304 : vector<8x4x128xf32>
        %c25_i32_176 = arith.constant 25 : i32
        %306 = arith.muli %arg6, %c25_i32_176 : i32
        %c15_i32_177 = arith.constant 15 : i32
        %307 = arith.addi %306, %c15_i32_177 : i32
        %c1_i32_178 = arith.constant 1 : i32
        %308 = arith.addi %307, %c1_i32_178 : i32
        %309 = arith.index_cast %arg5 : i32 to index
        %310 = arith.index_cast %308 : i32 to index
        %311 = memref.load %arg2[%309, %310] : memref<20x250xf32, #tpu.memory_space<smem>>
        %c1_179 = arith.constant 1 : index
        %312 = arith.index_cast %arg6 : i32 to index
        %c3_180 = arith.constant 3 : index
        %c0_181 = arith.constant 0 : index
        %c0_182 = arith.constant 0 : index
        %313 = vector.load %arg1[%c1_179, %312, %c3_180, %c0_181, %c0_182] : memref<2x10x12x6x128xf32, #tpu.memory_space<vmem>>, vector<1x1x8x4x128xf32>
        %314 = vector.shape_cast %313 : vector<1x1x8x4x128xf32> to vector<8x4x128xf32>
        %315 = vector.broadcast %311 : f32 to vector<8x4x128xf32>
        %316 = arith.mulf %314, %315 : vector<8x4x128xf32>
        %317 = arith.addf %299, %316 : vector<8x4x128xf32>
        %c0_183 = arith.constant 0 : index
        %318 = arith.index_cast %arg6 : i32 to index
        %c3_184 = arith.constant 3 : index
        %c1_185 = arith.constant 1 : index
        %c0_186 = arith.constant 0 : index
        %319 = vector.load %arg1[%c0_183, %318, %c3_184, %c1_185, %c0_186] : memref<2x10x12x6x128xf32, #tpu.memory_space<vmem>>, vector<1x1x8x4x128xf32>
        %320 = vector.shape_cast %319 : vector<1x1x8x4x128xf32> to vector<8x4x128xf32>
        %321 = vector.broadcast %311 : f32 to vector<8x4x128xf32>
        %322 = arith.mulf %320, %321 : vector<8x4x128xf32>
        %323 = arith.addf %305, %322 : vector<8x4x128xf32>
        %c25_i32_187 = arith.constant 25 : i32
        %324 = arith.muli %arg6, %c25_i32_187 : i32
        %c15_i32_188 = arith.constant 15 : i32
        %325 = arith.addi %324, %c15_i32_188 : i32
        %c2_i32_189 = arith.constant 2 : i32
        %326 = arith.addi %325, %c2_i32_189 : i32
        %327 = arith.index_cast %arg5 : i32 to index
        %328 = arith.index_cast %326 : i32 to index
        %329 = memref.load %arg2[%327, %328] : memref<20x250xf32, #tpu.memory_space<smem>>
        %c0_190 = arith.constant 0 : index
        %330 = arith.index_cast %arg6 : i32 to index
        %c3_191 = arith.constant 3 : index
        %c1_192 = arith.constant 1 : index
        %c0_193 = arith.constant 0 : index
        %331 = vector.load %arg1[%c0_190, %330, %c3_191, %c1_192, %c0_193] : memref<2x10x12x6x128xf32, #tpu.memory_space<vmem>>, vector<1x1x8x4x128xf32>
        %332 = vector.shape_cast %331 : vector<1x1x8x4x128xf32> to vector<8x4x128xf32>
        %333 = vector.broadcast %329 : f32 to vector<8x4x128xf32>
        %334 = arith.mulf %332, %333 : vector<8x4x128xf32>
        %335 = arith.addf %317, %334 : vector<8x4x128xf32>
        %c1_194 = arith.constant 1 : index
        %336 = arith.index_cast %arg6 : i32 to index
        %c3_195 = arith.constant 3 : index
        %c1_196 = arith.constant 1 : index
        %c0_197 = arith.constant 0 : index
        %337 = vector.load %arg1[%c1_194, %336, %c3_195, %c1_196, %c0_197] : memref<2x10x12x6x128xf32, #tpu.memory_space<vmem>>, vector<1x1x8x4x128xf32>
        %338 = vector.shape_cast %337 : vector<1x1x8x4x128xf32> to vector<8x4x128xf32>
        %339 = vector.broadcast %329 : f32 to vector<8x4x128xf32>
        %340 = arith.mulf %338, %339 : vector<8x4x128xf32>
        %341 = arith.addf %323, %340 : vector<8x4x128xf32>
        %c25_i32_198 = arith.constant 25 : i32
        %342 = arith.muli %arg6, %c25_i32_198 : i32
        %c15_i32_199 = arith.constant 15 : i32
        %343 = arith.addi %342, %c15_i32_199 : i32
        %c3_i32_200 = arith.constant 3 : i32
        %344 = arith.addi %343, %c3_i32_200 : i32
        %345 = arith.index_cast %arg5 : i32 to index
        %346 = arith.index_cast %344 : i32 to index
        %347 = memref.load %arg2[%345, %346] : memref<20x250xf32, #tpu.memory_space<smem>>
        %c1_201 = arith.constant 1 : index
        %348 = arith.index_cast %arg6 : i32 to index
        %c3_202 = arith.constant 3 : index
        %c1_203 = arith.constant 1 : index
        %c0_204 = arith.constant 0 : index
        %349 = vector.load %arg1[%c1_201, %348, %c3_202, %c1_203, %c0_204] : memref<2x10x12x6x128xf32, #tpu.memory_space<vmem>>, vector<1x1x8x4x128xf32>
        %350 = vector.shape_cast %349 : vector<1x1x8x4x128xf32> to vector<8x4x128xf32>
        %351 = vector.broadcast %347 : f32 to vector<8x4x128xf32>
        %352 = arith.mulf %350, %351 : vector<8x4x128xf32>
        %353 = arith.addf %335, %352 : vector<8x4x128xf32>
        %c0_205 = arith.constant 0 : index
        %354 = arith.index_cast %arg6 : i32 to index
        %c3_206 = arith.constant 3 : index
        %c2_207 = arith.constant 2 : index
        %c0_208 = arith.constant 0 : index
        %355 = vector.load %arg1[%c0_205, %354, %c3_206, %c2_207, %c0_208] : memref<2x10x12x6x128xf32, #tpu.memory_space<vmem>>, vector<1x1x8x4x128xf32>
        %356 = vector.shape_cast %355 : vector<1x1x8x4x128xf32> to vector<8x4x128xf32>
        %357 = vector.broadcast %347 : f32 to vector<8x4x128xf32>
        %358 = arith.mulf %356, %357 : vector<8x4x128xf32>
        %359 = arith.addf %341, %358 : vector<8x4x128xf32>
        %c25_i32_209 = arith.constant 25 : i32
        %360 = arith.muli %arg6, %c25_i32_209 : i32
        %c15_i32_210 = arith.constant 15 : i32
        %361 = arith.addi %360, %c15_i32_210 : i32
        %c4_i32_211 = arith.constant 4 : i32
        %362 = arith.addi %361, %c4_i32_211 : i32
        %363 = arith.index_cast %arg5 : i32 to index
        %364 = arith.index_cast %362 : i32 to index
        %365 = memref.load %arg2[%363, %364] : memref<20x250xf32, #tpu.memory_space<smem>>
        %c0_212 = arith.constant 0 : index
        %366 = arith.index_cast %arg6 : i32 to index
        %c3_213 = arith.constant 3 : index
        %c2_214 = arith.constant 2 : index
        %c0_215 = arith.constant 0 : index
        %367 = vector.load %arg1[%c0_212, %366, %c3_213, %c2_214, %c0_215] : memref<2x10x12x6x128xf32, #tpu.memory_space<vmem>>, vector<1x1x8x4x128xf32>
        %368 = vector.shape_cast %367 : vector<1x1x8x4x128xf32> to vector<8x4x128xf32>
        %369 = vector.broadcast %365 : f32 to vector<8x4x128xf32>
        %370 = arith.mulf %368, %369 : vector<8x4x128xf32>
        %371 = arith.addf %353, %370 : vector<8x4x128xf32>
        %c1_216 = arith.constant 1 : index
        %372 = arith.index_cast %arg6 : i32 to index
        %c3_217 = arith.constant 3 : index
        %c2_218 = arith.constant 2 : index
        %c0_219 = arith.constant 0 : index
        %373 = vector.load %arg1[%c1_216, %372, %c3_217, %c2_218, %c0_219] : memref<2x10x12x6x128xf32, #tpu.memory_space<vmem>>, vector<1x1x8x4x128xf32>
        %374 = vector.shape_cast %373 : vector<1x1x8x4x128xf32> to vector<8x4x128xf32>
        %375 = vector.broadcast %365 : f32 to vector<8x4x128xf32>
        %376 = arith.mulf %374, %375 : vector<8x4x128xf32>
        %377 = arith.addf %359, %376 : vector<8x4x128xf32>
        %c25_i32_220 = arith.constant 25 : i32
        %378 = arith.muli %arg6, %c25_i32_220 : i32
        %c20_i32_221 = arith.constant 20 : i32
        %379 = arith.addi %378, %c20_i32_221 : i32
        %c0_i32_222 = arith.constant 0 : i32
        %380 = arith.addi %379, %c0_i32_222 : i32
        %381 = arith.index_cast %arg5 : i32 to index
        %382 = arith.index_cast %380 : i32 to index
        %383 = memref.load %arg2[%381, %382] : memref<20x250xf32, #tpu.memory_space<smem>>
        %c0_223 = arith.constant 0 : index
        %384 = arith.index_cast %arg6 : i32 to index
        %c4 = arith.constant 4 : index
        %c0_224 = arith.constant 0 : index
        %c0_225 = arith.constant 0 : index
        %385 = vector.load %arg1[%c0_223, %384, %c4, %c0_224, %c0_225] : memref<2x10x12x6x128xf32, #tpu.memory_space<vmem>>, vector<1x1x8x4x128xf32>
        %386 = vector.shape_cast %385 : vector<1x1x8x4x128xf32> to vector<8x4x128xf32>
        %387 = vector.broadcast %383 : f32 to vector<8x4x128xf32>
        %388 = arith.mulf %386, %387 : vector<8x4x128xf32>
        %389 = arith.addf %371, %388 : vector<8x4x128xf32>
        %c1_226 = arith.constant 1 : index
        %390 = arith.index_cast %arg6 : i32 to index
        %c4_227 = arith.constant 4 : index
        %c0_228 = arith.constant 0 : index
        %c0_229 = arith.constant 0 : index
        %391 = vector.load %arg1[%c1_226, %390, %c4_227, %c0_228, %c0_229] : memref<2x10x12x6x128xf32, #tpu.memory_space<vmem>>, vector<1x1x8x4x128xf32>
        %392 = vector.shape_cast %391 : vector<1x1x8x4x128xf32> to vector<8x4x128xf32>
        %393 = vector.broadcast %383 : f32 to vector<8x4x128xf32>
        %394 = arith.mulf %392, %393 : vector<8x4x128xf32>
        %395 = arith.addf %377, %394 : vector<8x4x128xf32>
        %c25_i32_230 = arith.constant 25 : i32
        %396 = arith.muli %arg6, %c25_i32_230 : i32
        %c20_i32_231 = arith.constant 20 : i32
        %397 = arith.addi %396, %c20_i32_231 : i32
        %c1_i32_232 = arith.constant 1 : i32
        %398 = arith.addi %397, %c1_i32_232 : i32
        %399 = arith.index_cast %arg5 : i32 to index
        %400 = arith.index_cast %398 : i32 to index
        %401 = memref.load %arg2[%399, %400] : memref<20x250xf32, #tpu.memory_space<smem>>
        %c1_233 = arith.constant 1 : index
        %402 = arith.index_cast %arg6 : i32 to index
        %c4_234 = arith.constant 4 : index
        %c0_235 = arith.constant 0 : index
        %c0_236 = arith.constant 0 : index
        %403 = vector.load %arg1[%c1_233, %402, %c4_234, %c0_235, %c0_236] : memref<2x10x12x6x128xf32, #tpu.memory_space<vmem>>, vector<1x1x8x4x128xf32>
        %404 = vector.shape_cast %403 : vector<1x1x8x4x128xf32> to vector<8x4x128xf32>
        %405 = vector.broadcast %401 : f32 to vector<8x4x128xf32>
        %406 = arith.mulf %404, %405 : vector<8x4x128xf32>
        %407 = arith.addf %389, %406 : vector<8x4x128xf32>
        %c0_237 = arith.constant 0 : index
        %408 = arith.index_cast %arg6 : i32 to index
        %c4_238 = arith.constant 4 : index
        %c1_239 = arith.constant 1 : index
        %c0_240 = arith.constant 0 : index
        %409 = vector.load %arg1[%c0_237, %408, %c4_238, %c1_239, %c0_240] : memref<2x10x12x6x128xf32, #tpu.memory_space<vmem>>, vector<1x1x8x4x128xf32>
        %410 = vector.shape_cast %409 : vector<1x1x8x4x128xf32> to vector<8x4x128xf32>
        %411 = vector.broadcast %401 : f32 to vector<8x4x128xf32>
        %412 = arith.mulf %410, %411 : vector<8x4x128xf32>
        %413 = arith.addf %395, %412 : vector<8x4x128xf32>
        %c25_i32_241 = arith.constant 25 : i32
        %414 = arith.muli %arg6, %c25_i32_241 : i32
        %c20_i32_242 = arith.constant 20 : i32
        %415 = arith.addi %414, %c20_i32_242 : i32
        %c2_i32_243 = arith.constant 2 : i32
        %416 = arith.addi %415, %c2_i32_243 : i32
        %417 = arith.index_cast %arg5 : i32 to index
        %418 = arith.index_cast %416 : i32 to index
        %419 = memref.load %arg2[%417, %418] : memref<20x250xf32, #tpu.memory_space<smem>>
        %c0_244 = arith.constant 0 : index
        %420 = arith.index_cast %arg6 : i32 to index
        %c4_245 = arith.constant 4 : index
        %c1_246 = arith.constant 1 : index
        %c0_247 = arith.constant 0 : index
        %421 = vector.load %arg1[%c0_244, %420, %c4_245, %c1_246, %c0_247] : memref<2x10x12x6x128xf32, #tpu.memory_space<vmem>>, vector<1x1x8x4x128xf32>
        %422 = vector.shape_cast %421 : vector<1x1x8x4x128xf32> to vector<8x4x128xf32>
        %423 = vector.broadcast %419 : f32 to vector<8x4x128xf32>
        %424 = arith.mulf %422, %423 : vector<8x4x128xf32>
        %425 = arith.addf %407, %424 : vector<8x4x128xf32>
        %c1_248 = arith.constant 1 : index
        %426 = arith.index_cast %arg6 : i32 to index
        %c4_249 = arith.constant 4 : index
        %c1_250 = arith.constant 1 : index
        %c0_251 = arith.constant 0 : index
        %427 = vector.load %arg1[%c1_248, %426, %c4_249, %c1_250, %c0_251] : memref<2x10x12x6x128xf32, #tpu.memory_space<vmem>>, vector<1x1x8x4x128xf32>
        %428 = vector.shape_cast %427 : vector<1x1x8x4x128xf32> to vector<8x4x128xf32>
        %429 = vector.broadcast %419 : f32 to vector<8x4x128xf32>
        %430 = arith.mulf %428, %429 : vector<8x4x128xf32>
        %431 = arith.addf %413, %430 : vector<8x4x128xf32>
        %c25_i32_252 = arith.constant 25 : i32
        %432 = arith.muli %arg6, %c25_i32_252 : i32
        %c20_i32_253 = arith.constant 20 : i32
        %433 = arith.addi %432, %c20_i32_253 : i32
        %c3_i32_254 = arith.constant 3 : i32
        %434 = arith.addi %433, %c3_i32_254 : i32
        %435 = arith.index_cast %arg5 : i32 to index
        %436 = arith.index_cast %434 : i32 to index
        %437 = memref.load %arg2[%435, %436] : memref<20x250xf32, #tpu.memory_space<smem>>
        %c1_255 = arith.constant 1 : index
        %438 = arith.index_cast %arg6 : i32 to index
        %c4_256 = arith.constant 4 : index
        %c1_257 = arith.constant 1 : index
        %c0_258 = arith.constant 0 : index
        %439 = vector.load %arg1[%c1_255, %438, %c4_256, %c1_257, %c0_258] : memref<2x10x12x6x128xf32, #tpu.memory_space<vmem>>, vector<1x1x8x4x128xf32>
        %440 = vector.shape_cast %439 : vector<1x1x8x4x128xf32> to vector<8x4x128xf32>
        %441 = vector.broadcast %437 : f32 to vector<8x4x128xf32>
        %442 = arith.mulf %440, %441 : vector<8x4x128xf32>
        %443 = arith.addf %425, %442 : vector<8x4x128xf32>
        %c0_259 = arith.constant 0 : index
        %444 = arith.index_cast %arg6 : i32 to index
        %c4_260 = arith.constant 4 : index
        %c2_261 = arith.constant 2 : index
        %c0_262 = arith.constant 0 : index
        %445 = vector.load %arg1[%c0_259, %444, %c4_260, %c2_261, %c0_262] : memref<2x10x12x6x128xf32, #tpu.memory_space<vmem>>, vector<1x1x8x4x128xf32>
        %446 = vector.shape_cast %445 : vector<1x1x8x4x128xf32> to vector<8x4x128xf32>
        %447 = vector.broadcast %437 : f32 to vector<8x4x128xf32>
        %448 = arith.mulf %446, %447 : vector<8x4x128xf32>
        %449 = arith.addf %431, %448 : vector<8x4x128xf32>
        %c25_i32_263 = arith.constant 25 : i32
        %450 = arith.muli %arg6, %c25_i32_263 : i32
        %c20_i32_264 = arith.constant 20 : i32
        %451 = arith.addi %450, %c20_i32_264 : i32
        %c4_i32_265 = arith.constant 4 : i32
        %452 = arith.addi %451, %c4_i32_265 : i32
        %453 = arith.index_cast %arg5 : i32 to index
        %454 = arith.index_cast %452 : i32 to index
        %455 = memref.load %arg2[%453, %454] : memref<20x250xf32, #tpu.memory_space<smem>>
        %c0_266 = arith.constant 0 : index
        %456 = arith.index_cast %arg6 : i32 to index
        %c4_267 = arith.constant 4 : index
        %c2_268 = arith.constant 2 : index
        %c0_269 = arith.constant 0 : index
        %457 = vector.load %arg1[%c0_266, %456, %c4_267, %c2_268, %c0_269] : memref<2x10x12x6x128xf32, #tpu.memory_space<vmem>>, vector<1x1x8x4x128xf32>
        %458 = vector.shape_cast %457 : vector<1x1x8x4x128xf32> to vector<8x4x128xf32>
        %459 = vector.broadcast %455 : f32 to vector<8x4x128xf32>
        %460 = arith.mulf %458, %459 : vector<8x4x128xf32>
        %461 = arith.addf %443, %460 : vector<8x4x128xf32>
        %c1_270 = arith.constant 1 : index
        %462 = arith.index_cast %arg6 : i32 to index
        %c4_271 = arith.constant 4 : index
        %c2_272 = arith.constant 2 : index
        %c0_273 = arith.constant 0 : index
        %463 = vector.load %arg1[%c1_270, %462, %c4_271, %c2_272, %c0_273] : memref<2x10x12x6x128xf32, #tpu.memory_space<vmem>>, vector<1x1x8x4x128xf32>
        %464 = vector.shape_cast %463 : vector<1x1x8x4x128xf32> to vector<8x4x128xf32>
        %465 = vector.broadcast %455 : f32 to vector<8x4x128xf32>
        %466 = arith.mulf %464, %465 : vector<8x4x128xf32>
        %467 = arith.addf %449, %466 : vector<8x4x128xf32>
        scf.yield %461, %467 : vector<8x4x128xf32>, vector<8x4x128xf32>
      }
      %c10_i32_4 = arith.constant 10 : i32
      %5 = arith.index_cast %arg5 : i32 to index
      %6 = memref.load %arg3[%5] : memref<20xf32, #tpu.memory_space<smem>>
      %7 = arith.maximumf %4#0, %4#1 : vector<8x4x128xf32>
      %8 = vector.shape_cast %7 : vector<8x4x128xf32> to vector<4x2x4x128xf32>
      %cst_5 = arith.constant dense<0xFF800000> : vector<4x4x128xf32>
      %9 = vector.multi_reduction <maximumf>, %8, %cst_5 [1] : vector<4x2x4x128xf32> to vector<4x4x128xf32>
      %10 = vector.broadcast %6 : f32 to vector<4x4x128xf32>
      %11 = arith.addf %9, %10 : vector<4x4x128xf32>
      %cst_6 = arith.constant 0.000000e+00 : f32
      %12 = vector.broadcast %cst_6 : f32 to vector<4x4x128xf32>
      %13 = arith.maximumf %11, %12 : vector<4x4x128xf32>
      %14 = arith.index_cast %arg5 : i32 to index
      %c0 = arith.constant 0 : index
      %c0_7 = arith.constant 0 : index
      %c0_8 = arith.constant 0 : index
      %15 = vector.load %arg4[%14, %c0, %c0_7, %c0_8] : memref<20x4x4x128xf32, #tpu.memory_space<vmem>>, vector<1x4x4x128xf32>
      %16 = vector.shape_cast %15 : vector<1x4x4x128xf32> to vector<4x4x128xf32>
      %17 = vector.shape_cast %13 : vector<4x4x128xf32> to vector<1x4x4x128xf32>
      tpu.vector_store %arg4[%14, %c0, %c0_7, %c0_8], %17 {strides = array<i32>} : memref<20x4x4x128xf32, #tpu.memory_space<vmem>>, vector<1x4x4x128xf32>,
    }
    %c20_i32_0 = arith.constant 20 : i32
    return
  }
  func.func @transform_0(%arg0: i32) -> (i32, i32, i32, i32, i32) {
    %c0_i32 = arith.constant 0 : i32
    %c0_i32_0 = arith.constant 0 : i32
    %c0_i32_1 = arith.constant 0 : i32
    %c0_i32_2 = arith.constant 0 : i32
    %c0_i32_3 = arith.constant 0 : i32
    return %c0_i32, %c0_i32_0, %c0_i32_1, %c0_i32_2, %arg0 : i32, i32, i32, i32, i32
  }
  func.func @transform_1(%arg0: i32) -> (i32, i32) {
    %c0_i32 = arith.constant 0 : i32
    %c0_i32_0 = arith.constant 0 : i32
    %c0_i32_1 = arith.constant 0 : i32
    return %c0_i32, %c0_i32_0 : i32, i32
  }
  func.func @transform_2(%arg0: i32) -> i32 {
    %c0_i32 = arith.constant 0 : i32
    %c0_i32_0 = arith.constant 0 : i32
    return %c0_i32 : i32
  }
  func.func @transform_3(%arg0: i32) -> (i32, i32, i32, i32) {
    %c0_i32 = arith.constant 0 : i32
    %c0_i32_0 = arith.constant 0 : i32
    %c0_i32_1 = arith.constant 0 : i32
    %c0_i32_2 = arith.constant 0 : i32
    return %c0_i32, %c0_i32_0, %c0_i32_1, %arg0 : i32, i32, i32, i32
  }
}

</mosaic_0001>

<llo_original>
// kernel: lenet1_forward.5
$region0: #{lenet1_forward.5}
  #allocation0 [shape = 'u32[]', space=smem, size = 0x4, offset = 0x4, fixed_abs, tag = 'smem constant byte address 0x4 - core index']
  #allocation1 [shape = 'u32[144,128]{1,0:T(1,128)}', space=vmem, size = 0x12000, scoped, tag = 'internal scratch']
  %s0 = inlined_call_operand.vmem [shape: f32[320,128], index: 0, kind: input, shape index: {}]
  %s1 = inlined_call_operand.vmem [shape: f32[50,320], index: 1, kind: input, shape index: {}]
  %s2 = inlined_call_operand.vmem [shape: f32[50,1], index: 2, kind: input, shape index: {}]
  %s3 = inlined_call_operand.vmem [shape: f32[10,50], index: 3, kind: input, shape index: {}]
  %s4 = inlined_call_operand.vmem [shape: f32[10,1], index: 4, kind: input, shape index: {}]
  %s5 = inlined_call_operand.vmem [shape: f32[10,128], index: 5, kind: output, shape index: {}]
  %s6 = sld [smem:[#allocation0]]
  $region30: #{lenet1_forward.5} parent=0
    _
  %s8 = ssub.s32 1, %s6
  %s9 = scalar_select 0, %s8, %s6
  // Predicated region
  $region2: #{lenet1_forward.5} parent=0 // pred_check
    _
  $region3: #{lenet1_forward.5} parent=0 // pred_check_branch
    %11 = sbr.rel (0) target = $region5
  $region4: #{lenet1_forward.5} parent=0 // pred_region
    _
  $region5: #{lenet1_forward.5} parent=0 // pred_fallthru
    _
  // Predicated region
  $region6: #{lenet1_forward.5} parent=0 // pred_check
    _
  $region7: #{lenet1_forward.5} parent=0 // pred_check_branch
    %13 = sbr.rel (0) target = $region9
  $region8: #{lenet1_forward.5} parent=0 // pred_region
    _
  $region9: #{lenet1_forward.5} parent=0 // pred_fallthru
    _
  // Predicated region
  $region10: #{lenet1_forward.5} parent=0 // pred_check
    _
  $region11: #{lenet1_forward.5} parent=0 // pred_check_branch
    %15 = sbr.rel (0) target = $region13
  $region12: #{lenet1_forward.5} parent=0 // pred_region
    _
  $region13: #{lenet1_forward.5} parent=0 // pred_fallthru
    _
  // Predicated region
  $region14: #{lenet1_forward.5} parent=0 // pred_check
    _
  $region15: #{lenet1_forward.5} parent=0 // pred_check_branch
    %17 = sbr.rel (0) target = $region17
  $region16: #{lenet1_forward.5} parent=0 // pred_region
    _
  $region17: #{lenet1_forward.5} parent=0 // pred_fallthru
    _
  // Predicated region
  $region18: #{lenet1_forward.5} parent=0 // pred_check
    _
  $region19: #{lenet1_forward.5} parent=0 // pred_check_branch
    %19 = sbr.rel (0) target = $region21
  $region20: #{lenet1_forward.5} parent=0 // pred_region
    _
  $region21: #{lenet1_forward.5} parent=0 // pred_fallthru
    _
  %v20 = vld [vmem:[%s0] sm:$0xff]
  %v21 = vld [vmem:[%s0 + $0x8] sm:$0xff]
  %v22 = vld [vmem:[%s0 + $0x10] sm:$0xff]
  %v23 = vld [vmem:[%s0 + $0x18] sm:$0xff]
  %v24 = vld [vmem:[%s0 + $0x20] sm:$0xff]
  %v25 = vld [vmem:[%s0 + $0x28] sm:$0xff]
  %v26 = vld [vmem:[%s0 + $0x30] sm:$0xff]
  %v27 = vld [vmem:[%s0 + $0x38] sm:$0xff]
  %v28 = vld [vmem:[%s0 + $0x40] sm:$0xff]
  %v29 = vld [vmem:[%s0 + $0x48] sm:$0xff]
  %v30 = vld [vmem:[%s0 + $0x50] sm:$0xff]
  %v31 = vld [vmem:[%s0 + $0x58] sm:$0xff]
  %v32 = vld [vmem:[%s0 + $0x60] sm:$0xff]
  %v33 = vld [vmem:[%s0 + $0x68] sm:$0xff]
  %v34 = vld [vmem:[%s0 + $0x70] sm:$0xff]
  %v35 = vld [vmem:[%s0 + $0x78] sm:$0xff]
  %v36 = vld [vmem:[%s0 + $0x80] sm:$0xff]
  %v37 = vld [vmem:[%s0 + $0x88] sm:$0xff]
  %v38 = vld [vmem:[%s0 + $0x90] sm:$0xff]
  %v39 = vld [vmem:[%s0 + $0x98] sm:$0xff]
  %v40 = vld [vmem:[%s0 + $0xa0] sm:$0xff]
  %v41 = vld [vmem:[%s0 + $0xa8] sm:$0xff]
  %v42 = vld [vmem:[%s0 + $0xb0] sm:$0xff]
  %v43 = vld [vmem:[%s0 + $0xb8] sm:$0xff]
  %v44 = vld [vmem:[%s0 + $0xc0] sm:$0xff]
  %v45 = vld [vmem:[%s0 + $0xc8] sm:$0xff]
  %v46 = vld [vmem:[%s0 + $0xd0] sm:$0xff]
  %v47 = vld [vmem:[%s0 + $0xd8] sm:$0xff]
  %v48 = vld [vmem:[%s0 + $0xe0] sm:$0xff]
  %v49 = vld [vmem:[%s0 + $0xe8] sm:$0xff]
  %v50 = vld [vmem:[%s0 + $0xf0] sm:$0xff]
  %v51 = vld [vmem:[%s0 + $0xf8] sm:$0xff]
  %v52 = vld [vmem:[%s0 + $0x100] sm:$0xff]
  %v53 = vld [vmem:[%s0 + $0x108] sm:$0xff]
  %v54 = vld [vmem:[%s0 + $0x110] sm:$0xff]
  %v55 = vld [vmem:[%s0 + $0x118] sm:$0xff]
  %v56 = vld [vmem:[%s0 + $0x120] sm:$0xff]
  %v57 = vld [vmem:[%s0 + $0x128] sm:$0xff]
  %v58 = vld [vmem:[%s0 + $0x130] sm:$0xff]
  %v59 = vld [vmem:[%s0 + $0x138] sm:$0xff]
  %v60 = vld [vmem:[%s1] sm:$0xff]
  %v61 = vld [vmem:[%s1 + $0x8] sm:$0xff]
  %v62 = vld [vmem:[%s1 + $0x10] sm:$0xff]
  %v63 = vld [vmem:[%s1 + $0x18] sm:$0xff]
  %v64 = vld [vmem:[%s1 + $0x20] sm:$0xff]
  %v65 = vld [vmem:[%s1 + $0x28] sm:$0xff]
  %v66 = vld [vmem:[%s1 + $0x30] sm:$0xff]
  %v67 = vld [vmem:[%s1 + $0x38] sm:$0xff]
  %v68 = vld [vmem:[%s1 + $0x40] sm:$0xff]
  %v69 = vld [vmem:[%s1 + $0x48] sm:$0xff]
  %v70 = vld [vmem:[%s1 + $0x50] sm:$0xff]
  %v71 = vld [vmem:[%s1 + $0x58] sm:$0xff]
  %v72 = vld [vmem:[%s1 + $0x60] sm:$0xff]
  %v73 = vld [vmem:[%s1 + $0x68] sm:$0xff]
  %v74 = vld [vmem:[%s1 + $0x70] sm:$0xff]
  %v75 = vld [vmem:[%s1 + $0x78] sm:$0xff]
  %v76 = vld [vmem:[%s1 + $0x80] sm:$0xff]
  %v77 = vld [vmem:[%s1 + $0x88] sm:$0xff]
  %v78 = vld [vmem:[%s1 + $0x90] sm:$0x3]
  %v79 = vld [vmem:[%s1 + $0x98] sm:$0x3]
  %v80 = vld [vmem:[%s1 + $0xa0] sm:$0x3]
  %v81 = vld [vmem:[%s2] sm:$0xff]
  %v82 = vld [vmem:[%s2 + $0x8] sm:$0xff]
  %v83 = vld [vmem:[%s2 + $0x10] sm:$0xff]
  %v84 = vld [vmem:[%s2 + $0x18] sm:$0xff]
  %v85 = vld [vmem:[%s2 + $0x20] sm:$0xff]
  %v86 = vld [vmem:[%s2 + $0x28] sm:$0xff]
  %v87 = vld [vmem:[%s2 + $0x30] sm:$0x3]
  %89 = vset.pattern.permute.xlu0 0
  %90 = vperm.xlu0 %89, %v81
  %v91 = vpop.permute.xlu0 %90
  %94 = vset.pattern.permute.xlu0 0
  %95 = vperm.xlu0 %94, %v82
  %v96 = vpop.permute.xlu0 %95
  %99 = vset.pattern.permute.xlu0 0
  %100 = vperm.xlu0 %99, %v83
  %v101 = vpop.permute.xlu0 %100
  %104 = vset.pattern.permute.xlu0 0
  %105 = vperm.xlu0 %104, %v84
  %v106 = vpop.permute.xlu0 %105
  %109 = vset.pattern.permute.xlu0 0
  %110 = vperm.xlu0 %109, %v85
  %v111 = vpop.permute.xlu0 %110
  %114 = vset.pattern.permute.xlu0 0
  %115 = vperm.xlu0 %114, %v86
  %v116 = vpop.permute.xlu0 %115
  %119 = vset.pattern.permute.xlu0 0
  %120 = vperm.xlu0 %119, %v87
  %v121 = vpop.permute.xlu0 %120
  %vm123 = vcmask 523264
  %v125 = vsel %vm123, %v62, 0
  %v128 = vsel %vm123, %v65, 0
  %v131 = vsel %vm123, %v68, 0
  %v134 = vsel %vm123, %v71, 0
  %v137 = vsel %vm123, %v74, 0
  %v140 = vsel %vm123, %v77, 0
  %v143 = vsel %vm123, %v80, 0
  %145 = vmatprep.subr.mxu0 0.0
  %146 = vmatpush1.msra.mxu0 %v20
  %147 = vmatprep.subr.mxu0 0.0
  %148 = vmatpush1.msra.mxu0 %v21
  %149 = vmatprep.subr.mxu0 0.0
  %150 = vmatpush1.msra.mxu0 %v22
  %151 = vmatprep.subr.mxu0 0.0
  %152 = vmatpush1.msra.mxu0 %v23
  %153 = vmatprep.subr.mxu0 0.0
  %154 = vmatpush1.msra.mxu0 %v24
  %155 = vmatprep.subr.mxu0 0.0
  %156 = vmatpush1.msra.mxu0 %v25
  %157 = vmatprep.subr.mxu0 0.0
  %158 = vmatpush1.msra.mxu0 %v26
  %159 = vmatprep.subr.mxu0 0.0
  %160 = vmatpush1.msra.mxu0 %v27
  %161 = vmatprep.subr.mxu0 0.0
  %162 = vmatpush1.msra.mxu0 %v28
  %163 = vmatprep.subr.mxu0 0.0
  %164 = vmatpush1.msra.mxu0 %v29
  %165 = vmatprep.subr.mxu0 0.0
  %166 = vmatpush1.msra.mxu0 %v30
  %167 = vmatprep.subr.mxu0 0.0
  %168 = vmatpush1.msra.mxu0 %v31
  %169 = vmatprep.subr.mxu0 0.0
  %170 = vmatpush1.msra.mxu0 %v32
  %171 = vmatprep.subr.mxu0 0.0
  %172 = vmatpush1.msra.mxu0 %v33
  %173 = vmatprep.subr.mxu0 0.0
  %174 = vmatpush1.msra.mxu0 %v34
  %175 = vmatprep.subr.mxu0 0.0
  %176 = vmatpush1.msra.mxu0 %v35
  %177 = vmatprep.subr.mxu0 0.0
  %178 = vmatpush1.msra.mxu0 %v36
  %179 = vmatprep.subr.mxu0 0.0
  %180 = vmatpush1.msra.mxu0 %v37
  %181 = vmatprep.subr.mxu0 0.0
  %182 = vmatpush1.msra.mxu0 %v38
  %183 = vmatprep.subr.mxu0 0.0
  %184 = vmatpush1.msra.mxu0 %v39
  %185 = vmatprep.subr.mxu0 0.0
  %186 = vmatpush1.msra.mxu0 %v40
  %187 = vmatprep.subr.mxu0 0.0
  %188 = vmatpush1.msra.mxu0 %v41
  %189 = vmatprep.subr.mxu0 0.0
  %190 = vmatpush1.msra.mxu0 %v42
  %191 = vmatprep.subr.mxu0 0.0
  %192 = vmatpush1.msra.mxu0 %v43
  %193 = vmatprep.subr.mxu0 0.0
  %194 = vmatpush1.msra.mxu0 %v44
  %195 = vmatprep.subr.mxu0 0.0
  %196 = vmatpush1.msra.mxu0 %v45
  %197 = vmatprep.subr.mxu0 0.0
  %198 = vmatpush1.msra.mxu0 %v46
  %199 = vmatprep.subr.mxu0 0.0
  %200 = vmatpush1.msra.mxu0 %v47
  %201 = vmatprep.subr.mxu0 0.0
  %202 = vmatpush1.msra.mxu0 %v48
  %203 = vmatprep.subr.mxu0 0.0
  %204 = vmatpush1.msra.mxu0 %v49
  %205 = vmatprep.subr.mxu0 0.0
  %206 = vmatpush1.msra.mxu0 %v50
  %207 = vmatprep.subr.mxu0 0.0
  %208 = vmatpush1.msra.mxu0 %v51
  %209 = vmatprep.mubr.f32.mxu0 %v61
  %210 = vmatmul.mubr.f32.gmra.mrb[0].mxu0 %v60
  %v211 = vpop.f32.mrb[0].mxu0
  %v212 = vadd.f32 %v91, %v211
  %v213 = vpop.f32.mrb[0].mxu0
  %214 = vmatprep.mubr.f32.mxu0 %v64
  %215 = vmatmul.mubr.f32.gmra.mrb[0].mxu0 %v63
  %v216 = vpop.f32.mrb[0].mxu0
  %v217 = vadd.f32 %v96, %v216
  %v218 = vpop.f32.mrb[0].mxu0
  %219 = vmatprep.mubr.f32.mxu0 %v67
  %220 = vmatmul.mubr.f32.gmra.mrb[0].mxu0 %v66
  %v221 = vpop.f32.mrb[0].mxu0
  %v222 = vadd.f32 %v101, %v221
  %v223 = vpop.f32.mrb[0].mxu0
  %224 = vmatprep.mubr.f32.mxu0 %v70
  %225 = vmatmul.mubr.f32.gmra.mrb[0].mxu0 %v69
  %v226 = vpop.f32.mrb[0].mxu0
  %v227 = vadd.f32 %v106, %v226
  %v228 = vpop.f32.mrb[0].mxu0
  %229 = vmatprep.mubr.f32.mxu0 %v73
  %230 = vmatmul.mubr.f32.gmra.mrb[0].mxu0 %v72
  %v231 = vpop.f32.mrb[0].mxu0
  %v232 = vadd.f32 %v111, %v231
  %v233 = vpop.f32.mrb[0].mxu0
  %234 = vmatprep.mubr.f32.mxu0 %v76
  %235 = vmatmul.mubr.f32.gmra.mrb[0].mxu0 %v75
  %v236 = vpop.f32.mrb[0].mxu0
  %v237 = vadd.f32 %v116, %v236
  %v238 = vpop.f32.mrb[0].mxu0
  %239 = vmatprep.mubr.f32.mxu0 %v79
  %240 = vmatmul.mubr.f32.gmra.mrb[0].mxu0 %v78
  %v241 = vpop.f32.mrb[0].mxu0
  %v242 = vadd.f32 %v121, %v241
  %v243 = vpop.f32.mrb[0].mxu0
  %244 = vdwg.mxu0
  %245 = vmatprep.subr.mxu0 0.0
  %246 = vmatpush1.msra.mxu0 %v52
  %247 = vmatprep.subr.mxu0 0.0
  %248 = vmatpush1.msra.mxu0 %v53
  %249 = vmatprep.subr.mxu0 0.0
  %250 = vmatpush1.msra.mxu0 %v54
  %251 = vmatprep.subr.mxu0 0.0
  %252 = vmatpush1.msra.mxu0 %v55
  %253 = vmatprep.subr.mxu0 0.0
  %254 = vmatpush1.msra.mxu0 %v56
  %255 = vmatprep.subr.mxu0 0.0
  %256 = vmatpush1.msra.mxu0 %v57
  %257 = vmatprep.subr.mxu0 0.0
  %258 = vmatpush1.msra.mxu0 %v58
  %259 = vmatprep.subr.mxu0 0.0
  %260 = vmatpush1.msra.mxu0 %v59
  %261 = vmatprep.subr.mxu0 0.0
  %262 = vmatpush1.msra.mxu0 0.0
  %263 = vmatprep.subr.mxu0 0.0
  %264 = vmatpush1.msra.mxu0 0.0
  %265 = vmatprep.subr.mxu0 0.0
  %266 = vmatpush1.msra.mxu0 0.0
  %267 = vmatprep.subr.mxu0 0.0
  %268 = vmatpush1.msra.mxu0 0.0
  %269 = vmatprep.subr.mxu0 0.0
  %270 = vmatpush1.msra.mxu0 0.0
  %271 = vmatprep.subr.mxu0 0.0
  %272 = vmatpush1.msra.mxu0 0.0
  %273 = vmatprep.subr.mxu0 0.0
  %274 = vmatpush1.msra.mxu0 0.0
  %275 = vmatprep.subr.mxu0 0.0
  %276 = vmatpush1.msra.mxu0 0.0
  %277 = vmatprep.subr.mxu0 0.0
  %278 = vmatpush1.msra.mxu0 0.0
  %279 = vmatprep.subr.mxu0 0.0
  %280 = vmatpush1.msra.mxu0 0.0
  %281 = vmatprep.subr.mxu0 0.0
  %282 = vmatpush1.msra.mxu0 0.0
  %283 = vmatprep.subr.mxu0 0.0
  %284 = vmatpush1.msra.mxu0 0.0
  %285 = vmatprep.subr.mxu0 0.0
  %286 = vmatpush1.msra.mxu0 0.0
  %287 = vmatprep.subr.mxu0 0.0
  %288 = vmatpush1.msra.mxu0 0.0
  %289 = vmatprep.subr.mxu0 0.0
  %290 = vmatpush1.msra.mxu0 0.0
  %291 = vmatprep.subr.mxu0 0.0
  %292 = vmatpush1.msra.mxu0 0.0
  %293 = vmatprep.subr.mxu0 0.0
  %294 = vmatpush1.msra.mxu0 0.0
  %295 = vmatprep.subr.mxu0 0.0
  %296 = vmatpush1.msra.mxu0 0.0
  %297 = vmatprep.subr.mxu0 0.0
  %298 = vmatpush1.msra.mxu0 0.0
  %299 = vmatprep.subr.mxu0 0.0
  %300 = vmatpush1.msra.mxu0 0.0
  %301 = vmatprep.subr.mxu0 0.0
  %302 = vmatpush1.msra.mxu0 0.0
  %303 = vmatprep.subr.mxu0 0.0
  %304 = vmatpush1.msra.mxu0 0.0
  %305 = vmatprep.subr.mxu0 0.0
  %306 = vmatpush1.msra.mxu0 0.0
  %307 = vmatprep.subr.mxu0 0.0
  %308 = vmatpush1.msra.mxu0 0.0
  %309 = vmatprep.mubr.f32.mxu0 0.0
  %310 = vmatmul.mubr.f32.gmra.mrb[0].mxu0 %v125
  %v311 = vpop.f32.mrb[0].mxu0
  %v312 = vadd.f32 %v212, %v311
  %v313 = vpop.f32.mrb[0].mxu0
  %314 = vmatprep.mubr.f32.mxu0 0.0
  %315 = vmatmul.mubr.f32.gmra.mrb[0].mxu0 %v128
  %v316 = vpop.f32.mrb[0].mxu0
  %v317 = vadd.f32 %v217, %v316
  %v318 = vpop.f32.mrb[0].mxu0
  %319 = vmatprep.mubr.f32.mxu0 0.0
  %320 = vmatmul.mubr.f32.gmra.mrb[0].mxu0 %v131
  %v321 = vpop.f32.mrb[0].mxu0
  %v322 = vadd.f32 %v222, %v321
  %v323 = vpop.f32.mrb[0].mxu0
  %324 = vmatprep.mubr.f32.mxu0 0.0
  %325 = vmatmul.mubr.f32.gmra.mrb[0].mxu0 %v134
  %v326 = vpop.f32.mrb[0].mxu0
  %v327 = vadd.f32 %v227, %v326
  %v328 = vpop.f32.mrb[0].mxu0
  %329 = vmatprep.mubr.f32.mxu0 0.0
  %330 = vmatmul.mubr.f32.gmra.mrb[0].mxu0 %v137
  %v331 = vpop.f32.mrb[0].mxu0
  %v332 = vadd.f32 %v232, %v331
  %v333 = vpop.f32.mrb[0].mxu0
  %334 = vmatprep.mubr.f32.mxu0 0.0
  %335 = vmatmul.mubr.f32.gmra.mrb[0].mxu0 %v140
  %v336 = vpop.f32.mrb[0].mxu0
  %v337 = vadd.f32 %v237, %v336
  %v338 = vpop.f32.mrb[0].mxu0
  %339 = vmatprep.mubr.f32.mxu0 0.0
  %340 = vmatmul.mubr.f32.gmra.mrb[0].mxu0 %v143
  %v341 = vpop.f32.mrb[0].mxu0
  %v342 = vadd.f32 %v242, %v341
  %v343 = vpop.f32.mrb[0].mxu0
  %344 = vdwg.mxu0
  %v345 = vmax.f32 %v312, 0.0
  %v346 = vmax.f32 %v317, 0.0
  %v347 = vmax.f32 %v322, 0.0
  %v348 = vmax.f32 %v327, 0.0
  %v349 = vmax.f32 %v332, 0.0
  %v350 = vmax.f32 %v337, 0.0
  %v351 = vmax.f32 %v342, 0.0
  %v352 = vld [vmem:[%s3] sm:$0xff]
  %v353 = vld [vmem:[%s3 + $0x8] sm:$0x3]
  %v354 = vld [vmem:[%s4] sm:$0xff]
  %v355 = vld [vmem:[%s4 + $0x8] sm:$0x3]
  %357 = vset.pattern.permute.xlu0 0
  %358 = vperm.xlu0 %357, %v354
  %v359 = vpop.permute.xlu0 %358
  %362 = vset.pattern.permute.xlu0 0
  %363 = vperm.xlu0 %362, %v355
  %v364 = vpop.permute.xlu0 %363
  %vm366 = vcmask 408576
  %v368 = vsel %vm366, %v352, 0
  %v371 = vsel %vm366, %v353, 0
  %vm373 = vcmask 1041408
  %v375 = vsel %vm373, %v351, 0
  %377 = vmatprep.subr.mxu0 0.0
  %378 = vmatpush1.msra.mxu0 %v345
  %379 = vmatprep.subr.mxu0 0.0
  %380 = vmatpush1.msra.mxu0 %v346
  %381 = vmatprep.subr.mxu0 0.0
  %382 = vmatpush1.msra.mxu0 %v347
  %383 = vmatprep.subr.mxu0 0.0
  %384 = vmatpush1.msra.mxu0 %v348
  %385 = vmatprep.subr.mxu0 0.0
  %386 = vmatpush1.msra.mxu0 %v349
  %387 = vmatprep.subr.mxu0 0.0
  %388 = vmatpush1.msra.mxu0 %v350
  %389 = vmatprep.subr.mxu0 0.0
  %390 = vmatpush1.msra.mxu0 %v375
  %391 = vmatprep.subr.mxu0 0.0
  %392 = vmatpush1.msra.mxu0 0.0
  %393 = vmatprep.subr.mxu0 0.0
  %394 = vmatpush1.msra.mxu0 0.0
  %395 = vmatprep.subr.mxu0 0.0
  %396 = vmatpush1.msra.mxu0 0.0
  %397 = vmatprep.subr.mxu0 0.0
  %398 = vmatpush1.msra.mxu0 0.0
  %399 = vmatprep.subr.mxu0 0.0
  %400 = vmatpush1.msra.mxu0 0.0
  %401 = vmatprep.subr.mxu0 0.0
  %402 = vmatpush1.msra.mxu0 0.0
  %403 = vmatprep.subr.mxu0 0.0
  %404 = vmatpush1.msra.mxu0 0.0
  %405 = vmatprep.subr.mxu0 0.0
  %406 = vmatpush1.msra.mxu0 0.0
  %407 = vmatprep.subr.mxu0 0.0
  %408 = vmatpush1.msra.mxu0 0.0
  %409 = vmatprep.subr.mxu0 0.0
  %410 = vmatpush1.msra.mxu0 0.0
  %411 = vmatprep.subr.mxu0 0.0
  %412 = vmatpush1.msra.mxu0 0.0
  %413 = vmatprep.subr.mxu0 0.0
  %414 = vmatpush1.msra.mxu0 0.0
  %415 = vmatprep.subr.mxu0 0.0
  %416 = vmatpush1.msra.mxu0 0.0
  %417 = vmatprep.subr.mxu0 0.0
  %418 = vmatpush1.msra.mxu0 0.0
  %419 = vmatprep.subr.mxu0 0.0
  %420 = vmatpush1.msra.mxu0 0.0
  %421 = vmatprep.subr.mxu0 0.0
  %422 = vmatpush1.msra.mxu0 0.0
  %423 = vmatprep.subr.mxu0 0.0
  %424 = vmatpush1.msra.mxu0 0.0
  %425 = vmatprep.subr.mxu0 0.0
  %426 = vmatpush1.msra.mxu0 0.0
  %427 = vmatprep.subr.mxu0 0.0
  %428 = vmatpush1.msra.mxu0 0.0
  %429 = vmatprep.subr.mxu0 0.0
  %430 = vmatpush1.msra.mxu0 0.0
  %431 = vmatprep.subr.mxu0 0.0
  %432 = vmatpush1.msra.mxu0 0.0
  %433 = vmatprep.subr.mxu0 0.0
  %434 = vmatpush1.msra.mxu0 0.0
  %435 = vmatprep.subr.mxu0 0.0
  %436 = vmatpush1.msra.mxu0 0.0
  %437 = vmatprep.subr.mxu0 0.0
  %438 = vmatpush1.msra.mxu0 0.0
  %439 = vmatprep.subr.mxu0 0.0
  %440 = vmatpush1.msra.mxu0 0.0
  %441 = vmatprep.mubr.f32.mxu0 0.0
  %442 = vmatmul.mubr.f32.gmra.mrb[0].mxu0 %v368
  %v443 = vpop.f32.mrb[0].mxu0
  %v444 = vadd.f32 %v359, %v443
  %v445 = vpop.f32.mrb[0].mxu0
  %446 = vmatprep.mubr.f32.mxu0 0.0
  %447 = vmatmul.mubr.f32.gmra.mrb[0].mxu0 %v371
  %v448 = vpop.f32.mrb[0].mxu0
  %v449 = vadd.f32 %v364, %v448
  %v450 = vpop.f32.mrb[0].mxu0
  %451 = vdwg.mxu0
  %v452 = vsel %vm373, %v449, -inf
  %v453 = vmax.f32 %v444, %v452
  %v454 = vrot.slane %v453, 4
  %v455 = vmax.f32 %v453, %v454
  %v456 = vrot.slane %v455, 2
  %v457 = vmax.f32 %v455, %v456
  %v458 = vrot.slane %v457, 1
  %v459 = vmax.f32 %v457, %v458
  %v460 = vsub.f32 %v444, %v459
  %v461 = vsub.f32 %v449, %v459
  %v462 = vmul.f32 %v460, 1.442695
  %v463 = vpow.pop %v462
  %v464 = vmul.f32 %v461, 1.442695
  %v465 = vpow.pop %v464
  %v466 = vsel %vm373, %v465, 0.0
  %v467 = vadd.f32 %v463, %v466
  %v468 = vrot.slane %v467, 4
  %v469 = vadd.f32 %v467, %v468
  %v470 = vrot.slane %v469, 2
  %v471 = vadd.f32 %v469, %v470
  %v472 = vrot.slane %v471, 1
  %v473 = vadd.f32 %v471, %v472
  %v474 = vlog2.pop %v473
  %v475 = vmul.f32 %v474, 0.6931472
  %v476 = vsub.f32 %v460, %v475
  %v477 = vsub.f32 %v461, %v475
  %478 = vst [vmem:[%s5] sm:$0xff] %v476
  %479 = vst [vmem:[%s5 + $0x8] sm:$0x3] %v477
  // Predicated region
  $region22: #{lenet1_forward.5} parent=0 // pred_check
    _
  $region23: #{lenet1_forward.5} parent=0 // pred_check_branch
    %481 = sbr.rel (0) target = $region25
  $region24: #{lenet1_forward.5} parent=0 // pred_region
    _
  $region25: #{lenet1_forward.5} parent=0 // pred_fallthru
    _
  // Predicated region
  $region26: #{lenet1_forward.5} parent=0 // pred_check
    _
  $region27: #{lenet1_forward.5} parent=0 // pred_check_branch
    %483 = sbr.rel (0) target = $region29
  $region28: #{lenet1_forward.5} parent=0 // pred_region
    _
  $region29: #{lenet1_forward.5} parent=0 // pred_fallthru
    _

// kernel: lenet1_forward.4
$region0: #{lenet1_forward.4}
  #allocation0 [shape = 'u32[]', space=smem, size = 0x4, offset = 0x4, fixed_abs, tag = 'smem constant byte address 0x4 - core index']
  #allocation1 [shape = 'u32[144,128]{1,0:T(1,128)}', space=vmem, size = 0x12000, scoped, tag = 'internal scratch']
  %s0 = inlined_call_operand.vmem [shape: f32[2,10,12,6,128], index: 0, kind: input, shape index: {}]
  %s1 = inlined_call_operand.vmem [shape: f32[20,250], index: 1, kind: input, shape index: {}]
  %s2 = inlined_call_operand.vmem [shape: f32[20], index: 2, kind: input, shape index: {}]
  %s3 = inlined_call_operand.vmem [shape: f32[20,4,4,128], index: 3, kind: output, shape index: {}]
  %s4 = sld [smem:[#allocation0]]
  $region44: #{lenet1_forward.4} parent=0
    _
  %s6 = ssub.s32 1, %s4
  %s7 = scalar_select 0, %s6, %s4
  $region1: #{lenet1_forward.4} parent=0
    #allocation2 [shape = 'u8[24576]{0}', space=smem, size = 0x6000, scoped, tag = 'input window, operand 1, single buffered']
    #allocation3 [shape = 's32[1]{0}', space=sflag, size = 0x4, scoped, tag = 'scoped memory for lenet1_forward.4']
    #allocation4 [shape = 'u8[512]{0}', space=smem, size = 0x200, scoped, tag = 'input window, operand 2, single buffered']
    #allocation5 [shape = 's32[1]{0}', space=sflag, size = 0x4, scoped, tag = 'scoped memory for lenet1_forward.4']
    %8 = vsyncpa [#allocation3], 0
    %9 = vsyncpa [#allocation5], 0
    // Predicated region
    $region2: #{lenet1_forward.4} parent=1 // pred_check
      _
    $region3: #{lenet1_forward.4} parent=1 // pred_check_branch
      %11 = sbr.rel (0) target = $region5
    $region4: #{lenet1_forward.4} parent=1 // pred_region
      _
    $region5: #{lenet1_forward.4} parent=1 // pred_fallthru
      _
    // Predicated region
    $region6: #{lenet1_forward.4} parent=1 // pred_check
      _
    $region7: #{lenet1_forward.4} parent=1 // pred_check_branch
      %13 = sbr.rel (0) target = $region9
    $region8: #{lenet1_forward.4} parent=1 // pred_region
      %s15 = ssub.s32 768, 768
      %16 = vsyncadd [#allocation3], %s15
      %s17 = sshll.u32 %s1, 4
      %s18 = int_to_ptr.vmem [resolvable:$true] %s17
      %23 = dma.vmem_to_smem %s18, 768, [#allocation2], [#allocation3], 256, 256, 16
    $region9: #{lenet1_forward.4} parent=1 // pred_fallthru
      _
    // Predicated region
    $region10: #{lenet1_forward.4} parent=1 // pred_check
      _
    $region11: #{lenet1_forward.4} parent=1 // pred_check_branch
      %25 = sbr.rel (0) target = $region13
    $region12: #{lenet1_forward.4} parent=1 // pred_region
      %s27 = ssub.s32 16, 16
      %28 = vsyncadd [#allocation5], %s27
      %s30 = sshll.u32 %s2, 4
      %s31 = int_to_ptr.vmem [resolvable:$true] %s30
      %33 = dma.vmem_to_smem %s31, 16, [#allocation4], [#allocation5]
    $region13: #{lenet1_forward.4} parent=1 // pred_fallthru
      _
    // Predicated region
    $region14: #{lenet1_forward.4} parent=1 // pred_check
      _
    $region15: #{lenet1_forward.4} parent=1 // pred_check_branch
      %35 = sbr.rel (0) target = $region17
    $region16: #{lenet1_forward.4} parent=1 // pred_region
      %36 = dma.done [#allocation3], 768
    $region17: #{lenet1_forward.4} parent=1 // pred_fallthru
      _
    // Predicated region
    $region18: #{lenet1_forward.4} parent=1 // pred_check
      _
    $region19: #{lenet1_forward.4} parent=1 // pred_check_branch
      %38 = sbr.rel (0) target = $region21
    $region20: #{lenet1_forward.4} parent=1 // pred_region
      %39 = dma.done [#allocation5], 16
    $region21: #{lenet1_forward.4} parent=1 // pred_fallthru
      _
    %40 = sfence
    loop: start=0, step=1, limit=20
    $region22: #{lenet1_forward.4} parent=1 // loop_pre_header
      _
    $region23: #{lenet1_forward.4} parent=1 // loop_header
      %s42 = sphi 0, %s46
      %p43 = scmp.ge.s32.totalorder %s42, 20
    $region24: #{lenet1_forward.4} parent=1 // loop_header_branch
      %45 = sbr.rel (%p43) target = $region28
    $region25: #{lenet1_forward.4} parent=1 // loop_body
      loop: start=0, step=1, limit=10
      $region29: #{lenet1_forward.4} parent=25 // loop_pre_header
        _
      $region30: #{lenet1_forward.4} parent=25 // loop_header
        %s48 = sphi 0, %s52
        %p49 = scmp.ge.s32.totalorder %s48, 10
        %v53 = vphi 0.0, %v1378
        %v54 = vphi 0.0, %v1379
        %v55 = vphi 0.0, %v1380
        %v56 = vphi 0.0, %v1381
        %v57 = vphi 0.0, %v1382
        %v58 = vphi 0.0, %v1383
        %v59 = vphi 0.0, %v1384
        %v60 = vphi 0.0, %v1385
        %v61 = vphi 0.0, %v1402
        %v62 = vphi 0.0, %v1403
        %v63 = vphi 0.0, %v1404
        %v64 = vphi 0.0, %v1405
        %v65 = vphi 0.0, %v1406
        %v66 = vphi 0.0, %v1407
        %v67 = vphi 0.0, %v1408
        %v68 = vphi 0.0, %v1409
      $region31: #{lenet1_forward.4} parent=25 // loop_header_branch
        %51 = sbr.rel (%p49) target = $region35
      $region32: #{lenet1_forward.4} parent=25 // loop_body
        %s69 = smul.u32 %s48, 25
        %s70 = sshra.s32 %s69, 7
        %s71 = sand.u32 %s69, 127
        %s72 = sshra.s32 %s42, 3
        %s73 = sand.u32 %s42, 7
        %s74 = smul.u32 %s72, 2
        %s75 = sadd.s32 %s70, %s74
        %s76 = smul.u32 %s75, 1024
        %s77 = sshra.s32 %s42, 3
        %s78 = sand.u32 %s42, 7
        %s79 = sshra.s32 %s69, 7
        %s80 = sand.u32 %s69, 127
        %s81 = smul.u32 %s78, 128
        %s82 = sadd.s32 %s81, %s80
        %s83 = sadd.s32 %s76, %s82
        %s84 = sld [smem:[#allocation2 + %s83]]
        %s85 = smul.u32 %s48, 96
        %s86 = scalar_lea.vmem %s0, %s85
        %v87 = vld [vmem:[%s86] sm:$0xf]
        %v88 = vld [vmem:[%s86 + $0x8] sm:$0xf]
        %v89 = vld [vmem:[%s86 + $0x10] sm:$0xf]
        %v90 = vld [vmem:[%s86 + $0x18] sm:$0xf]
        %v91 = vld [vmem:[%s86 + $0x20] sm:$0xf]
        %v92 = vld [vmem:[%s86 + $0x28] sm:$0xf]
        %v93 = vld [vmem:[%s86 + $0x30] sm:$0xf]
        %v94 = vld [vmem:[%s86 + $0x38] sm:$0xf]
        %v95 = vstv %s84
        %v96 = vmul.f32 %v87, %v95
        %v97 = vmul.f32 %v88, %v95
        %v98 = vmul.f32 %v89, %v95
        %v99 = vmul.f32 %v90, %v95
        %v100 = vmul.f32 %v91, %v95
        %v101 = vmul.f32 %v92, %v95
        %v102 = vmul.f32 %v93, %v95
        %v103 = vmul.f32 %v94, %v95
        %v104 = vadd.f32 %v53, %v96
        %v105 = vadd.f32 %v54, %v97
        %v106 = vadd.f32 %v55, %v98
        %v107 = vadd.f32 %v56, %v99
        %v108 = vadd.f32 %v57, %v100
        %v109 = vadd.f32 %v58, %v101
        %v110 = vadd.f32 %v59, %v102
        %v111 = vadd.f32 %v60, %v103
        %s112 = sadd.s32 %s85, 960
        %s113 = scalar_lea.vmem %s0, %s112
        %v114 = vld [vmem:[%s113] sm:$0xf]
        %v115 = vld [vmem:[%s113 + $0x8] sm:$0xf]
        %v116 = vld [vmem:[%s113 + $0x10] sm:$0xf]
        %v117 = vld [vmem:[%s113 + $0x18] sm:$0xf]
        %v118 = vld [vmem:[%s113 + $0x20] sm:$0xf]
        %v119 = vld [vmem:[%s113 + $0x28] sm:$0xf]
        %v120 = vld [vmem:[%s113 + $0x30] sm:$0xf]
        %v121 = vld [vmem:[%s113 + $0x38] sm:$0xf]
        %v122 = vmul.f32 %v114, %v95
        %v123 = vmul.f32 %v115, %v95
        %v124 = vmul.f32 %v116, %v95
        %v125 = vmul.f32 %v117, %v95
        %v126 = vmul.f32 %v118, %v95
        %v127 = vmul.f32 %v119, %v95
        %v128 = vmul.f32 %v120, %v95
        %v129 = vmul.f32 %v121, %v95
        %v130 = vadd.f32 %v61, %v122
        %v131 = vadd.f32 %v62, %v123
        %v132 = vadd.f32 %v63, %v124
        %v133 = vadd.f32 %v64, %v125
        %v134 = vadd.f32 %v65, %v126
        %v135 = vadd.f32 %v66, %v127
        %v136 = vadd.f32 %v67, %v128
        %v137 = vadd.f32 %v68, %v129
        %s138 = sadd.s32 %s69, 1
        %s139 = sshra.s32 %s138, 7
        %s140 = sand.u32 %s138, 127
        %s141 = sadd.s32 %s139, %s74
        %s142 = smul.u32 %s141, 1024
        %s143 = sshra.s32 %s138, 7
        %s144 = sand.u32 %s138, 127
        %s145 = sadd.s32 %s81, %s144
        %s146 = sadd.s32 %s142, %s145
        %s147 = sld [smem:[#allocation2 + %s146]]
        %v148 = vstv %s147
        %v149 = vmul.f32 %v114, %v148
        %v150 = vmul.f32 %v115, %v148
        %v151 = vmul.f32 %v116, %v148
        %v152 = vmul.f32 %v117, %v148
        %v153 = vmul.f32 %v118, %v148
        %v154 = vmul.f32 %v119, %v148
        %v155 = vmul.f32 %v120, %v148
        %v156 = vmul.f32 %v121, %v148
        %v157 = vadd.f32 %v104, %v149
        %v158 = vadd.f32 %v105, %v150
        %v159 = vadd.f32 %v106, %v151
        %v160 = vadd.f32 %v107, %v152
        %v161 = vadd.f32 %v108, %v153
        %v162 = vadd.f32 %v109, %v154
        %v163 = vadd.f32 %v110, %v155
        %v164 = vadd.f32 %v111, %v156
        %v165 = vld [vmem:[%s86 + $0x1] sm:$0xf]
        %v166 = vld [vmem:[%s86 + $0x9] sm:$0xf]
        %v167 = vld [vmem:[%s86 + $0x11] sm:$0xf]
        %v168 = vld [vmem:[%s86 + $0x19] sm:$0xf]
        %v169 = vld [vmem:[%s86 + $0x21] sm:$0xf]
        %v170 = vld [vmem:[%s86 + $0x29] sm:$0xf]
        %v171 = vld [vmem:[%s86 + $0x31] sm:$0xf]
        %v172 = vld [vmem:[%s86 + $0x39] sm:$0xf]
        %v173 = vmul.f32 %v165, %v148
        %v174 = vmul.f32 %v166, %v148
        %v175 = vmul.f32 %v167, %v148
        %v176 = vmul.f32 %v168, %v148
        %v177 = vmul.f32 %v169, %v148
        %v178 = vmul.f32 %v170, %v148
        %v179 = vmul.f32 %v171, %v148
        %v180 = vmul.f32 %v172, %v148
        %v181 = vadd.f32 %v130, %v173
        %v182 = vadd.f32 %v131, %v174
        %v183 = vadd.f32 %v132, %v175
        %v184 = vadd.f32 %v133, %v176
        %v185 = vadd.f32 %v134, %v177
        %v186 = vadd.f32 %v135, %v178
        %v187 = vadd.f32 %v136, %v179
        %v188 = vadd.f32 %v137, %v180
        %s189 = sadd.s32 %s69, 2
        %s190 = sshra.s32 %s189, 7
        %s191 = sand.u32 %s189, 127
        %s192 = sadd.s32 %s190, %s74
        %s193 = smul.u32 %s192, 1024
        %s194 = sshra.s32 %s189, 7
        %s195 = sand.u32 %s189, 127
        %s196 = sadd.s32 %s81, %s195
        %s197 = sadd.s32 %s193, %s196
        %s198 = sld [smem:[#allocation2 + %s197]]
        %v199 = vstv %s198
        %v200 = vmul.f32 %v165, %v199
        %v201 = vmul.f32 %v166, %v199
        %v202 = vmul.f32 %v167, %v199
        %v203 = vmul.f32 %v168, %v199
        %v204 = vmul.f32 %v169, %v199
        %v205 = vmul.f32 %v170, %v199
        %v206 = vmul.f32 %v171, %v199
        %v207 = vmul.f32 %v172, %v199
        %v208 = vadd.f32 %v157, %v200
        %v209 = vadd.f32 %v158, %v201
        %v210 = vadd.f32 %v159, %v202
        %v211 = vadd.f32 %v160, %v203
        %v212 = vadd.f32 %v161, %v204
        %v213 = vadd.f32 %v162, %v205
        %v214 = vadd.f32 %v163, %v206
        %v215 = vadd.f32 %v164, %v207
        %v216 = vld [vmem:[%s113 + $0x1] sm:$0xf]
        %v217 = vld [vmem:[%s113 + $0x9] sm:$0xf]
        %v218 = vld [vmem:[%s113 + $0x11] sm:$0xf]
        %v219 = vld [vmem:[%s113 + $0x19] sm:$0xf]
        %v220 = vld [vmem:[%s113 + $0x21] sm:$0xf]
        %v221 = vld [vmem:[%s113 + $0x29] sm:$0xf]
        %v222 = vld [vmem:[%s113 + $0x31] sm:$0xf]
        %v223 = vld [vmem:[%s113 + $0x39] sm:$0xf]
        %v224 = vmul.f32 %v216, %v199
        %v225 = vmul.f32 %v217, %v199
        %v226 = vmul.f32 %v218, %v199
        %v227 = vmul.f32 %v219, %v199
        %v228 = vmul.f32 %v220, %v199
        %v229 = vmul.f32 %v221, %v199
        %v230 = vmul.f32 %v222, %v199
        %v231 = vmul.f32 %v223, %v199
        %v232 = vadd.f32 %v181, %v224
        %v233 = vadd.f32 %v182, %v225
        %v234 = vadd.f32 %v183, %v226
        %v235 = vadd.f32 %v184, %v227
        %v236 = vadd.f32 %v185, %v228
        %v237 = vadd.f32 %v186, %v229
        %v238 = vadd.f32 %v187, %v230
        %v239 = vadd.f32 %v188, %v231
        %s240 = sadd.s32 %s69, 3
        %s241 = sshra.s32 %s240, 7
        %s242 = sand.u32 %s240, 127
        %s243 = sadd.s32 %s241, %s74
        %s244 = smul.u32 %s243, 1024
        %s245 = sshra.s32 %s240, 7
        %s246 = sand.u32 %s240, 127
        %s247 = sadd.s32 %s81, %s246
        %s248 = sadd.s32 %s244, %s247
        %s249 = sld [smem:[#allocation2 + %s248]]
        %v250 = vstv %s249
        %v251 = vmul.f32 %v216, %v250
        %v252 = vmul.f32 %v217, %v250
        %v253 = vmul.f32 %v218, %v250
        %v254 = vmul.f32 %v219, %v250
        %v255 = vmul.f32 %v220, %v250
        %v256 = vmul.f32 %v221, %v250
        %v257 = vmul.f32 %v222, %v250
        %v258 = vmul.f32 %v223, %v250
        %v259 = vadd.f32 %v208, %v251
        %v260 = vadd.f32 %v209, %v252
        %v261 = vadd.f32 %v210, %v253
        %v262 = vadd.f32 %v211, %v254
        %v263 = vadd.f32 %v212, %v255
        %v264 = vadd.f32 %v213, %v256
        %v265 = vadd.f32 %v214, %v257
        %v266 = vadd.f32 %v215, %v258
        %v267 = vld [vmem:[%s86 + $0x2] sm:$0xf]
        %v268 = vld [vmem:[%s86 + $0xa] sm:$0xf]
        %v269 = vld [vmem:[%s86 + $0x12] sm:$0xf]
        %v270 = vld [vmem:[%s86 + $0x1a] sm:$0xf]
        %v271 = vld [vmem:[%s86 + $0x22] sm:$0xf]
        %v272 = vld [vmem:[%s86 + $0x2a] sm:$0xf]
        %v273 = vld [vmem:[%s86 + $0x32] sm:$0xf]
        %v274 = vld [vmem:[%s86 + $0x3a] sm:$0xf]
        %v275 = vmul.f32 %v267, %v250
        %v276 = vmul.f32 %v268, %v250
        %v277 = vmul.f32 %v269, %v250
        %v278 = vmul.f32 %v270, %v250
        %v279 = vmul.f32 %v271, %v250
        %v280 = vmul.f32 %v272, %v250
        %v281 = vmul.f32 %v273, %v250
        %v282 = vmul.f32 %v274, %v250
        %v283 = vadd.f32 %v232, %v275
        %v284 = vadd.f32 %v233, %v276
        %v285 = vadd.f32 %v234, %v277
        %v286 = vadd.f32 %v235, %v278
        %v287 = vadd.f32 %v236, %v279
        %v288 = vadd.f32 %v237, %v280
        %v289 = vadd.f32 %v238, %v281
        %v290 = vadd.f32 %v239, %v282
        %s291 = sadd.s32 %s69, 4
        %s292 = sshra.s32 %s291, 7
        %s293 = sand.u32 %s291, 127
        %s294 = sadd.s32 %s292, %s74
        %s295 = smul.u32 %s294, 1024
        %s296 = sshra.s32 %s291, 7
        %s297 = sand.u32 %s291, 127
        %s298 = sadd.s32 %s81, %s297
        %s299 = sadd.s32 %s295, %s298
        %s300 = sld [smem:[#allocation2 + %s299]]
        %v301 = vstv %s300
        %v302 = vmul.f32 %v267, %v301
        %v303 = vmul.f32 %v268, %v301
        %v304 = vmul.f32 %v269, %v301
        %v305 = vmul.f32 %v270, %v301
        %v306 = vmul.f32 %v271, %v301
        %v307 = vmul.f32 %v272, %v301
        %v308 = vmul.f32 %v273, %v301
        %v309 = vmul.f32 %v274, %v301
        %v310 = vadd.f32 %v259, %v302
        %v311 = vadd.f32 %v260, %v303
        %v312 = vadd.f32 %v261, %v304
        %v313 = vadd.f32 %v262, %v305
        %v314 = vadd.f32 %v263, %v306
        %v315 = vadd.f32 %v264, %v307
        %v316 = vadd.f32 %v265, %v308
        %v317 = vadd.f32 %v266, %v309
        %v318 = vld [vmem:[%s113 + $0x2] sm:$0xf]
        %v319 = vld [vmem:[%s113 + $0xa] sm:$0xf]
        %v320 = vld [vmem:[%s113 + $0x12] sm:$0xf]
        %v321 = vld [vmem:[%s113 + $0x1a] sm:$0xf]
        %v322 = vld [vmem:[%s113 + $0x22] sm:$0xf]
        %v323 = vld [vmem:[%s113 + $0x2a] sm:$0xf]
        %v324 = vld [vmem:[%s113 + $0x32] sm:$0xf]
        %v325 = vld [vmem:[%s113 + $0x3a] sm:$0xf]
        %v326 = vmul.f32 %v318, %v301
        %v327 = vmul.f32 %v319, %v301
        %v328 = vmul.f32 %v320, %v301
        %v329 = vmul.f32 %v321, %v301
        %v330 = vmul.f32 %v322, %v301
        %v331 = vmul.f32 %v323, %v301
        %v332 = vmul.f32 %v324, %v301
        %v333 = vmul.f32 %v325, %v301
        %v334 = vadd.f32 %v283, %v326
        %v335 = vadd.f32 %v284, %v327
        %v336 = vadd.f32 %v285, %v328
        %v337 = vadd.f32 %v286, %v329
        %v338 = vadd.f32 %v287, %v330
        %v339 = vadd.f32 %v288, %v331
        %v340 = vadd.f32 %v289, %v332
        %v341 = vadd.f32 %v290, %v333
        %s342 = sadd.s32 %s69, 5
        %s343 = sshra.s32 %s342, 7
        %s344 = sand.u32 %s342, 127
        %s345 = sadd.s32 %s343, %s74
        %s346 = smul.u32 %s345, 1024
        %s347 = sshra.s32 %s342, 7
        %s348 = sand.u32 %s342, 127
        %s349 = sadd.s32 %s81, %s348
        %s350 = sadd.s32 %s346, %s349
        %s351 = sld [smem:[#allocation2 + %s350]]
        %s352 = sadd.s32 8, %s85
        %s353 = scalar_lea.vmem %s0, %s352
        %v354 = vld [vmem:[%s353] sm:$0xf]
        %v355 = vld [vmem:[%s353 + $0x8] sm:$0xf]
        %v356 = vld [vmem:[%s353 + $0x10] sm:$0xf]
        %v357 = vld [vmem:[%s353 + $0x18] sm:$0xf]
        %v358 = vld [vmem:[%s353 + $0x20] sm:$0xf]
        %v359 = vld [vmem:[%s353 + $0x28] sm:$0xf]
        %v360 = vld [vmem:[%s353 + $0x30] sm:$0xf]
        %v361 = vld [vmem:[%s353 + $0x38] sm:$0xf]
        %v362 = vstv %s351
        %v363 = vmul.f32 %v354, %v362
        %v364 = vmul.f32 %v355, %v362
        %v365 = vmul.f32 %v356, %v362
        %v366 = vmul.f32 %v357, %v362
        %v367 = vmul.f32 %v358, %v362
        %v368 = vmul.f32 %v359, %v362
        %v369 = vmul.f32 %v360, %v362
        %v370 = vmul.f32 %v361, %v362
        %v371 = vadd.f32 %v310, %v363
        %v372 = vadd.f32 %v311, %v364
        %v373 = vadd.f32 %v312, %v365
        %v374 = vadd.f32 %v313, %v366
        %v375 = vadd.f32 %v314, %v367
        %v376 = vadd.f32 %v315, %v368
        %v377 = vadd.f32 %v316, %v369
        %v378 = vadd.f32 %v317, %v370
        %s379 = sadd.s32 %s352, 960
        %s380 = scalar_lea.vmem %s0, %s379
        %v381 = vld [vmem:[%s380] sm:$0xf]
        %v382 = vld [vmem:[%s380 + $0x8] sm:$0xf]
        %v383 = vld [vmem:[%s380 + $0x10] sm:$0xf]
        %v384 = vld [vmem:[%s380 + $0x18] sm:$0xf]
        %v385 = vld [vmem:[%s380 + $0x20] sm:$0xf]
        %v386 = vld [vmem:[%s380 + $0x28] sm:$0xf]
        %v387 = vld [vmem:[%s380 + $0x30] sm:$0xf]
        %v388 = vld [vmem:[%s380 + $0x38] sm:$0xf]
        %v389 = vmul.f32 %v381, %v362
        %v390 = vmul.f32 %v382, %v362
        %v391 = vmul.f32 %v383, %v362
        %v392 = vmul.f32 %v384, %v362
        %v393 = vmul.f32 %v385, %v362
        %v394 = vmul.f32 %v386, %v362
        %v395 = vmul.f32 %v387, %v362
        %v396 = vmul.f32 %v388, %v362
        %v397 = vadd.f32 %v334, %v389
        %v398 = vadd.f32 %v335, %v390
        %v399 = vadd.f32 %v336, %v391
        %v400 = vadd.f32 %v337, %v392
        %v401 = vadd.f32 %v338, %v393
        %v402 = vadd.f32 %v339, %v394
        %v403 = vadd.f32 %v340, %v395
        %v404 = vadd.f32 %v341, %v396
        %s405 = sadd.s32 %s69, 6
        %s406 = sshra.s32 %s405, 7
        %s407 = sand.u32 %s405, 127
        %s408 = sadd.s32 %s406, %s74
        %s409 = smul.u32 %s408, 1024
        %s410 = sshra.s32 %s405, 7
        %s411 = sand.u32 %s405, 127
        %s412 = sadd.s32 %s81, %s411
        %s413 = sadd.s32 %s409, %s412
        %s414 = sld [smem:[#allocation2 + %s413]]
        %v415 = vstv %s414
        %v416 = vmul.f32 %v381, %v415
        %v417 = vmul.f32 %v382, %v415
        %v418 = vmul.f32 %v383, %v415
        %v419 = vmul.f32 %v384, %v415
        %v420 = vmul.f32 %v385, %v415
        %v421 = vmul.f32 %v386, %v415
        %v422 = vmul.f32 %v387, %v415
        %v423 = vmul.f32 %v388, %v415
        %v424 = vadd.f32 %v371, %v416
        %v425 = vadd.f32 %v372, %v417
        %v426 = vadd.f32 %v373, %v418
        %v427 = vadd.f32 %v374, %v419
        %v428 = vadd.f32 %v375, %v420
        %v429 = vadd.f32 %v376, %v421
        %v430 = vadd.f32 %v377, %v422
        %v431 = vadd.f32 %v378, %v423
        %v432 = vld [vmem:[%s353 + $0x1] sm:$0xf]
        %v433 = vld [vmem:[%s353 + $0x9] sm:$0xf]
        %v434 = vld [vmem:[%s353 + $0x11] sm:$0xf]
        %v435 = vld [vmem:[%s353 + $0x19] sm:$0xf]
        %v436 = vld [vmem:[%s353 + $0x21] sm:$0xf]
        %v437 = vld [vmem:[%s353 + $0x29] sm:$0xf]
        %v438 = vld [vmem:[%s353 + $0x31] sm:$0xf]
        %v439 = vld [vmem:[%s353 + $0x39] sm:$0xf]
        %v440 = vmul.f32 %v432, %v415
        %v441 = vmul.f32 %v433, %v415
        %v442 = vmul.f32 %v434, %v415
        %v443 = vmul.f32 %v435, %v415
        %v444 = vmul.f32 %v436, %v415
        %v445 = vmul.f32 %v437, %v415
        %v446 = vmul.f32 %v438, %v415
        %v447 = vmul.f32 %v439, %v415
        %v448 = vadd.f32 %v397, %v440
        %v449 = vadd.f32 %v398, %v441
        %v450 = vadd.f32 %v399, %v442
        %v451 = vadd.f32 %v400, %v443
        %v452 = vadd.f32 %v401, %v444
        %v453 = vadd.f32 %v402, %v445
        %v454 = vadd.f32 %v403, %v446
        %v455 = vadd.f32 %v404, %v447
        %s456 = sadd.s32 %s69, 7
        %s457 = sshra.s32 %s456, 7
        %s458 = sand.u32 %s456, 127
        %s459 = sadd.s32 %s457, %s74
        %s460 = smul.u32 %s459, 1024
        %s461 = sshra.s32 %s456, 7
        %s462 = sand.u32 %s456, 127
        %s463 = sadd.s32 %s81, %s462
        %s464 = sadd.s32 %s460, %s463
        %s465 = sld [smem:[#allocation2 + %s464]]
        %v466 = vstv %s465
        %v467 = vmul.f32 %v432, %v466
        %v468 = vmul.f32 %v433, %v466
        %v469 = vmul.f32 %v434, %v466
        %v470 = vmul.f32 %v435, %v466
        %v471 = vmul.f32 %v436, %v466
        %v472 = vmul.f32 %v437, %v466
        %v473 = vmul.f32 %v438, %v466
        %v474 = vmul.f32 %v439, %v466
        %v475 = vadd.f32 %v424, %v467
        %v476 = vadd.f32 %v425, %v468
        %v477 = vadd.f32 %v426, %v469
        %v478 = vadd.f32 %v427, %v470
        %v479 = vadd.f32 %v428, %v471
        %v480 = vadd.f32 %v429, %v472
        %v481 = vadd.f32 %v430, %v473
        %v482 = vadd.f32 %v431, %v474
        %v483 = vld [vmem:[%s380 + $0x1] sm:$0xf]
        %v484 = vld [vmem:[%s380 + $0x9] sm:$0xf]
        %v485 = vld [vmem:[%s380 + $0x11] sm:$0xf]
        %v486 = vld [vmem:[%s380 + $0x19] sm:$0xf]
        %v487 = vld [vmem:[%s380 + $0x21] sm:$0xf]
        %v488 = vld [vmem:[%s380 + $0x29] sm:$0xf]
        %v489 = vld [vmem:[%s380 + $0x31] sm:$0xf]
        %v490 = vld [vmem:[%s380 + $0x39] sm:$0xf]
        %v491 = vmul.f32 %v483, %v466
        %v492 = vmul.f32 %v484, %v466
        %v493 = vmul.f32 %v485, %v466
        %v494 = vmul.f32 %v486, %v466
        %v495 = vmul.f32 %v487, %v466
        %v496 = vmul.f32 %v488, %v466
        %v497 = vmul.f32 %v489, %v466
        %v498 = vmul.f32 %v490, %v466
        %v499 = vadd.f32 %v448, %v491
        %v500 = vadd.f32 %v449, %v492
        %v501 = vadd.f32 %v450, %v493
        %v502 = vadd.f32 %v451, %v494
        %v503 = vadd.f32 %v452, %v495
        %v504 = vadd.f32 %v453, %v496
        %v505 = vadd.f32 %v454, %v497
        %v506 = vadd.f32 %v455, %v498
        %s507 = sadd.s32 %s69, 8
        %s508 = sshra.s32 %s507, 7
        %s509 = sand.u32 %s507, 127
        %s510 = sadd.s32 %s508, %s74
        %s511 = smul.u32 %s510, 1024
        %s512 = sshra.s32 %s507, 7
        %s513 = sand.u32 %s507, 127
        %s514 = sadd.s32 %s81, %s513
        %s515 = sadd.s32 %s511, %s514
        %s516 = sld [smem:[#allocation2 + %s515]]
        %v517 = vstv %s516
        %v518 = vmul.f32 %v483, %v517
        %v519 = vmul.f32 %v484, %v517
        %v520 = vmul.f32 %v485, %v517
        %v521 = vmul.f32 %v486, %v517
        %v522 = vmul.f32 %v487, %v517
        %v523 = vmul.f32 %v488, %v517
        %v524 = vmul.f32 %v489, %v517
        %v525 = vmul.f32 %v490, %v517
        %v526 = vadd.f32 %v475, %v518
        %v527 = vadd.f32 %v476, %v519
        %v528 = vadd.f32 %v477, %v520
        %v529 = vadd.f32 %v478, %v521
        %v530 = vadd.f32 %v479, %v522
        %v531 = vadd.f32 %v480, %v523
        %v532 = vadd.f32 %v481, %v524
        %v533 = vadd.f32 %v482, %v525
        %v534 = vld [vmem:[%s353 + $0x2] sm:$0xf]
        %v535 = vld [vmem:[%s353 + $0xa] sm:$0xf]
        %v536 = vld [vmem:[%s353 + $0x12] sm:$0xf]
        %v537 = vld [vmem:[%s353 + $0x1a] sm:$0xf]
        %v538 = vld [vmem:[%s353 + $0x22] sm:$0xf]
        %v539 = vld [vmem:[%s353 + $0x2a] sm:$0xf]
        %v540 = vld [vmem:[%s353 + $0x32] sm:$0xf]
        %v541 = vld [vmem:[%s353 + $0x3a] sm:$0xf]
        %v542 = vmul.f32 %v534, %v517
        %v543 = vmul.f32 %v535, %v517
        %v544 = vmul.f32 %v536, %v517
        %v545 = vmul.f32 %v537, %v517
        %v546 = vmul.f32 %v538, %v517
        %v547 = vmul.f32 %v539, %v517
        %v548 = vmul.f32 %v540, %v517
        %v549 = vmul.f32 %v541, %v517
        %v550 = vadd.f32 %v499, %v542
        %v551 = vadd.f32 %v500, %v543
        %v552 = vadd.f32 %v501, %v544
        %v553 = vadd.f32 %v502, %v545
        %v554 = vadd.f32 %v503, %v546
        %v555 = vadd.f32 %v504, %v547
        %v556 = vadd.f32 %v505, %v548
        %v557 = vadd.f32 %v506, %v549
        %s558 = sadd.s32 %s69, 9
        %s559 = sshra.s32 %s558, 7
        %s560 = sand.u32 %s558, 127
        %s561 = sadd.s32 %s559, %s74
        %s562 = smul.u32 %s561, 1024
        %s563 = sshra.s32 %s558, 7
        %s564 = sand.u32 %s558, 127
        %s565 = sadd.s32 %s81, %s564
        %s566 = sadd.s32 %s562, %s565
        %s567 = sld [smem:[#allocation2 + %s566]]
        %v568 = vstv %s567
        %v569 = vmul.f32 %v534, %v568
        %v570 = vmul.f32 %v535, %v568
        %v571 = vmul.f32 %v536, %v568
        %v572 = vmul.f32 %v537, %v568
        %v573 = vmul.f32 %v538, %v568
        %v574 = vmul.f32 %v539, %v568
        %v575 = vmul.f32 %v540, %v568
        %v576 = vmul.f32 %v541, %v568
        %v577 = vadd.f32 %v526, %v569
        %v578 = vadd.f32 %v527, %v570
        %v579 = vadd.f32 %v528, %v571
        %v580 = vadd.f32 %v529, %v572
        %v581 = vadd.f32 %v530, %v573
        %v582 = vadd.f32 %v531, %v574
        %v583 = vadd.f32 %v532, %v575
        %v584 = vadd.f32 %v533, %v576
        %v585 = vld [vmem:[%s380 + $0x2] sm:$0xf]
        %v586 = vld [vmem:[%s380 + $0xa] sm:$0xf]
        %v587 = vld [vmem:[%s380 + $0x12] sm:$0xf]
        %v588 = vld [vmem:[%s380 + $0x1a] sm:$0xf]
        %v589 = vld [vmem:[%s380 + $0x22] sm:$0xf]
        %v590 = vld [vmem:[%s380 + $0x2a] sm:$0xf]
        %v591 = vld [vmem:[%s380 + $0x32] sm:$0xf]
        %v592 = vld [vmem:[%s380 + $0x3a] sm:$0xf]
        %v593 = vmul.f32 %v585, %v568
        %v594 = vmul.f32 %v586, %v568
        %v595 = vmul.f32 %v587, %v568
        %v596 = vmul.f32 %v588, %v568
        %v597 = vmul.f32 %v589, %v568
        %v598 = vmul.f32 %v590, %v568
        %v599 = vmul.f32 %v591, %v568
        %v600 = vmul.f32 %v592, %v568
        %v601 = vadd.f32 %v550, %v593
        %v602 = vadd.f32 %v551, %v594
        %v603 = vadd.f32 %v552, %v595
        %v604 = vadd.f32 %v553, %v596
        %v605 = vadd.f32 %v554, %v597
        %v606 = vadd.f32 %v555, %v598
        %v607 = vadd.f32 %v556, %v599
        %v608 = vadd.f32 %v557, %v600
        %s609 = sadd.s32 %s69, 10
        %s610 = sshra.s32 %s609, 7
        %s611 = sand.u32 %s609, 127
        %s612 = sadd.s32 %s610, %s74
        %s613 = smul.u32 %s612, 1024
        %s614 = sshra.s32 %s609, 7
        %s615 = sand.u32 %s609, 127
        %s616 = sadd.s32 %s81, %s615
        %s617 = sadd.s32 %s613, %s616
        %s618 = sld [smem:[#allocation2 + %s617]]
        %s619 = sadd.s32 16, %s85
        %s620 = scalar_lea.vmem %s0, %s619
        %v621 = vld [vmem:[%s620] sm:$0xf]
        %v622 = vld [vmem:[%s620 + $0x8] sm:$0xf]
        %v623 = vld [vmem:[%s620 + $0x10] sm:$0xf]
        %v624 = vld [vmem:[%s620 + $0x18] sm:$0xf]
        %v625 = vld [vmem:[%s620 + $0x20] sm:$0xf]
        %v626 = vld [vmem:[%s620 + $0x28] sm:$0xf]
        %v627 = vld [vmem:[%s620 + $0x30] sm:$0xf]
        %v628 = vld [vmem:[%s620 + $0x38] sm:$0xf]
        %v629 = vstv %s618
        %v630 = vmul.f32 %v621, %v629
        %v631 = vmul.f32 %v622, %v629
        %v632 = vmul.f32 %v623, %v629
        %v633 = vmul.f32 %v624, %v629
        %v634 = vmul.f32 %v625, %v629
        %v635 = vmul.f32 %v626, %v629
        %v636 = vmul.f32 %v627, %v629
        %v637 = vmul.f32 %v628, %v629
        %v638 = vadd.f32 %v577, %v630
        %v639 = vadd.f32 %v578, %v631
        %v640 = vadd.f32 %v579, %v632
        %v641 = vadd.f32 %v580, %v633
        %v642 = vadd.f32 %v581, %v634
        %v643 = vadd.f32 %v582, %v635
        %v644 = vadd.f32 %v583, %v636
        %v645 = vadd.f32 %v584, %v637
        %s646 = sadd.s32 %s619, 960
        %s647 = scalar_lea.vmem %s0, %s646
        %v648 = vld [vmem:[%s647] sm:$0xf]
        %v649 = vld [vmem:[%s647 + $0x8] sm:$0xf]
        %v650 = vld [vmem:[%s647 + $0x10] sm:$0xf]
        %v651 = vld [vmem:[%s647 + $0x18] sm:$0xf]
        %v652 = vld [vmem:[%s647 + $0x20] sm:$0xf]
        %v653 = vld [vmem:[%s647 + $0x28] sm:$0xf]
        %v654 = vld [vmem:[%s647 + $0x30] sm:$0xf]
        %v655 = vld [vmem:[%s647 + $0x38] sm:$0xf]
        %v656 = vmul.f32 %v648, %v629
        %v657 = vmul.f32 %v649, %v629
        %v658 = vmul.f32 %v650, %v629
        %v659 = vmul.f32 %v651, %v629
        %v660 = vmul.f32 %v652, %v629
        %v661 = vmul.f32 %v653, %v629
        %v662 = vmul.f32 %v654, %v629
        %v663 = vmul.f32 %v655, %v629
        %v664 = vadd.f32 %v601, %v656
        %v665 = vadd.f32 %v602, %v657
        %v666 = vadd.f32 %v603, %v658
        %v667 = vadd.f32 %v604, %v659
        %v668 = vadd.f32 %v605, %v660
        %v669 = vadd.f32 %v606, %v661
        %v670 = vadd.f32 %v607, %v662
        %v671 = vadd.f32 %v608, %v663
        %s672 = sadd.s32 %s69, 11
        %s673 = sshra.s32 %s672, 7
        %s674 = sand.u32 %s672, 127
        %s675 = sadd.s32 %s673, %s74
        %s676 = smul.u32 %s675, 1024
        %s677 = sshra.s32 %s672, 7
        %s678 = sand.u32 %s672, 127
        %s679 = sadd.s32 %s81, %s678
        %s680 = sadd.s32 %s676, %s679
        %s681 = sld [smem:[#allocation2 + %s680]]
        %v682 = vstv %s681
        %v683 = vmul.f32 %v648, %v682
        %v684 = vmul.f32 %v649, %v682
        %v685 = vmul.f32 %v650, %v682
        %v686 = vmul.f32 %v651, %v682
        %v687 = vmul.f32 %v652, %v682
        %v688 = vmul.f32 %v653, %v682
        %v689 = vmul.f32 %v654, %v682
        %v690 = vmul.f32 %v655, %v682
        %v691 = vadd.f32 %v638, %v683
        %v692 = vadd.f32 %v639, %v684
        %v693 = vadd.f32 %v640, %v685
        %v694 = vadd.f32 %v641, %v686
        %v695 = vadd.f32 %v642, %v687
        %v696 = vadd.f32 %v643, %v688
        %v697 = vadd.f32 %v644, %v689
        %v698 = vadd.f32 %v645, %v690
        %v699 = vld [vmem:[%s620 + $0x1] sm:$0xf]
        %v700 = vld [vmem:[%s620 + $0x9] sm:$0xf]
        %v701 = vld [vmem:[%s620 + $0x11] sm:$0xf]
        %v702 = vld [vmem:[%s620 + $0x19] sm:$0xf]
        %v703 = vld [vmem:[%s620 + $0x21] sm:$0xf]
        %v704 = vld [vmem:[%s620 + $0x29] sm:$0xf]
        %v705 = vld [vmem:[%s620 + $0x31] sm:$0xf]
        %v706 = vld [vmem:[%s620 + $0x39] sm:$0xf]
        %v707 = vmul.f32 %v699, %v682
        %v708 = vmul.f32 %v700, %v682
        %v709 = vmul.f32 %v701, %v682
        %v710 = vmul.f32 %v702, %v682
        %v711 = vmul.f32 %v703, %v682
        %v712 = vmul.f32 %v704, %v682
        %v713 = vmul.f32 %v705, %v682
        %v714 = vmul.f32 %v706, %v682
        %v715 = vadd.f32 %v664, %v707
        %v716 = vadd.f32 %v665, %v708
        %v717 = vadd.f32 %v666, %v709
        %v718 = vadd.f32 %v667, %v710
        %v719 = vadd.f32 %v668, %v711
        %v720 = vadd.f32 %v669, %v712
        %v721 = vadd.f32 %v670, %v713
        %v722 = vadd.f32 %v671, %v714
        %s723 = sadd.s32 %s69, 12
        %s724 = sshra.s32 %s723, 7
        %s725 = sand.u32 %s723, 127
        %s726 = sadd.s32 %s724, %s74
        %s727 = smul.u32 %s726, 1024
        %s728 = sshra.s32 %s723, 7
        %s729 = sand.u32 %s723, 127
        %s730 = sadd.s32 %s81, %s729
        %s731 = sadd.s32 %s727, %s730
        %s732 = sld [smem:[#allocation2 + %s731]]
        %v733 = vstv %s732
        %v734 = vmul.f32 %v699, %v733
        %v735 = vmul.f32 %v700, %v733
        %v736 = vmul.f32 %v701, %v733
        %v737 = vmul.f32 %v702, %v733
        %v738 = vmul.f32 %v703, %v733
        %v739 = vmul.f32 %v704, %v733
        %v740 = vmul.f32 %v705, %v733
        %v741 = vmul.f32 %v706, %v733
        %v742 = vadd.f32 %v691, %v734
        %v743 = vadd.f32 %v692, %v735
        %v744 = vadd.f32 %v693, %v736
        %v745 = vadd.f32 %v694, %v737
        %v746 = vadd.f32 %v695, %v738
        %v747 = vadd.f32 %v696, %v739
        %v748 = vadd.f32 %v697, %v740
        %v749 = vadd.f32 %v698, %v741
        %v750 = vld [vmem:[%s647 + $0x1] sm:$0xf]
        %v751 = vld [vmem:[%s647 + $0x9] sm:$0xf]
        %v752 = vld [vmem:[%s647 + $0x11] sm:$0xf]
        %v753 = vld [vmem:[%s647 + $0x19] sm:$0xf]
        %v754 = vld [vmem:[%s647 + $0x21] sm:$0xf]
        %v755 = vld [vmem:[%s647 + $0x29] sm:$0xf]
        %v756 = vld [vmem:[%s647 + $0x31] sm:$0xf]
        %v757 = vld [vmem:[%s647 + $0x39] sm:$0xf]
        %v758 = vmul.f32 %v750, %v733
        %v759 = vmul.f32 %v751, %v733
        %v760 = vmul.f32 %v752, %v733
        %v761 = vmul.f32 %v753, %v733
        %v762 = vmul.f32 %v754, %v733
        %v763 = vmul.f32 %v755, %v733
        %v764 = vmul.f32 %v756, %v733
        %v765 = vmul.f32 %v757, %v733
        %v766 = vadd.f32 %v715, %v758
        %v767 = vadd.f32 %v716, %v759
        %v768 = vadd.f32 %v717, %v760
        %v769 = vadd.f32 %v718, %v761
        %v770 = vadd.f32 %v719, %v762
        %v771 = vadd.f32 %v720, %v763
        %v772 = vadd.f32 %v721, %v764
        %v773 = vadd.f32 %v722, %v765
        %s774 = sadd.s32 %s69, 13
        %s775 = sshra.s32 %s774, 7
        %s776 = sand.u32 %s774, 127
        %s777 = sadd.s32 %s775, %s74
        %s778 = smul.u32 %s777, 1024
        %s779 = sshra.s32 %s774, 7
        %s780 = sand.u32 %s774, 127
        %s781 = sadd.s32 %s81, %s780
        %s782 = sadd.s32 %s778, %s781
        %s783 = sld [smem:[#allocation2 + %s782]]
        %v784 = vstv %s783
        %v785 = vmul.f32 %v750, %v784
        %v786 = vmul.f32 %v751, %v784
        %v787 = vmul.f32 %v752, %v784
        %v788 = vmul.f32 %v753, %v784
        %v789 = vmul.f32 %v754, %v784
        %v790 = vmul.f32 %v755, %v784
        %v791 = vmul.f32 %v756, %v784
        %v792 = vmul.f32 %v757, %v784
        %v793 = vadd.f32 %v742, %v785
        %v794 = vadd.f32 %v743, %v786
        %v795 = vadd.f32 %v744, %v787
        %v796 = vadd.f32 %v745, %v788
        %v797 = vadd.f32 %v746, %v789
        %v798 = vadd.f32 %v747, %v790
        %v799 = vadd.f32 %v748, %v791
        %v800 = vadd.f32 %v749, %v792
        %v801 = vld [vmem:[%s620 + $0x2] sm:$0xf]
        %v802 = vld [vmem:[%s620 + $0xa] sm:$0xf]
        %v803 = vld [vmem:[%s620 + $0x12] sm:$0xf]
        %v804 = vld [vmem:[%s620 + $0x1a] sm:$0xf]
        %v805 = vld [vmem:[%s620 + $0x22] sm:$0xf]
        %v806 = vld [vmem:[%s620 + $0x2a] sm:$0xf]
        %v807 = vld [vmem:[%s620 + $0x32] sm:$0xf]
        %v808 = vld [vmem:[%s620 + $0x3a] sm:$0xf]
        %v809 = vmul.f32 %v801, %v784
        %v810 = vmul.f32 %v802, %v784
        %v811 = vmul.f32 %v803, %v784
        %v812 = vmul.f32 %v804, %v784
        %v813 = vmul.f32 %v805, %v784
        %v814 = vmul.f32 %v806, %v784
        %v815 = vmul.f32 %v807, %v784
        %v816 = vmul.f32 %v808, %v784
        %v817 = vadd.f32 %v766, %v809
        %v818 = vadd.f32 %v767, %v810
        %v819 = vadd.f32 %v768, %v811
        %v820 = vadd.f32 %v769, %v812
        %v821 = vadd.f32 %v770, %v813
        %v822 = vadd.f32 %v771, %v814
        %v823 = vadd.f32 %v772, %v815
        %v824 = vadd.f32 %v773, %v816
        %s825 = sadd.s32 %s69, 14
        %s826 = sshra.s32 %s825, 7
        %s827 = sand.u32 %s825, 127
        %s828 = sadd.s32 %s826, %s74
        %s829 = smul.u32 %s828, 1024
        %s830 = sshra.s32 %s825, 7
        %s831 = sand.u32 %s825, 127
        %s832 = sadd.s32 %s81, %s831
        %s833 = sadd.s32 %s829, %s832
        %s834 = sld [smem:[#allocation2 + %s833]]
        %v835 = vstv %s834
        %v836 = vmul.f32 %v801, %v835
        %v837 = vmul.f32 %v802, %v835
        %v838 = vmul.f32 %v803, %v835
        %v839 = vmul.f32 %v804, %v835
        %v840 = vmul.f32 %v805, %v835
        %v841 = vmul.f32 %v806, %v835
        %v842 = vmul.f32 %v807, %v835
        %v843 = vmul.f32 %v808, %v835
        %v844 = vadd.f32 %v793, %v836
        %v845 = vadd.f32 %v794, %v837
        %v846 = vadd.f32 %v795, %v838
        %v847 = vadd.f32 %v796, %v839
        %v848 = vadd.f32 %v797, %v840
        %v849 = vadd.f32 %v798, %v841
        %v850 = vadd.f32 %v799, %v842
        %v851 = vadd.f32 %v800, %v843
        %v852 = vld [vmem:[%s647 + $0x2] sm:$0xf]
        %v853 = vld [vmem:[%s647 + $0xa] sm:$0xf]
        %v854 = vld [vmem:[%s647 + $0x12] sm:$0xf]
        %v855 = vld [vmem:[%s647 + $0x1a] sm:$0xf]
        %v856 = vld [vmem:[%s647 + $0x22] sm:$0xf]
        %v857 = vld [vmem:[%s647 + $0x2a] sm:$0xf]
        %v858 = vld [vmem:[%s647 + $0x32] sm:$0xf]
        %v859 = vld [vmem:[%s647 + $0x3a] sm:$0xf]
        %v860 = vmul.f32 %v852, %v835
        %v861 = vmul.f32 %v853, %v835
        %v862 = vmul.f32 %v854, %v835
        %v863 = vmul.f32 %v855, %v835
        %v864 = vmul.f32 %v856, %v835
        %v865 = vmul.f32 %v857, %v835
        %v866 = vmul.f32 %v858, %v835
        %v867 = vmul.f32 %v859, %v835
        %v868 = vadd.f32 %v817, %v860
        %v869 = vadd.f32 %v818, %v861
        %v870 = vadd.f32 %v819, %v862
        %v871 = vadd.f32 %v820, %v863
        %v872 = vadd.f32 %v821, %v864
        %v873 = vadd.f32 %v822, %v865
        %v874 = vadd.f32 %v823, %v866
        %v875 = vadd.f32 %v824, %v867
        %s876 = sadd.s32 %s69, 15
        %s877 = sshra.s32 %s876, 7
        %s878 = sand.u32 %s876, 127
        %s879 = sadd.s32 %s877, %s74
        %s880 = smul.u32 %s879, 1024
        %s881 = sshra.s32 %s876, 7
        %s882 = sand.u32 %s876, 127
        %s883 = sadd.s32 %s81, %s882
        %s884 = sadd.s32 %s880, %s883
        %s885 = sld [smem:[#allocation2 + %s884]]
        %s886 = sadd.s32 24, %s85
        %s887 = scalar_lea.vmem %s0, %s886
        %v888 = vld [vmem:[%s887] sm:$0xf]
        %v889 = vld [vmem:[%s887 + $0x8] sm:$0xf]
        %v890 = vld [vmem:[%s887 + $0x10] sm:$0xf]
        %v891 = vld [vmem:[%s887 + $0x18] sm:$0xf]
        %v892 = vld [vmem:[%s887 + $0x20] sm:$0xf]
        %v893 = vld [vmem:[%s887 + $0x28] sm:$0xf]
        %v894 = vld [vmem:[%s887 + $0x30] sm:$0xf]
        %v895 = vld [vmem:[%s887 + $0x38] sm:$0xf]
        %v896 = vstv %s885
        %v897 = vmul.f32 %v888, %v896
        %v898 = vmul.f32 %v889, %v896
        %v899 = vmul.f32 %v890, %v896
        %v900 = vmul.f32 %v891, %v896
        %v901 = vmul.f32 %v892, %v896
        %v902 = vmul.f32 %v893, %v896
        %v903 = vmul.f32 %v894, %v896
        %v904 = vmul.f32 %v895, %v896
        %v905 = vadd.f32 %v844, %v897
        %v906 = vadd.f32 %v845, %v898
        %v907 = vadd.f32 %v846, %v899
        %v908 = vadd.f32 %v847, %v900
        %v909 = vadd.f32 %v848, %v901
        %v910 = vadd.f32 %v849, %v902
        %v911 = vadd.f32 %v850, %v903
        %v912 = vadd.f32 %v851, %v904
        %s913 = sadd.s32 %s886, 960
        %s914 = scalar_lea.vmem %s0, %s913
        %v915 = vld [vmem:[%s914] sm:$0xf]
        %v916 = vld [vmem:[%s914 + $0x8] sm:$0xf]
        %v917 = vld [vmem:[%s914 + $0x10] sm:$0xf]
        %v918 = vld [vmem:[%s914 + $0x18] sm:$0xf]
        %v919 = vld [vmem:[%s914 + $0x20] sm:$0xf]
        %v920 = vld [vmem:[%s914 + $0x28] sm:$0xf]
        %v921 = vld [vmem:[%s914 + $0x30] sm:$0xf]
        %v922 = vld [vmem:[%s914 + $0x38] sm:$0xf]
        %v923 = vmul.f32 %v915, %v896
        %v924 = vmul.f32 %v916, %v896
        %v925 = vmul.f32 %v917, %v896
        %v926 = vmul.f32 %v918, %v896
        %v927 = vmul.f32 %v919, %v896
        %v928 = vmul.f32 %v920, %v896
        %v929 = vmul.f32 %v921, %v896
        %v930 = vmul.f32 %v922, %v896
        %v931 = vadd.f32 %v868, %v923
        %v932 = vadd.f32 %v869, %v924
        %v933 = vadd.f32 %v870, %v925
        %v934 = vadd.f32 %v871, %v926
        %v935 = vadd.f32 %v872, %v927
        %v936 = vadd.f32 %v873, %v928
        %v937 = vadd.f32 %v874, %v929
        %v938 = vadd.f32 %v875, %v930
        %s939 = sadd.s32 %s69, 16
        %s940 = sshra.s32 %s939, 7
        %s941 = sand.u32 %s939, 127
        %s942 = sadd.s32 %s940, %s74
        %s943 = smul.u32 %s942, 1024
        %s944 = sshra.s32 %s939, 7
        %s945 = sand.u32 %s939, 127
        %s946 = sadd.s32 %s81, %s945
        %s947 = sadd.s32 %s943, %s946
        %s948 = sld [smem:[#allocation2 + %s947]]
        %v949 = vstv %s948
        %v950 = vmul.f32 %v915, %v949
        %v951 = vmul.f32 %v916, %v949
        %v952 = vmul.f32 %v917, %v949
        %v953 = vmul.f32 %v918, %v949
        %v954 = vmul.f32 %v919, %v949
        %v955 = vmul.f32 %v920, %v949
        %v956 = vmul.f32 %v921, %v949
        %v957 = vmul.f32 %v922, %v949
        %v958 = vadd.f32 %v905, %v950
        %v959 = vadd.f32 %v906, %v951
        %v960 = vadd.f32 %v907, %v952
        %v961 = vadd.f32 %v908, %v953
        %v962 = vadd.f32 %v909, %v954
        %v963 = vadd.f32 %v910, %v955
        %v964 = vadd.f32 %v911, %v956
        %v965 = vadd.f32 %v912, %v957
        %v966 = vld [vmem:[%s887 + $0x1] sm:$0xf]
        %v967 = vld [vmem:[%s887 + $0x9] sm:$0xf]
        %v968 = vld [vmem:[%s887 + $0x11] sm:$0xf]
        %v969 = vld [vmem:[%s887 + $0x19] sm:$0xf]
        %v970 = vld [vmem:[%s887 + $0x21] sm:$0xf]
        %v971 = vld [vmem:[%s887 + $0x29] sm:$0xf]
        %v972 = vld [vmem:[%s887 + $0x31] sm:$0xf]
        %v973 = vld [vmem:[%s887 + $0x39] sm:$0xf]
        %v974 = vmul.f32 %v966, %v949
        %v975 = vmul.f32 %v967, %v949
        %v976 = vmul.f32 %v968, %v949
        %v977 = vmul.f32 %v969, %v949
        %v978 = vmul.f32 %v970, %v949
        %v979 = vmul.f32 %v971, %v949
        %v980 = vmul.f32 %v972, %v949
        %v981 = vmul.f32 %v973, %v949
        %v982 = vadd.f32 %v931, %v974
        %v983 = vadd.f32 %v932, %v975
        %v984 = vadd.f32 %v933, %v976
        %v985 = vadd.f32 %v934, %v977
        %v986 = vadd.f32 %v935, %v978
        %v987 = vadd.f32 %v936, %v979
        %v988 = vadd.f32 %v937, %v980
        %v989 = vadd.f32 %v938, %v981
        %s990 = sadd.s32 %s69, 17
        %s991 = sshra.s32 %s990, 7
        %s992 = sand.u32 %s990, 127
        %s993 = sadd.s32 %s991, %s74
        %s994 = smul.u32 %s993, 1024
        %s995 = sshra.s32 %s990, 7
        %s996 = sand.u32 %s990, 127
        %s997 = sadd.s32 %s81, %s996
        %s998 = sadd.s32 %s994, %s997
        %s999 = sld [smem:[#allocation2 + %s998]]
        %v1000 = vstv %s999
        %v1001 = vmul.f32 %v966, %v1000
        %v1002 = vmul.f32 %v967, %v1000
        %v1003 = vmul.f32 %v968, %v1000
        %v1004 = vmul.f32 %v969, %v1000
        %v1005 = vmul.f32 %v970, %v1000
        %v1006 = vmul.f32 %v971, %v1000
        %v1007 = vmul.f32 %v972, %v1000
        %v1008 = vmul.f32 %v973, %v1000
        %v1009 = vadd.f32 %v958, %v1001
        %v1010 = vadd.f32 %v959, %v1002
        %v1011 = vadd.f32 %v960, %v1003
        %v1012 = vadd.f32 %v961, %v1004
        %v1013 = vadd.f32 %v962, %v1005
        %v1014 = vadd.f32 %v963, %v1006
        %v1015 = vadd.f32 %v964, %v1007
        %v1016 = vadd.f32 %v965, %v1008
        %v1017 = vld [vmem:[%s914 + $0x1] sm:$0xf]
        %v1018 = vld [vmem:[%s914 + $0x9] sm:$0xf]
        %v1019 = vld [vmem:[%s914 + $0x11] sm:$0xf]
        %v1020 = vld [vmem:[%s914 + $0x19] sm:$0xf]
        %v1021 = vld [vmem:[%s914 + $0x21] sm:$0xf]
        %v1022 = vld [vmem:[%s914 + $0x29] sm:$0xf]
        %v1023 = vld [vmem:[%s914 + $0x31] sm:$0xf]
        %v1024 = vld [vmem:[%s914 + $0x39] sm:$0xf]
        %v1025 = vmul.f32 %v1017, %v1000
        %v1026 = vmul.f32 %v1018, %v1000
        %v1027 = vmul.f32 %v1019, %v1000
        %v1028 = vmul.f32 %v1020, %v1000
        %v1029 = vmul.f32 %v1021, %v1000
        %v1030 = vmul.f32 %v1022, %v1000
        %v1031 = vmul.f32 %v1023, %v1000
        %v1032 = vmul.f32 %v1024, %v1000
        %v1033 = vadd.f32 %v982, %v1025
        %v1034 = vadd.f32 %v983, %v1026
        %v1035 = vadd.f32 %v984, %v1027
        %v1036 = vadd.f32 %v985, %v1028
        %v1037 = vadd.f32 %v986, %v1029
        %v1038 = vadd.f32 %v987, %v1030
        %v1039 = vadd.f32 %v988, %v1031
        %v1040 = vadd.f32 %v989, %v1032
        %s1041 = sadd.s32 %s69, 18
        %s1042 = sshra.s32 %s1041, 7
        %s1043 = sand.u32 %s1041, 127
        %s1044 = sadd.s32 %s1042, %s74
        %s1045 = smul.u32 %s1044, 1024
        %s1046 = sshra.s32 %s1041, 7
        %s1047 = sand.u32 %s1041, 127
        %s1048 = sadd.s32 %s81, %s1047
        %s1049 = sadd.s32 %s1045, %s1048
        %s1050 = sld [smem:[#allocation2 + %s1049]]
        %v1051 = vstv %s1050
        %v1052 = vmul.f32 %v1017, %v1051
        %v1053 = vmul.f32 %v1018, %v1051
        %v1054 = vmul.f32 %v1019, %v1051
        %v1055 = vmul.f32 %v1020, %v1051
        %v1056 = vmul.f32 %v1021, %v1051
        %v1057 = vmul.f32 %v1022, %v1051
        %v1058 = vmul.f32 %v1023, %v1051
        %v1059 = vmul.f32 %v1024, %v1051
        %v1060 = vadd.f32 %v1009, %v1052
        %v1061 = vadd.f32 %v1010, %v1053
        %v1062 = vadd.f32 %v1011, %v1054
        %v1063 = vadd.f32 %v1012, %v1055
        %v1064 = vadd.f32 %v1013, %v1056
        %v1065 = vadd.f32 %v1014, %v1057
        %v1066 = vadd.f32 %v1015, %v1058
        %v1067 = vadd.f32 %v1016, %v1059
        %v1068 = vld [vmem:[%s887 + $0x2] sm:$0xf]
        %v1069 = vld [vmem:[%s887 + $0xa] sm:$0xf]
        %v1070 = vld [vmem:[%s887 + $0x12] sm:$0xf]
        %v1071 = vld [vmem:[%s887 + $0x1a] sm:$0xf]
        %v1072 = vld [vmem:[%s887 + $0x22] sm:$0xf]
        %v1073 = vld [vmem:[%s887 + $0x2a] sm:$0xf]
        %v1074 = vld [vmem:[%s887 + $0x32] sm:$0xf]
        %v1075 = vld [vmem:[%s887 + $0x3a] sm:$0xf]
        %v1076 = vmul.f32 %v1068, %v1051
        %v1077 = vmul.f32 %v1069, %v1051
        %v1078 = vmul.f32 %v1070, %v1051
        %v1079 = vmul.f32 %v1071, %v1051
        %v1080 = vmul.f32 %v1072, %v1051
        %v1081 = vmul.f32 %v1073, %v1051
        %v1082 = vmul.f32 %v1074, %v1051
        %v1083 = vmul.f32 %v1075, %v1051
        %v1084 = vadd.f32 %v1033, %v1076
        %v1085 = vadd.f32 %v1034, %v1077
        %v1086 = vadd.f32 %v1035, %v1078
        %v1087 = vadd.f32 %v1036, %v1079
        %v1088 = vadd.f32 %v1037, %v1080
        %v1089 = vadd.f32 %v1038, %v1081
        %v1090 = vadd.f32 %v1039, %v1082
        %v1091 = vadd.f32 %v1040, %v1083
        %s1092 = sadd.s32 %s69, 19
        %s1093 = sshra.s32 %s1092, 7
        %s1094 = sand.u32 %s1092, 127
        %s1095 = sadd.s32 %s1093, %s74
        %s1096 = smul.u32 %s1095, 1024
        %s1097 = sshra.s32 %s1092, 7
        %s1098 = sand.u32 %s1092, 127
        %s1099 = sadd.s32 %s81, %s1098
        %s1100 = sadd.s32 %s1096, %s1099
        %s1101 = sld [smem:[#allocation2 + %s1100]]
        %v1102 = vstv %s1101
        %v1103 = vmul.f32 %v1068, %v1102
        %v1104 = vmul.f32 %v1069, %v1102
        %v1105 = vmul.f32 %v1070, %v1102
        %v1106 = vmul.f32 %v1071, %v1102
        %v1107 = vmul.f32 %v1072, %v1102
        %v1108 = vmul.f32 %v1073, %v1102
        %v1109 = vmul.f32 %v1074, %v1102
        %v1110 = vmul.f32 %v1075, %v1102
        %v1111 = vadd.f32 %v1060, %v1103
        %v1112 = vadd.f32 %v1061, %v1104
        %v1113 = vadd.f32 %v1062, %v1105
        %v1114 = vadd.f32 %v1063, %v1106
        %v1115 = vadd.f32 %v1064, %v1107
        %v1116 = vadd.f32 %v1065, %v1108
        %v1117 = vadd.f32 %v1066, %v1109
        %v1118 = vadd.f32 %v1067, %v1110
        %v1119 = vld [vmem:[%s914 + $0x2] sm:$0xf]
        %v1120 = vld [vmem:[%s914 + $0xa] sm:$0xf]
        %v1121 = vld [vmem:[%s914 + $0x12] sm:$0xf]
        %v1122 = vld [vmem:[%s914 + $0x1a] sm:$0xf]
        %v1123 = vld [vmem:[%s914 + $0x22] sm:$0xf]
        %v1124 = vld [vmem:[%s914 + $0x2a] sm:$0xf]
        %v1125 = vld [vmem:[%s914 + $0x32] sm:$0xf]
        %v1126 = vld [vmem:[%s914 + $0x3a] sm:$0xf]
        %v1127 = vmul.f32 %v1119, %v1102
        %v1128 = vmul.f32 %v1120, %v1102
        %v1129 = vmul.f32 %v1121, %v1102
        %v1130 = vmul.f32 %v1122, %v1102
        %v1131 = vmul.f32 %v1123, %v1102
        %v1132 = vmul.f32 %v1124, %v1102
        %v1133 = vmul.f32 %v1125, %v1102
        %v1134 = vmul.f32 %v1126, %v1102
        %v1135 = vadd.f32 %v1084, %v1127
        %v1136 = vadd.f32 %v1085, %v1128
        %v1137 = vadd.f32 %v1086, %v1129
        %v1138 = vadd.f32 %v1087, %v1130
        %v1139 = vadd.f32 %v1088, %v1131
        %v1140 = vadd.f32 %v1089, %v1132
        %v1141 = vadd.f32 %v1090, %v1133
        %v1142 = vadd.f32 %v1091, %v1134
        %s1143 = sadd.s32 %s69, 20
        %s1144 = sshra.s32 %s1143, 7
        %s1145 = sand.u32 %s1143, 127
        %s1146 = sadd.s32 %s1144, %s74
        %s1147 = smul.u32 %s1146, 1024
        %s1148 = sshra.s32 %s1143, 7
        %s1149 = sand.u32 %s1143, 127
        %s1150 = sadd.s32 %s81, %s1149
        %s1151 = sadd.s32 %s1147, %s1150
        %s1152 = sld [smem:[#allocation2 + %s1151]]
        %s1153 = sadd.s32 32, %s85
        %s1154 = scalar_lea.vmem %s0, %s1153
        %v1155 = vld [vmem:[%s1154] sm:$0xf]
        %v1156 = vld [vmem:[%s1154 + $0x8] sm:$0xf]
        %v1157 = vld [vmem:[%s1154 + $0x10] sm:$0xf]
        %v1158 = vld [vmem:[%s1154 + $0x18] sm:$0xf]
        %v1159 = vld [vmem:[%s1154 + $0x20] sm:$0xf]
        %v1160 = vld [vmem:[%s1154 + $0x28] sm:$0xf]
        %v1161 = vld [vmem:[%s1154 + $0x30] sm:$0xf]
        %v1162 = vld [vmem:[%s1154 + $0x38] sm:$0xf]
        %v1163 = vstv %s1152
        %v1164 = vmul.f32 %v1155, %v1163
        %v1165 = vmul.f32 %v1156, %v1163
        %v1166 = vmul.f32 %v1157, %v1163
        %v1167 = vmul.f32 %v1158, %v1163
        %v1168 = vmul.f32 %v1159, %v1163
        %v1169 = vmul.f32 %v1160, %v1163
        %v1170 = vmul.f32 %v1161, %v1163
        %v1171 = vmul.f32 %v1162, %v1163
        %v1172 = vadd.f32 %v1111, %v1164
        %v1173 = vadd.f32 %v1112, %v1165
        %v1174 = vadd.f32 %v1113, %v1166
        %v1175 = vadd.f32 %v1114, %v1167
        %v1176 = vadd.f32 %v1115, %v1168
        %v1177 = vadd.f32 %v1116, %v1169
        %v1178 = vadd.f32 %v1117, %v1170
        %v1179 = vadd.f32 %v1118, %v1171
        %s1180 = sadd.s32 %s1153, 960
        %s1181 = scalar_lea.vmem %s0, %s1180
        %v1182 = vld [vmem:[%s1181] sm:$0xf]
        %v1183 = vld [vmem:[%s1181 + $0x8] sm:$0xf]
        %v1184 = vld [vmem:[%s1181 + $0x10] sm:$0xf]
        %v1185 = vld [vmem:[%s1181 + $0x18] sm:$0xf]
        %v1186 = vld [vmem:[%s1181 + $0x20] sm:$0xf]
        %v1187 = vld [vmem:[%s1181 + $0x28] sm:$0xf]
        %v1188 = vld [vmem:[%s1181 + $0x30] sm:$0xf]
        %v1189 = vld [vmem:[%s1181 + $0x38] sm:$0xf]
        %v1190 = vmul.f32 %v1182, %v1163
        %v1191 = vmul.f32 %v1183, %v1163
        %v1192 = vmul.f32 %v1184, %v1163
        %v1193 = vmul.f32 %v1185, %v1163
        %v1194 = vmul.f32 %v1186, %v1163
        %v1195 = vmul.f32 %v1187, %v1163
        %v1196 = vmul.f32 %v1188, %v1163
        %v1197 = vmul.f32 %v1189, %v1163
        %v1198 = vadd.f32 %v1135, %v1190
        %v1199 = vadd.f32 %v1136, %v1191
        %v1200 = vadd.f32 %v1137, %v1192
        %v1201 = vadd.f32 %v1138, %v1193
        %v1202 = vadd.f32 %v1139, %v1194
        %v1203 = vadd.f32 %v1140, %v1195
        %v1204 = vadd.f32 %v1141, %v1196
        %v1205 = vadd.f32 %v1142, %v1197
        %s1206 = sadd.s32 %s69, 21
        %s1207 = sshra.s32 %s1206, 7
        %s1208 = sand.u32 %s1206, 127
        %s1209 = sadd.s32 %s1207, %s74
        %s1210 = smul.u32 %s1209, 1024
        %s1211 = sshra.s32 %s1206, 7
        %s1212 = sand.u32 %s1206, 127
        %s1213 = sadd.s32 %s81, %s1212
        %s1214 = sadd.s32 %s1210, %s1213
        %s1215 = sld [smem:[#allocation2 + %s1214]]
        %v1216 = vstv %s1215
        %v1217 = vmul.f32 %v1182, %v1216
        %v1218 = vmul.f32 %v1183, %v1216
        %v1219 = vmul.f32 %v1184, %v1216
        %v1220 = vmul.f32 %v1185, %v1216
        %v1221 = vmul.f32 %v1186, %v1216
        %v1222 = vmul.f32 %v1187, %v1216
        %v1223 = vmul.f32 %v1188, %v1216
        %v1224 = vmul.f32 %v1189, %v1216
        %v1225 = vadd.f32 %v1172, %v1217
        %v1226 = vadd.f32 %v1173, %v1218
        %v1227 = vadd.f32 %v1174, %v1219
        %v1228 = vadd.f32 %v1175, %v1220
        %v1229 = vadd.f32 %v1176, %v1221
        %v1230 = vadd.f32 %v1177, %v1222
        %v1231 = vadd.f32 %v1178, %v1223
        %v1232 = vadd.f32 %v1179, %v1224
        %v1233 = vld [vmem:[%s1154 + $0x1] sm:$0xf]
        %v1234 = vld [vmem:[%s1154 + $0x9] sm:$0xf]
        %v1235 = vld [vmem:[%s1154 + $0x11] sm:$0xf]
        %v1236 = vld [vmem:[%s1154 + $0x19] sm:$0xf]
        %v1237 = vld [vmem:[%s1154 + $0x21] sm:$0xf]
        %v1238 = vld [vmem:[%s1154 + $0x29] sm:$0xf]
        %v1239 = vld [vmem:[%s1154 + $0x31] sm:$0xf]
        %v1240 = vld [vmem:[%s1154 + $0x39] sm:$0xf]
        %v1241 = vmul.f32 %v1233, %v1216
        %v1242 = vmul.f32 %v1234, %v1216
        %v1243 = vmul.f32 %v1235, %v1216
        %v1244 = vmul.f32 %v1236, %v1216
        %v1245 = vmul.f32 %v1237, %v1216
        %v1246 = vmul.f32 %v1238, %v1216
        %v1247 = vmul.f32 %v1239, %v1216
        %v1248 = vmul.f32 %v1240, %v1216
        %v1249 = vadd.f32 %v1198, %v1241
        %v1250 = vadd.f32 %v1199, %v1242
        %v1251 = vadd.f32 %v1200, %v1243
        %v1252 = vadd.f32 %v1201, %v1244
        %v1253 = vadd.f32 %v1202, %v1245
        %v1254 = vadd.f32 %v1203, %v1246
        %v1255 = vadd.f32 %v1204, %v1247
        %v1256 = vadd.f32 %v1205, %v1248
        %s1257 = sadd.s32 %s69, 22
        %s1258 = sshra.s32 %s1257, 7
        %s1259 = sand.u32 %s1257, 127
        %s1260 = sadd.s32 %s1258, %s74
        %s1261 = smul.u32 %s1260, 1024
        %s1262 = sshra.s32 %s1257, 7
        %s1263 = sand.u32 %s1257, 127
        %s1264 = sadd.s32 %s81, %s1263
        %s1265 = sadd.s32 %s1261, %s1264
        %s1266 = sld [smem:[#allocation2 + %s1265]]
        %v1267 = vstv %s1266
        %v1268 = vmul.f32 %v1233, %v1267
        %v1269 = vmul.f32 %v1234, %v1267
        %v1270 = vmul.f32 %v1235, %v1267
        %v1271 = vmul.f32 %v1236, %v1267
        %v1272 = vmul.f32 %v1237, %v1267
        %v1273 = vmul.f32 %v1238, %v1267
        %v1274 = vmul.f32 %v1239, %v1267
        %v1275 = vmul.f32 %v1240, %v1267
        %v1276 = vadd.f32 %v1225, %v1268
        %v1277 = vadd.f32 %v1226, %v1269
        %v1278 = vadd.f32 %v1227, %v1270
        %v1279 = vadd.f32 %v1228, %v1271
        %v1280 = vadd.f32 %v1229, %v1272
        %v1281 = vadd.f32 %v1230, %v1273
        %v1282 = vadd.f32 %v1231, %v1274
        %v1283 = vadd.f32 %v1232, %v1275
        %v1284 = vld [vmem:[%s1181 + $0x1] sm:$0xf]
        %v1285 = vld [vmem:[%s1181 + $0x9] sm:$0xf]
        %v1286 = vld [vmem:[%s1181 + $0x11] sm:$0xf]
        %v1287 = vld [vmem:[%s1181 + $0x19] sm:$0xf]
        %v1288 = vld [vmem:[%s1181 + $0x21] sm:$0xf]
        %v1289 = vld [vmem:[%s1181 + $0x29] sm:$0xf]
        %v1290 = vld [vmem:[%s1181 + $0x31] sm:$0xf]
        %v1291 = vld [vmem:[%s1181 + $0x39] sm:$0xf]
        %v1292 = vmul.f32 %v1284, %v1267
        %v1293 = vmul.f32 %v1285, %v1267
        %v1294 = vmul.f32 %v1286, %v1267
        %v1295 = vmul.f32 %v1287, %v1267
        %v1296 = vmul.f32 %v1288, %v1267
        %v1297 = vmul.f32 %v1289, %v1267
        %v1298 = vmul.f32 %v1290, %v1267
        %v1299 = vmul.f32 %v1291, %v1267
        %v1300 = vadd.f32 %v1249, %v1292
        %v1301 = vadd.f32 %v1250, %v1293
        %v1302 = vadd.f32 %v1251, %v1294
        %v1303 = vadd.f32 %v1252, %v1295
        %v1304 = vadd.f32 %v1253, %v1296
        %v1305 = vadd.f32 %v1254, %v1297
        %v1306 = vadd.f32 %v1255, %v1298
        %v1307 = vadd.f32 %v1256, %v1299
        %s1308 = sadd.s32 %s69, 23
        %s1309 = sshra.s32 %s1308, 7
        %s1310 = sand.u32 %s1308, 127
        %s1311 = sadd.s32 %s1309, %s74
        %s1312 = smul.u32 %s1311, 1024
        %s1313 = sshra.s32 %s1308, 7
        %s1314 = sand.u32 %s1308, 127
        %s1315 = sadd.s32 %s81, %s1314
        %s1316 = sadd.s32 %s1312, %s1315
        %s1317 = sld [smem:[#allocation2 + %s1316]]
        %v1318 = vstv %s1317
        %v1319 = vmul.f32 %v1284, %v1318
        %v1320 = vmul.f32 %v1285, %v1318
        %v1321 = vmul.f32 %v1286, %v1318
        %v1322 = vmul.f32 %v1287, %v1318
        %v1323 = vmul.f32 %v1288, %v1318
        %v1324 = vmul.f32 %v1289, %v1318
        %v1325 = vmul.f32 %v1290, %v1318
        %v1326 = vmul.f32 %v1291, %v1318
        %v1327 = vadd.f32 %v1276, %v1319
        %v1328 = vadd.f32 %v1277, %v1320
        %v1329 = vadd.f32 %v1278, %v1321
        %v1330 = vadd.f32 %v1279, %v1322
        %v1331 = vadd.f32 %v1280, %v1323
        %v1332 = vadd.f32 %v1281, %v1324
        %v1333 = vadd.f32 %v1282, %v1325
        %v1334 = vadd.f32 %v1283, %v1326
        %v1335 = vld [vmem:[%s1154 + $0x2] sm:$0xf]
        %v1336 = vld [vmem:[%s1154 + $0xa] sm:$0xf]
        %v1337 = vld [vmem:[%s1154 + $0x12] sm:$0xf]
        %v1338 = vld [vmem:[%s1154 + $0x1a] sm:$0xf]
        %v1339 = vld [vmem:[%s1154 + $0x22] sm:$0xf]
        %v1340 = vld [vmem:[%s1154 + $0x2a] sm:$0xf]
        %v1341 = vld [vmem:[%s1154 + $0x32] sm:$0xf]
        %v1342 = vld [vmem:[%s1154 + $0x3a] sm:$0xf]
        %v1343 = vmul.f32 %v1335, %v1318
        %v1344 = vmul.f32 %v1336, %v1318
        %v1345 = vmul.f32 %v1337, %v1318
        %v1346 = vmul.f32 %v1338, %v1318
        %v1347 = vmul.f32 %v1339, %v1318
        %v1348 = vmul.f32 %v1340, %v1318
        %v1349 = vmul.f32 %v1341, %v1318
        %v1350 = vmul.f32 %v1342, %v1318
        %v1351 = vadd.f32 %v1300, %v1343
        %v1352 = vadd.f32 %v1301, %v1344
        %v1353 = vadd.f32 %v1302, %v1345
        %v1354 = vadd.f32 %v1303, %v1346
        %v1355 = vadd.f32 %v1304, %v1347
        %v1356 = vadd.f32 %v1305, %v1348
        %v1357 = vadd.f32 %v1306, %v1349
        %v1358 = vadd.f32 %v1307, %v1350
        %s1359 = sadd.s32 %s69, 24
        %s1360 = sshra.s32 %s1359, 7
        %s1361 = sand.u32 %s1359, 127
        %s1362 = sadd.s32 %s1360, %s74
        %s1363 = smul.u32 %s1362, 1024
        %s1364 = sshra.s32 %s1359, 7
        %s1365 = sand.u32 %s1359, 127
        %s1366 = sadd.s32 %s81, %s1365
        %s1367 = sadd.s32 %s1363, %s1366
        %s1368 = sld [smem:[#allocation2 + %s1367]]
        %v1369 = vstv %s1368
        %v1370 = vmul.f32 %v1335, %v1369
        %v1371 = vmul.f32 %v1336, %v1369
        %v1372 = vmul.f32 %v1337, %v1369
        %v1373 = vmul.f32 %v1338, %v1369
        %v1374 = vmul.f32 %v1339, %v1369
        %v1375 = vmul.f32 %v1340, %v1369
        %v1376 = vmul.f32 %v1341, %v1369
        %v1377 = vmul.f32 %v1342, %v1369
        %v1378 = vadd.f32 %v1327, %v1370
        %v1379 = vadd.f32 %v1328, %v1371
        %v1380 = vadd.f32 %v1329, %v1372
        %v1381 = vadd.f32 %v1330, %v1373
        %v1382 = vadd.f32 %v1331, %v1374
        %v1383 = vadd.f32 %v1332, %v1375
        %v1384 = vadd.f32 %v1333, %v1376
        %v1385 = vadd.f32 %v1334, %v1377
        %v1386 = vld [vmem:[%s1181 + $0x2] sm:$0xf]
        %v1387 = vld [vmem:[%s1181 + $0xa] sm:$0xf]
        %v1388 = vld [vmem:[%s1181 + $0x12] sm:$0xf]
        %v1389 = vld [vmem:[%s1181 + $0x1a] sm:$0xf]
        %v1390 = vld [vmem:[%s1181 + $0x22] sm:$0xf]
        %v1391 = vld [vmem:[%s1181 + $0x2a] sm:$0xf]
        %v1392 = vld [vmem:[%s1181 + $0x32] sm:$0xf]
        %v1393 = vld [vmem:[%s1181 + $0x3a] sm:$0xf]
        %v1394 = vmul.f32 %v1386, %v1369
        %v1395 = vmul.f32 %v1387, %v1369
        %v1396 = vmul.f32 %v1388, %v1369
        %v1397 = vmul.f32 %v1389, %v1369
        %v1398 = vmul.f32 %v1390, %v1369
        %v1399 = vmul.f32 %v1391, %v1369
        %v1400 = vmul.f32 %v1392, %v1369
        %v1401 = vmul.f32 %v1393, %v1369
        %v1402 = vadd.f32 %v1351, %v1394
        %v1403 = vadd.f32 %v1352, %v1395
        %v1404 = vadd.f32 %v1353, %v1396
        %v1405 = vadd.f32 %v1354, %v1397
        %v1406 = vadd.f32 %v1355, %v1398
        %v1407 = vadd.f32 %v1356, %v1399
        %v1408 = vadd.f32 %v1357, %v1400
        %v1409 = vadd.f32 %v1358, %v1401
      $region33: #{lenet1_forward.4} parent=25 // loop_footer
        %s52 = sadd.s32 1, %s48
      $region34: #{lenet1_forward.4} parent=25 // loop_footer_branch
        %47 = sbr.rel target = $region30
      $region35: #{lenet1_forward.4} parent=25 // loop_exit
        _
      %s1410 = sld [smem:[#allocation4 + %s42]]
      %v1411 = vmax.f32 %v53, %v61
      %v1412 = vmax.f32 %v54, %v62
      %v1413 = vmax.f32 %v55, %v63
      %v1414 = vmax.f32 %v56, %v64
      %v1415 = vmax.f32 %v57, %v65
      %v1416 = vmax.f32 %v58, %v66
      %v1417 = vmax.f32 %v59, %v67
      %v1418 = vmax.f32 %v60, %v68
      %vm1419 = vcmask 1043456
      %v1420 = vsel %vm1419, %v1411, -inf
      %v1421 = vsel %vm1419, %v1412, -inf
      %v1422 = vmax.f32 %v1420, %v1421
      %v1423 = vsel %vm1419, %v1413, -inf
      %v1424 = vsel %vm1419, %v1414, -inf
      %v1425 = vmax.f32 %v1423, %v1424
      %v1426 = vsel %vm1419, %v1415, -inf
      %v1427 = vsel %vm1419, %v1416, -inf
      %v1428 = vmax.f32 %v1426, %v1427
      %v1429 = vsel %vm1419, %v1417, -inf
      %v1430 = vsel %vm1419, %v1418, -inf
      %v1431 = vmax.f32 %v1429, %v1430
      %v1432 = vstv %s1410
      %v1433 = vadd.f32 %v1422, %v1432
      %v1434 = vadd.f32 %v1425, %v1432
      %v1435 = vadd.f32 %v1428, %v1432
      %v1436 = vadd.f32 %v1431, %v1432
      %v1437 = vmax.f32 %v1433, 0.0
      %v1438 = vmax.f32 %v1434, 0.0
      %v1439 = vmax.f32 %v1435, 0.0
      %v1440 = vmax.f32 %v1436, 0.0
      %s1441 = smul.u32 %s42, 16
      %s1442 = scalar_lea.vmem %s3, %s1441
      %1443 = vst [vmem:[%s1442] sm:$0xf] %v1437
      %1444 = vst [vmem:[%s1442 + $0x4] sm:$0xf] %v1438
      %1445 = vst [vmem:[%s1442 + $0x8] sm:$0xf] %v1439
      %1446 = vst [vmem:[%s1442 + $0xc] sm:$0xf] %v1440
    $region26: #{lenet1_forward.4} parent=1 // loop_footer
      %s46 = sadd.s32 1, %s42
    $region27: #{lenet1_forward.4} parent=1 // loop_footer_branch
      %41 = sbr.rel target = $region23
    $region28: #{lenet1_forward.4} parent=1 // loop_exit
      _
    // Predicated region
    $region36: #{lenet1_forward.4} parent=1 // pred_check
      _
    $region37: #{lenet1_forward.4} parent=1 // pred_check_branch
      %1448 = sbr.rel (0) target = $region39
    $region38: #{lenet1_forward.4} parent=1 // pred_region
      _
    $region39: #{lenet1_forward.4} parent=1 // pred_fallthru
      _
    // Predicated region
    $region40: #{lenet1_forward.4} parent=1 // pred_check
      _
    $region41: #{lenet1_forward.4} parent=1 // pred_check_branch
      %1450 = sbr.rel (0) target = $region43
    $region42: #{lenet1_forward.4} parent=1 // pred_region
      _
    $region43: #{lenet1_forward.4} parent=1 // pred_fallthru
      _
    %1451 = vsyncpa [#allocation3], 1
    %1452 = vsyncpa [#allocation5], 1

// kernel: lenet1_forward.3
$region0: #{lenet1_forward.3}
  #allocation0 [shape = 'u32[]', space=smem, size = 0x4, offset = 0x4, fixed_abs, tag = 'smem constant byte address 0x4 - core index']
  #allocation1 [shape = 'u32[144,128]{1,0:T(1,128)}', space=vmem, size = 0x12000, scoped, tag = 'internal scratch']
  %s0 = inlined_call_operand.vmem [shape: f32[4,28,7,128], index: 0, kind: input, shape index: {}]
  %s1 = inlined_call_operand.vmem [shape: f32[10,25], index: 1, kind: input, shape index: {}]
  %s2 = inlined_call_operand.vmem [shape: f32[10], index: 2, kind: input, shape index: {}]
  %s3 = inlined_call_operand.vmem [shape: f32[2,10,12,6,128], index: 3, kind: output, shape index: {}]
  %s4 = sld [smem:[#allocation0]]
  $region37: #{lenet1_forward.3} parent=0
    _
  %s6 = ssub.s32 1, %s4
  %s7 = scalar_select 0, %s6, %s4
  $region1: #{lenet1_forward.3} parent=0
    #allocation2 [shape = 'u8[8192]{0}', space=smem, size = 0x2000, scoped, tag = 'input window, operand 1, single buffered']
    #allocation3 [shape = 's32[1]{0}', space=sflag, size = 0x4, scoped, tag = 'scoped memory for lenet1_forward.3']
    #allocation4 [shape = 'u8[512]{0}', space=smem, size = 0x200, scoped, tag = 'input window, operand 2, single buffered']
    #allocation5 [shape = 's32[1]{0}', space=sflag, size = 0x4, scoped, tag = 'scoped memory for lenet1_forward.3']
    %8 = vsyncpa [#allocation3], 0
    %9 = vsyncpa [#allocation5], 0
    // Predicated region
    $region2: #{lenet1_forward.3} parent=1 // pred_check
      _
    $region3: #{lenet1_forward.3} parent=1 // pred_check_branch
      %11 = sbr.rel (0) target = $region5
    $region4: #{lenet1_forward.3} parent=1 // pred_region
      _
    $region5: #{lenet1_forward.3} parent=1 // pred_fallthru
      _
    // Predicated region
    $region6: #{lenet1_forward.3} parent=1 // pred_check
      _
    $region7: #{lenet1_forward.3} parent=1 // pred_check_branch
      %13 = sbr.rel (0) target = $region9
    $region8: #{lenet1_forward.3} parent=1 // pred_region
      %s15 = ssub.s32 256, 256
      %16 = vsyncadd [#allocation3], %s15
      %s17 = sshll.u32 %s1, 4
      %s18 = int_to_ptr.vmem [resolvable:$true] %s17
      %23 = dma.vmem_to_smem %s18, 256, [#allocation2], [#allocation3], 128, 128, 8
    $region9: #{lenet1_forward.3} parent=1 // pred_fallthru
      _
    // Predicated region
    $region10: #{lenet1_forward.3} parent=1 // pred_check
      _
    $region11: #{lenet1_forward.3} parent=1 // pred_check_branch
      %25 = sbr.rel (0) target = $region13
    $region12: #{lenet1_forward.3} parent=1 // pred_region
      %s27 = ssub.s32 16, 16
      %28 = vsyncadd [#allocation5], %s27
      %s30 = sshll.u32 %s2, 4
      %s31 = int_to_ptr.vmem [resolvable:$true] %s30
      %33 = dma.vmem_to_smem %s31, 16, [#allocation4], [#allocation5]
    $region13: #{lenet1_forward.3} parent=1 // pred_fallthru
      _
    // Predicated region
    $region14: #{lenet1_forward.3} parent=1 // pred_check
      _
    $region15: #{lenet1_forward.3} parent=1 // pred_check_branch
      %35 = sbr.rel (0) target = $region17
    $region16: #{lenet1_forward.3} parent=1 // pred_region
      %36 = dma.done [#allocation3], 256
    $region17: #{lenet1_forward.3} parent=1 // pred_fallthru
      _
    // Predicated region
    $region18: #{lenet1_forward.3} parent=1 // pred_check
      _
    $region19: #{lenet1_forward.3} parent=1 // pred_check_branch
      %38 = sbr.rel (0) target = $region21
    $region20: #{lenet1_forward.3} parent=1 // pred_region
      %39 = dma.done [#allocation5], 16
    $region21: #{lenet1_forward.3} parent=1 // pred_fallthru
      _
    %40 = sfence
    loop: start=0, step=1, limit=10
    $region22: #{lenet1_forward.3} parent=1 // loop_pre_header
      _
    $region23: #{lenet1_forward.3} parent=1 // loop_header
      %s42 = sphi 0, %s46
      %p43 = scmp.ge.s32.totalorder %s42, 10
    $region24: #{lenet1_forward.3} parent=1 // loop_header_branch
      %45 = sbr.rel (%p43) target = $region28
    $region25: #{lenet1_forward.3} parent=1 // loop_body
      %s47 = sld [smem:[#allocation4 + %s42]]
      %s48 = smul.u32 %s42, 128
      %s49 = sld [smem:[#allocation2 + %s48]]
      %v50 = vld [vmem:[%s0] sm:$0x3f]
      %v51 = vld [vmem:[%s0 + $0x8] sm:$0x3f]
      %v52 = vld [vmem:[%s0 + $0x10] sm:$0x3f]
      %v53 = vld [vmem:[%s0 + $0x18] sm:$0x3f]
      %v54 = vld [vmem:[%s0 + $0x20] sm:$0x3f]
      %v55 = vld [vmem:[%s0 + $0x28] sm:$0x3f]
      %v56 = vld [vmem:[%s0 + $0x30] sm:$0x3f]
      %v57 = vld [vmem:[%s0 + $0x38] sm:$0x3f]
      %v58 = vld [vmem:[%s0 + $0x40] sm:$0x3f]
      %v59 = vld [vmem:[%s0 + $0x48] sm:$0x3f]
      %v60 = vld [vmem:[%s0 + $0x50] sm:$0x3f]
      %v61 = vld [vmem:[%s0 + $0x58] sm:$0x3f]
      %v62 = vld [vmem:[%s0 + $0x60] sm:$0x3f]
      %v63 = vld [vmem:[%s0 + $0x68] sm:$0x3f]
      %v64 = vld [vmem:[%s0 + $0x70] sm:$0x3f]
      %v65 = vld [vmem:[%s0 + $0x78] sm:$0x3f]
      %v66 = vld [vmem:[%s0 + $0x80] sm:$0x3f]
      %v67 = vld [vmem:[%s0 + $0x88] sm:$0x3f]
      %v68 = vld [vmem:[%s0 + $0x90] sm:$0x3f]
      %v69 = vld [vmem:[%s0 + $0x98] sm:$0x3f]
      %v70 = vld [vmem:[%s0 + $0xa0] sm:$0x3f]
      %v71 = vld [vmem:[%s0 + $0xa8] sm:$0x3f]
      %v72 = vld [vmem:[%s0 + $0xb0] sm:$0x3f]
      %v73 = vld [vmem:[%s0 + $0xb8] sm:$0x3f]
      %v74 = vstv %s49
      %v75 = vmul.f32 %v50, %v74
      %v76 = vmul.f32 %v51, %v74
      %v77 = vmul.f32 %v52, %v74
      %v78 = vmul.f32 %v53, %v74
      %v79 = vmul.f32 %v54, %v74
      %v80 = vmul.f32 %v55, %v74
      %v81 = vmul.f32 %v56, %v74
      %v82 = vmul.f32 %v57, %v74
      %v83 = vmul.f32 %v58, %v74
      %v84 = vmul.f32 %v59, %v74
      %v85 = vmul.f32 %v60, %v74
      %v86 = vmul.f32 %v61, %v74
      %v87 = vmul.f32 %v62, %v74
      %v88 = vmul.f32 %v63, %v74
      %v89 = vmul.f32 %v64, %v74
      %v90 = vmul.f32 %v65, %v74
      %v91 = vmul.f32 %v66, %v74
      %v92 = vmul.f32 %v67, %v74
      %v93 = vmul.f32 %v68, %v74
      %v94 = vmul.f32 %v69, %v74
      %v95 = vmul.f32 %v70, %v74
      %v96 = vmul.f32 %v71, %v74
      %v97 = vmul.f32 %v72, %v74
      %v98 = vmul.f32 %v73, %v74
      %v99 = vadd.f32 %v75, 0.0
      %v100 = vadd.f32 %v76, 0.0
      %v101 = vadd.f32 %v77, 0.0
      %v102 = vadd.f32 %v78, 0.0
      %v103 = vadd.f32 %v79, 0.0
      %v104 = vadd.f32 %v80, 0.0
      %v105 = vadd.f32 %v81, 0.0
      %v106 = vadd.f32 %v82, 0.0
      %v107 = vadd.f32 %v83, 0.0
      %v108 = vadd.f32 %v84, 0.0
      %v109 = vadd.f32 %v85, 0.0
      %v110 = vadd.f32 %v86, 0.0
      %v111 = vadd.f32 %v87, 0.0
      %v112 = vadd.f32 %v88, 0.0
      %v113 = vadd.f32 %v89, 0.0
      %v114 = vadd.f32 %v90, 0.0
      %v115 = vadd.f32 %v91, 0.0
      %v116 = vadd.f32 %v92, 0.0
      %v117 = vadd.f32 %v93, 0.0
      %v118 = vadd.f32 %v94, 0.0
      %v119 = vadd.f32 %v95, 0.0
      %v120 = vadd.f32 %v96, 0.0
      %v121 = vadd.f32 %v97, 0.0
      %v122 = vadd.f32 %v98, 0.0
      %s123 = scalar_lea.vmem %s0, 224
      %v124 = vld [vmem:[%s123] sm:$0x3f]
      %v125 = vld [vmem:[%s123 + $0x8] sm:$0x3f]
      %v126 = vld [vmem:[%s123 + $0x10] sm:$0x3f]
      %v127 = vld [vmem:[%s123 + $0x18] sm:$0x3f]
      %v128 = vld [vmem:[%s123 + $0x20] sm:$0x3f]
      %v129 = vld [vmem:[%s123 + $0x28] sm:$0x3f]
      %v130 = vld [vmem:[%s123 + $0x30] sm:$0x3f]
      %v131 = vld [vmem:[%s123 + $0x38] sm:$0x3f]
      %v132 = vld [vmem:[%s123 + $0x40] sm:$0x3f]
      %v133 = vld [vmem:[%s123 + $0x48] sm:$0x3f]
      %v134 = vld [vmem:[%s123 + $0x50] sm:$0x3f]
      %v135 = vld [vmem:[%s123 + $0x58] sm:$0x3f]
      %v136 = vld [vmem:[%s123 + $0x60] sm:$0x3f]
      %v137 = vld [vmem:[%s123 + $0x68] sm:$0x3f]
      %v138 = vld [vmem:[%s123 + $0x70] sm:$0x3f]
      %v139 = vld [vmem:[%s123 + $0x78] sm:$0x3f]
      %v140 = vld [vmem:[%s123 + $0x80] sm:$0x3f]
      %v141 = vld [vmem:[%s123 + $0x88] sm:$0x3f]
      %v142 = vld [vmem:[%s123 + $0x90] sm:$0x3f]
      %v143 = vld [vmem:[%s123 + $0x98] sm:$0x3f]
      %v144 = vld [vmem:[%s123 + $0xa0] sm:$0x3f]
      %v145 = vld [vmem:[%s123 + $0xa8] sm:$0x3f]
      %v146 = vld [vmem:[%s123 + $0xb0] sm:$0x3f]
      %v147 = vld [vmem:[%s123 + $0xb8] sm:$0x3f]
      %v148 = vmul.f32 %v124, %v74
      %v149 = vmul.f32 %v125, %v74
      %v150 = vmul.f32 %v126, %v74
      %v151 = vmul.f32 %v127, %v74
      %v152 = vmul.f32 %v128, %v74
      %v153 = vmul.f32 %v129, %v74
      %v154 = vmul.f32 %v130, %v74
      %v155 = vmul.f32 %v131, %v74
      %v156 = vmul.f32 %v132, %v74
      %v157 = vmul.f32 %v133, %v74
      %v158 = vmul.f32 %v134, %v74
      %v159 = vmul.f32 %v135, %v74
      %v160 = vmul.f32 %v136, %v74
      %v161 = vmul.f32 %v137, %v74
      %v162 = vmul.f32 %v138, %v74
      %v163 = vmul.f32 %v139, %v74
      %v164 = vmul.f32 %v140, %v74
      %v165 = vmul.f32 %v141, %v74
      %v166 = vmul.f32 %v142, %v74
      %v167 = vmul.f32 %v143, %v74
      %v168 = vmul.f32 %v144, %v74
      %v169 = vmul.f32 %v145, %v74
      %v170 = vmul.f32 %v146, %v74
      %v171 = vmul.f32 %v147, %v74
      %v172 = vadd.f32 %v148, 0.0
      %v173 = vadd.f32 %v149, 0.0
      %v174 = vadd.f32 %v150, 0.0
      %v175 = vadd.f32 %v151, 0.0
      %v176 = vadd.f32 %v152, 0.0
      %v177 = vadd.f32 %v153, 0.0
      %v178 = vadd.f32 %v154, 0.0
      %v179 = vadd.f32 %v155, 0.0
      %v180 = vadd.f32 %v156, 0.0
      %v181 = vadd.f32 %v157, 0.0
      %v182 = vadd.f32 %v158, 0.0
      %v183 = vadd.f32 %v159, 0.0
      %v184 = vadd.f32 %v160, 0.0
      %v185 = vadd.f32 %v161, 0.0
      %v186 = vadd.f32 %v162, 0.0
      %v187 = vadd.f32 %v163, 0.0
      %v188 = vadd.f32 %v164, 0.0
      %v189 = vadd.f32 %v165, 0.0
      %v190 = vadd.f32 %v166, 0.0
      %v191 = vadd.f32 %v167, 0.0
      %v192 = vadd.f32 %v168, 0.0
      %v193 = vadd.f32 %v169, 0.0
      %v194 = vadd.f32 %v170, 0.0
      %v195 = vadd.f32 %v171, 0.0
      %s196 = sadd.s32 %s48, 1
      %s197 = sld [smem:[#allocation2 + %s196]]
      %v198 = vstv %s197
      %v199 = vmul.f32 %v124, %v198
      %v200 = vmul.f32 %v125, %v198
      %v201 = vmul.f32 %v126, %v198
      %v202 = vmul.f32 %v127, %v198
      %v203 = vmul.f32 %v128, %v198
      %v204 = vmul.f32 %v129, %v198
      %v205 = vmul.f32 %v130, %v198
      %v206 = vmul.f32 %v131, %v198
      %v207 = vmul.f32 %v132, %v198
      %v208 = vmul.f32 %v133, %v198
      %v209 = vmul.f32 %v134, %v198
      %v210 = vmul.f32 %v135, %v198
      %v211 = vmul.f32 %v136, %v198
      %v212 = vmul.f32 %v137, %v198
      %v213 = vmul.f32 %v138, %v198
      %v214 = vmul.f32 %v139, %v198
      %v215 = vmul.f32 %v140, %v198
      %v216 = vmul.f32 %v141, %v198
      %v217 = vmul.f32 %v142, %v198
      %v218 = vmul.f32 %v143, %v198
      %v219 = vmul.f32 %v144, %v198
      %v220 = vmul.f32 %v145, %v198
      %v221 = vmul.f32 %v146, %v198
      %v222 = vmul.f32 %v147, %v198
      %v223 = vadd.f32 %v99, %v199
      %v224 = vadd.f32 %v100, %v200
      %v225 = vadd.f32 %v101, %v201
      %v226 = vadd.f32 %v102, %v202
      %v227 = vadd.f32 %v103, %v203
      %v228 = vadd.f32 %v104, %v204
      %v229 = vadd.f32 %v105, %v205
      %v230 = vadd.f32 %v106, %v206
      %v231 = vadd.f32 %v107, %v207
      %v232 = vadd.f32 %v108, %v208
      %v233 = vadd.f32 %v109, %v209
      %v234 = vadd.f32 %v110, %v210
      %v235 = vadd.f32 %v111, %v211
      %v236 = vadd.f32 %v112, %v212
      %v237 = vadd.f32 %v113, %v213
      %v238 = vadd.f32 %v114, %v214
      %v239 = vadd.f32 %v115, %v215
      %v240 = vadd.f32 %v116, %v216
      %v241 = vadd.f32 %v117, %v217
      %v242 = vadd.f32 %v118, %v218
      %v243 = vadd.f32 %v119, %v219
      %v244 = vadd.f32 %v120, %v220
      %v245 = vadd.f32 %v121, %v221
      %v246 = vadd.f32 %v122, %v222
      %s247 = scalar_lea.vmem %s0, 448
      %v248 = vld [vmem:[%s247] sm:$0x3f]
      %v249 = vld [vmem:[%s247 + $0x8] sm:$0x3f]
      %v250 = vld [vmem:[%s247 + $0x10] sm:$0x3f]
      %v251 = vld [vmem:[%s247 + $0x18] sm:$0x3f]
      %v252 = vld [vmem:[%s247 + $0x20] sm:$0x3f]
      %v253 = vld [vmem:[%s247 + $0x28] sm:$0x3f]
      %v254 = vld [vmem:[%s247 + $0x30] sm:$0x3f]
      %v255 = vld [vmem:[%s247 + $0x38] sm:$0x3f]
      %v256 = vld [vmem:[%s247 + $0x40] sm:$0x3f]
      %v257 = vld [vmem:[%s247 + $0x48] sm:$0x3f]
      %v258 = vld [vmem:[%s247 + $0x50] sm:$0x3f]
      %v259 = vld [vmem:[%s247 + $0x58] sm:$0x3f]
      %v260 = vld [vmem:[%s247 + $0x60] sm:$0x3f]
      %v261 = vld [vmem:[%s247 + $0x68] sm:$0x3f]
      %v262 = vld [vmem:[%s247 + $0x70] sm:$0x3f]
      %v263 = vld [vmem:[%s247 + $0x78] sm:$0x3f]
      %v264 = vld [vmem:[%s247 + $0x80] sm:$0x3f]
      %v265 = vld [vmem:[%s247 + $0x88] sm:$0x3f]
      %v266 = vld [vmem:[%s247 + $0x90] sm:$0x3f]
      %v267 = vld [vmem:[%s247 + $0x98] sm:$0x3f]
      %v268 = vld [vmem:[%s247 + $0xa0] sm:$0x3f]
      %v269 = vld [vmem:[%s247 + $0xa8] sm:$0x3f]
      %v270 = vld [vmem:[%s247 + $0xb0] sm:$0x3f]
      %v271 = vld [vmem:[%s247 + $0xb8] sm:$0x3f]
      %v272 = vmul.f32 %v248, %v198
      %v273 = vmul.f32 %v249, %v198
      %v274 = vmul.f32 %v250, %v198
      %v275 = vmul.f32 %v251, %v198
      %v276 = vmul.f32 %v252, %v198
      %v277 = vmul.f32 %v253, %v198
      %v278 = vmul.f32 %v254, %v198
      %v279 = vmul.f32 %v255, %v198
      %v280 = vmul.f32 %v256, %v198
      %v281 = vmul.f32 %v257, %v198
      %v282 = vmul.f32 %v258, %v198
      %v283 = vmul.f32 %v259, %v198
      %v284 = vmul.f32 %v260, %v198
      %v285 = vmul.f32 %v261, %v198
      %v286 = vmul.f32 %v262, %v198
      %v287 = vmul.f32 %v263, %v198
      %v288 = vmul.f32 %v264, %v198
      %v289 = vmul.f32 %v265, %v198
      %v290 = vmul.f32 %v266, %v198
      %v291 = vmul.f32 %v267, %v198
      %v292 = vmul.f32 %v268, %v198
      %v293 = vmul.f32 %v269, %v198
      %v294 = vmul.f32 %v270, %v198
      %v295 = vmul.f32 %v271, %v198
      %v296 = vadd.f32 %v172, %v272
      %v297 = vadd.f32 %v173, %v273
      %v298 = vadd.f32 %v174, %v274
      %v299 = vadd.f32 %v175, %v275
      %v300 = vadd.f32 %v176, %v276
      %v301 = vadd.f32 %v177, %v277
      %v302 = vadd.f32 %v178, %v278
      %v303 = vadd.f32 %v179, %v279
      %v304 = vadd.f32 %v180, %v280
      %v305 = vadd.f32 %v181, %v281
      %v306 = vadd.f32 %v182, %v282
      %v307 = vadd.f32 %v183, %v283
      %v308 = vadd.f32 %v184, %v284
      %v309 = vadd.f32 %v185, %v285
      %v310 = vadd.f32 %v186, %v286
      %v311 = vadd.f32 %v187, %v287
      %v312 = vadd.f32 %v188, %v288
      %v313 = vadd.f32 %v189, %v289
      %v314 = vadd.f32 %v190, %v290
      %v315 = vadd.f32 %v191, %v291
      %v316 = vadd.f32 %v192, %v292
      %v317 = vadd.f32 %v193, %v293
      %v318 = vadd.f32 %v194, %v294
      %v319 = vadd.f32 %v195, %v295
      %s320 = sadd.s32 %s48, 2
      %s321 = sld [smem:[#allocation2 + %s320]]
      %v322 = vstv %s321
      %v323 = vmul.f32 %v248, %v322
      %v324 = vmul.f32 %v249, %v322
      %v325 = vmul.f32 %v250, %v322
      %v326 = vmul.f32 %v251, %v322
      %v327 = vmul.f32 %v252, %v322
      %v328 = vmul.f32 %v253, %v322
      %v329 = vmul.f32 %v254, %v322
      %v330 = vmul.f32 %v255, %v322
      %v331 = vmul.f32 %v256, %v322
      %v332 = vmul.f32 %v257, %v322
      %v333 = vmul.f32 %v258, %v322
      %v334 = vmul.f32 %v259, %v322
      %v335 = vmul.f32 %v260, %v322
      %v336 = vmul.f32 %v261, %v322
      %v337 = vmul.f32 %v262, %v322
      %v338 = vmul.f32 %v263, %v322
      %v339 = vmul.f32 %v264, %v322
      %v340 = vmul.f32 %v265, %v322
      %v341 = vmul.f32 %v266, %v322
      %v342 = vmul.f32 %v267, %v322
      %v343 = vmul.f32 %v268, %v322
      %v344 = vmul.f32 %v269, %v322
      %v345 = vmul.f32 %v270, %v322
      %v346 = vmul.f32 %v271, %v322
      %v347 = vadd.f32 %v223, %v323
      %v348 = vadd.f32 %v224, %v324
      %v349 = vadd.f32 %v225, %v325
      %v350 = vadd.f32 %v226, %v326
      %v351 = vadd.f32 %v227, %v327
      %v352 = vadd.f32 %v228, %v328
      %v353 = vadd.f32 %v229, %v329
      %v354 = vadd.f32 %v230, %v330
      %v355 = vadd.f32 %v231, %v331
      %v356 = vadd.f32 %v232, %v332
      %v357 = vadd.f32 %v233, %v333
      %v358 = vadd.f32 %v234, %v334
      %v359 = vadd.f32 %v235, %v335
      %v360 = vadd.f32 %v236, %v336
      %v361 = vadd.f32 %v237, %v337
      %v362 = vadd.f32 %v238, %v338
      %v363 = vadd.f32 %v239, %v339
      %v364 = vadd.f32 %v240, %v340
      %v365 = vadd.f32 %v241, %v341
      %v366 = vadd.f32 %v242, %v342
      %v367 = vadd.f32 %v243, %v343
      %v368 = vadd.f32 %v244, %v344
      %v369 = vadd.f32 %v245, %v345
      %v370 = vadd.f32 %v246, %v346
      %s371 = scalar_lea.vmem %s0, 672
      %v372 = vld [vmem:[%s371] sm:$0x3f]
      %v373 = vld [vmem:[%s371 + $0x8] sm:$0x3f]
      %v374 = vld [vmem:[%s371 + $0x10] sm:$0x3f]
      %v375 = vld [vmem:[%s371 + $0x18] sm:$0x3f]
      %v376 = vld [vmem:[%s371 + $0x20] sm:$0x3f]
      %v377 = vld [vmem:[%s371 + $0x28] sm:$0x3f]
      %v378 = vld [vmem:[%s371 + $0x30] sm:$0x3f]
      %v379 = vld [vmem:[%s371 + $0x38] sm:$0x3f]
      %v380 = vld [vmem:[%s371 + $0x40] sm:$0x3f]
      %v381 = vld [vmem:[%s371 + $0x48] sm:$0x3f]
      %v382 = vld [vmem:[%s371 + $0x50] sm:$0x3f]
      %v383 = vld [vmem:[%s371 + $0x58] sm:$0x3f]
      %v384 = vld [vmem:[%s371 + $0x60] sm:$0x3f]
      %v385 = vld [vmem:[%s371 + $0x68] sm:$0x3f]
      %v386 = vld [vmem:[%s371 + $0x70] sm:$0x3f]
      %v387 = vld [vmem:[%s371 + $0x78] sm:$0x3f]
      %v388 = vld [vmem:[%s371 + $0x80] sm:$0x3f]
      %v389 = vld [vmem:[%s371 + $0x88] sm:$0x3f]
      %v390 = vld [vmem:[%s371 + $0x90] sm:$0x3f]
      %v391 = vld [vmem:[%s371 + $0x98] sm:$0x3f]
      %v392 = vld [vmem:[%s371 + $0xa0] sm:$0x3f]
      %v393 = vld [vmem:[%s371 + $0xa8] sm:$0x3f]
      %v394 = vld [vmem:[%s371 + $0xb0] sm:$0x3f]
      %v395 = vld [vmem:[%s371 + $0xb8] sm:$0x3f]
      %v396 = vmul.f32 %v372, %v322
      %v397 = vmul.f32 %v373, %v322
      %v398 = vmul.f32 %v374, %v322
      %v399 = vmul.f32 %v375, %v322
      %v400 = vmul.f32 %v376, %v322
      %v401 = vmul.f32 %v377, %v322
      %v402 = vmul.f32 %v378, %v322
      %v403 = vmul.f32 %v379, %v322
      %v404 = vmul.f32 %v380, %v322
      %v405 = vmul.f32 %v381, %v322
      %v406 = vmul.f32 %v382, %v322
      %v407 = vmul.f32 %v383, %v322
      %v408 = vmul.f32 %v384, %v322
      %v409 = vmul.f32 %v385, %v322
      %v410 = vmul.f32 %v386, %v322
      %v411 = vmul.f32 %v387, %v322
      %v412 = vmul.f32 %v388, %v322
      %v413 = vmul.f32 %v389, %v322
      %v414 = vmul.f32 %v390, %v322
      %v415 = vmul.f32 %v391, %v322
      %v416 = vmul.f32 %v392, %v322
      %v417 = vmul.f32 %v393, %v322
      %v418 = vmul.f32 %v394, %v322
      %v419 = vmul.f32 %v395, %v322
      %v420 = vadd.f32 %v296, %v396
      %v421 = vadd.f32 %v297, %v397
      %v422 = vadd.f32 %v298, %v398
      %v423 = vadd.f32 %v299, %v399
      %v424 = vadd.f32 %v300, %v400
      %v425 = vadd.f32 %v301, %v401
      %v426 = vadd.f32 %v302, %v402
      %v427 = vadd.f32 %v303, %v403
      %v428 = vadd.f32 %v304, %v404
      %v429 = vadd.f32 %v305, %v405
      %v430 = vadd.f32 %v306, %v406
      %v431 = vadd.f32 %v307, %v407
      %v432 = vadd.f32 %v308, %v408
      %v433 = vadd.f32 %v309, %v409
      %v434 = vadd.f32 %v310, %v410
      %v435 = vadd.f32 %v311, %v411
      %v436 = vadd.f32 %v312, %v412
      %v437 = vadd.f32 %v313, %v413
      %v438 = vadd.f32 %v314, %v414
      %v439 = vadd.f32 %v315, %v415
      %v440 = vadd.f32 %v316, %v416
      %v441 = vadd.f32 %v317, %v417
      %v442 = vadd.f32 %v318, %v418
      %v443 = vadd.f32 %v319, %v419
      %s444 = sadd.s32 %s48, 3
      %s445 = sld [smem:[#allocation2 + %s444]]
      %v446 = vstv %s445
      %v447 = vmul.f32 %v372, %v446
      %v448 = vmul.f32 %v373, %v446
      %v449 = vmul.f32 %v374, %v446
      %v450 = vmul.f32 %v375, %v446
      %v451 = vmul.f32 %v376, %v446
      %v452 = vmul.f32 %v377, %v446
      %v453 = vmul.f32 %v378, %v446
      %v454 = vmul.f32 %v379, %v446
      %v455 = vmul.f32 %v380, %v446
      %v456 = vmul.f32 %v381, %v446
      %v457 = vmul.f32 %v382, %v446
      %v458 = vmul.f32 %v383, %v446
      %v459 = vmul.f32 %v384, %v446
      %v460 = vmul.f32 %v385, %v446
      %v461 = vmul.f32 %v386, %v446
      %v462 = vmul.f32 %v387, %v446
      %v463 = vmul.f32 %v388, %v446
      %v464 = vmul.f32 %v389, %v446
      %v465 = vmul.f32 %v390, %v446
      %v466 = vmul.f32 %v391, %v446
      %v467 = vmul.f32 %v392, %v446
      %v468 = vmul.f32 %v393, %v446
      %v469 = vmul.f32 %v394, %v446
      %v470 = vmul.f32 %v395, %v446
      %v471 = vadd.f32 %v347, %v447
      %v472 = vadd.f32 %v348, %v448
      %v473 = vadd.f32 %v349, %v449
      %v474 = vadd.f32 %v350, %v450
      %v475 = vadd.f32 %v351, %v451
      %v476 = vadd.f32 %v352, %v452
      %v477 = vadd.f32 %v353, %v453
      %v478 = vadd.f32 %v354, %v454
      %v479 = vadd.f32 %v355, %v455
      %v480 = vadd.f32 %v356, %v456
      %v481 = vadd.f32 %v357, %v457
      %v482 = vadd.f32 %v358, %v458
      %v483 = vadd.f32 %v359, %v459
      %v484 = vadd.f32 %v360, %v460
      %v485 = vadd.f32 %v361, %v461
      %v486 = vadd.f32 %v362, %v462
      %v487 = vadd.f32 %v363, %v463
      %v488 = vadd.f32 %v364, %v464
      %v489 = vadd.f32 %v365, %v465
      %v490 = vadd.f32 %v366, %v466
      %v491 = vadd.f32 %v367, %v467
      %v492 = vadd.f32 %v368, %v468
      %v493 = vadd.f32 %v369, %v469
      %v494 = vadd.f32 %v370, %v470
      %v495 = vld [vmem:[%s0 + $0x1] sm:$0x3f]
      %v496 = vld [vmem:[%s0 + $0x9] sm:$0x3f]
      %v497 = vld [vmem:[%s0 + $0x11] sm:$0x3f]
      %v498 = vld [vmem:[%s0 + $0x19] sm:$0x3f]
      %v499 = vld [vmem:[%s0 + $0x21] sm:$0x3f]
      %v500 = vld [vmem:[%s0 + $0x29] sm:$0x3f]
      %v501 = vld [vmem:[%s0 + $0x31] sm:$0x3f]
      %v502 = vld [vmem:[%s0 + $0x39] sm:$0x3f]
      %v503 = vld [vmem:[%s0 + $0x41] sm:$0x3f]
      %v504 = vld [vmem:[%s0 + $0x49] sm:$0x3f]
      %v505 = vld [vmem:[%s0 + $0x51] sm:$0x3f]
      %v506 = vld [vmem:[%s0 + $0x59] sm:$0x3f]
      %v507 = vld [vmem:[%s0 + $0x61] sm:$0x3f]
      %v508 = vld [vmem:[%s0 + $0x69] sm:$0x3f]
      %v509 = vld [vmem:[%s0 + $0x71] sm:$0x3f]
      %v510 = vld [vmem:[%s0 + $0x79] sm:$0x3f]
      %v511 = vld [vmem:[%s0 + $0x81] sm:$0x3f]
      %v512 = vld [vmem:[%s0 + $0x89] sm:$0x3f]
      %v513 = vld [vmem:[%s0 + $0x91] sm:$0x3f]
      %v514 = vld [vmem:[%s0 + $0x99] sm:$0x3f]
      %v515 = vld [vmem:[%s0 + $0xa1] sm:$0x3f]
      %v516 = vld [vmem:[%s0 + $0xa9] sm:$0x3f]
      %v517 = vld [vmem:[%s0 + $0xb1] sm:$0x3f]
      %v518 = vld [vmem:[%s0 + $0xb9] sm:$0x3f]
      %v519 = vmul.f32 %v495, %v446
      %v520 = vmul.f32 %v496, %v446
      %v521 = vmul.f32 %v497, %v446
      %v522 = vmul.f32 %v498, %v446
      %v523 = vmul.f32 %v499, %v446
      %v524 = vmul.f32 %v500, %v446
      %v525 = vmul.f32 %v501, %v446
      %v526 = vmul.f32 %v502, %v446
      %v527 = vmul.f32 %v503, %v446
      %v528 = vmul.f32 %v504, %v446
      %v529 = vmul.f32 %v505, %v446
      %v530 = vmul.f32 %v506, %v446
      %v531 = vmul.f32 %v507, %v446
      %v532 = vmul.f32 %v508, %v446
      %v533 = vmul.f32 %v509, %v446
      %v534 = vmul.f32 %v510, %v446
      %v535 = vmul.f32 %v511, %v446
      %v536 = vmul.f32 %v512, %v446
      %v537 = vmul.f32 %v513, %v446
      %v538 = vmul.f32 %v514, %v446
      %v539 = vmul.f32 %v515, %v446
      %v540 = vmul.f32 %v516, %v446
      %v541 = vmul.f32 %v517, %v446
      %v542 = vmul.f32 %v518, %v446
      %v543 = vadd.f32 %v420, %v519
      %v544 = vadd.f32 %v421, %v520
      %v545 = vadd.f32 %v422, %v521
      %v546 = vadd.f32 %v423, %v522
      %v547 = vadd.f32 %v424, %v523
      %v548 = vadd.f32 %v425, %v524
      %v549 = vadd.f32 %v426, %v525
      %v550 = vadd.f32 %v427, %v526
      %v551 = vadd.f32 %v428, %v527
      %v552 = vadd.f32 %v429, %v528
      %v553 = vadd.f32 %v430, %v529
      %v554 = vadd.f32 %v431, %v530
      %v555 = vadd.f32 %v432, %v531
      %v556 = vadd.f32 %v433, %v532
      %v557 = vadd.f32 %v434, %v533
      %v558 = vadd.f32 %v435, %v534
      %v559 = vadd.f32 %v436, %v535
      %v560 = vadd.f32 %v437, %v536
      %v561 = vadd.f32 %v438, %v537
      %v562 = vadd.f32 %v439, %v538
      %v563 = vadd.f32 %v440, %v539
      %v564 = vadd.f32 %v441, %v540
      %v565 = vadd.f32 %v442, %v541
      %v566 = vadd.f32 %v443, %v542
      %s567 = sadd.s32 %s48, 4
      %s568 = sld [smem:[#allocation2 + %s567]]
      %v569 = vstv %s568
      %v570 = vmul.f32 %v495, %v569
      %v571 = vmul.f32 %v496, %v569
      %v572 = vmul.f32 %v497, %v569
      %v573 = vmul.f32 %v498, %v569
      %v574 = vmul.f32 %v499, %v569
      %v575 = vmul.f32 %v500, %v569
      %v576 = vmul.f32 %v501, %v569
      %v577 = vmul.f32 %v502, %v569
      %v578 = vmul.f32 %v503, %v569
      %v579 = vmul.f32 %v504, %v569
      %v580 = vmul.f32 %v505, %v569
      %v581 = vmul.f32 %v506, %v569
      %v582 = vmul.f32 %v507, %v569
      %v583 = vmul.f32 %v508, %v569
      %v584 = vmul.f32 %v509, %v569
      %v585 = vmul.f32 %v510, %v569
      %v586 = vmul.f32 %v511, %v569
      %v587 = vmul.f32 %v512, %v569
      %v588 = vmul.f32 %v513, %v569
      %v589 = vmul.f32 %v514, %v569
      %v590 = vmul.f32 %v515, %v569
      %v591 = vmul.f32 %v516, %v569
      %v592 = vmul.f32 %v517, %v569
      %v593 = vmul.f32 %v518, %v569
      %v594 = vadd.f32 %v471, %v570
      %v595 = vadd.f32 %v472, %v571
      %v596 = vadd.f32 %v473, %v572
      %v597 = vadd.f32 %v474, %v573
      %v598 = vadd.f32 %v475, %v574
      %v599 = vadd.f32 %v476, %v575
      %v600 = vadd.f32 %v477, %v576
      %v601 = vadd.f32 %v478, %v577
      %v602 = vadd.f32 %v479, %v578
      %v603 = vadd.f32 %v480, %v579
      %v604 = vadd.f32 %v481, %v580
      %v605 = vadd.f32 %v482, %v581
      %v606 = vadd.f32 %v483, %v582
      %v607 = vadd.f32 %v484, %v583
      %v608 = vadd.f32 %v485, %v584
      %v609 = vadd.f32 %v486, %v585
      %v610 = vadd.f32 %v487, %v586
      %v611 = vadd.f32 %v488, %v587
      %v612 = vadd.f32 %v489, %v588
      %v613 = vadd.f32 %v490, %v589
      %v614 = vadd.f32 %v491, %v590
      %v615 = vadd.f32 %v492, %v591
      %v616 = vadd.f32 %v493, %v592
      %v617 = vadd.f32 %v494, %v593
      %v618 = vld [vmem:[%s123 + $0x1] sm:$0x3f]
      %v619 = vld [vmem:[%s123 + $0x9] sm:$0x3f]
      %v620 = vld [vmem:[%s123 + $0x11] sm:$0x3f]
      %v621 = vld [vmem:[%s123 + $0x19] sm:$0x3f]
      %v622 = vld [vmem:[%s123 + $0x21] sm:$0x3f]
      %v623 = vld [vmem:[%s123 + $0x29] sm:$0x3f]
      %v624 = vld [vmem:[%s123 + $0x31] sm:$0x3f]
      %v625 = vld [vmem:[%s123 + $0x39] sm:$0x3f]
      %v626 = vld [vmem:[%s123 + $0x41] sm:$0x3f]
      %v627 = vld [vmem:[%s123 + $0x49] sm:$0x3f]
      %v628 = vld [vmem:[%s123 + $0x51] sm:$0x3f]
      %v629 = vld [vmem:[%s123 + $0x59] sm:$0x3f]
      %v630 = vld [vmem:[%s123 + $0x61] sm:$0x3f]
      %v631 = vld [vmem:[%s123 + $0x69] sm:$0x3f]
      %v632 = vld [vmem:[%s123 + $0x71] sm:$0x3f]
      %v633 = vld [vmem:[%s123 + $0x79] sm:$0x3f]
      %v634 = vld [vmem:[%s123 + $0x81] sm:$0x3f]
      %v635 = vld [vmem:[%s123 + $0x89] sm:$0x3f]
      %v636 = vld [vmem:[%s123 + $0x91] sm:$0x3f]
      %v637 = vld [vmem:[%s123 + $0x99] sm:$0x3f]
      %v638 = vld [vmem:[%s123 + $0xa1] sm:$0x3f]
      %v639 = vld [vmem:[%s123 + $0xa9] sm:$0x3f]
      %v640 = vld [vmem:[%s123 + $0xb1] sm:$0x3f]
      %v641 = vld [vmem:[%s123 + $0xb9] sm:$0x3f]
      %v642 = vmul.f32 %v618, %v569
      %v643 = vmul.f32 %v619, %v569
      %v644 = vmul.f32 %v620, %v569
      %v645 = vmul.f32 %v621, %v569
      %v646 = vmul.f32 %v622, %v569
      %v647 = vmul.f32 %v623, %v569
      %v648 = vmul.f32 %v624, %v569
      %v649 = vmul.f32 %v625, %v569
      %v650 = vmul.f32 %v626, %v569
      %v651 = vmul.f32 %v627, %v569
      %v652 = vmul.f32 %v628, %v569
      %v653 = vmul.f32 %v629, %v569
      %v654 = vmul.f32 %v630, %v569
      %v655 = vmul.f32 %v631, %v569
      %v656 = vmul.f32 %v632, %v569
      %v657 = vmul.f32 %v633, %v569
      %v658 = vmul.f32 %v634, %v569
      %v659 = vmul.f32 %v635, %v569
      %v660 = vmul.f32 %v636, %v569
      %v661 = vmul.f32 %v637, %v569
      %v662 = vmul.f32 %v638, %v569
      %v663 = vmul.f32 %v639, %v569
      %v664 = vmul.f32 %v640, %v569
      %v665 = vmul.f32 %v641, %v569
      %v666 = vadd.f32 %v543, %v642
      %v667 = vadd.f32 %v544, %v643
      %v668 = vadd.f32 %v545, %v644
      %v669 = vadd.f32 %v546, %v645
      %v670 = vadd.f32 %v547, %v646
      %v671 = vadd.f32 %v548, %v647
      %v672 = vadd.f32 %v549, %v648
      %v673 = vadd.f32 %v550, %v649
      %v674 = vadd.f32 %v551, %v650
      %v675 = vadd.f32 %v552, %v651
      %v676 = vadd.f32 %v553, %v652
      %v677 = vadd.f32 %v554, %v653
      %v678 = vadd.f32 %v555, %v654
      %v679 = vadd.f32 %v556, %v655
      %v680 = vadd.f32 %v557, %v656
      %v681 = vadd.f32 %v558, %v657
      %v682 = vadd.f32 %v559, %v658
      %v683 = vadd.f32 %v560, %v659
      %v684 = vadd.f32 %v561, %v660
      %v685 = vadd.f32 %v562, %v661
      %v686 = vadd.f32 %v563, %v662
      %v687 = vadd.f32 %v564, %v663
      %v688 = vadd.f32 %v565, %v664
      %v689 = vadd.f32 %v566, %v665
      %s690 = sadd.s32 %s48, 5
      %s691 = sld [smem:[#allocation2 + %s690]]
      %s692 = scalar_lea.vmem %s0, 8
      %v693 = vld [vmem:[%s692] sm:$0x3f]
      %v694 = vld [vmem:[%s692 + $0x8] sm:$0x3f]
      %v695 = vld [vmem:[%s692 + $0x10] sm:$0x3f]
      %v696 = vld [vmem:[%s692 + $0x18] sm:$0x3f]
      %v697 = vld [vmem:[%s692 + $0x20] sm:$0x3f]
      %v698 = vld [vmem:[%s692 + $0x28] sm:$0x3f]
      %v699 = vld [vmem:[%s692 + $0x30] sm:$0x3f]
      %v700 = vld [vmem:[%s692 + $0x38] sm:$0x3f]
      %v701 = vld [vmem:[%s692 + $0x40] sm:$0x3f]
      %v702 = vld [vmem:[%s692 + $0x48] sm:$0x3f]
      %v703 = vld [vmem:[%s692 + $0x50] sm:$0x3f]
      %v704 = vld [vmem:[%s692 + $0x58] sm:$0x3f]
      %v705 = vld [vmem:[%s692 + $0x60] sm:$0x3f]
      %v706 = vld [vmem:[%s692 + $0x68] sm:$0x3f]
      %v707 = vld [vmem:[%s692 + $0x70] sm:$0x3f]
      %v708 = vld [vmem:[%s692 + $0x78] sm:$0x3f]
      %v709 = vld [vmem:[%s692 + $0x80] sm:$0x3f]
      %v710 = vld [vmem:[%s692 + $0x88] sm:$0x3f]
      %v711 = vld [vmem:[%s692 + $0x90] sm:$0x3f]
      %v712 = vld [vmem:[%s692 + $0x98] sm:$0x3f]
      %v713 = vld [vmem:[%s692 + $0xa0] sm:$0x3f]
      %v714 = vld [vmem:[%s692 + $0xa8] sm:$0x3f]
      %v715 = vld [vmem:[%s692 + $0xb0] sm:$0x3f]
      %v716 = vld [vmem:[%s692 + $0xb8] sm:$0x3f]
      %v717 = vstv %s691
      %v718 = vmul.f32 %v693, %v717
      %v719 = vmul.f32 %v694, %v717
      %v720 = vmul.f32 %v695, %v717
      %v721 = vmul.f32 %v696, %v717
      %v722 = vmul.f32 %v697, %v717
      %v723 = vmul.f32 %v698, %v717
      %v724 = vmul.f32 %v699, %v717
      %v725 = vmul.f32 %v700, %v717
      %v726 = vmul.f32 %v701, %v717
      %v727 = vmul.f32 %v702, %v717
      %v728 = vmul.f32 %v703, %v717
      %v729 = vmul.f32 %v704, %v717
      %v730 = vmul.f32 %v705, %v717
      %v731 = vmul.f32 %v706, %v717
      %v732 = vmul.f32 %v707, %v717
      %v733 = vmul.f32 %v708, %v717
      %v734 = vmul.f32 %v709, %v717
      %v735 = vmul.f32 %v710, %v717
      %v736 = vmul.f32 %v711, %v717
      %v737 = vmul.f32 %v712, %v717
      %v738 = vmul.f32 %v713, %v717
      %v739 = vmul.f32 %v714, %v717
      %v740 = vmul.f32 %v715, %v717
      %v741 = vmul.f32 %v716, %v717
      %v742 = vadd.f32 %v594, %v718
      %v743 = vadd.f32 %v595, %v719
      %v744 = vadd.f32 %v596, %v720
      %v745 = vadd.f32 %v597, %v721
      %v746 = vadd.f32 %v598, %v722
      %v747 = vadd.f32 %v599, %v723
      %v748 = vadd.f32 %v600, %v724
      %v749 = vadd.f32 %v601, %v725
      %v750 = vadd.f32 %v602, %v726
      %v751 = vadd.f32 %v603, %v727
      %v752 = vadd.f32 %v604, %v728
      %v753 = vadd.f32 %v605, %v729
      %v754 = vadd.f32 %v606, %v730
      %v755 = vadd.f32 %v607, %v731
      %v756 = vadd.f32 %v608, %v732
      %v757 = vadd.f32 %v609, %v733
      %v758 = vadd.f32 %v610, %v734
      %v759 = vadd.f32 %v611, %v735
      %v760 = vadd.f32 %v612, %v736
      %v761 = vadd.f32 %v613, %v737
      %v762 = vadd.f32 %v614, %v738
      %v763 = vadd.f32 %v615, %v739
      %v764 = vadd.f32 %v616, %v740
      %v765 = vadd.f32 %v617, %v741
      %s766 = scalar_lea.vmem %s0, 232
      %v767 = vld [vmem:[%s766] sm:$0x3f]
      %v768 = vld [vmem:[%s766 + $0x8] sm:$0x3f]
      %v769 = vld [vmem:[%s766 + $0x10] sm:$0x3f]
      %v770 = vld [vmem:[%s766 + $0x18] sm:$0x3f]
      %v771 = vld [vmem:[%s766 + $0x20] sm:$0x3f]
      %v772 = vld [vmem:[%s766 + $0x28] sm:$0x3f]
      %v773 = vld [vmem:[%s766 + $0x30] sm:$0x3f]
      %v774 = vld [vmem:[%s766 + $0x38] sm:$0x3f]
      %v775 = vld [vmem:[%s766 + $0x40] sm:$0x3f]
      %v776 = vld [vmem:[%s766 + $0x48] sm:$0x3f]
      %v777 = vld [vmem:[%s766 + $0x50] sm:$0x3f]
      %v778 = vld [vmem:[%s766 + $0x58] sm:$0x3f]
      %v779 = vld [vmem:[%s766 + $0x60] sm:$0x3f]
      %v780 = vld [vmem:[%s766 + $0x68] sm:$0x3f]
      %v781 = vld [vmem:[%s766 + $0x70] sm:$0x3f]
      %v782 = vld [vmem:[%s766 + $0x78] sm:$0x3f]
      %v783 = vld [vmem:[%s766 + $0x80] sm:$0x3f]
      %v784 = vld [vmem:[%s766 + $0x88] sm:$0x3f]
      %v785 = vld [vmem:[%s766 + $0x90] sm:$0x3f]
      %v786 = vld [vmem:[%s766 + $0x98] sm:$0x3f]
      %v787 = vld [vmem:[%s766 + $0xa0] sm:$0x3f]
      %v788 = vld [vmem:[%s766 + $0xa8] sm:$0x3f]
      %v789 = vld [vmem:[%s766 + $0xb0] sm:$0x3f]
      %v790 = vld [vmem:[%s766 + $0xb8] sm:$0x3f]
      %v791 = vmul.f32 %v767, %v717
      %v792 = vmul.f32 %v768, %v717
      %v793 = vmul.f32 %v769, %v717
      %v794 = vmul.f32 %v770, %v717
      %v795 = vmul.f32 %v771, %v717
      %v796 = vmul.f32 %v772, %v717
      %v797 = vmul.f32 %v773, %v717
      %v798 = vmul.f32 %v774, %v717
      %v799 = vmul.f32 %v775, %v717
      %v800 = vmul.f32 %v776, %v717
      %v801 = vmul.f32 %v777, %v717
      %v802 = vmul.f32 %v778, %v717
      %v803 = vmul.f32 %v779, %v717
      %v804 = vmul.f32 %v780, %v717
      %v805 = vmul.f32 %v781, %v717
      %v806 = vmul.f32 %v782, %v717
      %v807 = vmul.f32 %v783, %v717
      %v808 = vmul.f32 %v784, %v717
      %v809 = vmul.f32 %v785, %v717
      %v810 = vmul.f32 %v786, %v717
      %v811 = vmul.f32 %v787, %v717
      %v812 = vmul.f32 %v788, %v717
      %v813 = vmul.f32 %v789, %v717
      %v814 = vmul.f32 %v790, %v717
      %v815 = vadd.f32 %v666, %v791
      %v816 = vadd.f32 %v667, %v792
      %v817 = vadd.f32 %v668, %v793
      %v818 = vadd.f32 %v669, %v794
      %v819 = vadd.f32 %v670, %v795
      %v820 = vadd.f32 %v671, %v796
      %v821 = vadd.f32 %v672, %v797
      %v822 = vadd.f32 %v673, %v798
      %v823 = vadd.f32 %v674, %v799
      %v824 = vadd.f32 %v675, %v800
      %v825 = vadd.f32 %v676, %v801
      %v826 = vadd.f32 %v677, %v802
      %v827 = vadd.f32 %v678, %v803
      %v828 = vadd.f32 %v679, %v804
      %v829 = vadd.f32 %v680, %v805
      %v830 = vadd.f32 %v681, %v806
      %v831 = vadd.f32 %v682, %v807
      %v832 = vadd.f32 %v683, %v808
      %v833 = vadd.f32 %v684, %v809
      %v834 = vadd.f32 %v685, %v810
      %v835 = vadd.f32 %v686, %v811
      %v836 = vadd.f32 %v687, %v812
      %v837 = vadd.f32 %v688, %v813
      %v838 = vadd.f32 %v689, %v814
      %s839 = sadd.s32 %s48, 6
      %s840 = sld [smem:[#allocation2 + %s839]]
      %v841 = vstv %s840
      %v842 = vmul.f32 %v767, %v841
      %v843 = vmul.f32 %v768, %v841
      %v844 = vmul.f32 %v769, %v841
      %v845 = vmul.f32 %v770, %v841
      %v846 = vmul.f32 %v771, %v841
      %v847 = vmul.f32 %v772, %v841
      %v848 = vmul.f32 %v773, %v841
      %v849 = vmul.f32 %v774, %v841
      %v850 = vmul.f32 %v775, %v841
      %v851 = vmul.f32 %v776, %v841
      %v852 = vmul.f32 %v777, %v841
      %v853 = vmul.f32 %v778, %v841
      %v854 = vmul.f32 %v779, %v841
      %v855 = vmul.f32 %v780, %v841
      %v856 = vmul.f32 %v781, %v841
      %v857 = vmul.f32 %v782, %v841
      %v858 = vmul.f32 %v783, %v841
      %v859 = vmul.f32 %v784, %v841
      %v860 = vmul.f32 %v785, %v841
      %v861 = vmul.f32 %v786, %v841
      %v862 = vmul.f32 %v787, %v841
      %v863 = vmul.f32 %v788, %v841
      %v864 = vmul.f32 %v789, %v841
      %v865 = vmul.f32 %v790, %v841
      %v866 = vadd.f32 %v742, %v842
      %v867 = vadd.f32 %v743, %v843
      %v868 = vadd.f32 %v744, %v844
      %v869 = vadd.f32 %v745, %v845
      %v870 = vadd.f32 %v746, %v846
      %v871 = vadd.f32 %v747, %v847
      %v872 = vadd.f32 %v748, %v848
      %v873 = vadd.f32 %v749, %v849
      %v874 = vadd.f32 %v750, %v850
      %v875 = vadd.f32 %v751, %v851
      %v876 = vadd.f32 %v752, %v852
      %v877 = vadd.f32 %v753, %v853
      %v878 = vadd.f32 %v754, %v854
      %v879 = vadd.f32 %v755, %v855
      %v880 = vadd.f32 %v756, %v856
      %v881 = vadd.f32 %v757, %v857
      %v882 = vadd.f32 %v758, %v858
      %v883 = vadd.f32 %v759, %v859
      %v884 = vadd.f32 %v760, %v860
      %v885 = vadd.f32 %v761, %v861
      %v886 = vadd.f32 %v762, %v862
      %v887 = vadd.f32 %v763, %v863
      %v888 = vadd.f32 %v764, %v864
      %v889 = vadd.f32 %v765, %v865
      %s890 = scalar_lea.vmem %s0, 456
      %v891 = vld [vmem:[%s890] sm:$0x3f]
      %v892 = vld [vmem:[%s890 + $0x8] sm:$0x3f]
      %v893 = vld [vmem:[%s890 + $0x10] sm:$0x3f]
      %v894 = vld [vmem:[%s890 + $0x18] sm:$0x3f]
      %v895 = vld [vmem:[%s890 + $0x20] sm:$0x3f]
      %v896 = vld [vmem:[%s890 + $0x28] sm:$0x3f]
      %v897 = vld [vmem:[%s890 + $0x30] sm:$0x3f]
      %v898 = vld [vmem:[%s890 + $0x38] sm:$0x3f]
      %v899 = vld [vmem:[%s890 + $0x40] sm:$0x3f]
      %v900 = vld [vmem:[%s890 + $0x48] sm:$0x3f]
      %v901 = vld [vmem:[%s890 + $0x50] sm:$0x3f]
      %v902 = vld [vmem:[%s890 + $0x58] sm:$0x3f]
      %v903 = vld [vmem:[%s890 + $0x60] sm:$0x3f]
      %v904 = vld [vmem:[%s890 + $0x68] sm:$0x3f]
      %v905 = vld [vmem:[%s890 + $0x70] sm:$0x3f]
      %v906 = vld [vmem:[%s890 + $0x78] sm:$0x3f]
      %v907 = vld [vmem:[%s890 + $0x80] sm:$0x3f]
      %v908 = vld [vmem:[%s890 + $0x88] sm:$0x3f]
      %v909 = vld [vmem:[%s890 + $0x90] sm:$0x3f]
      %v910 = vld [vmem:[%s890 + $0x98] sm:$0x3f]
      %v911 = vld [vmem:[%s890 + $0xa0] sm:$0x3f]
      %v912 = vld [vmem:[%s890 + $0xa8] sm:$0x3f]
      %v913 = vld [vmem:[%s890 + $0xb0] sm:$0x3f]
      %v914 = vld [vmem:[%s890 + $0xb8] sm:$0x3f]
      %v915 = vmul.f32 %v891, %v841
      %v916 = vmul.f32 %v892, %v841
      %v917 = vmul.f32 %v893, %v841
      %v918 = vmul.f32 %v894, %v841
      %v919 = vmul.f32 %v895, %v841
      %v920 = vmul.f32 %v896, %v841
      %v921 = vmul.f32 %v897, %v841
      %v922 = vmul.f32 %v898, %v841
      %v923 = vmul.f32 %v899, %v841
      %v924 = vmul.f32 %v900, %v841
      %v925 = vmul.f32 %v901, %v841
      %v926 = vmul.f32 %v902, %v841
      %v927 = vmul.f32 %v903, %v841
      %v928 = vmul.f32 %v904, %v841
      %v929 = vmul.f32 %v905, %v841
      %v930 = vmul.f32 %v906, %v841
      %v931 = vmul.f32 %v907, %v841
      %v932 = vmul.f32 %v908, %v841
      %v933 = vmul.f32 %v909, %v841
      %v934 = vmul.f32 %v910, %v841
      %v935 = vmul.f32 %v911, %v841
      %v936 = vmul.f32 %v912, %v841
      %v937 = vmul.f32 %v913, %v841
      %v938 = vmul.f32 %v914, %v841
      %v939 = vadd.f32 %v815, %v915
      %v940 = vadd.f32 %v816, %v916
      %v941 = vadd.f32 %v817, %v917
      %v942 = vadd.f32 %v818, %v918
      %v943 = vadd.f32 %v819, %v919
      %v944 = vadd.f32 %v820, %v920
      %v945 = vadd.f32 %v821, %v921
      %v946 = vadd.f32 %v822, %v922
      %v947 = vadd.f32 %v823, %v923
      %v948 = vadd.f32 %v824, %v924
      %v949 = vadd.f32 %v825, %v925
      %v950 = vadd.f32 %v826, %v926
      %v951 = vadd.f32 %v827, %v927
      %v952 = vadd.f32 %v828, %v928
      %v953 = vadd.f32 %v829, %v929
      %v954 = vadd.f32 %v830, %v930
      %v955 = vadd.f32 %v831, %v931
      %v956 = vadd.f32 %v832, %v932
      %v957 = vadd.f32 %v833, %v933
      %v958 = vadd.f32 %v834, %v934
      %v959 = vadd.f32 %v835, %v935
      %v960 = vadd.f32 %v836, %v936
      %v961 = vadd.f32 %v837, %v937
      %v962 = vadd.f32 %v838, %v938
      %s963 = sadd.s32 %s48, 7
      %s964 = sld [smem:[#allocation2 + %s963]]
      %v965 = vstv %s964
      %v966 = vmul.f32 %v891, %v965
      %v967 = vmul.f32 %v892, %v965
      %v968 = vmul.f32 %v893, %v965
      %v969 = vmul.f32 %v894, %v965
      %v970 = vmul.f32 %v895, %v965
      %v971 = vmul.f32 %v896, %v965
      %v972 = vmul.f32 %v897, %v965
      %v973 = vmul.f32 %v898, %v965
      %v974 = vmul.f32 %v899, %v965
      %v975 = vmul.f32 %v900, %v965
      %v976 = vmul.f32 %v901, %v965
      %v977 = vmul.f32 %v902, %v965
      %v978 = vmul.f32 %v903, %v965
      %v979 = vmul.f32 %v904, %v965
      %v980 = vmul.f32 %v905, %v965
      %v981 = vmul.f32 %v906, %v965
      %v982 = vmul.f32 %v907, %v965
      %v983 = vmul.f32 %v908, %v965
      %v984 = vmul.f32 %v909, %v965
      %v985 = vmul.f32 %v910, %v965
      %v986 = vmul.f32 %v911, %v965
      %v987 = vmul.f32 %v912, %v965
      %v988 = vmul.f32 %v913, %v965
      %v989 = vmul.f32 %v914, %v965
      %v990 = vadd.f32 %v866, %v966
      %v991 = vadd.f32 %v867, %v967
      %v992 = vadd.f32 %v868, %v968
      %v993 = vadd.f32 %v869, %v969
      %v994 = vadd.f32 %v870, %v970
      %v995 = vadd.f32 %v871, %v971
      %v996 = vadd.f32 %v872, %v972
      %v997 = vadd.f32 %v873, %v973
      %v998 = vadd.f32 %v874, %v974
      %v999 = vadd.f32 %v875, %v975
      %v1000 = vadd.f32 %v876, %v976
      %v1001 = vadd.f32 %v877, %v977
      %v1002 = vadd.f32 %v878, %v978
      %v1003 = vadd.f32 %v879, %v979
      %v1004 = vadd.f32 %v880, %v980
      %v1005 = vadd.f32 %v881, %v981
      %v1006 = vadd.f32 %v882, %v982
      %v1007 = vadd.f32 %v883, %v983
      %v1008 = vadd.f32 %v884, %v984
      %v1009 = vadd.f32 %v885, %v985
      %v1010 = vadd.f32 %v886, %v986
      %v1011 = vadd.f32 %v887, %v987
      %v1012 = vadd.f32 %v888, %v988
      %v1013 = vadd.f32 %v889, %v989
      %s1014 = scalar_lea.vmem %s0, 680
      %v1015 = vld [vmem:[%s1014] sm:$0x3f]
      %v1016 = vld [vmem:[%s1014 + $0x8] sm:$0x3f]
      %v1017 = vld [vmem:[%s1014 + $0x10] sm:$0x3f]
      %v1018 = vld [vmem:[%s1014 + $0x18] sm:$0x3f]
      %v1019 = vld [vmem:[%s1014 + $0x20] sm:$0x3f]
      %v1020 = vld [vmem:[%s1014 + $0x28] sm:$0x3f]
      %v1021 = vld [vmem:[%s1014 + $0x30] sm:$0x3f]
      %v1022 = vld [vmem:[%s1014 + $0x38] sm:$0x3f]
      %v1023 = vld [vmem:[%s1014 + $0x40] sm:$0x3f]
      %v1024 = vld [vmem:[%s1014 + $0x48] sm:$0x3f]
      %v1025 = vld [vmem:[%s1014 + $0x50] sm:$0x3f]
      %v1026 = vld [vmem:[%s1014 + $0x58] sm:$0x3f]
      %v1027 = vld [vmem:[%s1014 + $0x60] sm:$0x3f]
      %v1028 = vld [vmem:[%s1014 + $0x68] sm:$0x3f]
      %v1029 = vld [vmem:[%s1014 + $0x70] sm:$0x3f]
      %v1030 = vld [vmem:[%s1014 + $0x78] sm:$0x3f]
      %v1031 = vld [vmem:[%s1014 + $0x80] sm:$0x3f]
      %v1032 = vld [vmem:[%s1014 + $0x88] sm:$0x3f]
      %v1033 = vld [vmem:[%s1014 + $0x90] sm:$0x3f]
      %v1034 = vld [vmem:[%s1014 + $0x98] sm:$0x3f]
      %v1035 = vld [vmem:[%s1014 + $0xa0] sm:$0x3f]
      %v1036 = vld [vmem:[%s1014 + $0xa8] sm:$0x3f]
      %v1037 = vld [vmem:[%s1014 + $0xb0] sm:$0x3f]
      %v1038 = vld [vmem:[%s1014 + $0xb8] sm:$0x3f]
      %v1039 = vmul.f32 %v1015, %v965
      %v1040 = vmul.f32 %v1016, %v965
      %v1041 = vmul.f32 %v1017, %v965
      %v1042 = vmul.f32 %v1018, %v965
      %v1043 = vmul.f32 %v1019, %v965
      %v1044 = vmul.f32 %v1020, %v965
      %v1045 = vmul.f32 %v1021, %v965
      %v1046 = vmul.f32 %v1022, %v965
      %v1047 = vmul.f32 %v1023, %v965
      %v1048 = vmul.f32 %v1024, %v965
      %v1049 = vmul.f32 %v1025, %v965
      %v1050 = vmul.f32 %v1026, %v965
      %v1051 = vmul.f32 %v1027, %v965
      %v1052 = vmul.f32 %v1028, %v965
      %v1053 = vmul.f32 %v1029, %v965
      %v1054 = vmul.f32 %v1030, %v965
      %v1055 = vmul.f32 %v1031, %v965
      %v1056 = vmul.f32 %v1032, %v965
      %v1057 = vmul.f32 %v1033, %v965
      %v1058 = vmul.f32 %v1034, %v965
      %v1059 = vmul.f32 %v1035, %v965
      %v1060 = vmul.f32 %v1036, %v965
      %v1061 = vmul.f32 %v1037, %v965
      %v1062 = vmul.f32 %v1038, %v965
      %v1063 = vadd.f32 %v939, %v1039
      %v1064 = vadd.f32 %v940, %v1040
      %v1065 = vadd.f32 %v941, %v1041
      %v1066 = vadd.f32 %v942, %v1042
      %v1067 = vadd.f32 %v943, %v1043
      %v1068 = vadd.f32 %v944, %v1044
      %v1069 = vadd.f32 %v945, %v1045
      %v1070 = vadd.f32 %v946, %v1046
      %v1071 = vadd.f32 %v947, %v1047
      %v1072 = vadd.f32 %v948, %v1048
      %v1073 = vadd.f32 %v949, %v1049
      %v1074 = vadd.f32 %v950, %v1050
      %v1075 = vadd.f32 %v951, %v1051
      %v1076 = vadd.f32 %v952, %v1052
      %v1077 = vadd.f32 %v953, %v1053
      %v1078 = vadd.f32 %v954, %v1054
      %v1079 = vadd.f32 %v955, %v1055
      %v1080 = vadd.f32 %v956, %v1056
      %v1081 = vadd.f32 %v957, %v1057
      %v1082 = vadd.f32 %v958, %v1058
      %v1083 = vadd.f32 %v959, %v1059
      %v1084 = vadd.f32 %v960, %v1060
      %v1085 = vadd.f32 %v961, %v1061
      %v1086 = vadd.f32 %v962, %v1062
      %s1087 = sadd.s32 %s48, 8
      %s1088 = sld [smem:[#allocation2 + %s1087]]
      %v1089 = vstv %s1088
      %v1090 = vmul.f32 %v1015, %v1089
      %v1091 = vmul.f32 %v1016, %v1089
      %v1092 = vmul.f32 %v1017, %v1089
      %v1093 = vmul.f32 %v1018, %v1089
      %v1094 = vmul.f32 %v1019, %v1089
      %v1095 = vmul.f32 %v1020, %v1089
      %v1096 = vmul.f32 %v1021, %v1089
      %v1097 = vmul.f32 %v1022, %v1089
      %v1098 = vmul.f32 %v1023, %v1089
      %v1099 = vmul.f32 %v1024, %v1089
      %v1100 = vmul.f32 %v1025, %v1089
      %v1101 = vmul.f32 %v1026, %v1089
      %v1102 = vmul.f32 %v1027, %v1089
      %v1103 = vmul.f32 %v1028, %v1089
      %v1104 = vmul.f32 %v1029, %v1089
      %v1105 = vmul.f32 %v1030, %v1089
      %v1106 = vmul.f32 %v1031, %v1089
      %v1107 = vmul.f32 %v1032, %v1089
      %v1108 = vmul.f32 %v1033, %v1089
      %v1109 = vmul.f32 %v1034, %v1089
      %v1110 = vmul.f32 %v1035, %v1089
      %v1111 = vmul.f32 %v1036, %v1089
      %v1112 = vmul.f32 %v1037, %v1089
      %v1113 = vmul.f32 %v1038, %v1089
      %v1114 = vadd.f32 %v990, %v1090
      %v1115 = vadd.f32 %v991, %v1091
      %v1116 = vadd.f32 %v992, %v1092
      %v1117 = vadd.f32 %v993, %v1093
      %v1118 = vadd.f32 %v994, %v1094
      %v1119 = vadd.f32 %v995, %v1095
      %v1120 = vadd.f32 %v996, %v1096
      %v1121 = vadd.f32 %v997, %v1097
      %v1122 = vadd.f32 %v998, %v1098
      %v1123 = vadd.f32 %v999, %v1099
      %v1124 = vadd.f32 %v1000, %v1100
      %v1125 = vadd.f32 %v1001, %v1101
      %v1126 = vadd.f32 %v1002, %v1102
      %v1127 = vadd.f32 %v1003, %v1103
      %v1128 = vadd.f32 %v1004, %v1104
      %v1129 = vadd.f32 %v1005, %v1105
      %v1130 = vadd.f32 %v1006, %v1106
      %v1131 = vadd.f32 %v1007, %v1107
      %v1132 = vadd.f32 %v1008, %v1108
      %v1133 = vadd.f32 %v1009, %v1109
      %v1134 = vadd.f32 %v1010, %v1110
      %v1135 = vadd.f32 %v1011, %v1111
      %v1136 = vadd.f32 %v1012, %v1112
      %v1137 = vadd.f32 %v1013, %v1113
      %v1138 = vld [vmem:[%s692 + $0x1] sm:$0x3f]
      %v1139 = vld [vmem:[%s692 + $0x9] sm:$0x3f]
      %v1140 = vld [vmem:[%s692 + $0x11] sm:$0x3f]
      %v1141 = vld [vmem:[%s692 + $0x19] sm:$0x3f]
      %v1142 = vld [vmem:[%s692 + $0x21] sm:$0x3f]
      %v1143 = vld [vmem:[%s692 + $0x29] sm:$0x3f]
      %v1144 = vld [vmem:[%s692 + $0x31] sm:$0x3f]
      %v1145 = vld [vmem:[%s692 + $0x39] sm:$0x3f]
      %v1146 = vld [vmem:[%s692 + $0x41] sm:$0x3f]
      %v1147 = vld [vmem:[%s692 + $0x49] sm:$0x3f]
      %v1148 = vld [vmem:[%s692 + $0x51] sm:$0x3f]
      %v1149 = vld [vmem:[%s692 + $0x59] sm:$0x3f]
      %v1150 = vld [vmem:[%s692 + $0x61] sm:$0x3f]
      %v1151 = vld [vmem:[%s692 + $0x69] sm:$0x3f]
      %v1152 = vld [vmem:[%s692 + $0x71] sm:$0x3f]
      %v1153 = vld [vmem:[%s692 + $0x79] sm:$0x3f]
      %v1154 = vld [vmem:[%s692 + $0x81] sm:$0x3f]
      %v1155 = vld [vmem:[%s692 + $0x89] sm:$0x3f]
      %v1156 = vld [vmem:[%s692 + $0x91] sm:$0x3f]
      %v1157 = vld [vmem:[%s692 + $0x99] sm:$0x3f]
      %v1158 = vld [vmem:[%s692 + $0xa1] sm:$0x3f]
      %v1159 = vld [vmem:[%s692 + $0xa9] sm:$0x3f]
      %v1160 = vld [vmem:[%s692 + $0xb1] sm:$0x3f]
      %v1161 = vld [vmem:[%s692 + $0xb9] sm:$0x3f]
      %v1162 = vmul.f32 %v1138, %v1089
      %v1163 = vmul.f32 %v1139, %v1089
      %v1164 = vmul.f32 %v1140, %v1089
      %v1165 = vmul.f32 %v1141, %v1089
      %v1166 = vmul.f32 %v1142, %v1089
      %v1167 = vmul.f32 %v1143, %v1089
      %v1168 = vmul.f32 %v1144, %v1089
      %v1169 = vmul.f32 %v1145, %v1089
      %v1170 = vmul.f32 %v1146, %v1089
      %v1171 = vmul.f32 %v1147, %v1089
      %v1172 = vmul.f32 %v1148, %v1089
      %v1173 = vmul.f32 %v1149, %v1089
      %v1174 = vmul.f32 %v1150, %v1089
      %v1175 = vmul.f32 %v1151, %v1089
      %v1176 = vmul.f32 %v1152, %v1089
      %v1177 = vmul.f32 %v1153, %v1089
      %v1178 = vmul.f32 %v1154, %v1089
      %v1179 = vmul.f32 %v1155, %v1089
      %v1180 = vmul.f32 %v1156, %v1089
      %v1181 = vmul.f32 %v1157, %v1089
      %v1182 = vmul.f32 %v1158, %v1089
      %v1183 = vmul.f32 %v1159, %v1089
      %v1184 = vmul.f32 %v1160, %v1089
      %v1185 = vmul.f32 %v1161, %v1089
      %v1186 = vadd.f32 %v1063, %v1162
      %v1187 = vadd.f32 %v1064, %v1163
      %v1188 = vadd.f32 %v1065, %v1164
      %v1189 = vadd.f32 %v1066, %v1165
      %v1190 = vadd.f32 %v1067, %v1166
      %v1191 = vadd.f32 %v1068, %v1167
      %v1192 = vadd.f32 %v1069, %v1168
      %v1193 = vadd.f32 %v1070, %v1169
      %v1194 = vadd.f32 %v1071, %v1170
      %v1195 = vadd.f32 %v1072, %v1171
      %v1196 = vadd.f32 %v1073, %v1172
      %v1197 = vadd.f32 %v1074, %v1173
      %v1198 = vadd.f32 %v1075, %v1174
      %v1199 = vadd.f32 %v1076, %v1175
      %v1200 = vadd.f32 %v1077, %v1176
      %v1201 = vadd.f32 %v1078, %v1177
      %v1202 = vadd.f32 %v1079, %v1178
      %v1203 = vadd.f32 %v1080, %v1179
      %v1204 = vadd.f32 %v1081, %v1180
      %v1205 = vadd.f32 %v1082, %v1181
      %v1206 = vadd.f32 %v1083, %v1182
      %v1207 = vadd.f32 %v1084, %v1183
      %v1208 = vadd.f32 %v1085, %v1184
      %v1209 = vadd.f32 %v1086, %v1185
      %s1210 = sadd.s32 %s48, 9
      %s1211 = sld [smem:[#allocation2 + %s1210]]
      %v1212 = vstv %s1211
      %v1213 = vmul.f32 %v1138, %v1212
      %v1214 = vmul.f32 %v1139, %v1212
      %v1215 = vmul.f32 %v1140, %v1212
      %v1216 = vmul.f32 %v1141, %v1212
      %v1217 = vmul.f32 %v1142, %v1212
      %v1218 = vmul.f32 %v1143, %v1212
      %v1219 = vmul.f32 %v1144, %v1212
      %v1220 = vmul.f32 %v1145, %v1212
      %v1221 = vmul.f32 %v1146, %v1212
      %v1222 = vmul.f32 %v1147, %v1212
      %v1223 = vmul.f32 %v1148, %v1212
      %v1224 = vmul.f32 %v1149, %v1212
      %v1225 = vmul.f32 %v1150, %v1212
      %v1226 = vmul.f32 %v1151, %v1212
      %v1227 = vmul.f32 %v1152, %v1212
      %v1228 = vmul.f32 %v1153, %v1212
      %v1229 = vmul.f32 %v1154, %v1212
      %v1230 = vmul.f32 %v1155, %v1212
      %v1231 = vmul.f32 %v1156, %v1212
      %v1232 = vmul.f32 %v1157, %v1212
      %v1233 = vmul.f32 %v1158, %v1212
      %v1234 = vmul.f32 %v1159, %v1212
      %v1235 = vmul.f32 %v1160, %v1212
      %v1236 = vmul.f32 %v1161, %v1212
      %v1237 = vadd.f32 %v1114, %v1213
      %v1238 = vadd.f32 %v1115, %v1214
      %v1239 = vadd.f32 %v1116, %v1215
      %v1240 = vadd.f32 %v1117, %v1216
      %v1241 = vadd.f32 %v1118, %v1217
      %v1242 = vadd.f32 %v1119, %v1218
      %v1243 = vadd.f32 %v1120, %v1219
      %v1244 = vadd.f32 %v1121, %v1220
      %v1245 = vadd.f32 %v1122, %v1221
      %v1246 = vadd.f32 %v1123, %v1222
      %v1247 = vadd.f32 %v1124, %v1223
      %v1248 = vadd.f32 %v1125, %v1224
      %v1249 = vadd.f32 %v1126, %v1225
      %v1250 = vadd.f32 %v1127, %v1226
      %v1251 = vadd.f32 %v1128, %v1227
      %v1252 = vadd.f32 %v1129, %v1228
      %v1253 = vadd.f32 %v1130, %v1229
      %v1254 = vadd.f32 %v1131, %v1230
      %v1255 = vadd.f32 %v1132, %v1231
      %v1256 = vadd.f32 %v1133, %v1232
      %v1257 = vadd.f32 %v1134, %v1233
      %v1258 = vadd.f32 %v1135, %v1234
      %v1259 = vadd.f32 %v1136, %v1235
      %v1260 = vadd.f32 %v1137, %v1236
      %v1261 = vld [vmem:[%s766 + $0x1] sm:$0x3f]
      %v1262 = vld [vmem:[%s766 + $0x9] sm:$0x3f]
      %v1263 = vld [vmem:[%s766 + $0x11] sm:$0x3f]
      %v1264 = vld [vmem:[%s766 + $0x19] sm:$0x3f]
      %v1265 = vld [vmem:[%s766 + $0x21] sm:$0x3f]
      %v1266 = vld [vmem:[%s766 + $0x29] sm:$0x3f]
      %v1267 = vld [vmem:[%s766 + $0x31] sm:$0x3f]
      %v1268 = vld [vmem:[%s766 + $0x39] sm:$0x3f]
      %v1269 = vld [vmem:[%s766 + $0x41] sm:$0x3f]
      %v1270 = vld [vmem:[%s766 + $0x49] sm:$0x3f]
      %v1271 = vld [vmem:[%s766 + $0x51] sm:$0x3f]
      %v1272 = vld [vmem:[%s766 + $0x59] sm:$0x3f]
      %v1273 = vld [vmem:[%s766 + $0x61] sm:$0x3f]
      %v1274 = vld [vmem:[%s766 + $0x69] sm:$0x3f]
      %v1275 = vld [vmem:[%s766 + $0x71] sm:$0x3f]
      %v1276 = vld [vmem:[%s766 + $0x79] sm:$0x3f]
      %v1277 = vld [vmem:[%s766 + $0x81] sm:$0x3f]
      %v1278 = vld [vmem:[%s766 + $0x89] sm:$0x3f]
      %v1279 = vld [vmem:[%s766 + $0x91] sm:$0x3f]
      %v1280 = vld [vmem:[%s766 + $0x99] sm:$0x3f]
      %v1281 = vld [vmem:[%s766 + $0xa1] sm:$0x3f]
      %v1282 = vld [vmem:[%s766 + $0xa9] sm:$0x3f]
      %v1283 = vld [vmem:[%s766 + $0xb1] sm:$0x3f]
      %v1284 = vld [vmem:[%s766 + $0xb9] sm:$0x3f]
      %v1285 = vmul.f32 %v1261, %v1212
      %v1286 = vmul.f32 %v1262, %v1212
      %v1287 = vmul.f32 %v1263, %v1212
      %v1288 = vmul.f32 %v1264, %v1212
      %v1289 = vmul.f32 %v1265, %v1212
      %v1290 = vmul.f32 %v1266, %v1212
      %v1291 = vmul.f32 %v1267, %v1212
      %v1292 = vmul.f32 %v1268, %v1212
      %v1293 = vmul.f32 %v1269, %v1212
      %v1294 = vmul.f32 %v1270, %v1212
      %v1295 = vmul.f32 %v1271, %v1212
      %v1296 = vmul.f32 %v1272, %v1212
      %v1297 = vmul.f32 %v1273, %v1212
      %v1298 = vmul.f32 %v1274, %v1212
      %v1299 = vmul.f32 %v1275, %v1212
      %v1300 = vmul.f32 %v1276, %v1212
      %v1301 = vmul.f32 %v1277, %v1212
      %v1302 = vmul.f32 %v1278, %v1212
      %v1303 = vmul.f32 %v1279, %v1212
      %v1304 = vmul.f32 %v1280, %v1212
      %v1305 = vmul.f32 %v1281, %v1212
      %v1306 = vmul.f32 %v1282, %v1212
      %v1307 = vmul.f32 %v1283, %v1212
      %v1308 = vmul.f32 %v1284, %v1212
      %v1309 = vadd.f32 %v1186, %v1285
      %v1310 = vadd.f32 %v1187, %v1286
      %v1311 = vadd.f32 %v1188, %v1287
      %v1312 = vadd.f32 %v1189, %v1288
      %v1313 = vadd.f32 %v1190, %v1289
      %v1314 = vadd.f32 %v1191, %v1290
      %v1315 = vadd.f32 %v1192, %v1291
      %v1316 = vadd.f32 %v1193, %v1292
      %v1317 = vadd.f32 %v1194, %v1293
      %v1318 = vadd.f32 %v1195, %v1294
      %v1319 = vadd.f32 %v1196, %v1295
      %v1320 = vadd.f32 %v1197, %v1296
      %v1321 = vadd.f32 %v1198, %v1297
      %v1322 = vadd.f32 %v1199, %v1298
      %v1323 = vadd.f32 %v1200, %v1299
      %v1324 = vadd.f32 %v1201, %v1300
      %v1325 = vadd.f32 %v1202, %v1301
      %v1326 = vadd.f32 %v1203, %v1302
      %v1327 = vadd.f32 %v1204, %v1303
      %v1328 = vadd.f32 %v1205, %v1304
      %v1329 = vadd.f32 %v1206, %v1305
      %v1330 = vadd.f32 %v1207, %v1306
      %v1331 = vadd.f32 %v1208, %v1307
      %v1332 = vadd.f32 %v1209, %v1308
      %s1333 = sadd.s32 %s48, 10
      %s1334 = sld [smem:[#allocation2 + %s1333]]
      %s1335 = scalar_lea.vmem %s0, 16
      %v1336 = vld [vmem:[%s1335] sm:$0x3f]
      %v1337 = vld [vmem:[%s1335 + $0x8] sm:$0x3f]
      %v1338 = vld [vmem:[%s1335 + $0x10] sm:$0x3f]
      %v1339 = vld [vmem:[%s1335 + $0x18] sm:$0x3f]
      %v1340 = vld [vmem:[%s1335 + $0x20] sm:$0x3f]
      %v1341 = vld [vmem:[%s1335 + $0x28] sm:$0x3f]
      %v1342 = vld [vmem:[%s1335 + $0x30] sm:$0x3f]
      %v1343 = vld [vmem:[%s1335 + $0x38] sm:$0x3f]
      %v1344 = vld [vmem:[%s1335 + $0x40] sm:$0x3f]
      %v1345 = vld [vmem:[%s1335 + $0x48] sm:$0x3f]
      %v1346 = vld [vmem:[%s1335 + $0x50] sm:$0x3f]
      %v1347 = vld [vmem:[%s1335 + $0x58] sm:$0x3f]
      %v1348 = vld [vmem:[%s1335 + $0x60] sm:$0x3f]
      %v1349 = vld [vmem:[%s1335 + $0x68] sm:$0x3f]
      %v1350 = vld [vmem:[%s1335 + $0x70] sm:$0x3f]
      %v1351 = vld [vmem:[%s1335 + $0x78] sm:$0x3f]
      %v1352 = vld [vmem:[%s1335 + $0x80] sm:$0x3f]
      %v1353 = vld [vmem:[%s1335 + $0x88] sm:$0x3f]
      %v1354 = vld [vmem:[%s1335 + $0x90] sm:$0x3f]
      %v1355 = vld [vmem:[%s1335 + $0x98] sm:$0x3f]
      %v1356 = vld [vmem:[%s1335 + $0xa0] sm:$0x3f]
      %v1357 = vld [vmem:[%s1335 + $0xa8] sm:$0x3f]
      %v1358 = vld [vmem:[%s1335 + $0xb0] sm:$0x3f]
      %v1359 = vld [vmem:[%s1335 + $0xb8] sm:$0x3f]
      %v1360 = vstv %s1334
      %v1361 = vmul.f32 %v1336, %v1360
      %v1362 = vmul.f32 %v1337, %v1360
      %v1363 = vmul.f32 %v1338, %v1360
      %v1364 = vmul.f32 %v1339, %v1360
      %v1365 = vmul.f32 %v1340, %v1360
      %v1366 = vmul.f32 %v1341, %v1360
      %v1367 = vmul.f32 %v1342, %v1360
      %v1368 = vmul.f32 %v1343, %v1360
      %v1369 = vmul.f32 %v1344, %v1360
      %v1370 = vmul.f32 %v1345, %v1360
      %v1371 = vmul.f32 %v1346, %v1360
      %v1372 = vmul.f32 %v1347, %v1360
      %v1373 = vmul.f32 %v1348, %v1360
      %v1374 = vmul.f32 %v1349, %v1360
      %v1375 = vmul.f32 %v1350, %v1360
      %v1376 = vmul.f32 %v1351, %v1360
      %v1377 = vmul.f32 %v1352, %v1360
      %v1378 = vmul.f32 %v1353, %v1360
      %v1379 = vmul.f32 %v1354, %v1360
      %v1380 = vmul.f32 %v1355, %v1360
      %v1381 = vmul.f32 %v1356, %v1360
      %v1382 = vmul.f32 %v1357, %v1360
      %v1383 = vmul.f32 %v1358, %v1360
      %v1384 = vmul.f32 %v1359, %v1360
      %v1385 = vadd.f32 %v1237, %v1361
      %v1386 = vadd.f32 %v1238, %v1362
      %v1387 = vadd.f32 %v1239, %v1363
      %v1388 = vadd.f32 %v1240, %v1364
      %v1389 = vadd.f32 %v1241, %v1365
      %v1390 = vadd.f32 %v1242, %v1366
      %v1391 = vadd.f32 %v1243, %v1367
      %v1392 = vadd.f32 %v1244, %v1368
      %v1393 = vadd.f32 %v1245, %v1369
      %v1394 = vadd.f32 %v1246, %v1370
      %v1395 = vadd.f32 %v1247, %v1371
      %v1396 = vadd.f32 %v1248, %v1372
      %v1397 = vadd.f32 %v1249, %v1373
      %v1398 = vadd.f32 %v1250, %v1374
      %v1399 = vadd.f32 %v1251, %v1375
      %v1400 = vadd.f32 %v1252, %v1376
      %v1401 = vadd.f32 %v1253, %v1377
      %v1402 = vadd.f32 %v1254, %v1378
      %v1403 = vadd.f32 %v1255, %v1379
      %v1404 = vadd.f32 %v1256, %v1380
      %v1405 = vadd.f32 %v1257, %v1381
      %v1406 = vadd.f32 %v1258, %v1382
      %v1407 = vadd.f32 %v1259, %v1383
      %v1408 = vadd.f32 %v1260, %v1384
      %s1409 = scalar_lea.vmem %s0, 240
      %v1410 = vld [vmem:[%s1409] sm:$0x3f]
      %v1411 = vld [vmem:[%s1409 + $0x8] sm:$0x3f]
      %v1412 = vld [vmem:[%s1409 + $0x10] sm:$0x3f]
      %v1413 = vld [vmem:[%s1409 + $0x18] sm:$0x3f]
      %v1414 = vld [vmem:[%s1409 + $0x20] sm:$0x3f]
      %v1415 = vld [vmem:[%s1409 + $0x28] sm:$0x3f]
      %v1416 = vld [vmem:[%s1409 + $0x30] sm:$0x3f]
      %v1417 = vld [vmem:[%s1409 + $0x38] sm:$0x3f]
      %v1418 = vld [vmem:[%s1409 + $0x40] sm:$0x3f]
      %v1419 = vld [vmem:[%s1409 + $0x48] sm:$0x3f]
      %v1420 = vld [vmem:[%s1409 + $0x50] sm:$0x3f]
      %v1421 = vld [vmem:[%s1409 + $0x58] sm:$0x3f]
      %v1422 = vld [vmem:[%s1409 + $0x60] sm:$0x3f]
      %v1423 = vld [vmem:[%s1409 + $0x68] sm:$0x3f]
      %v1424 = vld [vmem:[%s1409 + $0x70] sm:$0x3f]
      %v1425 = vld [vmem:[%s1409 + $0x78] sm:$0x3f]
      %v1426 = vld [vmem:[%s1409 + $0x80] sm:$0x3f]
      %v1427 = vld [vmem:[%s1409 + $0x88] sm:$0x3f]
      %v1428 = vld [vmem:[%s1409 + $0x90] sm:$0x3f]
      %v1429 = vld [vmem:[%s1409 + $0x98] sm:$0x3f]
      %v1430 = vld [vmem:[%s1409 + $0xa0] sm:$0x3f]
      %v1431 = vld [vmem:[%s1409 + $0xa8] sm:$0x3f]
      %v1432 = vld [vmem:[%s1409 + $0xb0] sm:$0x3f]
      %v1433 = vld [vmem:[%s1409 + $0xb8] sm:$0x3f]
      %v1434 = vmul.f32 %v1410, %v1360
      %v1435 = vmul.f32 %v1411, %v1360
      %v1436 = vmul.f32 %v1412, %v1360
      %v1437 = vmul.f32 %v1413, %v1360
      %v1438 = vmul.f32 %v1414, %v1360
      %v1439 = vmul.f32 %v1415, %v1360
      %v1440 = vmul.f32 %v1416, %v1360
      %v1441 = vmul.f32 %v1417, %v1360
      %v1442 = vmul.f32 %v1418, %v1360
      %v1443 = vmul.f32 %v1419, %v1360
      %v1444 = vmul.f32 %v1420, %v1360
      %v1445 = vmul.f32 %v1421, %v1360
      %v1446 = vmul.f32 %v1422, %v1360
      %v1447 = vmul.f32 %v1423, %v1360
      %v1448 = vmul.f32 %v1424, %v1360
      %v1449 = vmul.f32 %v1425, %v1360
      %v1450 = vmul.f32 %v1426, %v1360
      %v1451 = vmul.f32 %v1427, %v1360
      %v1452 = vmul.f32 %v1428, %v1360
      %v1453 = vmul.f32 %v1429, %v1360
      %v1454 = vmul.f32 %v1430, %v1360
      %v1455 = vmul.f32 %v1431, %v1360
      %v1456 = vmul.f32 %v1432, %v1360
      %v1457 = vmul.f32 %v1433, %v1360
      %v1458 = vadd.f32 %v1309, %v1434
      %v1459 = vadd.f32 %v1310, %v1435
      %v1460 = vadd.f32 %v1311, %v1436
      %v1461 = vadd.f32 %v1312, %v1437
      %v1462 = vadd.f32 %v1313, %v1438
      %v1463 = vadd.f32 %v1314, %v1439
      %v1464 = vadd.f32 %v1315, %v1440
      %v1465 = vadd.f32 %v1316, %v1441
      %v1466 = vadd.f32 %v1317, %v1442
      %v1467 = vadd.f32 %v1318, %v1443
      %v1468 = vadd.f32 %v1319, %v1444
      %v1469 = vadd.f32 %v1320, %v1445
      %v1470 = vadd.f32 %v1321, %v1446
      %v1471 = vadd.f32 %v1322, %v1447
      %v1472 = vadd.f32 %v1323, %v1448
      %v1473 = vadd.f32 %v1324, %v1449
      %v1474 = vadd.f32 %v1325, %v1450
      %v1475 = vadd.f32 %v1326, %v1451
      %v1476 = vadd.f32 %v1327, %v1452
      %v1477 = vadd.f32 %v1328, %v1453
      %v1478 = vadd.f32 %v1329, %v1454
      %v1479 = vadd.f32 %v1330, %v1455
      %v1480 = vadd.f32 %v1331, %v1456
      %v1481 = vadd.f32 %v1332, %v1457
      %s1482 = sadd.s32 %s48, 11
      %s1483 = sld [smem:[#allocation2 + %s1482]]
      %v1484 = vstv %s1483
      %v1485 = vmul.f32 %v1410, %v1484
      %v1486 = vmul.f32 %v1411, %v1484
      %v1487 = vmul.f32 %v1412, %v1484
      %v1488 = vmul.f32 %v1413, %v1484
      %v1489 = vmul.f32 %v1414, %v1484
      %v1490 = vmul.f32 %v1415, %v1484
      %v1491 = vmul.f32 %v1416, %v1484
      %v1492 = vmul.f32 %v1417, %v1484
      %v1493 = vmul.f32 %v1418, %v1484
      %v1494 = vmul.f32 %v1419, %v1484
      %v1495 = vmul.f32 %v1420, %v1484
      %v1496 = vmul.f32 %v1421, %v1484
      %v1497 = vmul.f32 %v1422, %v1484
      %v1498 = vmul.f32 %v1423, %v1484
      %v1499 = vmul.f32 %v1424, %v1484
      %v1500 = vmul.f32 %v1425, %v1484
      %v1501 = vmul.f32 %v1426, %v1484
      %v1502 = vmul.f32 %v1427, %v1484
      %v1503 = vmul.f32 %v1428, %v1484
      %v1504 = vmul.f32 %v1429, %v1484
      %v1505 = vmul.f32 %v1430, %v1484
      %v1506 = vmul.f32 %v1431, %v1484
      %v1507 = vmul.f32 %v1432, %v1484
      %v1508 = vmul.f32 %v1433, %v1484
      %v1509 = vadd.f32 %v1385, %v1485
      %v1510 = vadd.f32 %v1386, %v1486
      %v1511 = vadd.f32 %v1387, %v1487
      %v1512 = vadd.f32 %v1388, %v1488
      %v1513 = vadd.f32 %v1389, %v1489
      %v1514 = vadd.f32 %v1390, %v1490
      %v1515 = vadd.f32 %v1391, %v1491
      %v1516 = vadd.f32 %v1392, %v1492
      %v1517 = vadd.f32 %v1393, %v1493
      %v1518 = vadd.f32 %v1394, %v1494
      %v1519 = vadd.f32 %v1395, %v1495
      %v1520 = vadd.f32 %v1396, %v1496
      %v1521 = vadd.f32 %v1397, %v1497
      %v1522 = vadd.f32 %v1398, %v1498
      %v1523 = vadd.f32 %v1399, %v1499
      %v1524 = vadd.f32 %v1400, %v1500
      %v1525 = vadd.f32 %v1401, %v1501
      %v1526 = vadd.f32 %v1402, %v1502
      %v1527 = vadd.f32 %v1403, %v1503
      %v1528 = vadd.f32 %v1404, %v1504
      %v1529 = vadd.f32 %v1405, %v1505
      %v1530 = vadd.f32 %v1406, %v1506
      %v1531 = vadd.f32 %v1407, %v1507
      %v1532 = vadd.f32 %v1408, %v1508
      %s1533 = scalar_lea.vmem %s0, 464
      %v1534 = vld [vmem:[%s1533] sm:$0x3f]
      %v1535 = vld [vmem:[%s1533 + $0x8] sm:$0x3f]
      %v1536 = vld [vmem:[%s1533 + $0x10] sm:$0x3f]
      %v1537 = vld [vmem:[%s1533 + $0x18] sm:$0x3f]
      %v1538 = vld [vmem:[%s1533 + $0x20] sm:$0x3f]
      %v1539 = vld [vmem:[%s1533 + $0x28] sm:$0x3f]
      %v1540 = vld [vmem:[%s1533 + $0x30] sm:$0x3f]
      %v1541 = vld [vmem:[%s1533 + $0x38] sm:$0x3f]
      %v1542 = vld [vmem:[%s1533 + $0x40] sm:$0x3f]
      %v1543 = vld [vmem:[%s1533 + $0x48] sm:$0x3f]
      %v1544 = vld [vmem:[%s1533 + $0x50] sm:$0x3f]
      %v1545 = vld [vmem:[%s1533 + $0x58] sm:$0x3f]
      %v1546 = vld [vmem:[%s1533 + $0x60] sm:$0x3f]
      %v1547 = vld [vmem:[%s1533 + $0x68] sm:$0x3f]
      %v1548 = vld [vmem:[%s1533 + $0x70] sm:$0x3f]
      %v1549 = vld [vmem:[%s1533 + $0x78] sm:$0x3f]
      %v1550 = vld [vmem:[%s1533 + $0x80] sm:$0x3f]
      %v1551 = vld [vmem:[%s1533 + $0x88] sm:$0x3f]
      %v1552 = vld [vmem:[%s1533 + $0x90] sm:$0x3f]
      %v1553 = vld [vmem:[%s1533 + $0x98] sm:$0x3f]
      %v1554 = vld [vmem:[%s1533 + $0xa0] sm:$0x3f]
      %v1555 = vld [vmem:[%s1533 + $0xa8] sm:$0x3f]
      %v1556 = vld [vmem:[%s1533 + $0xb0] sm:$0x3f]
      %v1557 = vld [vmem:[%s1533 + $0xb8] sm:$0x3f]
      %v1558 = vmul.f32 %v1534, %v1484
      %v1559 = vmul.f32 %v1535, %v1484
      %v1560 = vmul.f32 %v1536, %v1484
      %v1561 = vmul.f32 %v1537, %v1484
      %v1562 = vmul.f32 %v1538, %v1484
      %v1563 = vmul.f32 %v1539, %v1484
      %v1564 = vmul.f32 %v1540, %v1484
      %v1565 = vmul.f32 %v1541, %v1484
      %v1566 = vmul.f32 %v1542, %v1484
      %v1567 = vmul.f32 %v1543, %v1484
      %v1568 = vmul.f32 %v1544, %v1484
      %v1569 = vmul.f32 %v1545, %v1484
      %v1570 = vmul.f32 %v1546, %v1484
      %v1571 = vmul.f32 %v1547, %v1484
      %v1572 = vmul.f32 %v1548, %v1484
      %v1573 = vmul.f32 %v1549, %v1484
      %v1574 = vmul.f32 %v1550, %v1484
      %v1575 = vmul.f32 %v1551, %v1484
      %v1576 = vmul.f32 %v1552, %v1484
      %v1577 = vmul.f32 %v1553, %v1484
      %v1578 = vmul.f32 %v1554, %v1484
      %v1579 = vmul.f32 %v1555, %v1484
      %v1580 = vmul.f32 %v1556, %v1484
      %v1581 = vmul.f32 %v1557, %v1484
      %v1582 = vadd.f32 %v1458, %v1558
      %v1583 = vadd.f32 %v1459, %v1559
      %v1584 = vadd.f32 %v1460, %v1560
      %v1585 = vadd.f32 %v1461, %v1561
      %v1586 = vadd.f32 %v1462, %v1562
      %v1587 = vadd.f32 %v1463, %v1563
      %v1588 = vadd.f32 %v1464, %v1564
      %v1589 = vadd.f32 %v1465, %v1565
      %v1590 = vadd.f32 %v1466, %v1566
      %v1591 = vadd.f32 %v1467, %v1567
      %v1592 = vadd.f32 %v1468, %v1568
      %v1593 = vadd.f32 %v1469, %v1569
      %v1594 = vadd.f32 %v1470, %v1570
      %v1595 = vadd.f32 %v1471, %v1571
      %v1596 = vadd.f32 %v1472, %v1572
      %v1597 = vadd.f32 %v1473, %v1573
      %v1598 = vadd.f32 %v1474, %v1574
      %v1599 = vadd.f32 %v1475, %v1575
      %v1600 = vadd.f32 %v1476, %v1576
      %v1601 = vadd.f32 %v1477, %v1577
      %v1602 = vadd.f32 %v1478, %v1578
      %v1603 = vadd.f32 %v1479, %v1579
      %v1604 = vadd.f32 %v1480, %v1580
      %v1605 = vadd.f32 %v1481, %v1581
      %s1606 = sadd.s32 %s48, 12
      %s1607 = sld [smem:[#allocation2 + %s1606]]
      %v1608 = vstv %s1607
      %v1609 = vmul.f32 %v1534, %v1608
      %v1610 = vmul.f32 %v1535, %v1608
      %v1611 = vmul.f32 %v1536, %v1608
      %v1612 = vmul.f32 %v1537, %v1608
      %v1613 = vmul.f32 %v1538, %v1608
      %v1614 = vmul.f32 %v1539, %v1608
      %v1615 = vmul.f32 %v1540, %v1608
      %v1616 = vmul.f32 %v1541, %v1608
      %v1617 = vmul.f32 %v1542, %v1608
      %v1618 = vmul.f32 %v1543, %v1608
      %v1619 = vmul.f32 %v1544, %v1608
      %v1620 = vmul.f32 %v1545, %v1608
      %v1621 = vmul.f32 %v1546, %v1608
      %v1622 = vmul.f32 %v1547, %v1608
      %v1623 = vmul.f32 %v1548, %v1608
      %v1624 = vmul.f32 %v1549, %v1608
      %v1625 = vmul.f32 %v1550, %v1608
      %v1626 = vmul.f32 %v1551, %v1608
      %v1627 = vmul.f32 %v1552, %v1608
      %v1628 = vmul.f32 %v1553, %v1608
      %v1629 = vmul.f32 %v1554, %v1608
      %v1630 = vmul.f32 %v1555, %v1608
      %v1631 = vmul.f32 %v1556, %v1608
      %v1632 = vmul.f32 %v1557, %v1608
      %v1633 = vadd.f32 %v1509, %v1609
      %v1634 = vadd.f32 %v1510, %v1610
      %v1635 = vadd.f32 %v1511, %v1611
      %v1636 = vadd.f32 %v1512, %v1612
      %v1637 = vadd.f32 %v1513, %v1613
      %v1638 = vadd.f32 %v1514, %v1614
      %v1639 = vadd.f32 %v1515, %v1615
      %v1640 = vadd.f32 %v1516, %v1616
      %v1641 = vadd.f32 %v1517, %v1617
      %v1642 = vadd.f32 %v1518, %v1618
      %v1643 = vadd.f32 %v1519, %v1619
      %v1644 = vadd.f32 %v1520, %v1620
      %v1645 = vadd.f32 %v1521, %v1621
      %v1646 = vadd.f32 %v1522, %v1622
      %v1647 = vadd.f32 %v1523, %v1623
      %v1648 = vadd.f32 %v1524, %v1624
      %v1649 = vadd.f32 %v1525, %v1625
      %v1650 = vadd.f32 %v1526, %v1626
      %v1651 = vadd.f32 %v1527, %v1627
      %v1652 = vadd.f32 %v1528, %v1628
      %v1653 = vadd.f32 %v1529, %v1629
      %v1654 = vadd.f32 %v1530, %v1630
      %v1655 = vadd.f32 %v1531, %v1631
      %v1656 = vadd.f32 %v1532, %v1632
      %s1657 = scalar_lea.vmem %s0, 688
      %v1658 = vld [vmem:[%s1657] sm:$0x3f]
      %v1659 = vld [vmem:[%s1657 + $0x8] sm:$0x3f]
      %v1660 = vld [vmem:[%s1657 + $0x10] sm:$0x3f]
      %v1661 = vld [vmem:[%s1657 + $0x18] sm:$0x3f]
      %v1662 = vld [vmem:[%s1657 + $0x20] sm:$0x3f]
      %v1663 = vld [vmem:[%s1657 + $0x28] sm:$0x3f]
      %v1664 = vld [vmem:[%s1657 + $0x30] sm:$0x3f]
      %v1665 = vld [vmem:[%s1657 + $0x38] sm:$0x3f]
      %v1666 = vld [vmem:[%s1657 + $0x40] sm:$0x3f]
      %v1667 = vld [vmem:[%s1657 + $0x48] sm:$0x3f]
      %v1668 = vld [vmem:[%s1657 + $0x50] sm:$0x3f]
      %v1669 = vld [vmem:[%s1657 + $0x58] sm:$0x3f]
      %v1670 = vld [vmem:[%s1657 + $0x60] sm:$0x3f]
      %v1671 = vld [vmem:[%s1657 + $0x68] sm:$0x3f]
      %v1672 = vld [vmem:[%s1657 + $0x70] sm:$0x3f]
      %v1673 = vld [vmem:[%s1657 + $0x78] sm:$0x3f]
      %v1674 = vld [vmem:[%s1657 + $0x80] sm:$0x3f]
      %v1675 = vld [vmem:[%s1657 + $0x88] sm:$0x3f]
      %v1676 = vld [vmem:[%s1657 + $0x90] sm:$0x3f]
      %v1677 = vld [vmem:[%s1657 + $0x98] sm:$0x3f]
      %v1678 = vld [vmem:[%s1657 + $0xa0] sm:$0x3f]
      %v1679 = vld [vmem:[%s1657 + $0xa8] sm:$0x3f]
      %v1680 = vld [vmem:[%s1657 + $0xb0] sm:$0x3f]
      %v1681 = vld [vmem:[%s1657 + $0xb8] sm:$0x3f]
      %v1682 = vmul.f32 %v1658, %v1608
      %v1683 = vmul.f32 %v1659, %v1608
      %v1684 = vmul.f32 %v1660, %v1608
      %v1685 = vmul.f32 %v1661, %v1608
      %v1686 = vmul.f32 %v1662, %v1608
      %v1687 = vmul.f32 %v1663, %v1608
      %v1688 = vmul.f32 %v1664, %v1608
      %v1689 = vmul.f32 %v1665, %v1608
      %v1690 = vmul.f32 %v1666, %v1608
      %v1691 = vmul.f32 %v1667, %v1608
      %v1692 = vmul.f32 %v1668, %v1608
      %v1693 = vmul.f32 %v1669, %v1608
      %v1694 = vmul.f32 %v1670, %v1608
      %v1695 = vmul.f32 %v1671, %v1608
      %v1696 = vmul.f32 %v1672, %v1608
      %v1697 = vmul.f32 %v1673, %v1608
      %v1698 = vmul.f32 %v1674, %v1608
      %v1699 = vmul.f32 %v1675, %v1608
      %v1700 = vmul.f32 %v1676, %v1608
      %v1701 = vmul.f32 %v1677, %v1608
      %v1702 = vmul.f32 %v1678, %v1608
      %v1703 = vmul.f32 %v1679, %v1608
      %v1704 = vmul.f32 %v1680, %v1608
      %v1705 = vmul.f32 %v1681, %v1608
      %v1706 = vadd.f32 %v1582, %v1682
      %v1707 = vadd.f32 %v1583, %v1683
      %v1708 = vadd.f32 %v1584, %v1684
      %v1709 = vadd.f32 %v1585, %v1685
      %v1710 = vadd.f32 %v1586, %v1686
      %v1711 = vadd.f32 %v1587, %v1687
      %v1712 = vadd.f32 %v1588, %v1688
      %v1713 = vadd.f32 %v1589, %v1689
      %v1714 = vadd.f32 %v1590, %v1690
      %v1715 = vadd.f32 %v1591, %v1691
      %v1716 = vadd.f32 %v1592, %v1692
      %v1717 = vadd.f32 %v1593, %v1693
      %v1718 = vadd.f32 %v1594, %v1694
      %v1719 = vadd.f32 %v1595, %v1695
      %v1720 = vadd.f32 %v1596, %v1696
      %v1721 = vadd.f32 %v1597, %v1697
      %v1722 = vadd.f32 %v1598, %v1698
      %v1723 = vadd.f32 %v1599, %v1699
      %v1724 = vadd.f32 %v1600, %v1700
      %v1725 = vadd.f32 %v1601, %v1701
      %v1726 = vadd.f32 %v1602, %v1702
      %v1727 = vadd.f32 %v1603, %v1703
      %v1728 = vadd.f32 %v1604, %v1704
      %v1729 = vadd.f32 %v1605, %v1705
      %s1730 = sadd.s32 %s48, 13
      %s1731 = sld [smem:[#allocation2 + %s1730]]
      %v1732 = vstv %s1731
      %v1733 = vmul.f32 %v1658, %v1732
      %v1734 = vmul.f32 %v1659, %v1732
      %v1735 = vmul.f32 %v1660, %v1732
      %v1736 = vmul.f32 %v1661, %v1732
      %v1737 = vmul.f32 %v1662, %v1732
      %v1738 = vmul.f32 %v1663, %v1732
      %v1739 = vmul.f32 %v1664, %v1732
      %v1740 = vmul.f32 %v1665, %v1732
      %v1741 = vmul.f32 %v1666, %v1732
      %v1742 = vmul.f32 %v1667, %v1732
      %v1743 = vmul.f32 %v1668, %v1732
      %v1744 = vmul.f32 %v1669, %v1732
      %v1745 = vmul.f32 %v1670, %v1732
      %v1746 = vmul.f32 %v1671, %v1732
      %v1747 = vmul.f32 %v1672, %v1732
      %v1748 = vmul.f32 %v1673, %v1732
      %v1749 = vmul.f32 %v1674, %v1732
      %v1750 = vmul.f32 %v1675, %v1732
      %v1751 = vmul.f32 %v1676, %v1732
      %v1752 = vmul.f32 %v1677, %v1732
      %v1753 = vmul.f32 %v1678, %v1732
      %v1754 = vmul.f32 %v1679, %v1732
      %v1755 = vmul.f32 %v1680, %v1732
      %v1756 = vmul.f32 %v1681, %v1732
      %v1757 = vadd.f32 %v1633, %v1733
      %v1758 = vadd.f32 %v1634, %v1734
      %v1759 = vadd.f32 %v1635, %v1735
      %v1760 = vadd.f32 %v1636, %v1736
      %v1761 = vadd.f32 %v1637, %v1737
      %v1762 = vadd.f32 %v1638, %v1738
      %v1763 = vadd.f32 %v1639, %v1739
      %v1764 = vadd.f32 %v1640, %v1740
      %v1765 = vadd.f32 %v1641, %v1741
      %v1766 = vadd.f32 %v1642, %v1742
      %v1767 = vadd.f32 %v1643, %v1743
      %v1768 = vadd.f32 %v1644, %v1744
      %v1769 = vadd.f32 %v1645, %v1745
      %v1770 = vadd.f32 %v1646, %v1746
      %v1771 = vadd.f32 %v1647, %v1747
      %v1772 = vadd.f32 %v1648, %v1748
      %v1773 = vadd.f32 %v1649, %v1749
      %v1774 = vadd.f32 %v1650, %v1750
      %v1775 = vadd.f32 %v1651, %v1751
      %v1776 = vadd.f32 %v1652, %v1752
      %v1777 = vadd.f32 %v1653, %v1753
      %v1778 = vadd.f32 %v1654, %v1754
      %v1779 = vadd.f32 %v1655, %v1755
      %v1780 = vadd.f32 %v1656, %v1756
      %v1781 = vld [vmem:[%s1335 + $0x1] sm:$0x3f]
      %v1782 = vld [vmem:[%s1335 + $0x9] sm:$0x3f]
      %v1783 = vld [vmem:[%s1335 + $0x11] sm:$0x3f]
      %v1784 = vld [vmem:[%s1335 + $0x19] sm:$0x3f]
      %v1785 = vld [vmem:[%s1335 + $0x21] sm:$0x3f]
      %v1786 = vld [vmem:[%s1335 + $0x29] sm:$0x3f]
      %v1787 = vld [vmem:[%s1335 + $0x31] sm:$0x3f]
      %v1788 = vld [vmem:[%s1335 + $0x39] sm:$0x3f]
      %v1789 = vld [vmem:[%s1335 + $0x41] sm:$0x3f]
      %v1790 = vld [vmem:[%s1335 + $0x49] sm:$0x3f]
      %v1791 = vld [vmem:[%s1335 + $0x51] sm:$0x3f]
      %v1792 = vld [vmem:[%s1335 + $0x59] sm:$0x3f]
      %v1793 = vld [vmem:[%s1335 + $0x61] sm:$0x3f]
      %v1794 = vld [vmem:[%s1335 + $0x69] sm:$0x3f]
      %v1795 = vld [vmem:[%s1335 + $0x71] sm:$0x3f]
      %v1796 = vld [vmem:[%s1335 + $0x79] sm:$0x3f]
      %v1797 = vld [vmem:[%s1335 + $0x81] sm:$0x3f]
      %v1798 = vld [vmem:[%s1335 + $0x89] sm:$0x3f]
      %v1799 = vld [vmem:[%s1335 + $0x91] sm:$0x3f]
      %v1800 = vld [vmem:[%s1335 + $0x99] sm:$0x3f]
      %v1801 = vld [vmem:[%s1335 + $0xa1] sm:$0x3f]
      %v1802 = vld [vmem:[%s1335 + $0xa9] sm:$0x3f]
      %v1803 = vld [vmem:[%s1335 + $0xb1] sm:$0x3f]
      %v1804 = vld [vmem:[%s1335 + $0xb9] sm:$0x3f]
      %v1805 = vmul.f32 %v1781, %v1732
      %v1806 = vmul.f32 %v1782, %v1732
      %v1807 = vmul.f32 %v1783, %v1732
      %v1808 = vmul.f32 %v1784, %v1732
      %v1809 = vmul.f32 %v1785, %v1732
      %v1810 = vmul.f32 %v1786, %v1732
      %v1811 = vmul.f32 %v1787, %v1732
      %v1812 = vmul.f32 %v1788, %v1732
      %v1813 = vmul.f32 %v1789, %v1732
      %v1814 = vmul.f32 %v1790, %v1732
      %v1815 = vmul.f32 %v1791, %v1732
      %v1816 = vmul.f32 %v1792, %v1732
      %v1817 = vmul.f32 %v1793, %v1732
      %v1818 = vmul.f32 %v1794, %v1732
      %v1819 = vmul.f32 %v1795, %v1732
      %v1820 = vmul.f32 %v1796, %v1732
      %v1821 = vmul.f32 %v1797, %v1732
      %v1822 = vmul.f32 %v1798, %v1732
      %v1823 = vmul.f32 %v1799, %v1732
      %v1824 = vmul.f32 %v1800, %v1732
      %v1825 = vmul.f32 %v1801, %v1732
      %v1826 = vmul.f32 %v1802, %v1732
      %v1827 = vmul.f32 %v1803, %v1732
      %v1828 = vmul.f32 %v1804, %v1732
      %v1829 = vadd.f32 %v1706, %v1805
      %v1830 = vadd.f32 %v1707, %v1806
      %v1831 = vadd.f32 %v1708, %v1807
      %v1832 = vadd.f32 %v1709, %v1808
      %v1833 = vadd.f32 %v1710, %v1809
      %v1834 = vadd.f32 %v1711, %v1810
      %v1835 = vadd.f32 %v1712, %v1811
      %v1836 = vadd.f32 %v1713, %v1812
      %v1837 = vadd.f32 %v1714, %v1813
      %v1838 = vadd.f32 %v1715, %v1814
      %v1839 = vadd.f32 %v1716, %v1815
      %v1840 = vadd.f32 %v1717, %v1816
      %v1841 = vadd.f32 %v1718, %v1817
      %v1842 = vadd.f32 %v1719, %v1818
      %v1843 = vadd.f32 %v1720, %v1819
      %v1844 = vadd.f32 %v1721, %v1820
      %v1845 = vadd.f32 %v1722, %v1821
      %v1846 = vadd.f32 %v1723, %v1822
      %v1847 = vadd.f32 %v1724, %v1823
      %v1848 = vadd.f32 %v1725, %v1824
      %v1849 = vadd.f32 %v1726, %v1825
      %v1850 = vadd.f32 %v1727, %v1826
      %v1851 = vadd.f32 %v1728, %v1827
      %v1852 = vadd.f32 %v1729, %v1828
      %s1853 = sadd.s32 %s48, 14
      %s1854 = sld [smem:[#allocation2 + %s1853]]
      %v1855 = vstv %s1854
      %v1856 = vmul.f32 %v1781, %v1855
      %v1857 = vmul.f32 %v1782, %v1855
      %v1858 = vmul.f32 %v1783, %v1855
      %v1859 = vmul.f32 %v1784, %v1855
      %v1860 = vmul.f32 %v1785, %v1855
      %v1861 = vmul.f32 %v1786, %v1855
      %v1862 = vmul.f32 %v1787, %v1855
      %v1863 = vmul.f32 %v1788, %v1855
      %v1864 = vmul.f32 %v1789, %v1855
      %v1865 = vmul.f32 %v1790, %v1855
      %v1866 = vmul.f32 %v1791, %v1855
      %v1867 = vmul.f32 %v1792, %v1855
      %v1868 = vmul.f32 %v1793, %v1855
      %v1869 = vmul.f32 %v1794, %v1855
      %v1870 = vmul.f32 %v1795, %v1855
      %v1871 = vmul.f32 %v1796, %v1855
      %v1872 = vmul.f32 %v1797, %v1855
      %v1873 = vmul.f32 %v1798, %v1855
      %v1874 = vmul.f32 %v1799, %v1855
      %v1875 = vmul.f32 %v1800, %v1855
      %v1876 = vmul.f32 %v1801, %v1855
      %v1877 = vmul.f32 %v1802, %v1855
      %v1878 = vmul.f32 %v1803, %v1855
      %v1879 = vmul.f32 %v1804, %v1855
      %v1880 = vadd.f32 %v1757, %v1856
      %v1881 = vadd.f32 %v1758, %v1857
      %v1882 = vadd.f32 %v1759, %v1858
      %v1883 = vadd.f32 %v1760, %v1859
      %v1884 = vadd.f32 %v1761, %v1860
      %v1885 = vadd.f32 %v1762, %v1861
      %v1886 = vadd.f32 %v1763, %v1862
      %v1887 = vadd.f32 %v1764, %v1863
      %v1888 = vadd.f32 %v1765, %v1864
      %v1889 = vadd.f32 %v1766, %v1865
      %v1890 = vadd.f32 %v1767, %v1866
      %v1891 = vadd.f32 %v1768, %v1867
      %v1892 = vadd.f32 %v1769, %v1868
      %v1893 = vadd.f32 %v1770, %v1869
      %v1894 = vadd.f32 %v1771, %v1870
      %v1895 = vadd.f32 %v1772, %v1871
      %v1896 = vadd.f32 %v1773, %v1872
      %v1897 = vadd.f32 %v1774, %v1873
      %v1898 = vadd.f32 %v1775, %v1874
      %v1899 = vadd.f32 %v1776, %v1875
      %v1900 = vadd.f32 %v1777, %v1876
      %v1901 = vadd.f32 %v1778, %v1877
      %v1902 = vadd.f32 %v1779, %v1878
      %v1903 = vadd.f32 %v1780, %v1879
      %v1904 = vld [vmem:[%s1409 + $0x1] sm:$0x3f]
      %v1905 = vld [vmem:[%s1409 + $0x9] sm:$0x3f]
      %v1906 = vld [vmem:[%s1409 + $0x11] sm:$0x3f]
      %v1907 = vld [vmem:[%s1409 + $0x19] sm:$0x3f]
      %v1908 = vld [vmem:[%s1409 + $0x21] sm:$0x3f]
      %v1909 = vld [vmem:[%s1409 + $0x29] sm:$0x3f]
      %v1910 = vld [vmem:[%s1409 + $0x31] sm:$0x3f]
      %v1911 = vld [vmem:[%s1409 + $0x39] sm:$0x3f]
      %v1912 = vld [vmem:[%s1409 + $0x41] sm:$0x3f]
      %v1913 = vld [vmem:[%s1409 + $0x49] sm:$0x3f]
      %v1914 = vld [vmem:[%s1409 + $0x51] sm:$0x3f]
      %v1915 = vld [vmem:[%s1409 + $0x59] sm:$0x3f]
      %v1916 = vld [vmem:[%s1409 + $0x61] sm:$0x3f]
      %v1917 = vld [vmem:[%s1409 + $0x69] sm:$0x3f]
      %v1918 = vld [vmem:[%s1409 + $0x71] sm:$0x3f]
      %v1919 = vld [vmem:[%s1409 + $0x79] sm:$0x3f]
      %v1920 = vld [vmem:[%s1409 + $0x81] sm:$0x3f]
      %v1921 = vld [vmem:[%s1409 + $0x89] sm:$0x3f]
      %v1922 = vld [vmem:[%s1409 + $0x91] sm:$0x3f]
      %v1923 = vld [vmem:[%s1409 + $0x99] sm:$0x3f]
      %v1924 = vld [vmem:[%s1409 + $0xa1] sm:$0x3f]
      %v1925 = vld [vmem:[%s1409 + $0xa9] sm:$0x3f]
      %v1926 = vld [vmem:[%s1409 + $0xb1] sm:$0x3f]
      %v1927 = vld [vmem:[%s1409 + $0xb9] sm:$0x3f]
      %v1928 = vmul.f32 %v1904, %v1855
      %v1929 = vmul.f32 %v1905, %v1855
      %v1930 = vmul.f32 %v1906, %v1855
      %v1931 = vmul.f32 %v1907, %v1855
      %v1932 = vmul.f32 %v1908, %v1855
      %v1933 = vmul.f32 %v1909, %v1855
      %v1934 = vmul.f32 %v1910, %v1855
      %v1935 = vmul.f32 %v1911, %v1855
      %v1936 = vmul.f32 %v1912, %v1855
      %v1937 = vmul.f32 %v1913, %v1855
      %v1938 = vmul.f32 %v1914, %v1855
      %v1939 = vmul.f32 %v1915, %v1855
      %v1940 = vmul.f32 %v1916, %v1855
      %v1941 = vmul.f32 %v1917, %v1855
      %v1942 = vmul.f32 %v1918, %v1855
      %v1943 = vmul.f32 %v1919, %v1855
      %v1944 = vmul.f32 %v1920, %v1855
      %v1945 = vmul.f32 %v1921, %v1855
      %v1946 = vmul.f32 %v1922, %v1855
      %v1947 = vmul.f32 %v1923, %v1855
      %v1948 = vmul.f32 %v1924, %v1855
      %v1949 = vmul.f32 %v1925, %v1855
      %v1950 = vmul.f32 %v1926, %v1855
      %v1951 = vmul.f32 %v1927, %v1855
      %v1952 = vadd.f32 %v1829, %v1928
      %v1953 = vadd.f32 %v1830, %v1929
      %v1954 = vadd.f32 %v1831, %v1930
      %v1955 = vadd.f32 %v1832, %v1931
      %v1956 = vadd.f32 %v1833, %v1932
      %v1957 = vadd.f32 %v1834, %v1933
      %v1958 = vadd.f32 %v1835, %v1934
      %v1959 = vadd.f32 %v1836, %v1935
      %v1960 = vadd.f32 %v1837, %v1936
      %v1961 = vadd.f32 %v1838, %v1937
      %v1962 = vadd.f32 %v1839, %v1938
      %v1963 = vadd.f32 %v1840, %v1939
      %v1964 = vadd.f32 %v1841, %v1940
      %v1965 = vadd.f32 %v1842, %v1941
      %v1966 = vadd.f32 %v1843, %v1942
      %v1967 = vadd.f32 %v1844, %v1943
      %v1968 = vadd.f32 %v1845, %v1944
      %v1969 = vadd.f32 %v1846, %v1945
      %v1970 = vadd.f32 %v1847, %v1946
      %v1971 = vadd.f32 %v1848, %v1947
      %v1972 = vadd.f32 %v1849, %v1948
      %v1973 = vadd.f32 %v1850, %v1949
      %v1974 = vadd.f32 %v1851, %v1950
      %v1975 = vadd.f32 %v1852, %v1951
      %s1976 = sadd.s32 %s48, 15
      %s1977 = sld [smem:[#allocation2 + %s1976]]
      %s1978 = scalar_lea.vmem %s0, 24
      %v1979 = vld [vmem:[%s1978] sm:$0x3f]
      %v1980 = vld [vmem:[%s1978 + $0x8] sm:$0x3f]
      %v1981 = vld [vmem:[%s1978 + $0x10] sm:$0x3f]
      %v1982 = vld [vmem:[%s1978 + $0x18] sm:$0x3f]
      %v1983 = vld [vmem:[%s1978 + $0x20] sm:$0x3f]
      %v1984 = vld [vmem:[%s1978 + $0x28] sm:$0x3f]
      %v1985 = vld [vmem:[%s1978 + $0x30] sm:$0x3f]
      %v1986 = vld [vmem:[%s1978 + $0x38] sm:$0x3f]
      %v1987 = vld [vmem:[%s1978 + $0x40] sm:$0x3f]
      %v1988 = vld [vmem:[%s1978 + $0x48] sm:$0x3f]
      %v1989 = vld [vmem:[%s1978 + $0x50] sm:$0x3f]
      %v1990 = vld [vmem:[%s1978 + $0x58] sm:$0x3f]
      %v1991 = vld [vmem:[%s1978 + $0x60] sm:$0x3f]
      %v1992 = vld [vmem:[%s1978 + $0x68] sm:$0x3f]
      %v1993 = vld [vmem:[%s1978 + $0x70] sm:$0x3f]
      %v1994 = vld [vmem:[%s1978 + $0x78] sm:$0x3f]
      %v1995 = vld [vmem:[%s1978 + $0x80] sm:$0x3f]
      %v1996 = vld [vmem:[%s1978 + $0x88] sm:$0x3f]
      %v1997 = vld [vmem:[%s1978 + $0x90] sm:$0x3f]
      %v1998 = vld [vmem:[%s1978 + $0x98] sm:$0x3f]
      %v1999 = vld [vmem:[%s1978 + $0xa0] sm:$0x3f]
      %v2000 = vld [vmem:[%s1978 + $0xa8] sm:$0x3f]
      %v2001 = vld [vmem:[%s1978 + $0xb0] sm:$0x3f]
      %v2002 = vld [vmem:[%s1978 + $0xb8] sm:$0x3f]
      %v2003 = vstv %s1977
      %v2004 = vmul.f32 %v1979, %v2003
      %v2005 = vmul.f32 %v1980, %v2003
      %v2006 = vmul.f32 %v1981, %v2003
      %v2007 = vmul.f32 %v1982, %v2003
      %v2008 = vmul.f32 %v1983, %v2003
      %v2009 = vmul.f32 %v1984, %v2003
      %v2010 = vmul.f32 %v1985, %v2003
      %v2011 = vmul.f32 %v1986, %v2003
      %v2012 = vmul.f32 %v1987, %v2003
      %v2013 = vmul.f32 %v1988, %v2003
      %v2014 = vmul.f32 %v1989, %v2003
      %v2015 = vmul.f32 %v1990, %v2003
      %v2016 = vmul.f32 %v1991, %v2003
      %v2017 = vmul.f32 %v1992, %v2003
      %v2018 = vmul.f32 %v1993, %v2003
      %v2019 = vmul.f32 %v1994, %v2003
      %v2020 = vmul.f32 %v1995, %v2003
      %v2021 = vmul.f32 %v1996, %v2003
      %v2022 = vmul.f32 %v1997, %v2003
      %v2023 = vmul.f32 %v1998, %v2003
      %v2024 = vmul.f32 %v1999, %v2003
      %v2025 = vmul.f32 %v2000, %v2003
      %v2026 = vmul.f32 %v2001, %v2003
      %v2027 = vmul.f32 %v2002, %v2003
      %v2028 = vadd.f32 %v1880, %v2004
      %v2029 = vadd.f32 %v1881, %v2005
      %v2030 = vadd.f32 %v1882, %v2006
      %v2031 = vadd.f32 %v1883, %v2007
      %v2032 = vadd.f32 %v1884, %v2008
      %v2033 = vadd.f32 %v1885, %v2009
      %v2034 = vadd.f32 %v1886, %v2010
      %v2035 = vadd.f32 %v1887, %v2011
      %v2036 = vadd.f32 %v1888, %v2012
      %v2037 = vadd.f32 %v1889, %v2013
      %v2038 = vadd.f32 %v1890, %v2014
      %v2039 = vadd.f32 %v1891, %v2015
      %v2040 = vadd.f32 %v1892, %v2016
      %v2041 = vadd.f32 %v1893, %v2017
      %v2042 = vadd.f32 %v1894, %v2018
      %v2043 = vadd.f32 %v1895, %v2019
      %v2044 = vadd.f32 %v1896, %v2020
      %v2045 = vadd.f32 %v1897, %v2021
      %v2046 = vadd.f32 %v1898, %v2022
      %v2047 = vadd.f32 %v1899, %v2023
      %v2048 = vadd.f32 %v1900, %v2024
      %v2049 = vadd.f32 %v1901, %v2025
      %v2050 = vadd.f32 %v1902, %v2026
      %v2051 = vadd.f32 %v1903, %v2027
      %s2052 = scalar_lea.vmem %s0, 248
      %v2053 = vld [vmem:[%s2052] sm:$0x3f]
      %v2054 = vld [vmem:[%s2052 + $0x8] sm:$0x3f]
      %v2055 = vld [vmem:[%s2052 + $0x10] sm:$0x3f]
      %v2056 = vld [vmem:[%s2052 + $0x18] sm:$0x3f]
      %v2057 = vld [vmem:[%s2052 + $0x20] sm:$0x3f]
      %v2058 = vld [vmem:[%s2052 + $0x28] sm:$0x3f]
      %v2059 = vld [vmem:[%s2052 + $0x30] sm:$0x3f]
      %v2060 = vld [vmem:[%s2052 + $0x38] sm:$0x3f]
      %v2061 = vld [vmem:[%s2052 + $0x40] sm:$0x3f]
      %v2062 = vld [vmem:[%s2052 + $0x48] sm:$0x3f]
      %v2063 = vld [vmem:[%s2052 + $0x50] sm:$0x3f]
      %v2064 = vld [vmem:[%s2052 + $0x58] sm:$0x3f]
      %v2065 = vld [vmem:[%s2052 + $0x60] sm:$0x3f]
      %v2066 = vld [vmem:[%s2052 + $0x68] sm:$0x3f]
      %v2067 = vld [vmem:[%s2052 + $0x70] sm:$0x3f]
      %v2068 = vld [vmem:[%s2052 + $0x78] sm:$0x3f]
      %v2069 = vld [vmem:[%s2052 + $0x80] sm:$0x3f]
      %v2070 = vld [vmem:[%s2052 + $0x88] sm:$0x3f]
      %v2071 = vld [vmem:[%s2052 + $0x90] sm:$0x3f]
      %v2072 = vld [vmem:[%s2052 + $0x98] sm:$0x3f]
      %v2073 = vld [vmem:[%s2052 + $0xa0] sm:$0x3f]
      %v2074 = vld [vmem:[%s2052 + $0xa8] sm:$0x3f]
      %v2075 = vld [vmem:[%s2052 + $0xb0] sm:$0x3f]
      %v2076 = vld [vmem:[%s2052 + $0xb8] sm:$0x3f]
      %v2077 = vmul.f32 %v2053, %v2003
      %v2078 = vmul.f32 %v2054, %v2003
      %v2079 = vmul.f32 %v2055, %v2003
      %v2080 = vmul.f32 %v2056, %v2003
      %v2081 = vmul.f32 %v2057, %v2003
      %v2082 = vmul.f32 %v2058, %v2003
      %v2083 = vmul.f32 %v2059, %v2003
      %v2084 = vmul.f32 %v2060, %v2003
      %v2085 = vmul.f32 %v2061, %v2003
      %v2086 = vmul.f32 %v2062, %v2003
      %v2087 = vmul.f32 %v2063, %v2003
      %v2088 = vmul.f32 %v2064, %v2003
      %v2089 = vmul.f32 %v2065, %v2003
      %v2090 = vmul.f32 %v2066, %v2003
      %v2091 = vmul.f32 %v2067, %v2003
      %v2092 = vmul.f32 %v2068, %v2003
      %v2093 = vmul.f32 %v2069, %v2003
      %v2094 = vmul.f32 %v2070, %v2003
      %v2095 = vmul.f32 %v2071, %v2003
      %v2096 = vmul.f32 %v2072, %v2003
      %v2097 = vmul.f32 %v2073, %v2003
      %v2098 = vmul.f32 %v2074, %v2003
      %v2099 = vmul.f32 %v2075, %v2003
      %v2100 = vmul.f32 %v2076, %v2003
      %v2101 = vadd.f32 %v1952, %v2077
      %v2102 = vadd.f32 %v1953, %v2078
      %v2103 = vadd.f32 %v1954, %v2079
      %v2104 = vadd.f32 %v1955, %v2080
      %v2105 = vadd.f32 %v1956, %v2081
      %v2106 = vadd.f32 %v1957, %v2082
      %v2107 = vadd.f32 %v1958, %v2083
      %v2108 = vadd.f32 %v1959, %v2084
      %v2109 = vadd.f32 %v1960, %v2085
      %v2110 = vadd.f32 %v1961, %v2086
      %v2111 = vadd.f32 %v1962, %v2087
      %v2112 = vadd.f32 %v1963, %v2088
      %v2113 = vadd.f32 %v1964, %v2089
      %v2114 = vadd.f32 %v1965, %v2090
      %v2115 = vadd.f32 %v1966, %v2091
      %v2116 = vadd.f32 %v1967, %v2092
      %v2117 = vadd.f32 %v1968, %v2093
      %v2118 = vadd.f32 %v1969, %v2094
      %v2119 = vadd.f32 %v1970, %v2095
      %v2120 = vadd.f32 %v1971, %v2096
      %v2121 = vadd.f32 %v1972, %v2097
      %v2122 = vadd.f32 %v1973, %v2098
      %v2123 = vadd.f32 %v1974, %v2099
      %v2124 = vadd.f32 %v1975, %v2100
      %s2125 = sadd.s32 %s48, 16
      %s2126 = sld [smem:[#allocation2 + %s2125]]
      %v2127 = vstv %s2126
      %v2128 = vmul.f32 %v2053, %v2127
      %v2129 = vmul.f32 %v2054, %v2127
      %v2130 = vmul.f32 %v2055, %v2127
      %v2131 = vmul.f32 %v2056, %v2127
      %v2132 = vmul.f32 %v2057, %v2127
      %v2133 = vmul.f32 %v2058, %v2127
      %v2134 = vmul.f32 %v2059, %v2127
      %v2135 = vmul.f32 %v2060, %v2127
      %v2136 = vmul.f32 %v2061, %v2127
      %v2137 = vmul.f32 %v2062, %v2127
      %v2138 = vmul.f32 %v2063, %v2127
      %v2139 = vmul.f32 %v2064, %v2127
      %v2140 = vmul.f32 %v2065, %v2127
      %v2141 = vmul.f32 %v2066, %v2127
      %v2142 = vmul.f32 %v2067, %v2127
      %v2143 = vmul.f32 %v2068, %v2127
      %v2144 = vmul.f32 %v2069, %v2127
      %v2145 = vmul.f32 %v2070, %v2127
      %v2146 = vmul.f32 %v2071, %v2127
      %v2147 = vmul.f32 %v2072, %v2127
      %v2148 = vmul.f32 %v2073, %v2127
      %v2149 = vmul.f32 %v2074, %v2127
      %v2150 = vmul.f32 %v2075, %v2127
      %v2151 = vmul.f32 %v2076, %v2127
      %v2152 = vadd.f32 %v2028, %v2128
      %v2153 = vadd.f32 %v2029, %v2129
      %v2154 = vadd.f32 %v2030, %v2130
      %v2155 = vadd.f32 %v2031, %v2131
      %v2156 = vadd.f32 %v2032, %v2132
      %v2157 = vadd.f32 %v2033, %v2133
      %v2158 = vadd.f32 %v2034, %v2134
      %v2159 = vadd.f32 %v2035, %v2135
      %v2160 = vadd.f32 %v2036, %v2136
      %v2161 = vadd.f32 %v2037, %v2137
      %v2162 = vadd.f32 %v2038, %v2138
      %v2163 = vadd.f32 %v2039, %v2139
      %v2164 = vadd.f32 %v2040, %v2140
      %v2165 = vadd.f32 %v2041, %v2141
      %v2166 = vadd.f32 %v2042, %v2142
      %v2167 = vadd.f32 %v2043, %v2143
      %v2168 = vadd.f32 %v2044, %v2144
      %v2169 = vadd.f32 %v2045, %v2145
      %v2170 = vadd.f32 %v2046, %v2146
      %v2171 = vadd.f32 %v2047, %v2147
      %v2172 = vadd.f32 %v2048, %v2148
      %v2173 = vadd.f32 %v2049, %v2149
      %v2174 = vadd.f32 %v2050, %v2150
      %v2175 = vadd.f32 %v2051, %v2151
      %s2176 = scalar_lea.vmem %s0, 472
      %v2177 = vld [vmem:[%s2176] sm:$0x3f]
      %v2178 = vld [vmem:[%s2176 + $0x8] sm:$0x3f]
      %v2179 = vld [vmem:[%s2176 + $0x10] sm:$0x3f]
      %v2180 = vld [vmem:[%s2176 + $0x18] sm:$0x3f]
      %v2181 = vld [vmem:[%s2176 + $0x20] sm:$0x3f]
      %v2182 = vld [vmem:[%s2176 + $0x28] sm:$0x3f]
      %v2183 = vld [vmem:[%s2176 + $0x30] sm:$0x3f]
      %v2184 = vld [vmem:[%s2176 + $0x38] sm:$0x3f]
      %v2185 = vld [vmem:[%s2176 + $0x40] sm:$0x3f]
      %v2186 = vld [vmem:[%s2176 + $0x48] sm:$0x3f]
      %v2187 = vld [vmem:[%s2176 + $0x50] sm:$0x3f]
      %v2188 = vld [vmem:[%s2176 + $0x58] sm:$0x3f]
      %v2189 = vld [vmem:[%s2176 + $0x60] sm:$0x3f]
      %v2190 = vld [vmem:[%s2176 + $0x68] sm:$0x3f]
      %v2191 = vld [vmem:[%s2176 + $0x70] sm:$0x3f]
      %v2192 = vld [vmem:[%s2176 + $0x78] sm:$0x3f]
      %v2193 = vld [vmem:[%s2176 + $0x80] sm:$0x3f]
      %v2194 = vld [vmem:[%s2176 + $0x88] sm:$0x3f]
      %v2195 = vld [vmem:[%s2176 + $0x90] sm:$0x3f]
      %v2196 = vld [vmem:[%s2176 + $0x98] sm:$0x3f]
      %v2197 = vld [vmem:[%s2176 + $0xa0] sm:$0x3f]
      %v2198 = vld [vmem:[%s2176 + $0xa8] sm:$0x3f]
      %v2199 = vld [vmem:[%s2176 + $0xb0] sm:$0x3f]
      %v2200 = vld [vmem:[%s2176 + $0xb8] sm:$0x3f]
      %v2201 = vmul.f32 %v2177, %v2127
      %v2202 = vmul.f32 %v2178, %v2127
      %v2203 = vmul.f32 %v2179, %v2127
      %v2204 = vmul.f32 %v2180, %v2127
      %v2205 = vmul.f32 %v2181, %v2127
      %v2206 = vmul.f32 %v2182, %v2127
      %v2207 = vmul.f32 %v2183, %v2127
      %v2208 = vmul.f32 %v2184, %v2127
      %v2209 = vmul.f32 %v2185, %v2127
      %v2210 = vmul.f32 %v2186, %v2127
      %v2211 = vmul.f32 %v2187, %v2127
      %v2212 = vmul.f32 %v2188, %v2127
      %v2213 = vmul.f32 %v2189, %v2127
      %v2214 = vmul.f32 %v2190, %v2127
      %v2215 = vmul.f32 %v2191, %v2127
      %v2216 = vmul.f32 %v2192, %v2127
      %v2217 = vmul.f32 %v2193, %v2127
      %v2218 = vmul.f32 %v2194, %v2127
      %v2219 = vmul.f32 %v2195, %v2127
      %v2220 = vmul.f32 %v2196, %v2127
      %v2221 = vmul.f32 %v2197, %v2127
      %v2222 = vmul.f32 %v2198, %v2127
      %v2223 = vmul.f32 %v2199, %v2127
      %v2224 = vmul.f32 %v2200, %v2127
      %v2225 = vadd.f32 %v2101, %v2201
      %v2226 = vadd.f32 %v2102, %v2202
      %v2227 = vadd.f32 %v2103, %v2203
      %v2228 = vadd.f32 %v2104, %v2204
      %v2229 = vadd.f32 %v2105, %v2205
      %v2230 = vadd.f32 %v2106, %v2206
      %v2231 = vadd.f32 %v2107, %v2207
      %v2232 = vadd.f32 %v2108, %v2208
      %v2233 = vadd.f32 %v2109, %v2209
      %v2234 = vadd.f32 %v2110, %v2210
      %v2235 = vadd.f32 %v2111, %v2211
      %v2236 = vadd.f32 %v2112, %v2212
      %v2237 = vadd.f32 %v2113, %v2213
      %v2238 = vadd.f32 %v2114, %v2214
      %v2239 = vadd.f32 %v2115, %v2215
      %v2240 = vadd.f32 %v2116, %v2216
      %v2241 = vadd.f32 %v2117, %v2217
      %v2242 = vadd.f32 %v2118, %v2218
      %v2243 = vadd.f32 %v2119, %v2219
      %v2244 = vadd.f32 %v2120, %v2220
      %v2245 = vadd.f32 %v2121, %v2221
      %v2246 = vadd.f32 %v2122, %v2222
      %v2247 = vadd.f32 %v2123, %v2223
      %v2248 = vadd.f32 %v2124, %v2224
      %s2249 = sadd.s32 %s48, 17
      %s2250 = sld [smem:[#allocation2 + %s2249]]
      %v2251 = vstv %s2250
      %v2252 = vmul.f32 %v2177, %v2251
      %v2253 = vmul.f32 %v2178, %v2251
      %v2254 = vmul.f32 %v2179, %v2251
      %v2255 = vmul.f32 %v2180, %v2251
      %v2256 = vmul.f32 %v2181, %v2251
      %v2257 = vmul.f32 %v2182, %v2251
      %v2258 = vmul.f32 %v2183, %v2251
      %v2259 = vmul.f32 %v2184, %v2251
      %v2260 = vmul.f32 %v2185, %v2251
      %v2261 = vmul.f32 %v2186, %v2251
      %v2262 = vmul.f32 %v2187, %v2251
      %v2263 = vmul.f32 %v2188, %v2251
      %v2264 = vmul.f32 %v2189, %v2251
      %v2265 = vmul.f32 %v2190, %v2251
      %v2266 = vmul.f32 %v2191, %v2251
      %v2267 = vmul.f32 %v2192, %v2251
      %v2268 = vmul.f32 %v2193, %v2251
      %v2269 = vmul.f32 %v2194, %v2251
      %v2270 = vmul.f32 %v2195, %v2251
      %v2271 = vmul.f32 %v2196, %v2251
      %v2272 = vmul.f32 %v2197, %v2251
      %v2273 = vmul.f32 %v2198, %v2251
      %v2274 = vmul.f32 %v2199, %v2251
      %v2275 = vmul.f32 %v2200, %v2251
      %v2276 = vadd.f32 %v2152, %v2252
      %v2277 = vadd.f32 %v2153, %v2253
      %v2278 = vadd.f32 %v2154, %v2254
      %v2279 = vadd.f32 %v2155, %v2255
      %v2280 = vadd.f32 %v2156, %v2256
      %v2281 = vadd.f32 %v2157, %v2257
      %v2282 = vadd.f32 %v2158, %v2258
      %v2283 = vadd.f32 %v2159, %v2259
      %v2284 = vadd.f32 %v2160, %v2260
      %v2285 = vadd.f32 %v2161, %v2261
      %v2286 = vadd.f32 %v2162, %v2262
      %v2287 = vadd.f32 %v2163, %v2263
      %v2288 = vadd.f32 %v2164, %v2264
      %v2289 = vadd.f32 %v2165, %v2265
      %v2290 = vadd.f32 %v2166, %v2266
      %v2291 = vadd.f32 %v2167, %v2267
      %v2292 = vadd.f32 %v2168, %v2268
      %v2293 = vadd.f32 %v2169, %v2269
      %v2294 = vadd.f32 %v2170, %v2270
      %v2295 = vadd.f32 %v2171, %v2271
      %v2296 = vadd.f32 %v2172, %v2272
      %v2297 = vadd.f32 %v2173, %v2273
      %v2298 = vadd.f32 %v2174, %v2274
      %v2299 = vadd.f32 %v2175, %v2275
      %s2300 = scalar_lea.vmem %s0, 696
      %v2301 = vld [vmem:[%s2300] sm:$0x3f]
      %v2302 = vld [vmem:[%s2300 + $0x8] sm:$0x3f]
      %v2303 = vld [vmem:[%s2300 + $0x10] sm:$0x3f]
      %v2304 = vld [vmem:[%s2300 + $0x18] sm:$0x3f]
      %v2305 = vld [vmem:[%s2300 + $0x20] sm:$0x3f]
      %v2306 = vld [vmem:[%s2300 + $0x28] sm:$0x3f]
      %v2307 = vld [vmem:[%s2300 + $0x30] sm:$0x3f]
      %v2308 = vld [vmem:[%s2300 + $0x38] sm:$0x3f]
      %v2309 = vld [vmem:[%s2300 + $0x40] sm:$0x3f]
      %v2310 = vld [vmem:[%s2300 + $0x48] sm:$0x3f]
      %v2311 = vld [vmem:[%s2300 + $0x50] sm:$0x3f]
      %v2312 = vld [vmem:[%s2300 + $0x58] sm:$0x3f]
      %v2313 = vld [vmem:[%s2300 + $0x60] sm:$0x3f]
      %v2314 = vld [vmem:[%s2300 + $0x68] sm:$0x3f]
      %v2315 = vld [vmem:[%s2300 + $0x70] sm:$0x3f]
      %v2316 = vld [vmem:[%s2300 + $0x78] sm:$0x3f]
      %v2317 = vld [vmem:[%s2300 + $0x80] sm:$0x3f]
      %v2318 = vld [vmem:[%s2300 + $0x88] sm:$0x3f]
      %v2319 = vld [vmem:[%s2300 + $0x90] sm:$0x3f]
      %v2320 = vld [vmem:[%s2300 + $0x98] sm:$0x3f]
      %v2321 = vld [vmem:[%s2300 + $0xa0] sm:$0x3f]
      %v2322 = vld [vmem:[%s2300 + $0xa8] sm:$0x3f]
      %v2323 = vld [vmem:[%s2300 + $0xb0] sm:$0x3f]
      %v2324 = vld [vmem:[%s2300 + $0xb8] sm:$0x3f]
      %v2325 = vmul.f32 %v2301, %v2251
      %v2326 = vmul.f32 %v2302, %v2251
      %v2327 = vmul.f32 %v2303, %v2251
      %v2328 = vmul.f32 %v2304, %v2251
      %v2329 = vmul.f32 %v2305, %v2251
      %v2330 = vmul.f32 %v2306, %v2251
      %v2331 = vmul.f32 %v2307, %v2251
      %v2332 = vmul.f32 %v2308, %v2251
      %v2333 = vmul.f32 %v2309, %v2251
      %v2334 = vmul.f32 %v2310, %v2251
      %v2335 = vmul.f32 %v2311, %v2251
      %v2336 = vmul.f32 %v2312, %v2251
      %v2337 = vmul.f32 %v2313, %v2251
      %v2338 = vmul.f32 %v2314, %v2251
      %v2339 = vmul.f32 %v2315, %v2251
      %v2340 = vmul.f32 %v2316, %v2251
      %v2341 = vmul.f32 %v2317, %v2251
      %v2342 = vmul.f32 %v2318, %v2251
      %v2343 = vmul.f32 %v2319, %v2251
      %v2344 = vmul.f32 %v2320, %v2251
      %v2345 = vmul.f32 %v2321, %v2251
      %v2346 = vmul.f32 %v2322, %v2251
      %v2347 = vmul.f32 %v2323, %v2251
      %v2348 = vmul.f32 %v2324, %v2251
      %v2349 = vadd.f32 %v2225, %v2325
      %v2350 = vadd.f32 %v2226, %v2326
      %v2351 = vadd.f32 %v2227, %v2327
      %v2352 = vadd.f32 %v2228, %v2328
      %v2353 = vadd.f32 %v2229, %v2329
      %v2354 = vadd.f32 %v2230, %v2330
      %v2355 = vadd.f32 %v2231, %v2331
      %v2356 = vadd.f32 %v2232, %v2332
      %v2357 = vadd.f32 %v2233, %v2333
      %v2358 = vadd.f32 %v2234, %v2334
      %v2359 = vadd.f32 %v2235, %v2335
      %v2360 = vadd.f32 %v2236, %v2336
      %v2361 = vadd.f32 %v2237, %v2337
      %v2362 = vadd.f32 %v2238, %v2338
      %v2363 = vadd.f32 %v2239, %v2339
      %v2364 = vadd.f32 %v2240, %v2340
      %v2365 = vadd.f32 %v2241, %v2341
      %v2366 = vadd.f32 %v2242, %v2342
      %v2367 = vadd.f32 %v2243, %v2343
      %v2368 = vadd.f32 %v2244, %v2344
      %v2369 = vadd.f32 %v2245, %v2345
      %v2370 = vadd.f32 %v2246, %v2346
      %v2371 = vadd.f32 %v2247, %v2347
      %v2372 = vadd.f32 %v2248, %v2348
      %s2373 = sadd.s32 %s48, 18
      %s2374 = sld [smem:[#allocation2 + %s2373]]
      %v2375 = vstv %s2374
      %v2376 = vmul.f32 %v2301, %v2375
      %v2377 = vmul.f32 %v2302, %v2375
      %v2378 = vmul.f32 %v2303, %v2375
      %v2379 = vmul.f32 %v2304, %v2375
      %v2380 = vmul.f32 %v2305, %v2375
      %v2381 = vmul.f32 %v2306, %v2375
      %v2382 = vmul.f32 %v2307, %v2375
      %v2383 = vmul.f32 %v2308, %v2375
      %v2384 = vmul.f32 %v2309, %v2375
      %v2385 = vmul.f32 %v2310, %v2375
      %v2386 = vmul.f32 %v2311, %v2375
      %v2387 = vmul.f32 %v2312, %v2375
      %v2388 = vmul.f32 %v2313, %v2375
      %v2389 = vmul.f32 %v2314, %v2375
      %v2390 = vmul.f32 %v2315, %v2375
      %v2391 = vmul.f32 %v2316, %v2375
      %v2392 = vmul.f32 %v2317, %v2375
      %v2393 = vmul.f32 %v2318, %v2375
      %v2394 = vmul.f32 %v2319, %v2375
      %v2395 = vmul.f32 %v2320, %v2375
      %v2396 = vmul.f32 %v2321, %v2375
      %v2397 = vmul.f32 %v2322, %v2375
      %v2398 = vmul.f32 %v2323, %v2375
      %v2399 = vmul.f32 %v2324, %v2375
      %v2400 = vadd.f32 %v2276, %v2376
      %v2401 = vadd.f32 %v2277, %v2377
      %v2402 = vadd.f32 %v2278, %v2378
      %v2403 = vadd.f32 %v2279, %v2379
      %v2404 = vadd.f32 %v2280, %v2380
      %v2405 = vadd.f32 %v2281, %v2381
      %v2406 = vadd.f32 %v2282, %v2382
      %v2407 = vadd.f32 %v2283, %v2383
      %v2408 = vadd.f32 %v2284, %v2384
      %v2409 = vadd.f32 %v2285, %v2385
      %v2410 = vadd.f32 %v2286, %v2386
      %v2411 = vadd.f32 %v2287, %v2387
      %v2412 = vadd.f32 %v2288, %v2388
      %v2413 = vadd.f32 %v2289, %v2389
      %v2414 = vadd.f32 %v2290, %v2390
      %v2415 = vadd.f32 %v2291, %v2391
      %v2416 = vadd.f32 %v2292, %v2392
      %v2417 = vadd.f32 %v2293, %v2393
      %v2418 = vadd.f32 %v2294, %v2394
      %v2419 = vadd.f32 %v2295, %v2395
      %v2420 = vadd.f32 %v2296, %v2396
      %v2421 = vadd.f32 %v2297, %v2397
      %v2422 = vadd.f32 %v2298, %v2398
      %v2423 = vadd.f32 %v2299, %v2399
      %v2424 = vld [vmem:[%s1978 + $0x1] sm:$0x3f]
      %v2425 = vld [vmem:[%s1978 + $0x9] sm:$0x3f]
      %v2426 = vld [vmem:[%s1978 + $0x11] sm:$0x3f]
      %v2427 = vld [vmem:[%s1978 + $0x19] sm:$0x3f]
      %v2428 = vld [vmem:[%s1978 + $0x21] sm:$0x3f]
      %v2429 = vld [vmem:[%s1978 + $0x29] sm:$0x3f]
      %v2430 = vld [vmem:[%s1978 + $0x31] sm:$0x3f]
      %v2431 = vld [vmem:[%s1978 + $0x39] sm:$0x3f]
      %v2432 = vld [vmem:[%s1978 + $0x41] sm:$0x3f]
      %v2433 = vld [vmem:[%s1978 + $0x49] sm:$0x3f]
      %v2434 = vld [vmem:[%s1978 + $0x51] sm:$0x3f]
      %v2435 = vld [vmem:[%s1978 + $0x59] sm:$0x3f]
      %v2436 = vld [vmem:[%s1978 + $0x61] sm:$0x3f]
      %v2437 = vld [vmem:[%s1978 + $0x69] sm:$0x3f]
      %v2438 = vld [vmem:[%s1978 + $0x71] sm:$0x3f]
      %v2439 = vld [vmem:[%s1978 + $0x79] sm:$0x3f]
      %v2440 = vld [vmem:[%s1978 + $0x81] sm:$0x3f]
      %v2441 = vld [vmem:[%s1978 + $0x89] sm:$0x3f]
      %v2442 = vld [vmem:[%s1978 + $0x91] sm:$0x3f]
      %v2443 = vld [vmem:[%s1978 + $0x99] sm:$0x3f]
      %v2444 = vld [vmem:[%s1978 + $0xa1] sm:$0x3f]
      %v2445 = vld [vmem:[%s1978 + $0xa9] sm:$0x3f]
      %v2446 = vld [vmem:[%s1978 + $0xb1] sm:$0x3f]
      %v2447 = vld [vmem:[%s1978 + $0xb9] sm:$0x3f]
      %v2448 = vmul.f32 %v2424, %v2375
      %v2449 = vmul.f32 %v2425, %v2375
      %v2450 = vmul.f32 %v2426, %v2375
      %v2451 = vmul.f32 %v2427, %v2375
      %v2452 = vmul.f32 %v2428, %v2375
      %v2453 = vmul.f32 %v2429, %v2375
      %v2454 = vmul.f32 %v2430, %v2375
      %v2455 = vmul.f32 %v2431, %v2375
      %v2456 = vmul.f32 %v2432, %v2375
      %v2457 = vmul.f32 %v2433, %v2375
      %v2458 = vmul.f32 %v2434, %v2375
      %v2459 = vmul.f32 %v2435, %v2375
      %v2460 = vmul.f32 %v2436, %v2375
      %v2461 = vmul.f32 %v2437, %v2375
      %v2462 = vmul.f32 %v2438, %v2375
      %v2463 = vmul.f32 %v2439, %v2375
      %v2464 = vmul.f32 %v2440, %v2375
      %v2465 = vmul.f32 %v2441, %v2375
      %v2466 = vmul.f32 %v2442, %v2375
      %v2467 = vmul.f32 %v2443, %v2375
      %v2468 = vmul.f32 %v2444, %v2375
      %v2469 = vmul.f32 %v2445, %v2375
      %v2470 = vmul.f32 %v2446, %v2375
      %v2471 = vmul.f32 %v2447, %v2375
      %v2472 = vadd.f32 %v2349, %v2448
      %v2473 = vadd.f32 %v2350, %v2449
      %v2474 = vadd.f32 %v2351, %v2450
      %v2475 = vadd.f32 %v2352, %v2451
      %v2476 = vadd.f32 %v2353, %v2452
      %v2477 = vadd.f32 %v2354, %v2453
      %v2478 = vadd.f32 %v2355, %v2454
      %v2479 = vadd.f32 %v2356, %v2455
      %v2480 = vadd.f32 %v2357, %v2456
      %v2481 = vadd.f32 %v2358, %v2457
      %v2482 = vadd.f32 %v2359, %v2458
      %v2483 = vadd.f32 %v2360, %v2459
      %v2484 = vadd.f32 %v2361, %v2460
      %v2485 = vadd.f32 %v2362, %v2461
      %v2486 = vadd.f32 %v2363, %v2462
      %v2487 = vadd.f32 %v2364, %v2463
      %v2488 = vadd.f32 %v2365, %v2464
      %v2489 = vadd.f32 %v2366, %v2465
      %v2490 = vadd.f32 %v2367, %v2466
      %v2491 = vadd.f32 %v2368, %v2467
      %v2492 = vadd.f32 %v2369, %v2468
      %v2493 = vadd.f32 %v2370, %v2469
      %v2494 = vadd.f32 %v2371, %v2470
      %v2495 = vadd.f32 %v2372, %v2471
      %s2496 = sadd.s32 %s48, 19
      %s2497 = sld [smem:[#allocation2 + %s2496]]
      %v2498 = vstv %s2497
      %v2499 = vmul.f32 %v2424, %v2498
      %v2500 = vmul.f32 %v2425, %v2498
      %v2501 = vmul.f32 %v2426, %v2498
      %v2502 = vmul.f32 %v2427, %v2498
      %v2503 = vmul.f32 %v2428, %v2498
      %v2504 = vmul.f32 %v2429, %v2498
      %v2505 = vmul.f32 %v2430, %v2498
      %v2506 = vmul.f32 %v2431, %v2498
      %v2507 = vmul.f32 %v2432, %v2498
      %v2508 = vmul.f32 %v2433, %v2498
      %v2509 = vmul.f32 %v2434, %v2498
      %v2510 = vmul.f32 %v2435, %v2498
      %v2511 = vmul.f32 %v2436, %v2498
      %v2512 = vmul.f32 %v2437, %v2498
      %v2513 = vmul.f32 %v2438, %v2498
      %v2514 = vmul.f32 %v2439, %v2498
      %v2515 = vmul.f32 %v2440, %v2498
      %v2516 = vmul.f32 %v2441, %v2498
      %v2517 = vmul.f32 %v2442, %v2498
      %v2518 = vmul.f32 %v2443, %v2498
      %v2519 = vmul.f32 %v2444, %v2498
      %v2520 = vmul.f32 %v2445, %v2498
      %v2521 = vmul.f32 %v2446, %v2498
      %v2522 = vmul.f32 %v2447, %v2498
      %v2523 = vadd.f32 %v2400, %v2499
      %v2524 = vadd.f32 %v2401, %v2500
      %v2525 = vadd.f32 %v2402, %v2501
      %v2526 = vadd.f32 %v2403, %v2502
      %v2527 = vadd.f32 %v2404, %v2503
      %v2528 = vadd.f32 %v2405, %v2504
      %v2529 = vadd.f32 %v2406, %v2505
      %v2530 = vadd.f32 %v2407, %v2506
      %v2531 = vadd.f32 %v2408, %v2507
      %v2532 = vadd.f32 %v2409, %v2508
      %v2533 = vadd.f32 %v2410, %v2509
      %v2534 = vadd.f32 %v2411, %v2510
      %v2535 = vadd.f32 %v2412, %v2511
      %v2536 = vadd.f32 %v2413, %v2512
      %v2537 = vadd.f32 %v2414, %v2513
      %v2538 = vadd.f32 %v2415, %v2514
      %v2539 = vadd.f32 %v2416, %v2515
      %v2540 = vadd.f32 %v2417, %v2516
      %v2541 = vadd.f32 %v2418, %v2517
      %v2542 = vadd.f32 %v2419, %v2518
      %v2543 = vadd.f32 %v2420, %v2519
      %v2544 = vadd.f32 %v2421, %v2520
      %v2545 = vadd.f32 %v2422, %v2521
      %v2546 = vadd.f32 %v2423, %v2522
      %v2547 = vld [vmem:[%s2052 + $0x1] sm:$0x3f]
      %v2548 = vld [vmem:[%s2052 + $0x9] sm:$0x3f]
      %v2549 = vld [vmem:[%s2052 + $0x11] sm:$0x3f]
      %v2550 = vld [vmem:[%s2052 + $0x19] sm:$0x3f]
      %v2551 = vld [vmem:[%s2052 + $0x21] sm:$0x3f]
      %v2552 = vld [vmem:[%s2052 + $0x29] sm:$0x3f]
      %v2553 = vld [vmem:[%s2052 + $0x31] sm:$0x3f]
      %v2554 = vld [vmem:[%s2052 + $0x39] sm:$0x3f]
      %v2555 = vld [vmem:[%s2052 + $0x41] sm:$0x3f]
      %v2556 = vld [vmem:[%s2052 + $0x49] sm:$0x3f]
      %v2557 = vld [vmem:[%s2052 + $0x51] sm:$0x3f]
      %v2558 = vld [vmem:[%s2052 + $0x59] sm:$0x3f]
      %v2559 = vld [vmem:[%s2052 + $0x61] sm:$0x3f]
      %v2560 = vld [vmem:[%s2052 + $0x69] sm:$0x3f]
      %v2561 = vld [vmem:[%s2052 + $0x71] sm:$0x3f]
      %v2562 = vld [vmem:[%s2052 + $0x79] sm:$0x3f]
      %v2563 = vld [vmem:[%s2052 + $0x81] sm:$0x3f]
      %v2564 = vld [vmem:[%s2052 + $0x89] sm:$0x3f]
      %v2565 = vld [vmem:[%s2052 + $0x91] sm:$0x3f]
      %v2566 = vld [vmem:[%s2052 + $0x99] sm:$0x3f]
      %v2567 = vld [vmem:[%s2052 + $0xa1] sm:$0x3f]
      %v2568 = vld [vmem:[%s2052 + $0xa9] sm:$0x3f]
      %v2569 = vld [vmem:[%s2052 + $0xb1] sm:$0x3f]
      %v2570 = vld [vmem:[%s2052 + $0xb9] sm:$0x3f]
      %v2571 = vmul.f32 %v2547, %v2498
      %v2572 = vmul.f32 %v2548, %v2498
      %v2573 = vmul.f32 %v2549, %v2498
      %v2574 = vmul.f32 %v2550, %v2498
      %v2575 = vmul.f32 %v2551, %v2498
      %v2576 = vmul.f32 %v2552, %v2498
      %v2577 = vmul.f32 %v2553, %v2498
      %v2578 = vmul.f32 %v2554, %v2498
      %v2579 = vmul.f32 %v2555, %v2498
      %v2580 = vmul.f32 %v2556, %v2498
      %v2581 = vmul.f32 %v2557, %v2498
      %v2582 = vmul.f32 %v2558, %v2498
      %v2583 = vmul.f32 %v2559, %v2498
      %v2584 = vmul.f32 %v2560, %v2498
      %v2585 = vmul.f32 %v2561, %v2498
      %v2586 = vmul.f32 %v2562, %v2498
      %v2587 = vmul.f32 %v2563, %v2498
      %v2588 = vmul.f32 %v2564, %v2498
      %v2589 = vmul.f32 %v2565, %v2498
      %v2590 = vmul.f32 %v2566, %v2498
      %v2591 = vmul.f32 %v2567, %v2498
      %v2592 = vmul.f32 %v2568, %v2498
      %v2593 = vmul.f32 %v2569, %v2498
      %v2594 = vmul.f32 %v2570, %v2498
      %v2595 = vadd.f32 %v2472, %v2571
      %v2596 = vadd.f32 %v2473, %v2572
      %v2597 = vadd.f32 %v2474, %v2573
      %v2598 = vadd.f32 %v2475, %v2574
      %v2599 = vadd.f32 %v2476, %v2575
      %v2600 = vadd.f32 %v2477, %v2576
      %v2601 = vadd.f32 %v2478, %v2577
      %v2602 = vadd.f32 %v2479, %v2578
      %v2603 = vadd.f32 %v2480, %v2579
      %v2604 = vadd.f32 %v2481, %v2580
      %v2605 = vadd.f32 %v2482, %v2581
      %v2606 = vadd.f32 %v2483, %v2582
      %v2607 = vadd.f32 %v2484, %v2583
      %v2608 = vadd.f32 %v2485, %v2584
      %v2609 = vadd.f32 %v2486, %v2585
      %v2610 = vadd.f32 %v2487, %v2586
      %v2611 = vadd.f32 %v2488, %v2587
      %v2612 = vadd.f32 %v2489, %v2588
      %v2613 = vadd.f32 %v2490, %v2589
      %v2614 = vadd.f32 %v2491, %v2590
      %v2615 = vadd.f32 %v2492, %v2591
      %v2616 = vadd.f32 %v2493, %v2592
      %v2617 = vadd.f32 %v2494, %v2593
      %v2618 = vadd.f32 %v2495, %v2594
      %s2619 = sadd.s32 %s48, 20
      %s2620 = sld [smem:[#allocation2 + %s2619]]
      %s2621 = scalar_lea.vmem %s0, 32
      %v2622 = vld [vmem:[%s2621] sm:$0x3f]
      %v2623 = vld [vmem:[%s2621 + $0x8] sm:$0x3f]
      %v2624 = vld [vmem:[%s2621 + $0x10] sm:$0x3f]
      %v2625 = vld [vmem:[%s2621 + $0x18] sm:$0x3f]
      %v2626 = vld [vmem:[%s2621 + $0x20] sm:$0x3f]
      %v2627 = vld [vmem:[%s2621 + $0x28] sm:$0x3f]
      %v2628 = vld [vmem:[%s2621 + $0x30] sm:$0x3f]
      %v2629 = vld [vmem:[%s2621 + $0x38] sm:$0x3f]
      %v2630 = vld [vmem:[%s2621 + $0x40] sm:$0x3f]
      %v2631 = vld [vmem:[%s2621 + $0x48] sm:$0x3f]
      %v2632 = vld [vmem:[%s2621 + $0x50] sm:$0x3f]
      %v2633 = vld [vmem:[%s2621 + $0x58] sm:$0x3f]
      %v2634 = vld [vmem:[%s2621 + $0x60] sm:$0x3f]
      %v2635 = vld [vmem:[%s2621 + $0x68] sm:$0x3f]
      %v2636 = vld [vmem:[%s2621 + $0x70] sm:$0x3f]
      %v2637 = vld [vmem:[%s2621 + $0x78] sm:$0x3f]
      %v2638 = vld [vmem:[%s2621 + $0x80] sm:$0x3f]
      %v2639 = vld [vmem:[%s2621 + $0x88] sm:$0x3f]
      %v2640 = vld [vmem:[%s2621 + $0x90] sm:$0x3f]
      %v2641 = vld [vmem:[%s2621 + $0x98] sm:$0x3f]
      %v2642 = vld [vmem:[%s2621 + $0xa0] sm:$0x3f]
      %v2643 = vld [vmem:[%s2621 + $0xa8] sm:$0x3f]
      %v2644 = vld [vmem:[%s2621 + $0xb0] sm:$0x3f]
      %v2645 = vld [vmem:[%s2621 + $0xb8] sm:$0x3f]
      %v2646 = vstv %s2620
      %v2647 = vmul.f32 %v2622, %v2646
      %v2648 = vmul.f32 %v2623, %v2646
      %v2649 = vmul.f32 %v2624, %v2646
      %v2650 = vmul.f32 %v2625, %v2646
      %v2651 = vmul.f32 %v2626, %v2646
      %v2652 = vmul.f32 %v2627, %v2646
      %v2653 = vmul.f32 %v2628, %v2646
      %v2654 = vmul.f32 %v2629, %v2646
      %v2655 = vmul.f32 %v2630, %v2646
      %v2656 = vmul.f32 %v2631, %v2646
      %v2657 = vmul.f32 %v2632, %v2646
      %v2658 = vmul.f32 %v2633, %v2646
      %v2659 = vmul.f32 %v2634, %v2646
      %v2660 = vmul.f32 %v2635, %v2646
      %v2661 = vmul.f32 %v2636, %v2646
      %v2662 = vmul.f32 %v2637, %v2646
      %v2663 = vmul.f32 %v2638, %v2646
      %v2664 = vmul.f32 %v2639, %v2646
      %v2665 = vmul.f32 %v2640, %v2646
      %v2666 = vmul.f32 %v2641, %v2646
      %v2667 = vmul.f32 %v2642, %v2646
      %v2668 = vmul.f32 %v2643, %v2646
      %v2669 = vmul.f32 %v2644, %v2646
      %v2670 = vmul.f32 %v2645, %v2646
      %v2671 = vadd.f32 %v2523, %v2647
      %v2672 = vadd.f32 %v2524, %v2648
      %v2673 = vadd.f32 %v2525, %v2649
      %v2674 = vadd.f32 %v2526, %v2650
      %v2675 = vadd.f32 %v2527, %v2651
      %v2676 = vadd.f32 %v2528, %v2652
      %v2677 = vadd.f32 %v2529, %v2653
      %v2678 = vadd.f32 %v2530, %v2654
      %v2679 = vadd.f32 %v2531, %v2655
      %v2680 = vadd.f32 %v2532, %v2656
      %v2681 = vadd.f32 %v2533, %v2657
      %v2682 = vadd.f32 %v2534, %v2658
      %v2683 = vadd.f32 %v2535, %v2659
      %v2684 = vadd.f32 %v2536, %v2660
      %v2685 = vadd.f32 %v2537, %v2661
      %v2686 = vadd.f32 %v2538, %v2662
      %v2687 = vadd.f32 %v2539, %v2663
      %v2688 = vadd.f32 %v2540, %v2664
      %v2689 = vadd.f32 %v2541, %v2665
      %v2690 = vadd.f32 %v2542, %v2666
      %v2691 = vadd.f32 %v2543, %v2667
      %v2692 = vadd.f32 %v2544, %v2668
      %v2693 = vadd.f32 %v2545, %v2669
      %v2694 = vadd.f32 %v2546, %v2670
      %s2695 = scalar_lea.vmem %s0, 256
      %v2696 = vld [vmem:[%s2695] sm:$0x3f]
      %v2697 = vld [vmem:[%s2695 + $0x8] sm:$0x3f]
      %v2698 = vld [vmem:[%s2695 + $0x10] sm:$0x3f]
      %v2699 = vld [vmem:[%s2695 + $0x18] sm:$0x3f]
      %v2700 = vld [vmem:[%s2695 + $0x20] sm:$0x3f]
      %v2701 = vld [vmem:[%s2695 + $0x28] sm:$0x3f]
      %v2702 = vld [vmem:[%s2695 + $0x30] sm:$0x3f]
      %v2703 = vld [vmem:[%s2695 + $0x38] sm:$0x3f]
      %v2704 = vld [vmem:[%s2695 + $0x40] sm:$0x3f]
      %v2705 = vld [vmem:[%s2695 + $0x48] sm:$0x3f]
      %v2706 = vld [vmem:[%s2695 + $0x50] sm:$0x3f]
      %v2707 = vld [vmem:[%s2695 + $0x58] sm:$0x3f]
      %v2708 = vld [vmem:[%s2695 + $0x60] sm:$0x3f]
      %v2709 = vld [vmem:[%s2695 + $0x68] sm:$0x3f]
      %v2710 = vld [vmem:[%s2695 + $0x70] sm:$0x3f]
      %v2711 = vld [vmem:[%s2695 + $0x78] sm:$0x3f]
      %v2712 = vld [vmem:[%s2695 + $0x80] sm:$0x3f]
      %v2713 = vld [vmem:[%s2695 + $0x88] sm:$0x3f]
      %v2714 = vld [vmem:[%s2695 + $0x90] sm:$0x3f]
      %v2715 = vld [vmem:[%s2695 + $0x98] sm:$0x3f]
      %v2716 = vld [vmem:[%s2695 + $0xa0] sm:$0x3f]
      %v2717 = vld [vmem:[%s2695 + $0xa8] sm:$0x3f]
      %v2718 = vld [vmem:[%s2695 + $0xb0] sm:$0x3f]
      %v2719 = vld [vmem:[%s2695 + $0xb8] sm:$0x3f]
      %v2720 = vmul.f32 %v2696, %v2646
      %v2721 = vmul.f32 %v2697, %v2646
      %v2722 = vmul.f32 %v2698, %v2646
      %v2723 = vmul.f32 %v2699, %v2646
      %v2724 = vmul.f32 %v2700, %v2646
      %v2725 = vmul.f32 %v2701, %v2646
      %v2726 = vmul.f32 %v2702, %v2646
      %v2727 = vmul.f32 %v2703, %v2646
      %v2728 = vmul.f32 %v2704, %v2646
      %v2729 = vmul.f32 %v2705, %v2646
      %v2730 = vmul.f32 %v2706, %v2646
      %v2731 = vmul.f32 %v2707, %v2646
      %v2732 = vmul.f32 %v2708, %v2646
      %v2733 = vmul.f32 %v2709, %v2646
      %v2734 = vmul.f32 %v2710, %v2646
      %v2735 = vmul.f32 %v2711, %v2646
      %v2736 = vmul.f32 %v2712, %v2646
      %v2737 = vmul.f32 %v2713, %v2646
      %v2738 = vmul.f32 %v2714, %v2646
      %v2739 = vmul.f32 %v2715, %v2646
      %v2740 = vmul.f32 %v2716, %v2646
      %v2741 = vmul.f32 %v2717, %v2646
      %v2742 = vmul.f32 %v2718, %v2646
      %v2743 = vmul.f32 %v2719, %v2646
      %v2744 = vadd.f32 %v2595, %v2720
      %v2745 = vadd.f32 %v2596, %v2721
      %v2746 = vadd.f32 %v2597, %v2722
      %v2747 = vadd.f32 %v2598, %v2723
      %v2748 = vadd.f32 %v2599, %v2724
      %v2749 = vadd.f32 %v2600, %v2725
      %v2750 = vadd.f32 %v2601, %v2726
      %v2751 = vadd.f32 %v2602, %v2727
      %v2752 = vadd.f32 %v2603, %v2728
      %v2753 = vadd.f32 %v2604, %v2729
      %v2754 = vadd.f32 %v2605, %v2730
      %v2755 = vadd.f32 %v2606, %v2731
      %v2756 = vadd.f32 %v2607, %v2732
      %v2757 = vadd.f32 %v2608, %v2733
      %v2758 = vadd.f32 %v2609, %v2734
      %v2759 = vadd.f32 %v2610, %v2735
      %v2760 = vadd.f32 %v2611, %v2736
      %v2761 = vadd.f32 %v2612, %v2737
      %v2762 = vadd.f32 %v2613, %v2738
      %v2763 = vadd.f32 %v2614, %v2739
      %v2764 = vadd.f32 %v2615, %v2740
      %v2765 = vadd.f32 %v2616, %v2741
      %v2766 = vadd.f32 %v2617, %v2742
      %v2767 = vadd.f32 %v2618, %v2743
      %s2768 = sadd.s32 %s48, 21
      %s2769 = sld [smem:[#allocation2 + %s2768]]
      %v2770 = vstv %s2769
      %v2771 = vmul.f32 %v2696, %v2770
      %v2772 = vmul.f32 %v2697, %v2770
      %v2773 = vmul.f32 %v2698, %v2770
      %v2774 = vmul.f32 %v2699, %v2770
      %v2775 = vmul.f32 %v2700, %v2770
      %v2776 = vmul.f32 %v2701, %v2770
      %v2777 = vmul.f32 %v2702, %v2770
      %v2778 = vmul.f32 %v2703, %v2770
      %v2779 = vmul.f32 %v2704, %v2770
      %v2780 = vmul.f32 %v2705, %v2770
      %v2781 = vmul.f32 %v2706, %v2770
      %v2782 = vmul.f32 %v2707, %v2770
      %v2783 = vmul.f32 %v2708, %v2770
      %v2784 = vmul.f32 %v2709, %v2770
      %v2785 = vmul.f32 %v2710, %v2770
      %v2786 = vmul.f32 %v2711, %v2770
      %v2787 = vmul.f32 %v2712, %v2770
      %v2788 = vmul.f32 %v2713, %v2770
      %v2789 = vmul.f32 %v2714, %v2770
      %v2790 = vmul.f32 %v2715, %v2770
      %v2791 = vmul.f32 %v2716, %v2770
      %v2792 = vmul.f32 %v2717, %v2770
      %v2793 = vmul.f32 %v2718, %v2770
      %v2794 = vmul.f32 %v2719, %v2770
      %v2795 = vadd.f32 %v2671, %v2771
      %v2796 = vadd.f32 %v2672, %v2772
      %v2797 = vadd.f32 %v2673, %v2773
      %v2798 = vadd.f32 %v2674, %v2774
      %v2799 = vadd.f32 %v2675, %v2775
      %v2800 = vadd.f32 %v2676, %v2776
      %v2801 = vadd.f32 %v2677, %v2777
      %v2802 = vadd.f32 %v2678, %v2778
      %v2803 = vadd.f32 %v2679, %v2779
      %v2804 = vadd.f32 %v2680, %v2780
      %v2805 = vadd.f32 %v2681, %v2781
      %v2806 = vadd.f32 %v2682, %v2782
      %v2807 = vadd.f32 %v2683, %v2783
      %v2808 = vadd.f32 %v2684, %v2784
      %v2809 = vadd.f32 %v2685, %v2785
      %v2810 = vadd.f32 %v2686, %v2786
      %v2811 = vadd.f32 %v2687, %v2787
      %v2812 = vadd.f32 %v2688, %v2788
      %v2813 = vadd.f32 %v2689, %v2789
      %v2814 = vadd.f32 %v2690, %v2790
      %v2815 = vadd.f32 %v2691, %v2791
      %v2816 = vadd.f32 %v2692, %v2792
      %v2817 = vadd.f32 %v2693, %v2793
      %v2818 = vadd.f32 %v2694, %v2794
      %s2819 = scalar_lea.vmem %s0, 480
      %v2820 = vld [vmem:[%s2819] sm:$0x3f]
      %v2821 = vld [vmem:[%s2819 + $0x8] sm:$0x3f]
      %v2822 = vld [vmem:[%s2819 + $0x10] sm:$0x3f]
      %v2823 = vld [vmem:[%s2819 + $0x18] sm:$0x3f]
      %v2824 = vld [vmem:[%s2819 + $0x20] sm:$0x3f]
      %v2825 = vld [vmem:[%s2819 + $0x28] sm:$0x3f]
      %v2826 = vld [vmem:[%s2819 + $0x30] sm:$0x3f]
      %v2827 = vld [vmem:[%s2819 + $0x38] sm:$0x3f]
      %v2828 = vld [vmem:[%s2819 + $0x40] sm:$0x3f]
      %v2829 = vld [vmem:[%s2819 + $0x48] sm:$0x3f]
      %v2830 = vld [vmem:[%s2819 + $0x50] sm:$0x3f]
      %v2831 = vld [vmem:[%s2819 + $0x58] sm:$0x3f]
      %v2832 = vld [vmem:[%s2819 + $0x60] sm:$0x3f]
      %v2833 = vld [vmem:[%s2819 + $0x68] sm:$0x3f]
      %v2834 = vld [vmem:[%s2819 + $0x70] sm:$0x3f]
      %v2835 = vld [vmem:[%s2819 + $0x78] sm:$0x3f]
      %v2836 = vld [vmem:[%s2819 + $0x80] sm:$0x3f]
      %v2837 = vld [vmem:[%s2819 + $0x88] sm:$0x3f]
      %v2838 = vld [vmem:[%s2819 + $0x90] sm:$0x3f]
      %v2839 = vld [vmem:[%s2819 + $0x98] sm:$0x3f]
      %v2840 = vld [vmem:[%s2819 + $0xa0] sm:$0x3f]
      %v2841 = vld [vmem:[%s2819 + $0xa8] sm:$0x3f]
      %v2842 = vld [vmem:[%s2819 + $0xb0] sm:$0x3f]
      %v2843 = vld [vmem:[%s2819 + $0xb8] sm:$0x3f]
      %v2844 = vmul.f32 %v2820, %v2770
      %v2845 = vmul.f32 %v2821, %v2770
      %v2846 = vmul.f32 %v2822, %v2770
      %v2847 = vmul.f32 %v2823, %v2770
      %v2848 = vmul.f32 %v2824, %v2770
      %v2849 = vmul.f32 %v2825, %v2770
      %v2850 = vmul.f32 %v2826, %v2770
      %v2851 = vmul.f32 %v2827, %v2770
      %v2852 = vmul.f32 %v2828, %v2770
      %v2853 = vmul.f32 %v2829, %v2770
      %v2854 = vmul.f32 %v2830, %v2770
      %v2855 = vmul.f32 %v2831, %v2770
      %v2856 = vmul.f32 %v2832, %v2770
      %v2857 = vmul.f32 %v2833, %v2770
      %v2858 = vmul.f32 %v2834, %v2770
      %v2859 = vmul.f32 %v2835, %v2770
      %v2860 = vmul.f32 %v2836, %v2770
      %v2861 = vmul.f32 %v2837, %v2770
      %v2862 = vmul.f32 %v2838, %v2770
      %v2863 = vmul.f32 %v2839, %v2770
      %v2864 = vmul.f32 %v2840, %v2770
      %v2865 = vmul.f32 %v2841, %v2770
      %v2866 = vmul.f32 %v2842, %v2770
      %v2867 = vmul.f32 %v2843, %v2770
      %v2868 = vadd.f32 %v2744, %v2844
      %v2869 = vadd.f32 %v2745, %v2845
      %v2870 = vadd.f32 %v2746, %v2846
      %v2871 = vadd.f32 %v2747, %v2847
      %v2872 = vadd.f32 %v2748, %v2848
      %v2873 = vadd.f32 %v2749, %v2849
      %v2874 = vadd.f32 %v2750, %v2850
      %v2875 = vadd.f32 %v2751, %v2851
      %v2876 = vadd.f32 %v2752, %v2852
      %v2877 = vadd.f32 %v2753, %v2853
      %v2878 = vadd.f32 %v2754, %v2854
      %v2879 = vadd.f32 %v2755, %v2855
      %v2880 = vadd.f32 %v2756, %v2856
      %v2881 = vadd.f32 %v2757, %v2857
      %v2882 = vadd.f32 %v2758, %v2858
      %v2883 = vadd.f32 %v2759, %v2859
      %v2884 = vadd.f32 %v2760, %v2860
      %v2885 = vadd.f32 %v2761, %v2861
      %v2886 = vadd.f32 %v2762, %v2862
      %v2887 = vadd.f32 %v2763, %v2863
      %v2888 = vadd.f32 %v2764, %v2864
      %v2889 = vadd.f32 %v2765, %v2865
      %v2890 = vadd.f32 %v2766, %v2866
      %v2891 = vadd.f32 %v2767, %v2867
      %s2892 = sadd.s32 %s48, 22
      %s2893 = sld [smem:[#allocation2 + %s2892]]
      %v2894 = vstv %s2893
      %v2895 = vmul.f32 %v2820, %v2894
      %v2896 = vmul.f32 %v2821, %v2894
      %v2897 = vmul.f32 %v2822, %v2894
      %v2898 = vmul.f32 %v2823, %v2894
      %v2899 = vmul.f32 %v2824, %v2894
      %v2900 = vmul.f32 %v2825, %v2894
      %v2901 = vmul.f32 %v2826, %v2894
      %v2902 = vmul.f32 %v2827, %v2894
      %v2903 = vmul.f32 %v2828, %v2894
      %v2904 = vmul.f32 %v2829, %v2894
      %v2905 = vmul.f32 %v2830, %v2894
      %v2906 = vmul.f32 %v2831, %v2894
      %v2907 = vmul.f32 %v2832, %v2894
      %v2908 = vmul.f32 %v2833, %v2894
      %v2909 = vmul.f32 %v2834, %v2894
      %v2910 = vmul.f32 %v2835, %v2894
      %v2911 = vmul.f32 %v2836, %v2894
      %v2912 = vmul.f32 %v2837, %v2894
      %v2913 = vmul.f32 %v2838, %v2894
      %v2914 = vmul.f32 %v2839, %v2894
      %v2915 = vmul.f32 %v2840, %v2894
      %v2916 = vmul.f32 %v2841, %v2894
      %v2917 = vmul.f32 %v2842, %v2894
      %v2918 = vmul.f32 %v2843, %v2894
      %v2919 = vadd.f32 %v2795, %v2895
      %v2920 = vadd.f32 %v2796, %v2896
      %v2921 = vadd.f32 %v2797, %v2897
      %v2922 = vadd.f32 %v2798, %v2898
      %v2923 = vadd.f32 %v2799, %v2899
      %v2924 = vadd.f32 %v2800, %v2900
      %v2925 = vadd.f32 %v2801, %v2901
      %v2926 = vadd.f32 %v2802, %v2902
      %v2927 = vadd.f32 %v2803, %v2903
      %v2928 = vadd.f32 %v2804, %v2904
      %v2929 = vadd.f32 %v2805, %v2905
      %v2930 = vadd.f32 %v2806, %v2906
      %v2931 = vadd.f32 %v2807, %v2907
      %v2932 = vadd.f32 %v2808, %v2908
      %v2933 = vadd.f32 %v2809, %v2909
      %v2934 = vadd.f32 %v2810, %v2910
      %v2935 = vadd.f32 %v2811, %v2911
      %v2936 = vadd.f32 %v2812, %v2912
      %v2937 = vadd.f32 %v2813, %v2913
      %v2938 = vadd.f32 %v2814, %v2914
      %v2939 = vadd.f32 %v2815, %v2915
      %v2940 = vadd.f32 %v2816, %v2916
      %v2941 = vadd.f32 %v2817, %v2917
      %v2942 = vadd.f32 %v2818, %v2918
      %s2943 = scalar_lea.vmem %s0, 704
      %v2944 = vld [vmem:[%s2943] sm:$0x3f]
      %v2945 = vld [vmem:[%s2943 + $0x8] sm:$0x3f]
      %v2946 = vld [vmem:[%s2943 + $0x10] sm:$0x3f]
      %v2947 = vld [vmem:[%s2943 + $0x18] sm:$0x3f]
      %v2948 = vld [vmem:[%s2943 + $0x20] sm:$0x3f]
      %v2949 = vld [vmem:[%s2943 + $0x28] sm:$0x3f]
      %v2950 = vld [vmem:[%s2943 + $0x30] sm:$0x3f]
      %v2951 = vld [vmem:[%s2943 + $0x38] sm:$0x3f]
      %v2952 = vld [vmem:[%s2943 + $0x40] sm:$0x3f]
      %v2953 = vld [vmem:[%s2943 + $0x48] sm:$0x3f]
      %v2954 = vld [vmem:[%s2943 + $0x50] sm:$0x3f]
      %v2955 = vld [vmem:[%s2943 + $0x58] sm:$0x3f]
      %v2956 = vld [vmem:[%s2943 + $0x60] sm:$0x3f]
      %v2957 = vld [vmem:[%s2943 + $0x68] sm:$0x3f]
      %v2958 = vld [vmem:[%s2943 + $0x70] sm:$0x3f]
      %v2959 = vld [vmem:[%s2943 + $0x78] sm:$0x3f]
      %v2960 = vld [vmem:[%s2943 + $0x80] sm:$0x3f]
      %v2961 = vld [vmem:[%s2943 + $0x88] sm:$0x3f]
      %v2962 = vld [vmem:[%s2943 + $0x90] sm:$0x3f]
      %v2963 = vld [vmem:[%s2943 + $0x98] sm:$0x3f]
      %v2964 = vld [vmem:[%s2943 + $0xa0] sm:$0x3f]
      %v2965 = vld [vmem:[%s2943 + $0xa8] sm:$0x3f]
      %v2966 = vld [vmem:[%s2943 + $0xb0] sm:$0x3f]
      %v2967 = vld [vmem:[%s2943 + $0xb8] sm:$0x3f]
      %v2968 = vmul.f32 %v2944, %v2894
      %v2969 = vmul.f32 %v2945, %v2894
      %v2970 = vmul.f32 %v2946, %v2894
      %v2971 = vmul.f32 %v2947, %v2894
      %v2972 = vmul.f32 %v2948, %v2894
      %v2973 = vmul.f32 %v2949, %v2894
      %v2974 = vmul.f32 %v2950, %v2894
      %v2975 = vmul.f32 %v2951, %v2894
      %v2976 = vmul.f32 %v2952, %v2894
      %v2977 = vmul.f32 %v2953, %v2894
      %v2978 = vmul.f32 %v2954, %v2894
      %v2979 = vmul.f32 %v2955, %v2894
      %v2980 = vmul.f32 %v2956, %v2894
      %v2981 = vmul.f32 %v2957, %v2894
      %v2982 = vmul.f32 %v2958, %v2894
      %v2983 = vmul.f32 %v2959, %v2894
      %v2984 = vmul.f32 %v2960, %v2894
      %v2985 = vmul.f32 %v2961, %v2894
      %v2986 = vmul.f32 %v2962, %v2894
      %v2987 = vmul.f32 %v2963, %v2894
      %v2988 = vmul.f32 %v2964, %v2894
      %v2989 = vmul.f32 %v2965, %v2894
      %v2990 = vmul.f32 %v2966, %v2894
      %v2991 = vmul.f32 %v2967, %v2894
      %v2992 = vadd.f32 %v2868, %v2968
      %v2993 = vadd.f32 %v2869, %v2969
      %v2994 = vadd.f32 %v2870, %v2970
      %v2995 = vadd.f32 %v2871, %v2971
      %v2996 = vadd.f32 %v2872, %v2972
      %v2997 = vadd.f32 %v2873, %v2973
      %v2998 = vadd.f32 %v2874, %v2974
      %v2999 = vadd.f32 %v2875, %v2975
      %v3000 = vadd.f32 %v2876, %v2976
      %v3001 = vadd.f32 %v2877, %v2977
      %v3002 = vadd.f32 %v2878, %v2978
      %v3003 = vadd.f32 %v2879, %v2979
      %v3004 = vadd.f32 %v2880, %v2980
      %v3005 = vadd.f32 %v2881, %v2981
      %v3006 = vadd.f32 %v2882, %v2982
      %v3007 = vadd.f32 %v2883, %v2983
      %v3008 = vadd.f32 %v2884, %v2984
      %v3009 = vadd.f32 %v2885, %v2985
      %v3010 = vadd.f32 %v2886, %v2986
      %v3011 = vadd.f32 %v2887, %v2987
      %v3012 = vadd.f32 %v2888, %v2988
      %v3013 = vadd.f32 %v2889, %v2989
      %v3014 = vadd.f32 %v2890, %v2990
      %v3015 = vadd.f32 %v2891, %v2991
      %s3016 = sadd.s32 %s48, 23
      %s3017 = sld [smem:[#allocation2 + %s3016]]
      %v3018 = vstv %s3017
      %v3019 = vmul.f32 %v2944, %v3018
      %v3020 = vmul.f32 %v2945, %v3018
      %v3021 = vmul.f32 %v2946, %v3018
      %v3022 = vmul.f32 %v2947, %v3018
      %v3023 = vmul.f32 %v2948, %v3018
      %v3024 = vmul.f32 %v2949, %v3018
      %v3025 = vmul.f32 %v2950, %v3018
      %v3026 = vmul.f32 %v2951, %v3018
      %v3027 = vmul.f32 %v2952, %v3018
      %v3028 = vmul.f32 %v2953, %v3018
      %v3029 = vmul.f32 %v2954, %v3018
      %v3030 = vmul.f32 %v2955, %v3018
      %v3031 = vmul.f32 %v2956, %v3018
      %v3032 = vmul.f32 %v2957, %v3018
      %v3033 = vmul.f32 %v2958, %v3018
      %v3034 = vmul.f32 %v2959, %v3018
      %v3035 = vmul.f32 %v2960, %v3018
      %v3036 = vmul.f32 %v2961, %v3018
      %v3037 = vmul.f32 %v2962, %v3018
      %v3038 = vmul.f32 %v2963, %v3018
      %v3039 = vmul.f32 %v2964, %v3018
      %v3040 = vmul.f32 %v2965, %v3018
      %v3041 = vmul.f32 %v2966, %v3018
      %v3042 = vmul.f32 %v2967, %v3018
      %v3043 = vadd.f32 %v2919, %v3019
      %v3044 = vadd.f32 %v2920, %v3020
      %v3045 = vadd.f32 %v2921, %v3021
      %v3046 = vadd.f32 %v2922, %v3022
      %v3047 = vadd.f32 %v2923, %v3023
      %v3048 = vadd.f32 %v2924, %v3024
      %v3049 = vadd.f32 %v2925, %v3025
      %v3050 = vadd.f32 %v2926, %v3026
      %v3051 = vadd.f32 %v2927, %v3027
      %v3052 = vadd.f32 %v2928, %v3028
      %v3053 = vadd.f32 %v2929, %v3029
      %v3054 = vadd.f32 %v2930, %v3030
      %v3055 = vadd.f32 %v2931, %v3031
      %v3056 = vadd.f32 %v2932, %v3032
      %v3057 = vadd.f32 %v2933, %v3033
      %v3058 = vadd.f32 %v2934, %v3034
      %v3059 = vadd.f32 %v2935, %v3035
      %v3060 = vadd.f32 %v2936, %v3036
      %v3061 = vadd.f32 %v2937, %v3037
      %v3062 = vadd.f32 %v2938, %v3038
      %v3063 = vadd.f32 %v2939, %v3039
      %v3064 = vadd.f32 %v2940, %v3040
      %v3065 = vadd.f32 %v2941, %v3041
      %v3066 = vadd.f32 %v2942, %v3042
      %v3067 = vld [vmem:[%s2621 + $0x1] sm:$0x3f]
      %v3068 = vld [vmem:[%s2621 + $0x9] sm:$0x3f]
      %v3069 = vld [vmem:[%s2621 + $0x11] sm:$0x3f]
      %v3070 = vld [vmem:[%s2621 + $0x19] sm:$0x3f]
      %v3071 = vld [vmem:[%s2621 + $0x21] sm:$0x3f]
      %v3072 = vld [vmem:[%s2621 + $0x29] sm:$0x3f]
      %v3073 = vld [vmem:[%s2621 + $0x31] sm:$0x3f]
      %v3074 = vld [vmem:[%s2621 + $0x39] sm:$0x3f]
      %v3075 = vld [vmem:[%s2621 + $0x41] sm:$0x3f]
      %v3076 = vld [vmem:[%s2621 + $0x49] sm:$0x3f]
      %v3077 = vld [vmem:[%s2621 + $0x51] sm:$0x3f]
      %v3078 = vld [vmem:[%s2621 + $0x59] sm:$0x3f]
      %v3079 = vld [vmem:[%s2621 + $0x61] sm:$0x3f]
      %v3080 = vld [vmem:[%s2621 + $0x69] sm:$0x3f]
      %v3081 = vld [vmem:[%s2621 + $0x71] sm:$0x3f]
      %v3082 = vld [vmem:[%s2621 + $0x79] sm:$0x3f]
      %v3083 = vld [vmem:[%s2621 + $0x81] sm:$0x3f]
      %v3084 = vld [vmem:[%s2621 + $0x89] sm:$0x3f]
      %v3085 = vld [vmem:[%s2621 + $0x91] sm:$0x3f]
      %v3086 = vld [vmem:[%s2621 + $0x99] sm:$0x3f]
      %v3087 = vld [vmem:[%s2621 + $0xa1] sm:$0x3f]
      %v3088 = vld [vmem:[%s2621 + $0xa9] sm:$0x3f]
      %v3089 = vld [vmem:[%s2621 + $0xb1] sm:$0x3f]
      %v3090 = vld [vmem:[%s2621 + $0xb9] sm:$0x3f]
      %v3091 = vmul.f32 %v3067, %v3018
      %v3092 = vmul.f32 %v3068, %v3018
      %v3093 = vmul.f32 %v3069, %v3018
      %v3094 = vmul.f32 %v3070, %v3018
      %v3095 = vmul.f32 %v3071, %v3018
      %v3096 = vmul.f32 %v3072, %v3018
      %v3097 = vmul.f32 %v3073, %v3018
      %v3098 = vmul.f32 %v3074, %v3018
      %v3099 = vmul.f32 %v3075, %v3018
      %v3100 = vmul.f32 %v3076, %v3018
      %v3101 = vmul.f32 %v3077, %v3018
      %v3102 = vmul.f32 %v3078, %v3018
      %v3103 = vmul.f32 %v3079, %v3018
      %v3104 = vmul.f32 %v3080, %v3018
      %v3105 = vmul.f32 %v3081, %v3018
      %v3106 = vmul.f32 %v3082, %v3018
      %v3107 = vmul.f32 %v3083, %v3018
      %v3108 = vmul.f32 %v3084, %v3018
      %v3109 = vmul.f32 %v3085, %v3018
      %v3110 = vmul.f32 %v3086, %v3018
      %v3111 = vmul.f32 %v3087, %v3018
      %v3112 = vmul.f32 %v3088, %v3018
      %v3113 = vmul.f32 %v3089, %v3018
      %v3114 = vmul.f32 %v3090, %v3018
      %v3115 = vadd.f32 %v2992, %v3091
      %v3116 = vadd.f32 %v2993, %v3092
      %v3117 = vadd.f32 %v2994, %v3093
      %v3118 = vadd.f32 %v2995, %v3094
      %v3119 = vadd.f32 %v2996, %v3095
      %v3120 = vadd.f32 %v2997, %v3096
      %v3121 = vadd.f32 %v2998, %v3097
      %v3122 = vadd.f32 %v2999, %v3098
      %v3123 = vadd.f32 %v3000, %v3099
      %v3124 = vadd.f32 %v3001, %v3100
      %v3125 = vadd.f32 %v3002, %v3101
      %v3126 = vadd.f32 %v3003, %v3102
      %v3127 = vadd.f32 %v3004, %v3103
      %v3128 = vadd.f32 %v3005, %v3104
      %v3129 = vadd.f32 %v3006, %v3105
      %v3130 = vadd.f32 %v3007, %v3106
      %v3131 = vadd.f32 %v3008, %v3107
      %v3132 = vadd.f32 %v3009, %v3108
      %v3133 = vadd.f32 %v3010, %v3109
      %v3134 = vadd.f32 %v3011, %v3110
      %v3135 = vadd.f32 %v3012, %v3111
      %v3136 = vadd.f32 %v3013, %v3112
      %v3137 = vadd.f32 %v3014, %v3113
      %v3138 = vadd.f32 %v3015, %v3114
      %s3139 = sadd.s32 %s48, 24
      %s3140 = sld [smem:[#allocation2 + %s3139]]
      %v3141 = vstv %s3140
      %v3142 = vmul.f32 %v3067, %v3141
      %v3143 = vmul.f32 %v3068, %v3141
      %v3144 = vmul.f32 %v3069, %v3141
      %v3145 = vmul.f32 %v3070, %v3141
      %v3146 = vmul.f32 %v3071, %v3141
      %v3147 = vmul.f32 %v3072, %v3141
      %v3148 = vmul.f32 %v3073, %v3141
      %v3149 = vmul.f32 %v3074, %v3141
      %v3150 = vmul.f32 %v3075, %v3141
      %v3151 = vmul.f32 %v3076, %v3141
      %v3152 = vmul.f32 %v3077, %v3141
      %v3153 = vmul.f32 %v3078, %v3141
      %v3154 = vmul.f32 %v3079, %v3141
      %v3155 = vmul.f32 %v3080, %v3141
      %v3156 = vmul.f32 %v3081, %v3141
      %v3157 = vmul.f32 %v3082, %v3141
      %v3158 = vmul.f32 %v3083, %v3141
      %v3159 = vmul.f32 %v3084, %v3141
      %v3160 = vmul.f32 %v3085, %v3141
      %v3161 = vmul.f32 %v3086, %v3141
      %v3162 = vmul.f32 %v3087, %v3141
      %v3163 = vmul.f32 %v3088, %v3141
      %v3164 = vmul.f32 %v3089, %v3141
      %v3165 = vmul.f32 %v3090, %v3141
      %v3166 = vadd.f32 %v3043, %v3142
      %v3167 = vadd.f32 %v3044, %v3143
      %v3168 = vadd.f32 %v3045, %v3144
      %v3169 = vadd.f32 %v3046, %v3145
      %v3170 = vadd.f32 %v3047, %v3146
      %v3171 = vadd.f32 %v3048, %v3147
      %v3172 = vadd.f32 %v3049, %v3148
      %v3173 = vadd.f32 %v3050, %v3149
      %v3174 = vadd.f32 %v3051, %v3150
      %v3175 = vadd.f32 %v3052, %v3151
      %v3176 = vadd.f32 %v3053, %v3152
      %v3177 = vadd.f32 %v3054, %v3153
      %v3178 = vadd.f32 %v3055, %v3154
      %v3179 = vadd.f32 %v3056, %v3155
      %v3180 = vadd.f32 %v3057, %v3156
      %v3181 = vadd.f32 %v3058, %v3157
      %v3182 = vadd.f32 %v3059, %v3158
      %v3183 = vadd.f32 %v3060, %v3159
      %v3184 = vadd.f32 %v3061, %v3160
      %v3185 = vadd.f32 %v3062, %v3161
      %v3186 = vadd.f32 %v3063, %v3162
      %v3187 = vadd.f32 %v3064, %v3163
      %v3188 = vadd.f32 %v3065, %v3164
      %v3189 = vadd.f32 %v3066, %v3165
      %v3190 = vld [vmem:[%s2695 + $0x1] sm:$0x3f]
      %v3191 = vld [vmem:[%s2695 + $0x9] sm:$0x3f]
      %v3192 = vld [vmem:[%s2695 + $0x11] sm:$0x3f]
      %v3193 = vld [vmem:[%s2695 + $0x19] sm:$0x3f]
      %v3194 = vld [vmem:[%s2695 + $0x21] sm:$0x3f]
      %v3195 = vld [vmem:[%s2695 + $0x29] sm:$0x3f]
      %v3196 = vld [vmem:[%s2695 + $0x31] sm:$0x3f]
      %v3197 = vld [vmem:[%s2695 + $0x39] sm:$0x3f]
      %v3198 = vld [vmem:[%s2695 + $0x41] sm:$0x3f]
      %v3199 = vld [vmem:[%s2695 + $0x49] sm:$0x3f]
      %v3200 = vld [vmem:[%s2695 + $0x51] sm:$0x3f]
      %v3201 = vld [vmem:[%s2695 + $0x59] sm:$0x3f]
      %v3202 = vld [vmem:[%s2695 + $0x61] sm:$0x3f]
      %v3203 = vld [vmem:[%s2695 + $0x69] sm:$0x3f]
      %v3204 = vld [vmem:[%s2695 + $0x71] sm:$0x3f]
      %v3205 = vld [vmem:[%s2695 + $0x79] sm:$0x3f]
      %v3206 = vld [vmem:[%s2695 + $0x81] sm:$0x3f]
      %v3207 = vld [vmem:[%s2695 + $0x89] sm:$0x3f]
      %v3208 = vld [vmem:[%s2695 + $0x91] sm:$0x3f]
      %v3209 = vld [vmem:[%s2695 + $0x99] sm:$0x3f]
      %v3210 = vld [vmem:[%s2695 + $0xa1] sm:$0x3f]
      %v3211 = vld [vmem:[%s2695 + $0xa9] sm:$0x3f]
      %v3212 = vld [vmem:[%s2695 + $0xb1] sm:$0x3f]
      %v3213 = vld [vmem:[%s2695 + $0xb9] sm:$0x3f]
      %v3214 = vmul.f32 %v3190, %v3141
      %v3215 = vmul.f32 %v3191, %v3141
      %v3216 = vmul.f32 %v3192, %v3141
      %v3217 = vmul.f32 %v3193, %v3141
      %v3218 = vmul.f32 %v3194, %v3141
      %v3219 = vmul.f32 %v3195, %v3141
      %v3220 = vmul.f32 %v3196, %v3141
      %v3221 = vmul.f32 %v3197, %v3141
      %v3222 = vmul.f32 %v3198, %v3141
      %v3223 = vmul.f32 %v3199, %v3141
      %v3224 = vmul.f32 %v3200, %v3141
      %v3225 = vmul.f32 %v3201, %v3141
      %v3226 = vmul.f32 %v3202, %v3141
      %v3227 = vmul.f32 %v3203, %v3141
      %v3228 = vmul.f32 %v3204, %v3141
      %v3229 = vmul.f32 %v3205, %v3141
      %v3230 = vmul.f32 %v3206, %v3141
      %v3231 = vmul.f32 %v3207, %v3141
      %v3232 = vmul.f32 %v3208, %v3141
      %v3233 = vmul.f32 %v3209, %v3141
      %v3234 = vmul.f32 %v3210, %v3141
      %v3235 = vmul.f32 %v3211, %v3141
      %v3236 = vmul.f32 %v3212, %v3141
      %v3237 = vmul.f32 %v3213, %v3141
      %v3238 = vadd.f32 %v3115, %v3214
      %v3239 = vadd.f32 %v3116, %v3215
      %v3240 = vadd.f32 %v3117, %v3216
      %v3241 = vadd.f32 %v3118, %v3217
      %v3242 = vadd.f32 %v3119, %v3218
      %v3243 = vadd.f32 %v3120, %v3219
      %v3244 = vadd.f32 %v3121, %v3220
      %v3245 = vadd.f32 %v3122, %v3221
      %v3246 = vadd.f32 %v3123, %v3222
      %v3247 = vadd.f32 %v3124, %v3223
      %v3248 = vadd.f32 %v3125, %v3224
      %v3249 = vadd.f32 %v3126, %v3225
      %v3250 = vadd.f32 %v3127, %v3226
      %v3251 = vadd.f32 %v3128, %v3227
      %v3252 = vadd.f32 %v3129, %v3228
      %v3253 = vadd.f32 %v3130, %v3229
      %v3254 = vadd.f32 %v3131, %v3230
      %v3255 = vadd.f32 %v3132, %v3231
      %v3256 = vadd.f32 %v3133, %v3232
      %v3257 = vadd.f32 %v3134, %v3233
      %v3258 = vadd.f32 %v3135, %v3234
      %v3259 = vadd.f32 %v3136, %v3235
      %v3260 = vadd.f32 %v3137, %v3236
      %v3261 = vadd.f32 %v3138, %v3237
      %v3262 = vmax.f32 %v3166, %v3238
      %v3263 = vmax.f32 %v3167, %v3239
      %v3264 = vmax.f32 %v3168, %v3240
      %v3265 = vmax.f32 %v3169, %v3241
      %v3266 = vmax.f32 %v3170, %v3242
      %v3267 = vmax.f32 %v3171, %v3243
      %v3268 = vmax.f32 %v3172, %v3244
      %v3269 = vmax.f32 %v3173, %v3245
      %v3270 = vmax.f32 %v3174, %v3246
      %v3271 = vmax.f32 %v3175, %v3247
      %v3272 = vmax.f32 %v3176, %v3248
      %v3273 = vmax.f32 %v3177, %v3249
      %v3274 = vmax.f32 %v3178, %v3250
      %v3275 = vmax.f32 %v3179, %v3251
      %v3276 = vmax.f32 %v3180, %v3252
      %v3277 = vmax.f32 %v3181, %v3253
      %v3278 = vmax.f32 %v3182, %v3254
      %v3279 = vmax.f32 %v3183, %v3255
      %v3280 = vmax.f32 %v3184, %v3256
      %v3281 = vmax.f32 %v3185, %v3257
      %v3282 = vmax.f32 %v3186, %v3258
      %v3283 = vmax.f32 %v3187, %v3259
      %v3284 = vmax.f32 %v3188, %v3260
      %v3285 = vmax.f32 %v3189, %v3261
      %vm3286 = vcmask 1045504
      %v3287 = vsel %vm3286, %v3262, -inf
      %v3288 = vsel %vm3286, %v3263, -inf
      %v3289 = vmax.f32 %v3287, %v3288
      %v3290 = vsel %vm3286, %v3264, -inf
      %v3291 = vsel %vm3286, %v3265, -inf
      %v3292 = vmax.f32 %v3290, %v3291
      %v3293 = vsel %vm3286, %v3266, -inf
      %v3294 = vsel %vm3286, %v3267, -inf
      %v3295 = vmax.f32 %v3293, %v3294
      %v3296 = vsel %vm3286, %v3268, -inf
      %v3297 = vsel %vm3286, %v3269, -inf
      %v3298 = vmax.f32 %v3296, %v3297
      %v3299 = vsel %vm3286, %v3270, -inf
      %v3300 = vsel %vm3286, %v3271, -inf
      %v3301 = vmax.f32 %v3299, %v3300
      %v3302 = vsel %vm3286, %v3272, -inf
      %v3303 = vsel %vm3286, %v3273, -inf
      %v3304 = vmax.f32 %v3302, %v3303
      %v3305 = vsel %vm3286, %v3274, -inf
      %v3306 = vsel %vm3286, %v3275, -inf
      %v3307 = vmax.f32 %v3305, %v3306
      %v3308 = vsel %vm3286, %v3276, -inf
      %v3309 = vsel %vm3286, %v3277, -inf
      %v3310 = vmax.f32 %v3308, %v3309
      %v3311 = vsel %vm3286, %v3278, -inf
      %v3312 = vsel %vm3286, %v3279, -inf
      %v3313 = vmax.f32 %v3311, %v3312
      %v3314 = vsel %vm3286, %v3280, -inf
      %v3315 = vsel %vm3286, %v3281, -inf
      %v3316 = vmax.f32 %v3314, %v3315
      %v3317 = vsel %vm3286, %v3282, -inf
      %v3318 = vsel %vm3286, %v3283, -inf
      %v3319 = vmax.f32 %v3317, %v3318
      %v3320 = vsel %vm3286, %v3284, -inf
      %v3321 = vsel %vm3286, %v3285, -inf
      %v3322 = vmax.f32 %v3320, %v3321
      %v3323 = vstv %s47
      %v3324 = vadd.f32 %v3289, %v3323
      %v3325 = vadd.f32 %v3292, %v3323
      %v3326 = vadd.f32 %v3295, %v3323
      %v3327 = vadd.f32 %v3298, %v3323
      %v3328 = vadd.f32 %v3301, %v3323
      %v3329 = vadd.f32 %v3304, %v3323
      %v3330 = vadd.f32 %v3307, %v3323
      %v3331 = vadd.f32 %v3310, %v3323
      %v3332 = vadd.f32 %v3313, %v3323
      %v3333 = vadd.f32 %v3316, %v3323
      %v3334 = vadd.f32 %v3319, %v3323
      %v3335 = vadd.f32 %v3322, %v3323
      %v3336 = vmax.f32 %v3324, 0.0
      %v3337 = vmax.f32 %v3325, 0.0
      %v3338 = vmax.f32 %v3326, 0.0
      %v3339 = vmax.f32 %v3327, 0.0
      %v3340 = vmax.f32 %v3328, 0.0
      %v3341 = vmax.f32 %v3329, 0.0
      %v3342 = vmax.f32 %v3330, 0.0
      %v3343 = vmax.f32 %v3331, 0.0
      %v3344 = vmax.f32 %v3332, 0.0
      %v3345 = vmax.f32 %v3333, 0.0
      %v3346 = vmax.f32 %v3334, 0.0
      %v3347 = vmax.f32 %v3335, 0.0
      %s3348 = smul.u32 %s42, 96
      %s3349 = scalar_lea.vmem %s3, %s3348
      %3350 = vst [vmem:[%s3349] sm:$0x3f] %v3336
      %3351 = vst [vmem:[%s3349 + $0x8] sm:$0x3f] %v3337
      %3352 = vst [vmem:[%s3349 + $0x10] sm:$0x3f] %v3338
      %3353 = vst [vmem:[%s3349 + $0x18] sm:$0x3f] %v3339
      %3354 = vst [vmem:[%s3349 + $0x20] sm:$0x3f] %v3340
      %3355 = vst [vmem:[%s3349 + $0x28] sm:$0x3f] %v3341
      %3356 = vst [vmem:[%s3349 + $0x30] sm:$0x3f] %v3342
      %3357 = vst [vmem:[%s3349 + $0x38] sm:$0x3f] %v3343
      %3358 = vst [vmem:[%s3349 + $0x40] sm:$0x3f] %v3344
      %3359 = vst [vmem:[%s3349 + $0x48] sm:$0x3f] %v3345
      %3360 = vst [vmem:[%s3349 + $0x50] sm:$0x3f] %v3346
      %3361 = vst [vmem:[%s3349 + $0x58] sm:$0x3f] %v3347
      %s3362 = sld [smem:[#allocation2 + %s48]]
      %v3363 = vld [vmem:[%s247] sm:$0x3f]
      %v3364 = vld [vmem:[%s247 + $0x8] sm:$0x3f]
      %v3365 = vld [vmem:[%s247 + $0x10] sm:$0x3f]
      %v3366 = vld [vmem:[%s247 + $0x18] sm:$0x3f]
      %v3367 = vld [vmem:[%s247 + $0x20] sm:$0x3f]
      %v3368 = vld [vmem:[%s247 + $0x28] sm:$0x3f]
      %v3369 = vld [vmem:[%s247 + $0x30] sm:$0x3f]
      %v3370 = vld [vmem:[%s247 + $0x38] sm:$0x3f]
      %v3371 = vld [vmem:[%s247 + $0x40] sm:$0x3f]
      %v3372 = vld [vmem:[%s247 + $0x48] sm:$0x3f]
      %v3373 = vld [vmem:[%s247 + $0x50] sm:$0x3f]
      %v3374 = vld [vmem:[%s247 + $0x58] sm:$0x3f]
      %v3375 = vld [vmem:[%s247 + $0x60] sm:$0x3f]
      %v3376 = vld [vmem:[%s247 + $0x68] sm:$0x3f]
      %v3377 = vld [vmem:[%s247 + $0x70] sm:$0x3f]
      %v3378 = vld [vmem:[%s247 + $0x78] sm:$0x3f]
      %v3379 = vld [vmem:[%s247 + $0x80] sm:$0x3f]
      %v3380 = vld [vmem:[%s247 + $0x88] sm:$0x3f]
      %v3381 = vld [vmem:[%s247 + $0x90] sm:$0x3f]
      %v3382 = vld [vmem:[%s247 + $0x98] sm:$0x3f]
      %v3383 = vld [vmem:[%s247 + $0xa0] sm:$0x3f]
      %v3384 = vld [vmem:[%s247 + $0xa8] sm:$0x3f]
      %v3385 = vld [vmem:[%s247 + $0xb0] sm:$0x3f]
      %v3386 = vld [vmem:[%s247 + $0xb8] sm:$0x3f]
      %v3387 = vstv %s3362
      %v3388 = vmul.f32 %v3363, %v3387
      %v3389 = vmul.f32 %v3364, %v3387
      %v3390 = vmul.f32 %v3365, %v3387
      %v3391 = vmul.f32 %v3366, %v3387
      %v3392 = vmul.f32 %v3367, %v3387
      %v3393 = vmul.f32 %v3368, %v3387
      %v3394 = vmul.f32 %v3369, %v3387
      %v3395 = vmul.f32 %v3370, %v3387
      %v3396 = vmul.f32 %v3371, %v3387
      %v3397 = vmul.f32 %v3372, %v3387
      %v3398 = vmul.f32 %v3373, %v3387
      %v3399 = vmul.f32 %v3374, %v3387
      %v3400 = vmul.f32 %v3375, %v3387
      %v3401 = vmul.f32 %v3376, %v3387
      %v3402 = vmul.f32 %v3377, %v3387
      %v3403 = vmul.f32 %v3378, %v3387
      %v3404 = vmul.f32 %v3379, %v3387
      %v3405 = vmul.f32 %v3380, %v3387
      %v3406 = vmul.f32 %v3381, %v3387
      %v3407 = vmul.f32 %v3382, %v3387
      %v3408 = vmul.f32 %v3383, %v3387
      %v3409 = vmul.f32 %v3384, %v3387
      %v3410 = vmul.f32 %v3385, %v3387
      %v3411 = vmul.f32 %v3386, %v3387
      %v3412 = vadd.f32 %v3388, 0.0
      %v3413 = vadd.f32 %v3389, 0.0
      %v3414 = vadd.f32 %v3390, 0.0
      %v3415 = vadd.f32 %v3391, 0.0
      %v3416 = vadd.f32 %v3392, 0.0
      %v3417 = vadd.f32 %v3393, 0.0
      %v3418 = vadd.f32 %v3394, 0.0
      %v3419 = vadd.f32 %v3395, 0.0
      %v3420 = vadd.f32 %v3396, 0.0
      %v3421 = vadd.f32 %v3397, 0.0
      %v3422 = vadd.f32 %v3398, 0.0
      %v3423 = vadd.f32 %v3399, 0.0
      %v3424 = vadd.f32 %v3400, 0.0
      %v3425 = vadd.f32 %v3401, 0.0
      %v3426 = vadd.f32 %v3402, 0.0
      %v3427 = vadd.f32 %v3403, 0.0
      %v3428 = vadd.f32 %v3404, 0.0
      %v3429 = vadd.f32 %v3405, 0.0
      %v3430 = vadd.f32 %v3406, 0.0
      %v3431 = vadd.f32 %v3407, 0.0
      %v3432 = vadd.f32 %v3408, 0.0
      %v3433 = vadd.f32 %v3409, 0.0
      %v3434 = vadd.f32 %v3410, 0.0
      %v3435 = vadd.f32 %v3411, 0.0
      %v3436 = vld [vmem:[%s371] sm:$0x3f]
      %v3437 = vld [vmem:[%s371 + $0x8] sm:$0x3f]
      %v3438 = vld [vmem:[%s371 + $0x10] sm:$0x3f]
      %v3439 = vld [vmem:[%s371 + $0x18] sm:$0x3f]
      %v3440 = vld [vmem:[%s371 + $0x20] sm:$0x3f]
      %v3441 = vld [vmem:[%s371 + $0x28] sm:$0x3f]
      %v3442 = vld [vmem:[%s371 + $0x30] sm:$0x3f]
      %v3443 = vld [vmem:[%s371 + $0x38] sm:$0x3f]
      %v3444 = vld [vmem:[%s371 + $0x40] sm:$0x3f]
      %v3445 = vld [vmem:[%s371 + $0x48] sm:$0x3f]
      %v3446 = vld [vmem:[%s371 + $0x50] sm:$0x3f]
      %v3447 = vld [vmem:[%s371 + $0x58] sm:$0x3f]
      %v3448 = vld [vmem:[%s371 + $0x60] sm:$0x3f]
      %v3449 = vld [vmem:[%s371 + $0x68] sm:$0x3f]
      %v3450 = vld [vmem:[%s371 + $0x70] sm:$0x3f]
      %v3451 = vld [vmem:[%s371 + $0x78] sm:$0x3f]
      %v3452 = vld [vmem:[%s371 + $0x80] sm:$0x3f]
      %v3453 = vld [vmem:[%s371 + $0x88] sm:$0x3f]
      %v3454 = vld [vmem:[%s371 + $0x90] sm:$0x3f]
      %v3455 = vld [vmem:[%s371 + $0x98] sm:$0x3f]
      %v3456 = vld [vmem:[%s371 + $0xa0] sm:$0x3f]
      %v3457 = vld [vmem:[%s371 + $0xa8] sm:$0x3f]
      %v3458 = vld [vmem:[%s371 + $0xb0] sm:$0x3f]
      %v3459 = vld [vmem:[%s371 + $0xb8] sm:$0x3f]
      %v3460 = vmul.f32 %v3436, %v3387
      %v3461 = vmul.f32 %v3437, %v3387
      %v3462 = vmul.f32 %v3438, %v3387
      %v3463 = vmul.f32 %v3439, %v3387
      %v3464 = vmul.f32 %v3440, %v3387
      %v3465 = vmul.f32 %v3441, %v3387
      %v3466 = vmul.f32 %v3442, %v3387
      %v3467 = vmul.f32 %v3443, %v3387
      %v3468 = vmul.f32 %v3444, %v3387
      %v3469 = vmul.f32 %v3445, %v3387
      %v3470 = vmul.f32 %v3446, %v3387
      %v3471 = vmul.f32 %v3447, %v3387
      %v3472 = vmul.f32 %v3448, %v3387
      %v3473 = vmul.f32 %v3449, %v3387
      %v3474 = vmul.f32 %v3450, %v3387
      %v3475 = vmul.f32 %v3451, %v3387
      %v3476 = vmul.f32 %v3452, %v3387
      %v3477 = vmul.f32 %v3453, %v3387
      %v3478 = vmul.f32 %v3454, %v3387
      %v3479 = vmul.f32 %v3455, %v3387
      %v3480 = vmul.f32 %v3456, %v3387
      %v3481 = vmul.f32 %v3457, %v3387
      %v3482 = vmul.f32 %v3458, %v3387
      %v3483 = vmul.f32 %v3459, %v3387
      %v3484 = vadd.f32 %v3460, 0.0
      %v3485 = vadd.f32 %v3461, 0.0
      %v3486 = vadd.f32 %v3462, 0.0
      %v3487 = vadd.f32 %v3463, 0.0
      %v3488 = vadd.f32 %v3464, 0.0
      %v3489 = vadd.f32 %v3465, 0.0
      %v3490 = vadd.f32 %v3466, 0.0
      %v3491 = vadd.f32 %v3467, 0.0
      %v3492 = vadd.f32 %v3468, 0.0
      %v3493 = vadd.f32 %v3469, 0.0
      %v3494 = vadd.f32 %v3470, 0.0
      %v3495 = vadd.f32 %v3471, 0.0
      %v3496 = vadd.f32 %v3472, 0.0
      %v3497 = vadd.f32 %v3473, 0.0
      %v3498 = vadd.f32 %v3474, 0.0
      %v3499 = vadd.f32 %v3475, 0.0
      %v3500 = vadd.f32 %v3476, 0.0
      %v3501 = vadd.f32 %v3477, 0.0
      %v3502 = vadd.f32 %v3478, 0.0
      %v3503 = vadd.f32 %v3479, 0.0
      %v3504 = vadd.f32 %v3480, 0.0
      %v3505 = vadd.f32 %v3481, 0.0
      %v3506 = vadd.f32 %v3482, 0.0
      %v3507 = vadd.f32 %v3483, 0.0
      %s3508 = sld [smem:[#allocation2 + %s196]]
      %v3509 = vstv %s3508
      %v3510 = vmul.f32 %v3436, %v3509
      %v3511 = vmul.f32 %v3437, %v3509
      %v3512 = vmul.f32 %v3438, %v3509
      %v3513 = vmul.f32 %v3439, %v3509
      %v3514 = vmul.f32 %v3440, %v3509
      %v3515 = vmul.f32 %v3441, %v3509
      %v3516 = vmul.f32 %v3442, %v3509
      %v3517 = vmul.f32 %v3443, %v3509
      %v3518 = vmul.f32 %v3444, %v3509
      %v3519 = vmul.f32 %v3445, %v3509
      %v3520 = vmul.f32 %v3446, %v3509
      %v3521 = vmul.f32 %v3447, %v3509
      %v3522 = vmul.f32 %v3448, %v3509
      %v3523 = vmul.f32 %v3449, %v3509
      %v3524 = vmul.f32 %v3450, %v3509
      %v3525 = vmul.f32 %v3451, %v3509
      %v3526 = vmul.f32 %v3452, %v3509
      %v3527 = vmul.f32 %v3453, %v3509
      %v3528 = vmul.f32 %v3454, %v3509
      %v3529 = vmul.f32 %v3455, %v3509
      %v3530 = vmul.f32 %v3456, %v3509
      %v3531 = vmul.f32 %v3457, %v3509
      %v3532 = vmul.f32 %v3458, %v3509
      %v3533 = vmul.f32 %v3459, %v3509
      %v3534 = vadd.f32 %v3412, %v3510
      %v3535 = vadd.f32 %v3413, %v3511
      %v3536 = vadd.f32 %v3414, %v3512
      %v3537 = vadd.f32 %v3415, %v3513
      %v3538 = vadd.f32 %v3416, %v3514
      %v3539 = vadd.f32 %v3417, %v3515
      %v3540 = vadd.f32 %v3418, %v3516
      %v3541 = vadd.f32 %v3419, %v3517
      %v3542 = vadd.f32 %v3420, %v3518
      %v3543 = vadd.f32 %v3421, %v3519
      %v3544 = vadd.f32 %v3422, %v3520
      %v3545 = vadd.f32 %v3423, %v3521
      %v3546 = vadd.f32 %v3424, %v3522
      %v3547 = vadd.f32 %v3425, %v3523
      %v3548 = vadd.f32 %v3426, %v3524
      %v3549 = vadd.f32 %v3427, %v3525
      %v3550 = vadd.f32 %v3428, %v3526
      %v3551 = vadd.f32 %v3429, %v3527
      %v3552 = vadd.f32 %v3430, %v3528
      %v3553 = vadd.f32 %v3431, %v3529
      %v3554 = vadd.f32 %v3432, %v3530
      %v3555 = vadd.f32 %v3433, %v3531
      %v3556 = vadd.f32 %v3434, %v3532
      %v3557 = vadd.f32 %v3435, %v3533
      %v3558 = vld [vmem:[%s0 + $0x1] sm:$0x3f]
      %v3559 = vld [vmem:[%s0 + $0x9] sm:$0x3f]
      %v3560 = vld [vmem:[%s0 + $0x11] sm:$0x3f]
      %v3561 = vld [vmem:[%s0 + $0x19] sm:$0x3f]
      %v3562 = vld [vmem:[%s0 + $0x21] sm:$0x3f]
      %v3563 = vld [vmem:[%s0 + $0x29] sm:$0x3f]
      %v3564 = vld [vmem:[%s0 + $0x31] sm:$0x3f]
      %v3565 = vld [vmem:[%s0 + $0x39] sm:$0x3f]
      %v3566 = vld [vmem:[%s0 + $0x41] sm:$0x3f]
      %v3567 = vld [vmem:[%s0 + $0x49] sm:$0x3f]
      %v3568 = vld [vmem:[%s0 + $0x51] sm:$0x3f]
      %v3569 = vld [vmem:[%s0 + $0x59] sm:$0x3f]
      %v3570 = vld [vmem:[%s0 + $0x61] sm:$0x3f]
      %v3571 = vld [vmem:[%s0 + $0x69] sm:$0x3f]
      %v3572 = vld [vmem:[%s0 + $0x71] sm:$0x3f]
      %v3573 = vld [vmem:[%s0 + $0x79] sm:$0x3f]
      %v3574 = vld [vmem:[%s0 + $0x81] sm:$0x3f]
      %v3575 = vld [vmem:[%s0 + $0x89] sm:$0x3f]
      %v3576 = vld [vmem:[%s0 + $0x91] sm:$0x3f]
      %v3577 = vld [vmem:[%s0 + $0x99] sm:$0x3f]
      %v3578 = vld [vmem:[%s0 + $0xa1] sm:$0x3f]
      %v3579 = vld [vmem:[%s0 + $0xa9] sm:$0x3f]
      %v3580 = vld [vmem:[%s0 + $0xb1] sm:$0x3f]
      %v3581 = vld [vmem:[%s0 + $0xb9] sm:$0x3f]
      %v3582 = vmul.f32 %v3558, %v3509
      %v3583 = vmul.f32 %v3559, %v3509
      %v3584 = vmul.f32 %v3560, %v3509
      %v3585 = vmul.f32 %v3561, %v3509
      %v3586 = vmul.f32 %v3562, %v3509
      %v3587 = vmul.f32 %v3563, %v3509
      %v3588 = vmul.f32 %v3564, %v3509
      %v3589 = vmul.f32 %v3565, %v3509
      %v3590 = vmul.f32 %v3566, %v3509
      %v3591 = vmul.f32 %v3567, %v3509
      %v3592 = vmul.f32 %v3568, %v3509
      %v3593 = vmul.f32 %v3569, %v3509
      %v3594 = vmul.f32 %v3570, %v3509
      %v3595 = vmul.f32 %v3571, %v3509
      %v3596 = vmul.f32 %v3572, %v3509
      %v3597 = vmul.f32 %v3573, %v3509
      %v3598 = vmul.f32 %v3574, %v3509
      %v3599 = vmul.f32 %v3575, %v3509
      %v3600 = vmul.f32 %v3576, %v3509
      %v3601 = vmul.f32 %v3577, %v3509
      %v3602 = vmul.f32 %v3578, %v3509
      %v3603 = vmul.f32 %v3579, %v3509
      %v3604 = vmul.f32 %v3580, %v3509
      %v3605 = vmul.f32 %v3581, %v3509
      %v3606 = vadd.f32 %v3484, %v3582
      %v3607 = vadd.f32 %v3485, %v3583
      %v3608 = vadd.f32 %v3486, %v3584
      %v3609 = vadd.f32 %v3487, %v3585
      %v3610 = vadd.f32 %v3488, %v3586
      %v3611 = vadd.f32 %v3489, %v3587
      %v3612 = vadd.f32 %v3490, %v3588
      %v3613 = vadd.f32 %v3491, %v3589
      %v3614 = vadd.f32 %v3492, %v3590
      %v3615 = vadd.f32 %v3493, %v3591
      %v3616 = vadd.f32 %v3494, %v3592
      %v3617 = vadd.f32 %v3495, %v3593
      %v3618 = vadd.f32 %v3496, %v3594
      %v3619 = vadd.f32 %v3497, %v3595
      %v3620 = vadd.f32 %v3498, %v3596
      %v3621 = vadd.f32 %v3499, %v3597
      %v3622 = vadd.f32 %v3500, %v3598
      %v3623 = vadd.f32 %v3501, %v3599
      %v3624 = vadd.f32 %v3502, %v3600
      %v3625 = vadd.f32 %v3503, %v3601
      %v3626 = vadd.f32 %v3504, %v3602
      %v3627 = vadd.f32 %v3505, %v3603
      %v3628 = vadd.f32 %v3506, %v3604
      %v3629 = vadd.f32 %v3507, %v3605
      %s3630 = sld [smem:[#allocation2 + %s320]]
      %v3631 = vstv %s3630
      %v3632 = vmul.f32 %v3558, %v3631
      %v3633 = vmul.f32 %v3559, %v3631
      %v3634 = vmul.f32 %v3560, %v3631
      %v3635 = vmul.f32 %v3561, %v3631
      %v3636 = vmul.f32 %v3562, %v3631
      %v3637 = vmul.f32 %v3563, %v3631
      %v3638 = vmul.f32 %v3564, %v3631
      %v3639 = vmul.f32 %v3565, %v3631
      %v3640 = vmul.f32 %v3566, %v3631
      %v3641 = vmul.f32 %v3567, %v3631
      %v3642 = vmul.f32 %v3568, %v3631
      %v3643 = vmul.f32 %v3569, %v3631
      %v3644 = vmul.f32 %v3570, %v3631
      %v3645 = vmul.f32 %v3571, %v3631
      %v3646 = vmul.f32 %v3572, %v3631
      %v3647 = vmul.f32 %v3573, %v3631
      %v3648 = vmul.f32 %v3574, %v3631
      %v3649 = vmul.f32 %v3575, %v3631
      %v3650 = vmul.f32 %v3576, %v3631
      %v3651 = vmul.f32 %v3577, %v3631
      %v3652 = vmul.f32 %v3578, %v3631
      %v3653 = vmul.f32 %v3579, %v3631
      %v3654 = vmul.f32 %v3580, %v3631
      %v3655 = vmul.f32 %v3581, %v3631
      %v3656 = vadd.f32 %v3534, %v3632
      %v3657 = vadd.f32 %v3535, %v3633
      %v3658 = vadd.f32 %v3536, %v3634
      %v3659 = vadd.f32 %v3537, %v3635
      %v3660 = vadd.f32 %v3538, %v3636
      %v3661 = vadd.f32 %v3539, %v3637
      %v3662 = vadd.f32 %v3540, %v3638
      %v3663 = vadd.f32 %v3541, %v3639
      %v3664 = vadd.f32 %v3542, %v3640
      %v3665 = vadd.f32 %v3543, %v3641
      %v3666 = vadd.f32 %v3544, %v3642
      %v3667 = vadd.f32 %v3545, %v3643
      %v3668 = vadd.f32 %v3546, %v3644
      %v3669 = vadd.f32 %v3547, %v3645
      %v3670 = vadd.f32 %v3548, %v3646
      %v3671 = vadd.f32 %v3549, %v3647
      %v3672 = vadd.f32 %v3550, %v3648
      %v3673 = vadd.f32 %v3551, %v3649
      %v3674 = vadd.f32 %v3552, %v3650
      %v3675 = vadd.f32 %v3553, %v3651
      %v3676 = vadd.f32 %v3554, %v3652
      %v3677 = vadd.f32 %v3555, %v3653
      %v3678 = vadd.f32 %v3556, %v3654
      %v3679 = vadd.f32 %v3557, %v3655
      %v3680 = vld [vmem:[%s123 + $0x1] sm:$0x3f]
      %v3681 = vld [vmem:[%s123 + $0x9] sm:$0x3f]
      %v3682 = vld [vmem:[%s123 + $0x11] sm:$0x3f]
      %v3683 = vld [vmem:[%s123 + $0x19] sm:$0x3f]
      %v3684 = vld [vmem:[%s123 + $0x21] sm:$0x3f]
      %v3685 = vld [vmem:[%s123 + $0x29] sm:$0x3f]
      %v3686 = vld [vmem:[%s123 + $0x31] sm:$0x3f]
      %v3687 = vld [vmem:[%s123 + $0x39] sm:$0x3f]
      %v3688 = vld [vmem:[%s123 + $0x41] sm:$0x3f]
      %v3689 = vld [vmem:[%s123 + $0x49] sm:$0x3f]
      %v3690 = vld [vmem:[%s123 + $0x51] sm:$0x3f]
      %v3691 = vld [vmem:[%s123 + $0x59] sm:$0x3f]
      %v3692 = vld [vmem:[%s123 + $0x61] sm:$0x3f]
      %v3693 = vld [vmem:[%s123 + $0x69] sm:$0x3f]
      %v3694 = vld [vmem:[%s123 + $0x71] sm:$0x3f]
      %v3695 = vld [vmem:[%s123 + $0x79] sm:$0x3f]
      %v3696 = vld [vmem:[%s123 + $0x81] sm:$0x3f]
      %v3697 = vld [vmem:[%s123 + $0x89] sm:$0x3f]
      %v3698 = vld [vmem:[%s123 + $0x91] sm:$0x3f]
      %v3699 = vld [vmem:[%s123 + $0x99] sm:$0x3f]
      %v3700 = vld [vmem:[%s123 + $0xa1] sm:$0x3f]
      %v3701 = vld [vmem:[%s123 + $0xa9] sm:$0x3f]
      %v3702 = vld [vmem:[%s123 + $0xb1] sm:$0x3f]
      %v3703 = vld [vmem:[%s123 + $0xb9] sm:$0x3f]
      %v3704 = vmul.f32 %v3680, %v3631
      %v3705 = vmul.f32 %v3681, %v3631
      %v3706 = vmul.f32 %v3682, %v3631
      %v3707 = vmul.f32 %v3683, %v3631
      %v3708 = vmul.f32 %v3684, %v3631
      %v3709 = vmul.f32 %v3685, %v3631
      %v3710 = vmul.f32 %v3686, %v3631
      %v3711 = vmul.f32 %v3687, %v3631
      %v3712 = vmul.f32 %v3688, %v3631
      %v3713 = vmul.f32 %v3689, %v3631
      %v3714 = vmul.f32 %v3690, %v3631
      %v3715 = vmul.f32 %v3691, %v3631
      %v3716 = vmul.f32 %v3692, %v3631
      %v3717 = vmul.f32 %v3693, %v3631
      %v3718 = vmul.f32 %v3694, %v3631
      %v3719 = vmul.f32 %v3695, %v3631
      %v3720 = vmul.f32 %v3696, %v3631
      %v3721 = vmul.f32 %v3697, %v3631
      %v3722 = vmul.f32 %v3698, %v3631
      %v3723 = vmul.f32 %v3699, %v3631
      %v3724 = vmul.f32 %v3700, %v3631
      %v3725 = vmul.f32 %v3701, %v3631
      %v3726 = vmul.f32 %v3702, %v3631
      %v3727 = vmul.f32 %v3703, %v3631
      %v3728 = vadd.f32 %v3606, %v3704
      %v3729 = vadd.f32 %v3607, %v3705
      %v3730 = vadd.f32 %v3608, %v3706
      %v3731 = vadd.f32 %v3609, %v3707
      %v3732 = vadd.f32 %v3610, %v3708
      %v3733 = vadd.f32 %v3611, %v3709
      %v3734 = vadd.f32 %v3612, %v3710
      %v3735 = vadd.f32 %v3613, %v3711
      %v3736 = vadd.f32 %v3614, %v3712
      %v3737 = vadd.f32 %v3615, %v3713
      %v3738 = vadd.f32 %v3616, %v3714
      %v3739 = vadd.f32 %v3617, %v3715
      %v3740 = vadd.f32 %v3618, %v3716
      %v3741 = vadd.f32 %v3619, %v3717
      %v3742 = vadd.f32 %v3620, %v3718
      %v3743 = vadd.f32 %v3621, %v3719
      %v3744 = vadd.f32 %v3622, %v3720
      %v3745 = vadd.f32 %v3623, %v3721
      %v3746 = vadd.f32 %v3624, %v3722
      %v3747 = vadd.f32 %v3625, %v3723
      %v3748 = vadd.f32 %v3626, %v3724
      %v3749 = vadd.f32 %v3627, %v3725
      %v3750 = vadd.f32 %v3628, %v3726
      %v3751 = vadd.f32 %v3629, %v3727
      %s3752 = sld [smem:[#allocation2 + %s444]]
      %v3753 = vstv %s3752
      %v3754 = vmul.f32 %v3680, %v3753
      %v3755 = vmul.f32 %v3681, %v3753
      %v3756 = vmul.f32 %v3682, %v3753
      %v3757 = vmul.f32 %v3683, %v3753
      %v3758 = vmul.f32 %v3684, %v3753
      %v3759 = vmul.f32 %v3685, %v3753
      %v3760 = vmul.f32 %v3686, %v3753
      %v3761 = vmul.f32 %v3687, %v3753
      %v3762 = vmul.f32 %v3688, %v3753
      %v3763 = vmul.f32 %v3689, %v3753
      %v3764 = vmul.f32 %v3690, %v3753
      %v3765 = vmul.f32 %v3691, %v3753
      %v3766 = vmul.f32 %v3692, %v3753
      %v3767 = vmul.f32 %v3693, %v3753
      %v3768 = vmul.f32 %v3694, %v3753
      %v3769 = vmul.f32 %v3695, %v3753
      %v3770 = vmul.f32 %v3696, %v3753
      %v3771 = vmul.f32 %v3697, %v3753
      %v3772 = vmul.f32 %v3698, %v3753
      %v3773 = vmul.f32 %v3699, %v3753
      %v3774 = vmul.f32 %v3700, %v3753
      %v3775 = vmul.f32 %v3701, %v3753
      %v3776 = vmul.f32 %v3702, %v3753
      %v3777 = vmul.f32 %v3703, %v3753
      %v3778 = vadd.f32 %v3656, %v3754
      %v3779 = vadd.f32 %v3657, %v3755
      %v3780 = vadd.f32 %v3658, %v3756
      %v3781 = vadd.f32 %v3659, %v3757
      %v3782 = vadd.f32 %v3660, %v3758
      %v3783 = vadd.f32 %v3661, %v3759
      %v3784 = vadd.f32 %v3662, %v3760
      %v3785 = vadd.f32 %v3663, %v3761
      %v3786 = vadd.f32 %v3664, %v3762
      %v3787 = vadd.f32 %v3665, %v3763
      %v3788 = vadd.f32 %v3666, %v3764
      %v3789 = vadd.f32 %v3667, %v3765
      %v3790 = vadd.f32 %v3668, %v3766
      %v3791 = vadd.f32 %v3669, %v3767
      %v3792 = vadd.f32 %v3670, %v3768
      %v3793 = vadd.f32 %v3671, %v3769
      %v3794 = vadd.f32 %v3672, %v3770
      %v3795 = vadd.f32 %v3673, %v3771
      %v3796 = vadd.f32 %v3674, %v3772
      %v3797 = vadd.f32 %v3675, %v3773
      %v3798 = vadd.f32 %v3676, %v3774
      %v3799 = vadd.f32 %v3677, %v3775
      %v3800 = vadd.f32 %v3678, %v3776
      %v3801 = vadd.f32 %v3679, %v3777
      %v3802 = vld [vmem:[%s247 + $0x1] sm:$0x3f]
      %v3803 = vld [vmem:[%s247 + $0x9] sm:$0x3f]
      %v3804 = vld [vmem:[%s247 + $0x11] sm:$0x3f]
      %v3805 = vld [vmem:[%s247 + $0x19] sm:$0x3f]
      %v3806 = vld [vmem:[%s247 + $0x21] sm:$0x3f]
      %v3807 = vld [vmem:[%s247 + $0x29] sm:$0x3f]
      %v3808 = vld [vmem:[%s247 + $0x31] sm:$0x3f]
      %v3809 = vld [vmem:[%s247 + $0x39] sm:$0x3f]
      %v3810 = vld [vmem:[%s247 + $0x41] sm:$0x3f]
      %v3811 = vld [vmem:[%s247 + $0x49] sm:$0x3f]
      %v3812 = vld [vmem:[%s247 + $0x51] sm:$0x3f]
      %v3813 = vld [vmem:[%s247 + $0x59] sm:$0x3f]
      %v3814 = vld [vmem:[%s247 + $0x61] sm:$0x3f]
      %v3815 = vld [vmem:[%s247 + $0x69] sm:$0x3f]
      %v3816 = vld [vmem:[%s247 + $0x71] sm:$0x3f]
      %v3817 = vld [vmem:[%s247 + $0x79] sm:$0x3f]
      %v3818 = vld [vmem:[%s247 + $0x81] sm:$0x3f]
      %v3819 = vld [vmem:[%s247 + $0x89] sm:$0x3f]
      %v3820 = vld [vmem:[%s247 + $0x91] sm:$0x3f]
      %v3821 = vld [vmem:[%s247 + $0x99] sm:$0x3f]
      %v3822 = vld [vmem:[%s247 + $0xa1] sm:$0x3f]
      %v3823 = vld [vmem:[%s247 + $0xa9] sm:$0x3f]
      %v3824 = vld [vmem:[%s247 + $0xb1] sm:$0x3f]
      %v3825 = vld [vmem:[%s247 + $0xb9] sm:$0x3f]
      %v3826 = vmul.f32 %v3802, %v3753
      %v3827 = vmul.f32 %v3803, %v3753
      %v3828 = vmul.f32 %v3804, %v3753
      %v3829 = vmul.f32 %v3805, %v3753
      %v3830 = vmul.f32 %v3806, %v3753
      %v3831 = vmul.f32 %v3807, %v3753
      %v3832 = vmul.f32 %v3808, %v3753
      %v3833 = vmul.f32 %v3809, %v3753
      %v3834 = vmul.f32 %v3810, %v3753
      %v3835 = vmul.f32 %v3811, %v3753
      %v3836 = vmul.f32 %v3812, %v3753
      %v3837 = vmul.f32 %v3813, %v3753
      %v3838 = vmul.f32 %v3814, %v3753
      %v3839 = vmul.f32 %v3815, %v3753
      %v3840 = vmul.f32 %v3816, %v3753
      %v3841 = vmul.f32 %v3817, %v3753
      %v3842 = vmul.f32 %v3818, %v3753
      %v3843 = vmul.f32 %v3819, %v3753
      %v3844 = vmul.f32 %v3820, %v3753
      %v3845 = vmul.f32 %v3821, %v3753
      %v3846 = vmul.f32 %v3822, %v3753
      %v3847 = vmul.f32 %v3823, %v3753
      %v3848 = vmul.f32 %v3824, %v3753
      %v3849 = vmul.f32 %v3825, %v3753
      %v3850 = vadd.f32 %v3728, %v3826
      %v3851 = vadd.f32 %v3729, %v3827
      %v3852 = vadd.f32 %v3730, %v3828
      %v3853 = vadd.f32 %v3731, %v3829
      %v3854 = vadd.f32 %v3732, %v3830
      %v3855 = vadd.f32 %v3733, %v3831
      %v3856 = vadd.f32 %v3734, %v3832
      %v3857 = vadd.f32 %v3735, %v3833
      %v3858 = vadd.f32 %v3736, %v3834
      %v3859 = vadd.f32 %v3737, %v3835
      %v3860 = vadd.f32 %v3738, %v3836
      %v3861 = vadd.f32 %v3739, %v3837
      %v3862 = vadd.f32 %v3740, %v3838
      %v3863 = vadd.f32 %v3741, %v3839
      %v3864 = vadd.f32 %v3742, %v3840
      %v3865 = vadd.f32 %v3743, %v3841
      %v3866 = vadd.f32 %v3744, %v3842
      %v3867 = vadd.f32 %v3745, %v3843
      %v3868 = vadd.f32 %v3746, %v3844
      %v3869 = vadd.f32 %v3747, %v3845
      %v3870 = vadd.f32 %v3748, %v3846
      %v3871 = vadd.f32 %v3749, %v3847
      %v3872 = vadd.f32 %v3750, %v3848
      %v3873 = vadd.f32 %v3751, %v3849
      %s3874 = sld [smem:[#allocation2 + %s567]]
      %v3875 = vstv %s3874
      %v3876 = vmul.f32 %v3802, %v3875
      %v3877 = vmul.f32 %v3803, %v3875
      %v3878 = vmul.f32 %v3804, %v3875
      %v3879 = vmul.f32 %v3805, %v3875
      %v3880 = vmul.f32 %v3806, %v3875
      %v3881 = vmul.f32 %v3807, %v3875
      %v3882 = vmul.f32 %v3808, %v3875
      %v3883 = vmul.f32 %v3809, %v3875
      %v3884 = vmul.f32 %v3810, %v3875
      %v3885 = vmul.f32 %v3811, %v3875
      %v3886 = vmul.f32 %v3812, %v3875
      %v3887 = vmul.f32 %v3813, %v3875
      %v3888 = vmul.f32 %v3814, %v3875
      %v3889 = vmul.f32 %v3815, %v3875
      %v3890 = vmul.f32 %v3816, %v3875
      %v3891 = vmul.f32 %v3817, %v3875
      %v3892 = vmul.f32 %v3818, %v3875
      %v3893 = vmul.f32 %v3819, %v3875
      %v3894 = vmul.f32 %v3820, %v3875
      %v3895 = vmul.f32 %v3821, %v3875
      %v3896 = vmul.f32 %v3822, %v3875
      %v3897 = vmul.f32 %v3823, %v3875
      %v3898 = vmul.f32 %v3824, %v3875
      %v3899 = vmul.f32 %v3825, %v3875
      %v3900 = vadd.f32 %v3778, %v3876
      %v3901 = vadd.f32 %v3779, %v3877
      %v3902 = vadd.f32 %v3780, %v3878
      %v3903 = vadd.f32 %v3781, %v3879
      %v3904 = vadd.f32 %v3782, %v3880
      %v3905 = vadd.f32 %v3783, %v3881
      %v3906 = vadd.f32 %v3784, %v3882
      %v3907 = vadd.f32 %v3785, %v3883
      %v3908 = vadd.f32 %v3786, %v3884
      %v3909 = vadd.f32 %v3787, %v3885
      %v3910 = vadd.f32 %v3788, %v3886
      %v3911 = vadd.f32 %v3789, %v3887
      %v3912 = vadd.f32 %v3790, %v3888
      %v3913 = vadd.f32 %v3791, %v3889
      %v3914 = vadd.f32 %v3792, %v3890
      %v3915 = vadd.f32 %v3793, %v3891
      %v3916 = vadd.f32 %v3794, %v3892
      %v3917 = vadd.f32 %v3795, %v3893
      %v3918 = vadd.f32 %v3796, %v3894
      %v3919 = vadd.f32 %v3797, %v3895
      %v3920 = vadd.f32 %v3798, %v3896
      %v3921 = vadd.f32 %v3799, %v3897
      %v3922 = vadd.f32 %v3800, %v3898
      %v3923 = vadd.f32 %v3801, %v3899
      %v3924 = vld [vmem:[%s371 + $0x1] sm:$0x3f]
      %v3925 = vld [vmem:[%s371 + $0x9] sm:$0x3f]
      %v3926 = vld [vmem:[%s371 + $0x11] sm:$0x3f]
      %v3927 = vld [vmem:[%s371 + $0x19] sm:$0x3f]
      %v3928 = vld [vmem:[%s371 + $0x21] sm:$0x3f]
      %v3929 = vld [vmem:[%s371 + $0x29] sm:$0x3f]
      %v3930 = vld [vmem:[%s371 + $0x31] sm:$0x3f]
      %v3931 = vld [vmem:[%s371 + $0x39] sm:$0x3f]
      %v3932 = vld [vmem:[%s371 + $0x41] sm:$0x3f]
      %v3933 = vld [vmem:[%s371 + $0x49] sm:$0x3f]
      %v3934 = vld [vmem:[%s371 + $0x51] sm:$0x3f]
      %v3935 = vld [vmem:[%s371 + $0x59] sm:$0x3f]
      %v3936 = vld [vmem:[%s371 + $0x61] sm:$0x3f]
      %v3937 = vld [vmem:[%s371 + $0x69] sm:$0x3f]
      %v3938 = vld [vmem:[%s371 + $0x71] sm:$0x3f]
      %v3939 = vld [vmem:[%s371 + $0x79] sm:$0x3f]
      %v3940 = vld [vmem:[%s371 + $0x81] sm:$0x3f]
      %v3941 = vld [vmem:[%s371 + $0x89] sm:$0x3f]
      %v3942 = vld [vmem:[%s371 + $0x91] sm:$0x3f]
      %v3943 = vld [vmem:[%s371 + $0x99] sm:$0x3f]
      %v3944 = vld [vmem:[%s371 + $0xa1] sm:$0x3f]
      %v3945 = vld [vmem:[%s371 + $0xa9] sm:$0x3f]
      %v3946 = vld [vmem:[%s371 + $0xb1] sm:$0x3f]
      %v3947 = vld [vmem:[%s371 + $0xb9] sm:$0x3f]
      %v3948 = vmul.f32 %v3924, %v3875
      %v3949 = vmul.f32 %v3925, %v3875
      %v3950 = vmul.f32 %v3926, %v3875
      %v3951 = vmul.f32 %v3927, %v3875
      %v3952 = vmul.f32 %v3928, %v3875
      %v3953 = vmul.f32 %v3929, %v3875
      %v3954 = vmul.f32 %v3930, %v3875
      %v3955 = vmul.f32 %v3931, %v3875
      %v3956 = vmul.f32 %v3932, %v3875
      %v3957 = vmul.f32 %v3933, %v3875
      %v3958 = vmul.f32 %v3934, %v3875
      %v3959 = vmul.f32 %v3935, %v3875
      %v3960 = vmul.f32 %v3936, %v3875
      %v3961 = vmul.f32 %v3937, %v3875
      %v3962 = vmul.f32 %v3938, %v3875
      %v3963 = vmul.f32 %v3939, %v3875
      %v3964 = vmul.f32 %v3940, %v3875
      %v3965 = vmul.f32 %v3941, %v3875
      %v3966 = vmul.f32 %v3942, %v3875
      %v3967 = vmul.f32 %v3943, %v3875
      %v3968 = vmul.f32 %v3944, %v3875
      %v3969 = vmul.f32 %v3945, %v3875
      %v3970 = vmul.f32 %v3946, %v3875
      %v3971 = vmul.f32 %v3947, %v3875
      %v3972 = vadd.f32 %v3850, %v3948
      %v3973 = vadd.f32 %v3851, %v3949
      %v3974 = vadd.f32 %v3852, %v3950
      %v3975 = vadd.f32 %v3853, %v3951
      %v3976 = vadd.f32 %v3854, %v3952
      %v3977 = vadd.f32 %v3855, %v3953
      %v3978 = vadd.f32 %v3856, %v3954
      %v3979 = vadd.f32 %v3857, %v3955
      %v3980 = vadd.f32 %v3858, %v3956
      %v3981 = vadd.f32 %v3859, %v3957
      %v3982 = vadd.f32 %v3860, %v3958
      %v3983 = vadd.f32 %v3861, %v3959
      %v3984 = vadd.f32 %v3862, %v3960
      %v3985 = vadd.f32 %v3863, %v3961
      %v3986 = vadd.f32 %v3864, %v3962
      %v3987 = vadd.f32 %v3865, %v3963
      %v3988 = vadd.f32 %v3866, %v3964
      %v3989 = vadd.f32 %v3867, %v3965
      %v3990 = vadd.f32 %v3868, %v3966
      %v3991 = vadd.f32 %v3869, %v3967
      %v3992 = vadd.f32 %v3870, %v3968
      %v3993 = vadd.f32 %v3871, %v3969
      %v3994 = vadd.f32 %v3872, %v3970
      %v3995 = vadd.f32 %v3873, %v3971
      %s3996 = sld [smem:[#allocation2 + %s690]]
      %v3997 = vld [vmem:[%s890] sm:$0x3f]
      %v3998 = vld [vmem:[%s890 + $0x8] sm:$0x3f]
      %v3999 = vld [vmem:[%s890 + $0x10] sm:$0x3f]
      %v4000 = vld [vmem:[%s890 + $0x18] sm:$0x3f]
      %v4001 = vld [vmem:[%s890 + $0x20] sm:$0x3f]
      %v4002 = vld [vmem:[%s890 + $0x28] sm:$0x3f]
      %v4003 = vld [vmem:[%s890 + $0x30] sm:$0x3f]
      %v4004 = vld [vmem:[%s890 + $0x38] sm:$0x3f]
      %v4005 = vld [vmem:[%s890 + $0x40] sm:$0x3f]
      %v4006 = vld [vmem:[%s890 + $0x48] sm:$0x3f]
      %v4007 = vld [vmem:[%s890 + $0x50] sm:$0x3f]
      %v4008 = vld [vmem:[%s890 + $0x58] sm:$0x3f]
      %v4009 = vld [vmem:[%s890 + $0x60] sm:$0x3f]
      %v4010 = vld [vmem:[%s890 + $0x68] sm:$0x3f]
      %v4011 = vld [vmem:[%s890 + $0x70] sm:$0x3f]
      %v4012 = vld [vmem:[%s890 + $0x78] sm:$0x3f]
      %v4013 = vld [vmem:[%s890 + $0x80] sm:$0x3f]
      %v4014 = vld [vmem:[%s890 + $0x88] sm:$0x3f]
      %v4015 = vld [vmem:[%s890 + $0x90] sm:$0x3f]
      %v4016 = vld [vmem:[%s890 + $0x98] sm:$0x3f]
      %v4017 = vld [vmem:[%s890 + $0xa0] sm:$0x3f]
      %v4018 = vld [vmem:[%s890 + $0xa8] sm:$0x3f]
      %v4019 = vld [vmem:[%s890 + $0xb0] sm:$0x3f]
      %v4020 = vld [vmem:[%s890 + $0xb8] sm:$0x3f]
      %v4021 = vstv %s3996
      %v4022 = vmul.f32 %v3997, %v4021
      %v4023 = vmul.f32 %v3998, %v4021
      %v4024 = vmul.f32 %v3999, %v4021
      %v4025 = vmul.f32 %v4000, %v4021
      %v4026 = vmul.f32 %v4001, %v4021
      %v4027 = vmul.f32 %v4002, %v4021
      %v4028 = vmul.f32 %v4003, %v4021
      %v4029 = vmul.f32 %v4004, %v4021
      %v4030 = vmul.f32 %v4005, %v4021
      %v4031 = vmul.f32 %v4006, %v4021
      %v4032 = vmul.f32 %v4007, %v4021
      %v4033 = vmul.f32 %v4008, %v4021
      %v4034 = vmul.f32 %v4009, %v4021
      %v4035 = vmul.f32 %v4010, %v4021
      %v4036 = vmul.f32 %v4011, %v4021
      %v4037 = vmul.f32 %v4012, %v4021
      %v4038 = vmul.f32 %v4013, %v4021
      %v4039 = vmul.f32 %v4014, %v4021
      %v4040 = vmul.f32 %v4015, %v4021
      %v4041 = vmul.f32 %v4016, %v4021
      %v4042 = vmul.f32 %v4017, %v4021
      %v4043 = vmul.f32 %v4018, %v4021
      %v4044 = vmul.f32 %v4019, %v4021
      %v4045 = vmul.f32 %v4020, %v4021
      %v4046 = vadd.f32 %v3900, %v4022
      %v4047 = vadd.f32 %v3901, %v4023
      %v4048 = vadd.f32 %v3902, %v4024
      %v4049 = vadd.f32 %v3903, %v4025
      %v4050 = vadd.f32 %v3904, %v4026
      %v4051 = vadd.f32 %v3905, %v4027
      %v4052 = vadd.f32 %v3906, %v4028
      %v4053 = vadd.f32 %v3907, %v4029
      %v4054 = vadd.f32 %v3908, %v4030
      %v4055 = vadd.f32 %v3909, %v4031
      %v4056 = vadd.f32 %v3910, %v4032
      %v4057 = vadd.f32 %v3911, %v4033
      %v4058 = vadd.f32 %v3912, %v4034
      %v4059 = vadd.f32 %v3913, %v4035
      %v4060 = vadd.f32 %v3914, %v4036
      %v4061 = vadd.f32 %v3915, %v4037
      %v4062 = vadd.f32 %v3916, %v4038
      %v4063 = vadd.f32 %v3917, %v4039
      %v4064 = vadd.f32 %v3918, %v4040
      %v4065 = vadd.f32 %v3919, %v4041
      %v4066 = vadd.f32 %v3920, %v4042
      %v4067 = vadd.f32 %v3921, %v4043
      %v4068 = vadd.f32 %v3922, %v4044
      %v4069 = vadd.f32 %v3923, %v4045
      %v4070 = vld [vmem:[%s1014] sm:$0x3f]
      %v4071 = vld [vmem:[%s1014 + $0x8] sm:$0x3f]
      %v4072 = vld [vmem:[%s1014 + $0x10] sm:$0x3f]
      %v4073 = vld [vmem:[%s1014 + $0x18] sm:$0x3f]
      %v4074 = vld [vmem:[%s1014 + $0x20] sm:$0x3f]
      %v4075 = vld [vmem:[%s1014 + $0x28] sm:$0x3f]
      %v4076 = vld [vmem:[%s1014 + $0x30] sm:$0x3f]
      %v4077 = vld [vmem:[%s1014 + $0x38] sm:$0x3f]
      %v4078 = vld [vmem:[%s1014 + $0x40] sm:$0x3f]
      %v4079 = vld [vmem:[%s1014 + $0x48] sm:$0x3f]
      %v4080 = vld [vmem:[%s1014 + $0x50] sm:$0x3f]
      %v4081 = vld [vmem:[%s1014 + $0x58] sm:$0x3f]
      %v4082 = vld [vmem:[%s1014 + $0x60] sm:$0x3f]
      %v4083 = vld [vmem:[%s1014 + $0x68] sm:$0x3f]
      %v4084 = vld [vmem:[%s1014 + $0x70] sm:$0x3f]
      %v4085 = vld [vmem:[%s1014 + $0x78] sm:$0x3f]
      %v4086 = vld [vmem:[%s1014 + $0x80] sm:$0x3f]
      %v4087 = vld [vmem:[%s1014 + $0x88] sm:$0x3f]
      %v4088 = vld [vmem:[%s1014 + $0x90] sm:$0x3f]
      %v4089 = vld [vmem:[%s1014 + $0x98] sm:$0x3f]
      %v4090 = vld [vmem:[%s1014 + $0xa0] sm:$0x3f]
      %v4091 = vld [vmem:[%s1014 + $0xa8] sm:$0x3f]
      %v4092 = vld [vmem:[%s1014 + $0xb0] sm:$0x3f]
      %v4093 = vld [vmem:[%s1014 + $0xb8] sm:$0x3f]
      %v4094 = vmul.f32 %v4070, %v4021
      %v4095 = vmul.f32 %v4071, %v4021
      %v4096 = vmul.f32 %v4072, %v4021
      %v4097 = vmul.f32 %v4073, %v4021
      %v4098 = vmul.f32 %v4074, %v4021
      %v4099 = vmul.f32 %v4075, %v4021
      %v4100 = vmul.f32 %v4076, %v4021
      %v4101 = vmul.f32 %v4077, %v4021
      %v4102 = vmul.f32 %v4078, %v4021
      %v4103 = vmul.f32 %v4079, %v4021
      %v4104 = vmul.f32 %v4080, %v4021
      %v4105 = vmul.f32 %v4081, %v4021
      %v4106 = vmul.f32 %v4082, %v4021
      %v4107 = vmul.f32 %v4083, %v4021
      %v4108 = vmul.f32 %v4084, %v4021
      %v4109 = vmul.f32 %v4085, %v4021
      %v4110 = vmul.f32 %v4086, %v4021
      %v4111 = vmul.f32 %v4087, %v4021
      %v4112 = vmul.f32 %v4088, %v4021
      %v4113 = vmul.f32 %v4089, %v4021
      %v4114 = vmul.f32 %v4090, %v4021
      %v4115 = vmul.f32 %v4091, %v4021
      %v4116 = vmul.f32 %v4092, %v4021
      %v4117 = vmul.f32 %v4093, %v4021
      %v4118 = vadd.f32 %v3972, %v4094
      %v4119 = vadd.f32 %v3973, %v4095
      %v4120 = vadd.f32 %v3974, %v4096
      %v4121 = vadd.f32 %v3975, %v4097
      %v4122 = vadd.f32 %v3976, %v4098
      %v4123 = vadd.f32 %v3977, %v4099
      %v4124 = vadd.f32 %v3978, %v4100
      %v4125 = vadd.f32 %v3979, %v4101
      %v4126 = vadd.f32 %v3980, %v4102
      %v4127 = vadd.f32 %v3981, %v4103
      %v4128 = vadd.f32 %v3982, %v4104
      %v4129 = vadd.f32 %v3983, %v4105
      %v4130 = vadd.f32 %v3984, %v4106
      %v4131 = vadd.f32 %v3985, %v4107
      %v4132 = vadd.f32 %v3986, %v4108
      %v4133 = vadd.f32 %v3987, %v4109
      %v4134 = vadd.f32 %v3988, %v4110
      %v4135 = vadd.f32 %v3989, %v4111
      %v4136 = vadd.f32 %v3990, %v4112
      %v4137 = vadd.f32 %v3991, %v4113
      %v4138 = vadd.f32 %v3992, %v4114
      %v4139 = vadd.f32 %v3993, %v4115
      %v4140 = vadd.f32 %v3994, %v4116
      %v4141 = vadd.f32 %v3995, %v4117
      %s4142 = sld [smem:[#allocation2 + %s839]]
      %v4143 = vstv %s4142
      %v4144 = vmul.f32 %v4070, %v4143
      %v4145 = vmul.f32 %v4071, %v4143
      %v4146 = vmul.f32 %v4072, %v4143
      %v4147 = vmul.f32 %v4073, %v4143
      %v4148 = vmul.f32 %v4074, %v4143
      %v4149 = vmul.f32 %v4075, %v4143
      %v4150 = vmul.f32 %v4076, %v4143
      %v4151 = vmul.f32 %v4077, %v4143
      %v4152 = vmul.f32 %v4078, %v4143
      %v4153 = vmul.f32 %v4079, %v4143
      %v4154 = vmul.f32 %v4080, %v4143
      %v4155 = vmul.f32 %v4081, %v4143
      %v4156 = vmul.f32 %v4082, %v4143
      %v4157 = vmul.f32 %v4083, %v4143
      %v4158 = vmul.f32 %v4084, %v4143
      %v4159 = vmul.f32 %v4085, %v4143
      %v4160 = vmul.f32 %v4086, %v4143
      %v4161 = vmul.f32 %v4087, %v4143
      %v4162 = vmul.f32 %v4088, %v4143
      %v4163 = vmul.f32 %v4089, %v4143
      %v4164 = vmul.f32 %v4090, %v4143
      %v4165 = vmul.f32 %v4091, %v4143
      %v4166 = vmul.f32 %v4092, %v4143
      %v4167 = vmul.f32 %v4093, %v4143
      %v4168 = vadd.f32 %v4046, %v4144
      %v4169 = vadd.f32 %v4047, %v4145
      %v4170 = vadd.f32 %v4048, %v4146
      %v4171 = vadd.f32 %v4049, %v4147
      %v4172 = vadd.f32 %v4050, %v4148
      %v4173 = vadd.f32 %v4051, %v4149
      %v4174 = vadd.f32 %v4052, %v4150
      %v4175 = vadd.f32 %v4053, %v4151
      %v4176 = vadd.f32 %v4054, %v4152
      %v4177 = vadd.f32 %v4055, %v4153
      %v4178 = vadd.f32 %v4056, %v4154
      %v4179 = vadd.f32 %v4057, %v4155
      %v4180 = vadd.f32 %v4058, %v4156
      %v4181 = vadd.f32 %v4059, %v4157
      %v4182 = vadd.f32 %v4060, %v4158
      %v4183 = vadd.f32 %v4061, %v4159
      %v4184 = vadd.f32 %v4062, %v4160
      %v4185 = vadd.f32 %v4063, %v4161
      %v4186 = vadd.f32 %v4064, %v4162
      %v4187 = vadd.f32 %v4065, %v4163
      %v4188 = vadd.f32 %v4066, %v4164
      %v4189 = vadd.f32 %v4067, %v4165
      %v4190 = vadd.f32 %v4068, %v4166
      %v4191 = vadd.f32 %v4069, %v4167
      %v4192 = vld [vmem:[%s692 + $0x1] sm:$0x3f]
      %v4193 = vld [vmem:[%s692 + $0x9] sm:$0x3f]
      %v4194 = vld [vmem:[%s692 + $0x11] sm:$0x3f]
      %v4195 = vld [vmem:[%s692 + $0x19] sm:$0x3f]
      %v4196 = vld [vmem:[%s692 + $0x21] sm:$0x3f]
      %v4197 = vld [vmem:[%s692 + $0x29] sm:$0x3f]
      %v4198 = vld [vmem:[%s692 + $0x31] sm:$0x3f]
      %v4199 = vld [vmem:[%s692 + $0x39] sm:$0x3f]
      %v4200 = vld [vmem:[%s692 + $0x41] sm:$0x3f]
      %v4201 = vld [vmem:[%s692 + $0x49] sm:$0x3f]
      %v4202 = vld [vmem:[%s692 + $0x51] sm:$0x3f]
      %v4203 = vld [vmem:[%s692 + $0x59] sm:$0x3f]
      %v4204 = vld [vmem:[%s692 + $0x61] sm:$0x3f]
      %v4205 = vld [vmem:[%s692 + $0x69] sm:$0x3f]
      %v4206 = vld [vmem:[%s692 + $0x71] sm:$0x3f]
      %v4207 = vld [vmem:[%s692 + $0x79] sm:$0x3f]
      %v4208 = vld [vmem:[%s692 + $0x81] sm:$0x3f]
      %v4209 = vld [vmem:[%s692 + $0x89] sm:$0x3f]
      %v4210 = vld [vmem:[%s692 + $0x91] sm:$0x3f]
      %v4211 = vld [vmem:[%s692 + $0x99] sm:$0x3f]
      %v4212 = vld [vmem:[%s692 + $0xa1] sm:$0x3f]
      %v4213 = vld [vmem:[%s692 + $0xa9] sm:$0x3f]
      %v4214 = vld [vmem:[%s692 + $0xb1] sm:$0x3f]
      %v4215 = vld [vmem:[%s692 + $0xb9] sm:$0x3f]
      %v4216 = vmul.f32 %v4192, %v4143
      %v4217 = vmul.f32 %v4193, %v4143
      %v4218 = vmul.f32 %v4194, %v4143
      %v4219 = vmul.f32 %v4195, %v4143
      %v4220 = vmul.f32 %v4196, %v4143
      %v4221 = vmul.f32 %v4197, %v4143
      %v4222 = vmul.f32 %v4198, %v4143
      %v4223 = vmul.f32 %v4199, %v4143
      %v4224 = vmul.f32 %v4200, %v4143
      %v4225 = vmul.f32 %v4201, %v4143
      %v4226 = vmul.f32 %v4202, %v4143
      %v4227 = vmul.f32 %v4203, %v4143
      %v4228 = vmul.f32 %v4204, %v4143
      %v4229 = vmul.f32 %v4205, %v4143
      %v4230 = vmul.f32 %v4206, %v4143
      %v4231 = vmul.f32 %v4207, %v4143
      %v4232 = vmul.f32 %v4208, %v4143
      %v4233 = vmul.f32 %v4209, %v4143
      %v4234 = vmul.f32 %v4210, %v4143
      %v4235 = vmul.f32 %v4211, %v4143
      %v4236 = vmul.f32 %v4212, %v4143
      %v4237 = vmul.f32 %v4213, %v4143
      %v4238 = vmul.f32 %v4214, %v4143
      %v4239 = vmul.f32 %v4215, %v4143
      %v4240 = vadd.f32 %v4118, %v4216
      %v4241 = vadd.f32 %v4119, %v4217
      %v4242 = vadd.f32 %v4120, %v4218
      %v4243 = vadd.f32 %v4121, %v4219
      %v4244 = vadd.f32 %v4122, %v4220
      %v4245 = vadd.f32 %v4123, %v4221
      %v4246 = vadd.f32 %v4124, %v4222
      %v4247 = vadd.f32 %v4125, %v4223
      %v4248 = vadd.f32 %v4126, %v4224
      %v4249 = vadd.f32 %v4127, %v4225
      %v4250 = vadd.f32 %v4128, %v4226
      %v4251 = vadd.f32 %v4129, %v4227
      %v4252 = vadd.f32 %v4130, %v4228
      %v4253 = vadd.f32 %v4131, %v4229
      %v4254 = vadd.f32 %v4132, %v4230
      %v4255 = vadd.f32 %v4133, %v4231
      %v4256 = vadd.f32 %v4134, %v4232
      %v4257 = vadd.f32 %v4135, %v4233
      %v4258 = vadd.f32 %v4136, %v4234
      %v4259 = vadd.f32 %v4137, %v4235
      %v4260 = vadd.f32 %v4138, %v4236
      %v4261 = vadd.f32 %v4139, %v4237
      %v4262 = vadd.f32 %v4140, %v4238
      %v4263 = vadd.f32 %v4141, %v4239
      %s4264 = sld [smem:[#allocation2 + %s963]]
      %v4265 = vstv %s4264
      %v4266 = vmul.f32 %v4192, %v4265
      %v4267 = vmul.f32 %v4193, %v4265
      %v4268 = vmul.f32 %v4194, %v4265
      %v4269 = vmul.f32 %v4195, %v4265
      %v4270 = vmul.f32 %v4196, %v4265
      %v4271 = vmul.f32 %v4197, %v4265
      %v4272 = vmul.f32 %v4198, %v4265
      %v4273 = vmul.f32 %v4199, %v4265
      %v4274 = vmul.f32 %v4200, %v4265
      %v4275 = vmul.f32 %v4201, %v4265
      %v4276 = vmul.f32 %v4202, %v4265
      %v4277 = vmul.f32 %v4203, %v4265
      %v4278 = vmul.f32 %v4204, %v4265
      %v4279 = vmul.f32 %v4205, %v4265
      %v4280 = vmul.f32 %v4206, %v4265
      %v4281 = vmul.f32 %v4207, %v4265
      %v4282 = vmul.f32 %v4208, %v4265
      %v4283 = vmul.f32 %v4209, %v4265
      %v4284 = vmul.f32 %v4210, %v4265
      %v4285 = vmul.f32 %v4211, %v4265
      %v4286 = vmul.f32 %v4212, %v4265
      %v4287 = vmul.f32 %v4213, %v4265
      %v4288 = vmul.f32 %v4214, %v4265
      %v4289 = vmul.f32 %v4215, %v4265
      %v4290 = vadd.f32 %v4168, %v4266
      %v4291 = vadd.f32 %v4169, %v4267
      %v4292 = vadd.f32 %v4170, %v4268
      %v4293 = vadd.f32 %v4171, %v4269
      %v4294 = vadd.f32 %v4172, %v4270
      %v4295 = vadd.f32 %v4173, %v4271
      %v4296 = vadd.f32 %v4174, %v4272
      %v4297 = vadd.f32 %v4175, %v4273
      %v4298 = vadd.f32 %v4176, %v4274
      %v4299 = vadd.f32 %v4177, %v4275
      %v4300 = vadd.f32 %v4178, %v4276
      %v4301 = vadd.f32 %v4179, %v4277
      %v4302 = vadd.f32 %v4180, %v4278
      %v4303 = vadd.f32 %v4181, %v4279
      %v4304 = vadd.f32 %v4182, %v4280
      %v4305 = vadd.f32 %v4183, %v4281
      %v4306 = vadd.f32 %v4184, %v4282
      %v4307 = vadd.f32 %v4185, %v4283
      %v4308 = vadd.f32 %v4186, %v4284
      %v4309 = vadd.f32 %v4187, %v4285
      %v4310 = vadd.f32 %v4188, %v4286
      %v4311 = vadd.f32 %v4189, %v4287
      %v4312 = vadd.f32 %v4190, %v4288
      %v4313 = vadd.f32 %v4191, %v4289
      %v4314 = vld [vmem:[%s766 + $0x1] sm:$0x3f]
      %v4315 = vld [vmem:[%s766 + $0x9] sm:$0x3f]
      %v4316 = vld [vmem:[%s766 + $0x11] sm:$0x3f]
      %v4317 = vld [vmem:[%s766 + $0x19] sm:$0x3f]
      %v4318 = vld [vmem:[%s766 + $0x21] sm:$0x3f]
      %v4319 = vld [vmem:[%s766 + $0x29] sm:$0x3f]
      %v4320 = vld [vmem:[%s766 + $0x31] sm:$0x3f]
      %v4321 = vld [vmem:[%s766 + $0x39] sm:$0x3f]
      %v4322 = vld [vmem:[%s766 + $0x41] sm:$0x3f]
      %v4323 = vld [vmem:[%s766 + $0x49] sm:$0x3f]
      %v4324 = vld [vmem:[%s766 + $0x51] sm:$0x3f]
      %v4325 = vld [vmem:[%s766 + $0x59] sm:$0x3f]
      %v4326 = vld [vmem:[%s766 + $0x61] sm:$0x3f]
      %v4327 = vld [vmem:[%s766 + $0x69] sm:$0x3f]
      %v4328 = vld [vmem:[%s766 + $0x71] sm:$0x3f]
      %v4329 = vld [vmem:[%s766 + $0x79] sm:$0x3f]
      %v4330 = vld [vmem:[%s766 + $0x81] sm:$0x3f]
      %v4331 = vld [vmem:[%s766 + $0x89] sm:$0x3f]
      %v4332 = vld [vmem:[%s766 + $0x91] sm:$0x3f]
      %v4333 = vld [vmem:[%s766 + $0x99] sm:$0x3f]
      %v4334 = vld [vmem:[%s766 + $0xa1] sm:$0x3f]
      %v4335 = vld [vmem:[%s766 + $0xa9] sm:$0x3f]
      %v4336 = vld [vmem:[%s766 + $0xb1] sm:$0x3f]
      %v4337 = vld [vmem:[%s766 + $0xb9] sm:$0x3f]
      %v4338 = vmul.f32 %v4314, %v4265
      %v4339 = vmul.f32 %v4315, %v4265
      %v4340 = vmul.f32 %v4316, %v4265
      %v4341 = vmul.f32 %v4317, %v4265
      %v4342 = vmul.f32 %v4318, %v4265
      %v4343 = vmul.f32 %v4319, %v4265
      %v4344 = vmul.f32 %v4320, %v4265
      %v4345 = vmul.f32 %v4321, %v4265
      %v4346 = vmul.f32 %v4322, %v4265
      %v4347 = vmul.f32 %v4323, %v4265
      %v4348 = vmul.f32 %v4324, %v4265
      %v4349 = vmul.f32 %v4325, %v4265
      %v4350 = vmul.f32 %v4326, %v4265
      %v4351 = vmul.f32 %v4327, %v4265
      %v4352 = vmul.f32 %v4328, %v4265
      %v4353 = vmul.f32 %v4329, %v4265
      %v4354 = vmul.f32 %v4330, %v4265
      %v4355 = vmul.f32 %v4331, %v4265
      %v4356 = vmul.f32 %v4332, %v4265
      %v4357 = vmul.f32 %v4333, %v4265
      %v4358 = vmul.f32 %v4334, %v4265
      %v4359 = vmul.f32 %v4335, %v4265
      %v4360 = vmul.f32 %v4336, %v4265
      %v4361 = vmul.f32 %v4337, %v4265
      %v4362 = vadd.f32 %v4240, %v4338
      %v4363 = vadd.f32 %v4241, %v4339
      %v4364 = vadd.f32 %v4242, %v4340
      %v4365 = vadd.f32 %v4243, %v4341
      %v4366 = vadd.f32 %v4244, %v4342
      %v4367 = vadd.f32 %v4245, %v4343
      %v4368 = vadd.f32 %v4246, %v4344
      %v4369 = vadd.f32 %v4247, %v4345
      %v4370 = vadd.f32 %v4248, %v4346
      %v4371 = vadd.f32 %v4249, %v4347
      %v4372 = vadd.f32 %v4250, %v4348
      %v4373 = vadd.f32 %v4251, %v4349
      %v4374 = vadd.f32 %v4252, %v4350
      %v4375 = vadd.f32 %v4253, %v4351
      %v4376 = vadd.f32 %v4254, %v4352
      %v4377 = vadd.f32 %v4255, %v4353
      %v4378 = vadd.f32 %v4256, %v4354
      %v4379 = vadd.f32 %v4257, %v4355
      %v4380 = vadd.f32 %v4258, %v4356
      %v4381 = vadd.f32 %v4259, %v4357
      %v4382 = vadd.f32 %v4260, %v4358
      %v4383 = vadd.f32 %v4261, %v4359
      %v4384 = vadd.f32 %v4262, %v4360
      %v4385 = vadd.f32 %v4263, %v4361
      %s4386 = sld [smem:[#allocation2 + %s1087]]
      %v4387 = vstv %s4386
      %v4388 = vmul.f32 %v4314, %v4387
      %v4389 = vmul.f32 %v4315, %v4387
      %v4390 = vmul.f32 %v4316, %v4387
      %v4391 = vmul.f32 %v4317, %v4387
      %v4392 = vmul.f32 %v4318, %v4387
      %v4393 = vmul.f32 %v4319, %v4387
      %v4394 = vmul.f32 %v4320, %v4387
      %v4395 = vmul.f32 %v4321, %v4387
      %v4396 = vmul.f32 %v4322, %v4387
      %v4397 = vmul.f32 %v4323, %v4387
      %v4398 = vmul.f32 %v4324, %v4387
      %v4399 = vmul.f32 %v4325, %v4387
      %v4400 = vmul.f32 %v4326, %v4387
      %v4401 = vmul.f32 %v4327, %v4387
      %v4402 = vmul.f32 %v4328, %v4387
      %v4403 = vmul.f32 %v4329, %v4387
      %v4404 = vmul.f32 %v4330, %v4387
      %v4405 = vmul.f32 %v4331, %v4387
      %v4406 = vmul.f32 %v4332, %v4387
      %v4407 = vmul.f32 %v4333, %v4387
      %v4408 = vmul.f32 %v4334, %v4387
      %v4409 = vmul.f32 %v4335, %v4387
      %v4410 = vmul.f32 %v4336, %v4387
      %v4411 = vmul.f32 %v4337, %v4387
      %v4412 = vadd.f32 %v4290, %v4388
      %v4413 = vadd.f32 %v4291, %v4389
      %v4414 = vadd.f32 %v4292, %v4390
      %v4415 = vadd.f32 %v4293, %v4391
      %v4416 = vadd.f32 %v4294, %v4392
      %v4417 = vadd.f32 %v4295, %v4393
      %v4418 = vadd.f32 %v4296, %v4394
      %v4419 = vadd.f32 %v4297, %v4395
      %v4420 = vadd.f32 %v4298, %v4396
      %v4421 = vadd.f32 %v4299, %v4397
      %v4422 = vadd.f32 %v4300, %v4398
      %v4423 = vadd.f32 %v4301, %v4399
      %v4424 = vadd.f32 %v4302, %v4400
      %v4425 = vadd.f32 %v4303, %v4401
      %v4426 = vadd.f32 %v4304, %v4402
      %v4427 = vadd.f32 %v4305, %v4403
      %v4428 = vadd.f32 %v4306, %v4404
      %v4429 = vadd.f32 %v4307, %v4405
      %v4430 = vadd.f32 %v4308, %v4406
      %v4431 = vadd.f32 %v4309, %v4407
      %v4432 = vadd.f32 %v4310, %v4408
      %v4433 = vadd.f32 %v4311, %v4409
      %v4434 = vadd.f32 %v4312, %v4410
      %v4435 = vadd.f32 %v4313, %v4411
      %v4436 = vld [vmem:[%s890 + $0x1] sm:$0x3f]
      %v4437 = vld [vmem:[%s890 + $0x9] sm:$0x3f]
      %v4438 = vld [vmem:[%s890 + $0x11] sm:$0x3f]
      %v4439 = vld [vmem:[%s890 + $0x19] sm:$0x3f]
      %v4440 = vld [vmem:[%s890 + $0x21] sm:$0x3f]
      %v4441 = vld [vmem:[%s890 + $0x29] sm:$0x3f]
      %v4442 = vld [vmem:[%s890 + $0x31] sm:$0x3f]
      %v4443 = vld [vmem:[%s890 + $0x39] sm:$0x3f]
      %v4444 = vld [vmem:[%s890 + $0x41] sm:$0x3f]
      %v4445 = vld [vmem:[%s890 + $0x49] sm:$0x3f]
      %v4446 = vld [vmem:[%s890 + $0x51] sm:$0x3f]
      %v4447 = vld [vmem:[%s890 + $0x59] sm:$0x3f]
      %v4448 = vld [vmem:[%s890 + $0x61] sm:$0x3f]
      %v4449 = vld [vmem:[%s890 + $0x69] sm:$0x3f]
      %v4450 = vld [vmem:[%s890 + $0x71] sm:$0x3f]
      %v4451 = vld [vmem:[%s890 + $0x79] sm:$0x3f]
      %v4452 = vld [vmem:[%s890 + $0x81] sm:$0x3f]
      %v4453 = vld [vmem:[%s890 + $0x89] sm:$0x3f]
      %v4454 = vld [vmem:[%s890 + $0x91] sm:$0x3f]
      %v4455 = vld [vmem:[%s890 + $0x99] sm:$0x3f]
      %v4456 = vld [vmem:[%s890 + $0xa1] sm:$0x3f]
      %v4457 = vld [vmem:[%s890 + $0xa9] sm:$0x3f]
      %v4458 = vld [vmem:[%s890 + $0xb1] sm:$0x3f]
      %v4459 = vld [vmem:[%s890 + $0xb9] sm:$0x3f]
      %v4460 = vmul.f32 %v4436, %v4387
      %v4461 = vmul.f32 %v4437, %v4387
      %v4462 = vmul.f32 %v4438, %v4387
      %v4463 = vmul.f32 %v4439, %v4387
      %v4464 = vmul.f32 %v4440, %v4387
      %v4465 = vmul.f32 %v4441, %v4387
      %v4466 = vmul.f32 %v4442, %v4387
      %v4467 = vmul.f32 %v4443, %v4387
      %v4468 = vmul.f32 %v4444, %v4387
      %v4469 = vmul.f32 %v4445, %v4387
      %v4470 = vmul.f32 %v4446, %v4387
      %v4471 = vmul.f32 %v4447, %v4387
      %v4472 = vmul.f32 %v4448, %v4387
      %v4473 = vmul.f32 %v4449, %v4387
      %v4474 = vmul.f32 %v4450, %v4387
      %v4475 = vmul.f32 %v4451, %v4387
      %v4476 = vmul.f32 %v4452, %v4387
      %v4477 = vmul.f32 %v4453, %v4387
      %v4478 = vmul.f32 %v4454, %v4387
      %v4479 = vmul.f32 %v4455, %v4387
      %v4480 = vmul.f32 %v4456, %v4387
      %v4481 = vmul.f32 %v4457, %v4387
      %v4482 = vmul.f32 %v4458, %v4387
      %v4483 = vmul.f32 %v4459, %v4387
      %v4484 = vadd.f32 %v4362, %v4460
      %v4485 = vadd.f32 %v4363, %v4461
      %v4486 = vadd.f32 %v4364, %v4462
      %v4487 = vadd.f32 %v4365, %v4463
      %v4488 = vadd.f32 %v4366, %v4464
      %v4489 = vadd.f32 %v4367, %v4465
      %v4490 = vadd.f32 %v4368, %v4466
      %v4491 = vadd.f32 %v4369, %v4467
      %v4492 = vadd.f32 %v4370, %v4468
      %v4493 = vadd.f32 %v4371, %v4469
      %v4494 = vadd.f32 %v4372, %v4470
      %v4495 = vadd.f32 %v4373, %v4471
      %v4496 = vadd.f32 %v4374, %v4472
      %v4497 = vadd.f32 %v4375, %v4473
      %v4498 = vadd.f32 %v4376, %v4474
      %v4499 = vadd.f32 %v4377, %v4475
      %v4500 = vadd.f32 %v4378, %v4476
      %v4501 = vadd.f32 %v4379, %v4477
      %v4502 = vadd.f32 %v4380, %v4478
      %v4503 = vadd.f32 %v4381, %v4479
      %v4504 = vadd.f32 %v4382, %v4480
      %v4505 = vadd.f32 %v4383, %v4481
      %v4506 = vadd.f32 %v4384, %v4482
      %v4507 = vadd.f32 %v4385, %v4483
      %s4508 = sld [smem:[#allocation2 + %s1210]]
      %v4509 = vstv %s4508
      %v4510 = vmul.f32 %v4436, %v4509
      %v4511 = vmul.f32 %v4437, %v4509
      %v4512 = vmul.f32 %v4438, %v4509
      %v4513 = vmul.f32 %v4439, %v4509
      %v4514 = vmul.f32 %v4440, %v4509
      %v4515 = vmul.f32 %v4441, %v4509
      %v4516 = vmul.f32 %v4442, %v4509
      %v4517 = vmul.f32 %v4443, %v4509
      %v4518 = vmul.f32 %v4444, %v4509
      %v4519 = vmul.f32 %v4445, %v4509
      %v4520 = vmul.f32 %v4446, %v4509
      %v4521 = vmul.f32 %v4447, %v4509
      %v4522 = vmul.f32 %v4448, %v4509
      %v4523 = vmul.f32 %v4449, %v4509
      %v4524 = vmul.f32 %v4450, %v4509
      %v4525 = vmul.f32 %v4451, %v4509
      %v4526 = vmul.f32 %v4452, %v4509
      %v4527 = vmul.f32 %v4453, %v4509
      %v4528 = vmul.f32 %v4454, %v4509
      %v4529 = vmul.f32 %v4455, %v4509
      %v4530 = vmul.f32 %v4456, %v4509
      %v4531 = vmul.f32 %v4457, %v4509
      %v4532 = vmul.f32 %v4458, %v4509
      %v4533 = vmul.f32 %v4459, %v4509
      %v4534 = vadd.f32 %v4412, %v4510
      %v4535 = vadd.f32 %v4413, %v4511
      %v4536 = vadd.f32 %v4414, %v4512
      %v4537 = vadd.f32 %v4415, %v4513
      %v4538 = vadd.f32 %v4416, %v4514
      %v4539 = vadd.f32 %v4417, %v4515
      %v4540 = vadd.f32 %v4418, %v4516
      %v4541 = vadd.f32 %v4419, %v4517
      %v4542 = vadd.f32 %v4420, %v4518
      %v4543 = vadd.f32 %v4421, %v4519
      %v4544 = vadd.f32 %v4422, %v4520
      %v4545 = vadd.f32 %v4423, %v4521
      %v4546 = vadd.f32 %v4424, %v4522
      %v4547 = vadd.f32 %v4425, %v4523
      %v4548 = vadd.f32 %v4426, %v4524
      %v4549 = vadd.f32 %v4427, %v4525
      %v4550 = vadd.f32 %v4428, %v4526
      %v4551 = vadd.f32 %v4429, %v4527
      %v4552 = vadd.f32 %v4430, %v4528
      %v4553 = vadd.f32 %v4431, %v4529
      %v4554 = vadd.f32 %v4432, %v4530
      %v4555 = vadd.f32 %v4433, %v4531
      %v4556 = vadd.f32 %v4434, %v4532
      %v4557 = vadd.f32 %v4435, %v4533
      %v4558 = vld [vmem:[%s1014 + $0x1] sm:$0x3f]
      %v4559 = vld [vmem:[%s1014 + $0x9] sm:$0x3f]
      %v4560 = vld [vmem:[%s1014 + $0x11] sm:$0x3f]
      %v4561 = vld [vmem:[%s1014 + $0x19] sm:$0x3f]
      %v4562 = vld [vmem:[%s1014 + $0x21] sm:$0x3f]
      %v4563 = vld [vmem:[%s1014 + $0x29] sm:$0x3f]
      %v4564 = vld [vmem:[%s1014 + $0x31] sm:$0x3f]
      %v4565 = vld [vmem:[%s1014 + $0x39] sm:$0x3f]
      %v4566 = vld [vmem:[%s1014 + $0x41] sm:$0x3f]
      %v4567 = vld [vmem:[%s1014 + $0x49] sm:$0x3f]
      %v4568 = vld [vmem:[%s1014 + $0x51] sm:$0x3f]
      %v4569 = vld [vmem:[%s1014 + $0x59] sm:$0x3f]
      %v4570 = vld [vmem:[%s1014 + $0x61] sm:$0x3f]
      %v4571 = vld [vmem:[%s1014 + $0x69] sm:$0x3f]
      %v4572 = vld [vmem:[%s1014 + $0x71] sm:$0x3f]
      %v4573 = vld [vmem:[%s1014 + $0x79] sm:$0x3f]
      %v4574 = vld [vmem:[%s1014 + $0x81] sm:$0x3f]
      %v4575 = vld [vmem:[%s1014 + $0x89] sm:$0x3f]
      %v4576 = vld [vmem:[%s1014 + $0x91] sm:$0x3f]
      %v4577 = vld [vmem:[%s1014 + $0x99] sm:$0x3f]
      %v4578 = vld [vmem:[%s1014 + $0xa1] sm:$0x3f]
      %v4579 = vld [vmem:[%s1014 + $0xa9] sm:$0x3f]
      %v4580 = vld [vmem:[%s1014 + $0xb1] sm:$0x3f]
      %v4581 = vld [vmem:[%s1014 + $0xb9] sm:$0x3f]
      %v4582 = vmul.f32 %v4558, %v4509
      %v4583 = vmul.f32 %v4559, %v4509
      %v4584 = vmul.f32 %v4560, %v4509
      %v4585 = vmul.f32 %v4561, %v4509
      %v4586 = vmul.f32 %v4562, %v4509
      %v4587 = vmul.f32 %v4563, %v4509
      %v4588 = vmul.f32 %v4564, %v4509
      %v4589 = vmul.f32 %v4565, %v4509
      %v4590 = vmul.f32 %v4566, %v4509
      %v4591 = vmul.f32 %v4567, %v4509
      %v4592 = vmul.f32 %v4568, %v4509
      %v4593 = vmul.f32 %v4569, %v4509
      %v4594 = vmul.f32 %v4570, %v4509
      %v4595 = vmul.f32 %v4571, %v4509
      %v4596 = vmul.f32 %v4572, %v4509
      %v4597 = vmul.f32 %v4573, %v4509
      %v4598 = vmul.f32 %v4574, %v4509
      %v4599 = vmul.f32 %v4575, %v4509
      %v4600 = vmul.f32 %v4576, %v4509
      %v4601 = vmul.f32 %v4577, %v4509
      %v4602 = vmul.f32 %v4578, %v4509
      %v4603 = vmul.f32 %v4579, %v4509
      %v4604 = vmul.f32 %v4580, %v4509
      %v4605 = vmul.f32 %v4581, %v4509
      %v4606 = vadd.f32 %v4484, %v4582
      %v4607 = vadd.f32 %v4485, %v4583
      %v4608 = vadd.f32 %v4486, %v4584
      %v4609 = vadd.f32 %v4487, %v4585
      %v4610 = vadd.f32 %v4488, %v4586
      %v4611 = vadd.f32 %v4489, %v4587
      %v4612 = vadd.f32 %v4490, %v4588
      %v4613 = vadd.f32 %v4491, %v4589
      %v4614 = vadd.f32 %v4492, %v4590
      %v4615 = vadd.f32 %v4493, %v4591
      %v4616 = vadd.f32 %v4494, %v4592
      %v4617 = vadd.f32 %v4495, %v4593
      %v4618 = vadd.f32 %v4496, %v4594
      %v4619 = vadd.f32 %v4497, %v4595
      %v4620 = vadd.f32 %v4498, %v4596
      %v4621 = vadd.f32 %v4499, %v4597
      %v4622 = vadd.f32 %v4500, %v4598
      %v4623 = vadd.f32 %v4501, %v4599
      %v4624 = vadd.f32 %v4502, %v4600
      %v4625 = vadd.f32 %v4503, %v4601
      %v4626 = vadd.f32 %v4504, %v4602
      %v4627 = vadd.f32 %v4505, %v4603
      %v4628 = vadd.f32 %v4506, %v4604
      %v4629 = vadd.f32 %v4507, %v4605
      %s4630 = sld [smem:[#allocation2 + %s1333]]
      %v4631 = vld [vmem:[%s1533] sm:$0x3f]
      %v4632 = vld [vmem:[%s1533 + $0x8] sm:$0x3f]
      %v4633 = vld [vmem:[%s1533 + $0x10] sm:$0x3f]
      %v4634 = vld [vmem:[%s1533 + $0x18] sm:$0x3f]
      %v4635 = vld [vmem:[%s1533 + $0x20] sm:$0x3f]
      %v4636 = vld [vmem:[%s1533 + $0x28] sm:$0x3f]
      %v4637 = vld [vmem:[%s1533 + $0x30] sm:$0x3f]
      %v4638 = vld [vmem:[%s1533 + $0x38] sm:$0x3f]
      %v4639 = vld [vmem:[%s1533 + $0x40] sm:$0x3f]
      %v4640 = vld [vmem:[%s1533 + $0x48] sm:$0x3f]
      %v4641 = vld [vmem:[%s1533 + $0x50] sm:$0x3f]
      %v4642 = vld [vmem:[%s1533 + $0x58] sm:$0x3f]
      %v4643 = vld [vmem:[%s1533 + $0x60] sm:$0x3f]
      %v4644 = vld [vmem:[%s1533 + $0x68] sm:$0x3f]
      %v4645 = vld [vmem:[%s1533 + $0x70] sm:$0x3f]
      %v4646 = vld [vmem:[%s1533 + $0x78] sm:$0x3f]
      %v4647 = vld [vmem:[%s1533 + $0x80] sm:$0x3f]
      %v4648 = vld [vmem:[%s1533 + $0x88] sm:$0x3f]
      %v4649 = vld [vmem:[%s1533 + $0x90] sm:$0x3f]
      %v4650 = vld [vmem:[%s1533 + $0x98] sm:$0x3f]
      %v4651 = vld [vmem:[%s1533 + $0xa0] sm:$0x3f]
      %v4652 = vld [vmem:[%s1533 + $0xa8] sm:$0x3f]
      %v4653 = vld [vmem:[%s1533 + $0xb0] sm:$0x3f]
      %v4654 = vld [vmem:[%s1533 + $0xb8] sm:$0x3f]
      %v4655 = vstv %s4630
      %v4656 = vmul.f32 %v4631, %v4655
      %v4657 = vmul.f32 %v4632, %v4655
      %v4658 = vmul.f32 %v4633, %v4655
      %v4659 = vmul.f32 %v4634, %v4655
      %v4660 = vmul.f32 %v4635, %v4655
      %v4661 = vmul.f32 %v4636, %v4655
      %v4662 = vmul.f32 %v4637, %v4655
      %v4663 = vmul.f32 %v4638, %v4655
      %v4664 = vmul.f32 %v4639, %v4655
      %v4665 = vmul.f32 %v4640, %v4655
      %v4666 = vmul.f32 %v4641, %v4655
      %v4667 = vmul.f32 %v4642, %v4655
      %v4668 = vmul.f32 %v4643, %v4655
      %v4669 = vmul.f32 %v4644, %v4655
      %v4670 = vmul.f32 %v4645, %v4655
      %v4671 = vmul.f32 %v4646, %v4655
      %v4672 = vmul.f32 %v4647, %v4655
      %v4673 = vmul.f32 %v4648, %v4655
      %v4674 = vmul.f32 %v4649, %v4655
      %v4675 = vmul.f32 %v4650, %v4655
      %v4676 = vmul.f32 %v4651, %v4655
      %v4677 = vmul.f32 %v4652, %v4655
      %v4678 = vmul.f32 %v4653, %v4655
      %v4679 = vmul.f32 %v4654, %v4655
      %v4680 = vadd.f32 %v4534, %v4656
      %v4681 = vadd.f32 %v4535, %v4657
      %v4682 = vadd.f32 %v4536, %v4658
      %v4683 = vadd.f32 %v4537, %v4659
      %v4684 = vadd.f32 %v4538, %v4660
      %v4685 = vadd.f32 %v4539, %v4661
      %v4686 = vadd.f32 %v4540, %v4662
      %v4687 = vadd.f32 %v4541, %v4663
      %v4688 = vadd.f32 %v4542, %v4664
      %v4689 = vadd.f32 %v4543, %v4665
      %v4690 = vadd.f32 %v4544, %v4666
      %v4691 = vadd.f32 %v4545, %v4667
      %v4692 = vadd.f32 %v4546, %v4668
      %v4693 = vadd.f32 %v4547, %v4669
      %v4694 = vadd.f32 %v4548, %v4670
      %v4695 = vadd.f32 %v4549, %v4671
      %v4696 = vadd.f32 %v4550, %v4672
      %v4697 = vadd.f32 %v4551, %v4673
      %v4698 = vadd.f32 %v4552, %v4674
      %v4699 = vadd.f32 %v4553, %v4675
      %v4700 = vadd.f32 %v4554, %v4676
      %v4701 = vadd.f32 %v4555, %v4677
      %v4702 = vadd.f32 %v4556, %v4678
      %v4703 = vadd.f32 %v4557, %v4679
      %v4704 = vld [vmem:[%s1657] sm:$0x3f]
      %v4705 = vld [vmem:[%s1657 + $0x8] sm:$0x3f]
      %v4706 = vld [vmem:[%s1657 + $0x10] sm:$0x3f]
      %v4707 = vld [vmem:[%s1657 + $0x18] sm:$0x3f]
      %v4708 = vld [vmem:[%s1657 + $0x20] sm:$0x3f]
      %v4709 = vld [vmem:[%s1657 + $0x28] sm:$0x3f]
      %v4710 = vld [vmem:[%s1657 + $0x30] sm:$0x3f]
      %v4711 = vld [vmem:[%s1657 + $0x38] sm:$0x3f]
      %v4712 = vld [vmem:[%s1657 + $0x40] sm:$0x3f]
      %v4713 = vld [vmem:[%s1657 + $0x48] sm:$0x3f]
      %v4714 = vld [vmem:[%s1657 + $0x50] sm:$0x3f]
      %v4715 = vld [vmem:[%s1657 + $0x58] sm:$0x3f]
      %v4716 = vld [vmem:[%s1657 + $0x60] sm:$0x3f]
      %v4717 = vld [vmem:[%s1657 + $0x68] sm:$0x3f]
      %v4718 = vld [vmem:[%s1657 + $0x70] sm:$0x3f]
      %v4719 = vld [vmem:[%s1657 + $0x78] sm:$0x3f]
      %v4720 = vld [vmem:[%s1657 + $0x80] sm:$0x3f]
      %v4721 = vld [vmem:[%s1657 + $0x88] sm:$0x3f]
      %v4722 = vld [vmem:[%s1657 + $0x90] sm:$0x3f]
      %v4723 = vld [vmem:[%s1657 + $0x98] sm:$0x3f]
      %v4724 = vld [vmem:[%s1657 + $0xa0] sm:$0x3f]
      %v4725 = vld [vmem:[%s1657 + $0xa8] sm:$0x3f]
      %v4726 = vld [vmem:[%s1657 + $0xb0] sm:$0x3f]
      %v4727 = vld [vmem:[%s1657 + $0xb8] sm:$0x3f]
      %v4728 = vmul.f32 %v4704, %v4655
      %v4729 = vmul.f32 %v4705, %v4655
      %v4730 = vmul.f32 %v4706, %v4655
      %v4731 = vmul.f32 %v4707, %v4655
      %v4732 = vmul.f32 %v4708, %v4655
      %v4733 = vmul.f32 %v4709, %v4655
      %v4734 = vmul.f32 %v4710, %v4655
      %v4735 = vmul.f32 %v4711, %v4655
      %v4736 = vmul.f32 %v4712, %v4655
      %v4737 = vmul.f32 %v4713, %v4655
      %v4738 = vmul.f32 %v4714, %v4655
      %v4739 = vmul.f32 %v4715, %v4655
      %v4740 = vmul.f32 %v4716, %v4655
      %v4741 = vmul.f32 %v4717, %v4655
      %v4742 = vmul.f32 %v4718, %v4655
      %v4743 = vmul.f32 %v4719, %v4655
      %v4744 = vmul.f32 %v4720, %v4655
      %v4745 = vmul.f32 %v4721, %v4655
      %v4746 = vmul.f32 %v4722, %v4655
      %v4747 = vmul.f32 %v4723, %v4655
      %v4748 = vmul.f32 %v4724, %v4655
      %v4749 = vmul.f32 %v4725, %v4655
      %v4750 = vmul.f32 %v4726, %v4655
      %v4751 = vmul.f32 %v4727, %v4655
      %v4752 = vadd.f32 %v4606, %v4728
      %v4753 = vadd.f32 %v4607, %v4729
      %v4754 = vadd.f32 %v4608, %v4730
      %v4755 = vadd.f32 %v4609, %v4731
      %v4756 = vadd.f32 %v4610, %v4732
      %v4757 = vadd.f32 %v4611, %v4733
      %v4758 = vadd.f32 %v4612, %v4734
      %v4759 = vadd.f32 %v4613, %v4735
      %v4760 = vadd.f32 %v4614, %v4736
      %v4761 = vadd.f32 %v4615, %v4737
      %v4762 = vadd.f32 %v4616, %v4738
      %v4763 = vadd.f32 %v4617, %v4739
      %v4764 = vadd.f32 %v4618, %v4740
      %v4765 = vadd.f32 %v4619, %v4741
      %v4766 = vadd.f32 %v4620, %v4742
      %v4767 = vadd.f32 %v4621, %v4743
      %v4768 = vadd.f32 %v4622, %v4744
      %v4769 = vadd.f32 %v4623, %v4745
      %v4770 = vadd.f32 %v4624, %v4746
      %v4771 = vadd.f32 %v4625, %v4747
      %v4772 = vadd.f32 %v4626, %v4748
      %v4773 = vadd.f32 %v4627, %v4749
      %v4774 = vadd.f32 %v4628, %v4750
      %v4775 = vadd.f32 %v4629, %v4751
      %s4776 = sld [smem:[#allocation2 + %s1482]]
      %v4777 = vstv %s4776
      %v4778 = vmul.f32 %v4704, %v4777
      %v4779 = vmul.f32 %v4705, %v4777
      %v4780 = vmul.f32 %v4706, %v4777
      %v4781 = vmul.f32 %v4707, %v4777
      %v4782 = vmul.f32 %v4708, %v4777
      %v4783 = vmul.f32 %v4709, %v4777
      %v4784 = vmul.f32 %v4710, %v4777
      %v4785 = vmul.f32 %v4711, %v4777
      %v4786 = vmul.f32 %v4712, %v4777
      %v4787 = vmul.f32 %v4713, %v4777
      %v4788 = vmul.f32 %v4714, %v4777
      %v4789 = vmul.f32 %v4715, %v4777
      %v4790 = vmul.f32 %v4716, %v4777
      %v4791 = vmul.f32 %v4717, %v4777
      %v4792 = vmul.f32 %v4718, %v4777
      %v4793 = vmul.f32 %v4719, %v4777
      %v4794 = vmul.f32 %v4720, %v4777
      %v4795 = vmul.f32 %v4721, %v4777
      %v4796 = vmul.f32 %v4722, %v4777
      %v4797 = vmul.f32 %v4723, %v4777
      %v4798 = vmul.f32 %v4724, %v4777
      %v4799 = vmul.f32 %v4725, %v4777
      %v4800 = vmul.f32 %v4726, %v4777
      %v4801 = vmul.f32 %v4727, %v4777
      %v4802 = vadd.f32 %v4680, %v4778
      %v4803 = vadd.f32 %v4681, %v4779
      %v4804 = vadd.f32 %v4682, %v4780
      %v4805 = vadd.f32 %v4683, %v4781
      %v4806 = vadd.f32 %v4684, %v4782
      %v4807 = vadd.f32 %v4685, %v4783
      %v4808 = vadd.f32 %v4686, %v4784
      %v4809 = vadd.f32 %v4687, %v4785
      %v4810 = vadd.f32 %v4688, %v4786
      %v4811 = vadd.f32 %v4689, %v4787
      %v4812 = vadd.f32 %v4690, %v4788
      %v4813 = vadd.f32 %v4691, %v4789
      %v4814 = vadd.f32 %v4692, %v4790
      %v4815 = vadd.f32 %v4693, %v4791
      %v4816 = vadd.f32 %v4694, %v4792
      %v4817 = vadd.f32 %v4695, %v4793
      %v4818 = vadd.f32 %v4696, %v4794
      %v4819 = vadd.f32 %v4697, %v4795
      %v4820 = vadd.f32 %v4698, %v4796
      %v4821 = vadd.f32 %v4699, %v4797
      %v4822 = vadd.f32 %v4700, %v4798
      %v4823 = vadd.f32 %v4701, %v4799
      %v4824 = vadd.f32 %v4702, %v4800
      %v4825 = vadd.f32 %v4703, %v4801
      %v4826 = vld [vmem:[%s1335 + $0x1] sm:$0x3f]
      %v4827 = vld [vmem:[%s1335 + $0x9] sm:$0x3f]
      %v4828 = vld [vmem:[%s1335 + $0x11] sm:$0x3f]
      %v4829 = vld [vmem:[%s1335 + $0x19] sm:$0x3f]
      %v4830 = vld [vmem:[%s1335 + $0x21] sm:$0x3f]
      %v4831 = vld [vmem:[%s1335 + $0x29] sm:$0x3f]
      %v4832 = vld [vmem:[%s1335 + $0x31] sm:$0x3f]
      %v4833 = vld [vmem:[%s1335 + $0x39] sm:$0x3f]
      %v4834 = vld [vmem:[%s1335 + $0x41] sm:$0x3f]
      %v4835 = vld [vmem:[%s1335 + $0x49] sm:$0x3f]
      %v4836 = vld [vmem:[%s1335 + $0x51] sm:$0x3f]
      %v4837 = vld [vmem:[%s1335 + $0x59] sm:$0x3f]
      %v4838 = vld [vmem:[%s1335 + $0x61] sm:$0x3f]
      %v4839 = vld [vmem:[%s1335 + $0x69] sm:$0x3f]
      %v4840 = vld [vmem:[%s1335 + $0x71] sm:$0x3f]
      %v4841 = vld [vmem:[%s1335 + $0x79] sm:$0x3f]
      %v4842 = vld [vmem:[%s1335 + $0x81] sm:$0x3f]
      %v4843 = vld [vmem:[%s1335 + $0x89] sm:$0x3f]
      %v4844 = vld [vmem:[%s1335 + $0x91] sm:$0x3f]
      %v4845 = vld [vmem:[%s1335 + $0x99] sm:$0x3f]
      %v4846 = vld [vmem:[%s1335 + $0xa1] sm:$0x3f]
      %v4847 = vld [vmem:[%s1335 + $0xa9] sm:$0x3f]
      %v4848 = vld [vmem:[%s1335 + $0xb1] sm:$0x3f]
      %v4849 = vld [vmem:[%s1335 + $0xb9] sm:$0x3f]
      %v4850 = vmul.f32 %v4826, %v4777
      %v4851 = vmul.f32 %v4827, %v4777
      %v4852 = vmul.f32 %v4828, %v4777
      %v4853 = vmul.f32 %v4829, %v4777
      %v4854 = vmul.f32 %v4830, %v4777
      %v4855 = vmul.f32 %v4831, %v4777
      %v4856 = vmul.f32 %v4832, %v4777
      %v4857 = vmul.f32 %v4833, %v4777
      %v4858 = vmul.f32 %v4834, %v4777
      %v4859 = vmul.f32 %v4835, %v4777
      %v4860 = vmul.f32 %v4836, %v4777
      %v4861 = vmul.f32 %v4837, %v4777
      %v4862 = vmul.f32 %v4838, %v4777
      %v4863 = vmul.f32 %v4839, %v4777
      %v4864 = vmul.f32 %v4840, %v4777
      %v4865 = vmul.f32 %v4841, %v4777
      %v4866 = vmul.f32 %v4842, %v4777
      %v4867 = vmul.f32 %v4843, %v4777
      %v4868 = vmul.f32 %v4844, %v4777
      %v4869 = vmul.f32 %v4845, %v4777
      %v4870 = vmul.f32 %v4846, %v4777
      %v4871 = vmul.f32 %v4847, %v4777
      %v4872 = vmul.f32 %v4848, %v4777
      %v4873 = vmul.f32 %v4849, %v4777
      %v4874 = vadd.f32 %v4752, %v4850
      %v4875 = vadd.f32 %v4753, %v4851
      %v4876 = vadd.f32 %v4754, %v4852
      %v4877 = vadd.f32 %v4755, %v4853
      %v4878 = vadd.f32 %v4756, %v4854
      %v4879 = vadd.f32 %v4757, %v4855
      %v4880 = vadd.f32 %v4758, %v4856
      %v4881 = vadd.f32 %v4759, %v4857
      %v4882 = vadd.f32 %v4760, %v4858
      %v4883 = vadd.f32 %v4761, %v4859
      %v4884 = vadd.f32 %v4762, %v4860
      %v4885 = vadd.f32 %v4763, %v4861
      %v4886 = vadd.f32 %v4764, %v4862
      %v4887 = vadd.f32 %v4765, %v4863
      %v4888 = vadd.f32 %v4766, %v4864
      %v4889 = vadd.f32 %v4767, %v4865
      %v4890 = vadd.f32 %v4768, %v4866
      %v4891 = vadd.f32 %v4769, %v4867
      %v4892 = vadd.f32 %v4770, %v4868
      %v4893 = vadd.f32 %v4771, %v4869
      %v4894 = vadd.f32 %v4772, %v4870
      %v4895 = vadd.f32 %v4773, %v4871
      %v4896 = vadd.f32 %v4774, %v4872
      %v4897 = vadd.f32 %v4775, %v4873
      %s4898 = sld [smem:[#allocation2 + %s1606]]
      %v4899 = vstv %s4898
      %v4900 = vmul.f32 %v4826, %v4899
      %v4901 = vmul.f32 %v4827, %v4899
      %v4902 = vmul.f32 %v4828, %v4899
      %v4903 = vmul.f32 %v4829, %v4899
      %v4904 = vmul.f32 %v4830, %v4899
      %v4905 = vmul.f32 %v4831, %v4899
      %v4906 = vmul.f32 %v4832, %v4899
      %v4907 = vmul.f32 %v4833, %v4899
      %v4908 = vmul.f32 %v4834, %v4899
      %v4909 = vmul.f32 %v4835, %v4899
      %v4910 = vmul.f32 %v4836, %v4899
      %v4911 = vmul.f32 %v4837, %v4899
      %v4912 = vmul.f32 %v4838, %v4899
      %v4913 = vmul.f32 %v4839, %v4899
      %v4914 = vmul.f32 %v4840, %v4899
      %v4915 = vmul.f32 %v4841, %v4899
      %v4916 = vmul.f32 %v4842, %v4899
      %v4917 = vmul.f32 %v4843, %v4899
      %v4918 = vmul.f32 %v4844, %v4899
      %v4919 = vmul.f32 %v4845, %v4899
      %v4920 = vmul.f32 %v4846, %v4899
      %v4921 = vmul.f32 %v4847, %v4899
      %v4922 = vmul.f32 %v4848, %v4899
      %v4923 = vmul.f32 %v4849, %v4899
      %v4924 = vadd.f32 %v4802, %v4900
      %v4925 = vadd.f32 %v4803, %v4901
      %v4926 = vadd.f32 %v4804, %v4902
      %v4927 = vadd.f32 %v4805, %v4903
      %v4928 = vadd.f32 %v4806, %v4904
      %v4929 = vadd.f32 %v4807, %v4905
      %v4930 = vadd.f32 %v4808, %v4906
      %v4931 = vadd.f32 %v4809, %v4907
      %v4932 = vadd.f32 %v4810, %v4908
      %v4933 = vadd.f32 %v4811, %v4909
      %v4934 = vadd.f32 %v4812, %v4910
      %v4935 = vadd.f32 %v4813, %v4911
      %v4936 = vadd.f32 %v4814, %v4912
      %v4937 = vadd.f32 %v4815, %v4913
      %v4938 = vadd.f32 %v4816, %v4914
      %v4939 = vadd.f32 %v4817, %v4915
      %v4940 = vadd.f32 %v4818, %v4916
      %v4941 = vadd.f32 %v4819, %v4917
      %v4942 = vadd.f32 %v4820, %v4918
      %v4943 = vadd.f32 %v4821, %v4919
      %v4944 = vadd.f32 %v4822, %v4920
      %v4945 = vadd.f32 %v4823, %v4921
      %v4946 = vadd.f32 %v4824, %v4922
      %v4947 = vadd.f32 %v4825, %v4923
      %v4948 = vld [vmem:[%s1409 + $0x1] sm:$0x3f]
      %v4949 = vld [vmem:[%s1409 + $0x9] sm:$0x3f]
      %v4950 = vld [vmem:[%s1409 + $0x11] sm:$0x3f]
      %v4951 = vld [vmem:[%s1409 + $0x19] sm:$0x3f]
      %v4952 = vld [vmem:[%s1409 + $0x21] sm:$0x3f]
      %v4953 = vld [vmem:[%s1409 + $0x29] sm:$0x3f]
      %v4954 = vld [vmem:[%s1409 + $0x31] sm:$0x3f]
      %v4955 = vld [vmem:[%s1409 + $0x39] sm:$0x3f]
      %v4956 = vld [vmem:[%s1409 + $0x41] sm:$0x3f]
      %v4957 = vld [vmem:[%s1409 + $0x49] sm:$0x3f]
      %v4958 = vld [vmem:[%s1409 + $0x51] sm:$0x3f]
      %v4959 = vld [vmem:[%s1409 + $0x59] sm:$0x3f]
      %v4960 = vld [vmem:[%s1409 + $0x61] sm:$0x3f]
      %v4961 = vld [vmem:[%s1409 + $0x69] sm:$0x3f]
      %v4962 = vld [vmem:[%s1409 + $0x71] sm:$0x3f]
      %v4963 = vld [vmem:[%s1409 + $0x79] sm:$0x3f]
      %v4964 = vld [vmem:[%s1409 + $0x81] sm:$0x3f]
      %v4965 = vld [vmem:[%s1409 + $0x89] sm:$0x3f]
      %v4966 = vld [vmem:[%s1409 + $0x91] sm:$0x3f]
      %v4967 = vld [vmem:[%s1409 + $0x99] sm:$0x3f]
      %v4968 = vld [vmem:[%s1409 + $0xa1] sm:$0x3f]
      %v4969 = vld [vmem:[%s1409 + $0xa9] sm:$0x3f]
      %v4970 = vld [vmem:[%s1409 + $0xb1] sm:$0x3f]
      %v4971 = vld [vmem:[%s1409 + $0xb9] sm:$0x3f]
      %v4972 = vmul.f32 %v4948, %v4899
      %v4973 = vmul.f32 %v4949, %v4899
      %v4974 = vmul.f32 %v4950, %v4899
      %v4975 = vmul.f32 %v4951, %v4899
      %v4976 = vmul.f32 %v4952, %v4899
      %v4977 = vmul.f32 %v4953, %v4899
      %v4978 = vmul.f32 %v4954, %v4899
      %v4979 = vmul.f32 %v4955, %v4899
      %v4980 = vmul.f32 %v4956, %v4899
      %v4981 = vmul.f32 %v4957, %v4899
      %v4982 = vmul.f32 %v4958, %v4899
      %v4983 = vmul.f32 %v4959, %v4899
      %v4984 = vmul.f32 %v4960, %v4899
      %v4985 = vmul.f32 %v4961, %v4899
      %v4986 = vmul.f32 %v4962, %v4899
      %v4987 = vmul.f32 %v4963, %v4899
      %v4988 = vmul.f32 %v4964, %v4899
      %v4989 = vmul.f32 %v4965, %v4899
      %v4990 = vmul.f32 %v4966, %v4899
      %v4991 = vmul.f32 %v4967, %v4899
      %v4992 = vmul.f32 %v4968, %v4899
      %v4993 = vmul.f32 %v4969, %v4899
      %v4994 = vmul.f32 %v4970, %v4899
      %v4995 = vmul.f32 %v4971, %v4899
      %v4996 = vadd.f32 %v4874, %v4972
      %v4997 = vadd.f32 %v4875, %v4973
      %v4998 = vadd.f32 %v4876, %v4974
      %v4999 = vadd.f32 %v4877, %v4975
      %v5000 = vadd.f32 %v4878, %v4976
      %v5001 = vadd.f32 %v4879, %v4977
      %v5002 = vadd.f32 %v4880, %v4978
      %v5003 = vadd.f32 %v4881, %v4979
      %v5004 = vadd.f32 %v4882, %v4980
      %v5005 = vadd.f32 %v4883, %v4981
      %v5006 = vadd.f32 %v4884, %v4982
      %v5007 = vadd.f32 %v4885, %v4983
      %v5008 = vadd.f32 %v4886, %v4984
      %v5009 = vadd.f32 %v4887, %v4985
      %v5010 = vadd.f32 %v4888, %v4986
      %v5011 = vadd.f32 %v4889, %v4987
      %v5012 = vadd.f32 %v4890, %v4988
      %v5013 = vadd.f32 %v4891, %v4989
      %v5014 = vadd.f32 %v4892, %v4990
      %v5015 = vadd.f32 %v4893, %v4991
      %v5016 = vadd.f32 %v4894, %v4992
      %v5017 = vadd.f32 %v4895, %v4993
      %v5018 = vadd.f32 %v4896, %v4994
      %v5019 = vadd.f32 %v4897, %v4995
      %s5020 = sld [smem:[#allocation2 + %s1730]]
      %v5021 = vstv %s5020
      %v5022 = vmul.f32 %v4948, %v5021
      %v5023 = vmul.f32 %v4949, %v5021
      %v5024 = vmul.f32 %v4950, %v5021
      %v5025 = vmul.f32 %v4951, %v5021
      %v5026 = vmul.f32 %v4952, %v5021
      %v5027 = vmul.f32 %v4953, %v5021
      %v5028 = vmul.f32 %v4954, %v5021
      %v5029 = vmul.f32 %v4955, %v5021
      %v5030 = vmul.f32 %v4956, %v5021
      %v5031 = vmul.f32 %v4957, %v5021
      %v5032 = vmul.f32 %v4958, %v5021
      %v5033 = vmul.f32 %v4959, %v5021
      %v5034 = vmul.f32 %v4960, %v5021
      %v5035 = vmul.f32 %v4961, %v5021
      %v5036 = vmul.f32 %v4962, %v5021
      %v5037 = vmul.f32 %v4963, %v5021
      %v5038 = vmul.f32 %v4964, %v5021
      %v5039 = vmul.f32 %v4965, %v5021
      %v5040 = vmul.f32 %v4966, %v5021
      %v5041 = vmul.f32 %v4967, %v5021
      %v5042 = vmul.f32 %v4968, %v5021
      %v5043 = vmul.f32 %v4969, %v5021
      %v5044 = vmul.f32 %v4970, %v5021
      %v5045 = vmul.f32 %v4971, %v5021
      %v5046 = vadd.f32 %v4924, %v5022
      %v5047 = vadd.f32 %v4925, %v5023
      %v5048 = vadd.f32 %v4926, %v5024
      %v5049 = vadd.f32 %v4927, %v5025
      %v5050 = vadd.f32 %v4928, %v5026
      %v5051 = vadd.f32 %v4929, %v5027
      %v5052 = vadd.f32 %v4930, %v5028
      %v5053 = vadd.f32 %v4931, %v5029
      %v5054 = vadd.f32 %v4932, %v5030
      %v5055 = vadd.f32 %v4933, %v5031
      %v5056 = vadd.f32 %v4934, %v5032
      %v5057 = vadd.f32 %v4935, %v5033
      %v5058 = vadd.f32 %v4936, %v5034
      %v5059 = vadd.f32 %v4937, %v5035
      %v5060 = vadd.f32 %v4938, %v5036
      %v5061 = vadd.f32 %v4939, %v5037
      %v5062 = vadd.f32 %v4940, %v5038
      %v5063 = vadd.f32 %v4941, %v5039
      %v5064 = vadd.f32 %v4942, %v5040
      %v5065 = vadd.f32 %v4943, %v5041
      %v5066 = vadd.f32 %v4944, %v5042
      %v5067 = vadd.f32 %v4945, %v5043
      %v5068 = vadd.f32 %v4946, %v5044
      %v5069 = vadd.f32 %v4947, %v5045
      %v5070 = vld [vmem:[%s1533 + $0x1] sm:$0x3f]
      %v5071 = vld [vmem:[%s1533 + $0x9] sm:$0x3f]
      %v5072 = vld [vmem:[%s1533 + $0x11] sm:$0x3f]
      %v5073 = vld [vmem:[%s1533 + $0x19] sm:$0x3f]
      %v5074 = vld [vmem:[%s1533 + $0x21] sm:$0x3f]
      %v5075 = vld [vmem:[%s1533 + $0x29] sm:$0x3f]
      %v5076 = vld [vmem:[%s1533 + $0x31] sm:$0x3f]
      %v5077 = vld [vmem:[%s1533 + $0x39] sm:$0x3f]
      %v5078 = vld [vmem:[%s1533 + $0x41] sm:$0x3f]
      %v5079 = vld [vmem:[%s1533 + $0x49] sm:$0x3f]
      %v5080 = vld [vmem:[%s1533 + $0x51] sm:$0x3f]
      %v5081 = vld [vmem:[%s1533 + $0x59] sm:$0x3f]
      %v5082 = vld [vmem:[%s1533 + $0x61] sm:$0x3f]
      %v5083 = vld [vmem:[%s1533 + $0x69] sm:$0x3f]
      %v5084 = vld [vmem:[%s1533 + $0x71] sm:$0x3f]
      %v5085 = vld [vmem:[%s1533 + $0x79] sm:$0x3f]
      %v5086 = vld [vmem:[%s1533 + $0x81] sm:$0x3f]
      %v5087 = vld [vmem:[%s1533 + $0x89] sm:$0x3f]
      %v5088 = vld [vmem:[%s1533 + $0x91] sm:$0x3f]
      %v5089 = vld [vmem:[%s1533 + $0x99] sm:$0x3f]
      %v5090 = vld [vmem:[%s1533 + $0xa1] sm:$0x3f]
      %v5091 = vld [vmem:[%s1533 + $0xa9] sm:$0x3f]
      %v5092 = vld [vmem:[%s1533 + $0xb1] sm:$0x3f]
      %v5093 = vld [vmem:[%s1533 + $0xb9] sm:$0x3f]
      %v5094 = vmul.f32 %v5070, %v5021
      %v5095 = vmul.f32 %v5071, %v5021
      %v5096 = vmul.f32 %v5072, %v5021
      %v5097 = vmul.f32 %v5073, %v5021
      %v5098 = vmul.f32 %v5074, %v5021
      %v5099 = vmul.f32 %v5075, %v5021
      %v5100 = vmul.f32 %v5076, %v5021
      %v5101 = vmul.f32 %v5077, %v5021
      %v5102 = vmul.f32 %v5078, %v5021
      %v5103 = vmul.f32 %v5079, %v5021
      %v5104 = vmul.f32 %v5080, %v5021
      %v5105 = vmul.f32 %v5081, %v5021
      %v5106 = vmul.f32 %v5082, %v5021
      %v5107 = vmul.f32 %v5083, %v5021
      %v5108 = vmul.f32 %v5084, %v5021
      %v5109 = vmul.f32 %v5085, %v5021
      %v5110 = vmul.f32 %v5086, %v5021
      %v5111 = vmul.f32 %v5087, %v5021
      %v5112 = vmul.f32 %v5088, %v5021
      %v5113 = vmul.f32 %v5089, %v5021
      %v5114 = vmul.f32 %v5090, %v5021
      %v5115 = vmul.f32 %v5091, %v5021
      %v5116 = vmul.f32 %v5092, %v5021
      %v5117 = vmul.f32 %v5093, %v5021
      %v5118 = vadd.f32 %v4996, %v5094
      %v5119 = vadd.f32 %v4997, %v5095
      %v5120 = vadd.f32 %v4998, %v5096
      %v5121 = vadd.f32 %v4999, %v5097
      %v5122 = vadd.f32 %v5000, %v5098
      %v5123 = vadd.f32 %v5001, %v5099
      %v5124 = vadd.f32 %v5002, %v5100
      %v5125 = vadd.f32 %v5003, %v5101
      %v5126 = vadd.f32 %v5004, %v5102
      %v5127 = vadd.f32 %v5005, %v5103
      %v5128 = vadd.f32 %v5006, %v5104
      %v5129 = vadd.f32 %v5007, %v5105
      %v5130 = vadd.f32 %v5008, %v5106
      %v5131 = vadd.f32 %v5009, %v5107
      %v5132 = vadd.f32 %v5010, %v5108
      %v5133 = vadd.f32 %v5011, %v5109
      %v5134 = vadd.f32 %v5012, %v5110
      %v5135 = vadd.f32 %v5013, %v5111
      %v5136 = vadd.f32 %v5014, %v5112
      %v5137 = vadd.f32 %v5015, %v5113
      %v5138 = vadd.f32 %v5016, %v5114
      %v5139 = vadd.f32 %v5017, %v5115
      %v5140 = vadd.f32 %v5018, %v5116
      %v5141 = vadd.f32 %v5019, %v5117
      %s5142 = sld [smem:[#allocation2 + %s1853]]
      %v5143 = vstv %s5142
      %v5144 = vmul.f32 %v5070, %v5143
      %v5145 = vmul.f32 %v5071, %v5143
      %v5146 = vmul.f32 %v5072, %v5143
      %v5147 = vmul.f32 %v5073, %v5143
      %v5148 = vmul.f32 %v5074, %v5143
      %v5149 = vmul.f32 %v5075, %v5143
      %v5150 = vmul.f32 %v5076, %v5143
      %v5151 = vmul.f32 %v5077, %v5143
      %v5152 = vmul.f32 %v5078, %v5143
      %v5153 = vmul.f32 %v5079, %v5143
      %v5154 = vmul.f32 %v5080, %v5143
      %v5155 = vmul.f32 %v5081, %v5143
      %v5156 = vmul.f32 %v5082, %v5143
      %v5157 = vmul.f32 %v5083, %v5143
      %v5158 = vmul.f32 %v5084, %v5143
      %v5159 = vmul.f32 %v5085, %v5143
      %v5160 = vmul.f32 %v5086, %v5143
      %v5161 = vmul.f32 %v5087, %v5143
      %v5162 = vmul.f32 %v5088, %v5143
      %v5163 = vmul.f32 %v5089, %v5143
      %v5164 = vmul.f32 %v5090, %v5143
      %v5165 = vmul.f32 %v5091, %v5143
      %v5166 = vmul.f32 %v5092, %v5143
      %v5167 = vmul.f32 %v5093, %v5143
      %v5168 = vadd.f32 %v5046, %v5144
      %v5169 = vadd.f32 %v5047, %v5145
      %v5170 = vadd.f32 %v5048, %v5146
      %v5171 = vadd.f32 %v5049, %v5147
      %v5172 = vadd.f32 %v5050, %v5148
      %v5173 = vadd.f32 %v5051, %v5149
      %v5174 = vadd.f32 %v5052, %v5150
      %v5175 = vadd.f32 %v5053, %v5151
      %v5176 = vadd.f32 %v5054, %v5152
      %v5177 = vadd.f32 %v5055, %v5153
      %v5178 = vadd.f32 %v5056, %v5154
      %v5179 = vadd.f32 %v5057, %v5155
      %v5180 = vadd.f32 %v5058, %v5156
      %v5181 = vadd.f32 %v5059, %v5157
      %v5182 = vadd.f32 %v5060, %v5158
      %v5183 = vadd.f32 %v5061, %v5159
      %v5184 = vadd.f32 %v5062, %v5160
      %v5185 = vadd.f32 %v5063, %v5161
      %v5186 = vadd.f32 %v5064, %v5162
      %v5187 = vadd.f32 %v5065, %v5163
      %v5188 = vadd.f32 %v5066, %v5164
      %v5189 = vadd.f32 %v5067, %v5165
      %v5190 = vadd.f32 %v5068, %v5166
      %v5191 = vadd.f32 %v5069, %v5167
      %v5192 = vld [vmem:[%s1657 + $0x1] sm:$0x3f]
      %v5193 = vld [vmem:[%s1657 + $0x9] sm:$0x3f]
      %v5194 = vld [vmem:[%s1657 + $0x11] sm:$0x3f]
      %v5195 = vld [vmem:[%s1657 + $0x19] sm:$0x3f]
      %v5196 = vld [vmem:[%s1657 + $0x21] sm:$0x3f]
      %v5197 = vld [vmem:[%s1657 + $0x29] sm:$0x3f]
      %v5198 = vld [vmem:[%s1657 + $0x31] sm:$0x3f]
      %v5199 = vld [vmem:[%s1657 + $0x39] sm:$0x3f]
      %v5200 = vld [vmem:[%s1657 + $0x41] sm:$0x3f]
      %v5201 = vld [vmem:[%s1657 + $0x49] sm:$0x3f]
      %v5202 = vld [vmem:[%s1657 + $0x51] sm:$0x3f]
      %v5203 = vld [vmem:[%s1657 + $0x59] sm:$0x3f]
      %v5204 = vld [vmem:[%s1657 + $0x61] sm:$0x3f]
      %v5205 = vld [vmem:[%s1657 + $0x69] sm:$0x3f]
      %v5206 = vld [vmem:[%s1657 + $0x71] sm:$0x3f]
      %v5207 = vld [vmem:[%s1657 + $0x79] sm:$0x3f]
      %v5208 = vld [vmem:[%s1657 + $0x81] sm:$0x3f]
      %v5209 = vld [vmem:[%s1657 + $0x89] sm:$0x3f]
      %v5210 = vld [vmem:[%s1657 + $0x91] sm:$0x3f]
      %v5211 = vld [vmem:[%s1657 + $0x99] sm:$0x3f]
      %v5212 = vld [vmem:[%s1657 + $0xa1] sm:$0x3f]
      %v5213 = vld [vmem:[%s1657 + $0xa9] sm:$0x3f]
      %v5214 = vld [vmem:[%s1657 + $0xb1] sm:$0x3f]
      %v5215 = vld [vmem:[%s1657 + $0xb9] sm:$0x3f]
      %v5216 = vmul.f32 %v5192, %v5143
      %v5217 = vmul.f32 %v5193, %v5143
      %v5218 = vmul.f32 %v5194, %v5143
      %v5219 = vmul.f32 %v5195, %v5143
      %v5220 = vmul.f32 %v5196, %v5143
      %v5221 = vmul.f32 %v5197, %v5143
      %v5222 = vmul.f32 %v5198, %v5143
      %v5223 = vmul.f32 %v5199, %v5143
      %v5224 = vmul.f32 %v5200, %v5143
      %v5225 = vmul.f32 %v5201, %v5143
      %v5226 = vmul.f32 %v5202, %v5143
      %v5227 = vmul.f32 %v5203, %v5143
      %v5228 = vmul.f32 %v5204, %v5143
      %v5229 = vmul.f32 %v5205, %v5143
      %v5230 = vmul.f32 %v5206, %v5143
      %v5231 = vmul.f32 %v5207, %v5143
      %v5232 = vmul.f32 %v5208, %v5143
      %v5233 = vmul.f32 %v5209, %v5143
      %v5234 = vmul.f32 %v5210, %v5143
      %v5235 = vmul.f32 %v5211, %v5143
      %v5236 = vmul.f32 %v5212, %v5143
      %v5237 = vmul.f32 %v5213, %v5143
      %v5238 = vmul.f32 %v5214, %v5143
      %v5239 = vmul.f32 %v5215, %v5143
      %v5240 = vadd.f32 %v5118, %v5216
      %v5241 = vadd.f32 %v5119, %v5217
      %v5242 = vadd.f32 %v5120, %v5218
      %v5243 = vadd.f32 %v5121, %v5219
      %v5244 = vadd.f32 %v5122, %v5220
      %v5245 = vadd.f32 %v5123, %v5221
      %v5246 = vadd.f32 %v5124, %v5222
      %v5247 = vadd.f32 %v5125, %v5223
      %v5248 = vadd.f32 %v5126, %v5224
      %v5249 = vadd.f32 %v5127, %v5225
      %v5250 = vadd.f32 %v5128, %v5226
      %v5251 = vadd.f32 %v5129, %v5227
      %v5252 = vadd.f32 %v5130, %v5228
      %v5253 = vadd.f32 %v5131, %v5229
      %v5254 = vadd.f32 %v5132, %v5230
      %v5255 = vadd.f32 %v5133, %v5231
      %v5256 = vadd.f32 %v5134, %v5232
      %v5257 = vadd.f32 %v5135, %v5233
      %v5258 = vadd.f32 %v5136, %v5234
      %v5259 = vadd.f32 %v5137, %v5235
      %v5260 = vadd.f32 %v5138, %v5236
      %v5261 = vadd.f32 %v5139, %v5237
      %v5262 = vadd.f32 %v5140, %v5238
      %v5263 = vadd.f32 %v5141, %v5239
      %s5264 = sld [smem:[#allocation2 + %s1976]]
      %v5265 = vld [vmem:[%s2176] sm:$0x3f]
      %v5266 = vld [vmem:[%s2176 + $0x8] sm:$0x3f]
      %v5267 = vld [vmem:[%s2176 + $0x10] sm:$0x3f]
      %v5268 = vld [vmem:[%s2176 + $0x18] sm:$0x3f]
      %v5269 = vld [vmem:[%s2176 + $0x20] sm:$0x3f]
      %v5270 = vld [vmem:[%s2176 + $0x28] sm:$0x3f]
      %v5271 = vld [vmem:[%s2176 + $0x30] sm:$0x3f]
      %v5272 = vld [vmem:[%s2176 + $0x38] sm:$0x3f]
      %v5273 = vld [vmem:[%s2176 + $0x40] sm:$0x3f]
      %v5274 = vld [vmem:[%s2176 + $0x48] sm:$0x3f]
      %v5275 = vld [vmem:[%s2176 + $0x50] sm:$0x3f]
      %v5276 = vld [vmem:[%s2176 + $0x58] sm:$0x3f]
      %v5277 = vld [vmem:[%s2176 + $0x60] sm:$0x3f]
      %v5278 = vld [vmem:[%s2176 + $0x68] sm:$0x3f]
      %v5279 = vld [vmem:[%s2176 + $0x70] sm:$0x3f]
      %v5280 = vld [vmem:[%s2176 + $0x78] sm:$0x3f]
      %v5281 = vld [vmem:[%s2176 + $0x80] sm:$0x3f]
      %v5282 = vld [vmem:[%s2176 + $0x88] sm:$0x3f]
      %v5283 = vld [vmem:[%s2176 + $0x90] sm:$0x3f]
      %v5284 = vld [vmem:[%s2176 + $0x98] sm:$0x3f]
      %v5285 = vld [vmem:[%s2176 + $0xa0] sm:$0x3f]
      %v5286 = vld [vmem:[%s2176 + $0xa8] sm:$0x3f]
      %v5287 = vld [vmem:[%s2176 + $0xb0] sm:$0x3f]
      %v5288 = vld [vmem:[%s2176 + $0xb8] sm:$0x3f]
      %v5289 = vstv %s5264
      %v5290 = vmul.f32 %v5265, %v5289
      %v5291 = vmul.f32 %v5266, %v5289
      %v5292 = vmul.f32 %v5267, %v5289
      %v5293 = vmul.f32 %v5268, %v5289
      %v5294 = vmul.f32 %v5269, %v5289
      %v5295 = vmul.f32 %v5270, %v5289
      %v5296 = vmul.f32 %v5271, %v5289
      %v5297 = vmul.f32 %v5272, %v5289
      %v5298 = vmul.f32 %v5273, %v5289
      %v5299 = vmul.f32 %v5274, %v5289
      %v5300 = vmul.f32 %v5275, %v5289
      %v5301 = vmul.f32 %v5276, %v5289
      %v5302 = vmul.f32 %v5277, %v5289
      %v5303 = vmul.f32 %v5278, %v5289
      %v5304 = vmul.f32 %v5279, %v5289
      %v5305 = vmul.f32 %v5280, %v5289
      %v5306 = vmul.f32 %v5281, %v5289
      %v5307 = vmul.f32 %v5282, %v5289
      %v5308 = vmul.f32 %v5283, %v5289
      %v5309 = vmul.f32 %v5284, %v5289
      %v5310 = vmul.f32 %v5285, %v5289
      %v5311 = vmul.f32 %v5286, %v5289
      %v5312 = vmul.f32 %v5287, %v5289
      %v5313 = vmul.f32 %v5288, %v5289
      %v5314 = vadd.f32 %v5168, %v5290
      %v5315 = vadd.f32 %v5169, %v5291
      %v5316 = vadd.f32 %v5170, %v5292
      %v5317 = vadd.f32 %v5171, %v5293
      %v5318 = vadd.f32 %v5172, %v5294
      %v5319 = vadd.f32 %v5173, %v5295
      %v5320 = vadd.f32 %v5174, %v5296
      %v5321 = vadd.f32 %v5175, %v5297
      %v5322 = vadd.f32 %v5176, %v5298
      %v5323 = vadd.f32 %v5177, %v5299
      %v5324 = vadd.f32 %v5178, %v5300
      %v5325 = vadd.f32 %v5179, %v5301
      %v5326 = vadd.f32 %v5180, %v5302
      %v5327 = vadd.f32 %v5181, %v5303
      %v5328 = vadd.f32 %v5182, %v5304
      %v5329 = vadd.f32 %v5183, %v5305
      %v5330 = vadd.f32 %v5184, %v5306
      %v5331 = vadd.f32 %v5185, %v5307
      %v5332 = vadd.f32 %v5186, %v5308
      %v5333 = vadd.f32 %v5187, %v5309
      %v5334 = vadd.f32 %v5188, %v5310
      %v5335 = vadd.f32 %v5189, %v5311
      %v5336 = vadd.f32 %v5190, %v5312
      %v5337 = vadd.f32 %v5191, %v5313
      %v5338 = vld [vmem:[%s2300] sm:$0x3f]
      %v5339 = vld [vmem:[%s2300 + $0x8] sm:$0x3f]
      %v5340 = vld [vmem:[%s2300 + $0x10] sm:$0x3f]
      %v5341 = vld [vmem:[%s2300 + $0x18] sm:$0x3f]
      %v5342 = vld [vmem:[%s2300 + $0x20] sm:$0x3f]
      %v5343 = vld [vmem:[%s2300 + $0x28] sm:$0x3f]
      %v5344 = vld [vmem:[%s2300 + $0x30] sm:$0x3f]
      %v5345 = vld [vmem:[%s2300 + $0x38] sm:$0x3f]
      %v5346 = vld [vmem:[%s2300 + $0x40] sm:$0x3f]
      %v5347 = vld [vmem:[%s2300 + $0x48] sm:$0x3f]
      %v5348 = vld [vmem:[%s2300 + $0x50] sm:$0x3f]
      %v5349 = vld [vmem:[%s2300 + $0x58] sm:$0x3f]
      %v5350 = vld [vmem:[%s2300 + $0x60] sm:$0x3f]
      %v5351 = vld [vmem:[%s2300 + $0x68] sm:$0x3f]
      %v5352 = vld [vmem:[%s2300 + $0x70] sm:$0x3f]
      %v5353 = vld [vmem:[%s2300 + $0x78] sm:$0x3f]
      %v5354 = vld [vmem:[%s2300 + $0x80] sm:$0x3f]
      %v5355 = vld [vmem:[%s2300 + $0x88] sm:$0x3f]
      %v5356 = vld [vmem:[%s2300 + $0x90] sm:$0x3f]
      %v5357 = vld [vmem:[%s2300 + $0x98] sm:$0x3f]
      %v5358 = vld [vmem:[%s2300 + $0xa0] sm:$0x3f]
      %v5359 = vld [vmem:[%s2300 + $0xa8] sm:$0x3f]
      %v5360 = vld [vmem:[%s2300 + $0xb0] sm:$0x3f]
      %v5361 = vld [vmem:[%s2300 + $0xb8] sm:$0x3f]
      %v5362 = vmul.f32 %v5338, %v5289
      %v5363 = vmul.f32 %v5339, %v5289
      %v5364 = vmul.f32 %v5340, %v5289
      %v5365 = vmul.f32 %v5341, %v5289
      %v5366 = vmul.f32 %v5342, %v5289
      %v5367 = vmul.f32 %v5343, %v5289
      %v5368 = vmul.f32 %v5344, %v5289
      %v5369 = vmul.f32 %v5345, %v5289
      %v5370 = vmul.f32 %v5346, %v5289
      %v5371 = vmul.f32 %v5347, %v5289
      %v5372 = vmul.f32 %v5348, %v5289
      %v5373 = vmul.f32 %v5349, %v5289
      %v5374 = vmul.f32 %v5350, %v5289
      %v5375 = vmul.f32 %v5351, %v5289
      %v5376 = vmul.f32 %v5352, %v5289
      %v5377 = vmul.f32 %v5353, %v5289
      %v5378 = vmul.f32 %v5354, %v5289
      %v5379 = vmul.f32 %v5355, %v5289
      %v5380 = vmul.f32 %v5356, %v5289
      %v5381 = vmul.f32 %v5357, %v5289
      %v5382 = vmul.f32 %v5358, %v5289
      %v5383 = vmul.f32 %v5359, %v5289
      %v5384 = vmul.f32 %v5360, %v5289
      %v5385 = vmul.f32 %v5361, %v5289
      %v5386 = vadd.f32 %v5240, %v5362
      %v5387 = vadd.f32 %v5241, %v5363
      %v5388 = vadd.f32 %v5242, %v5364
      %v5389 = vadd.f32 %v5243, %v5365
      %v5390 = vadd.f32 %v5244, %v5366
      %v5391 = vadd.f32 %v5245, %v5367
      %v5392 = vadd.f32 %v5246, %v5368
      %v5393 = vadd.f32 %v5247, %v5369
      %v5394 = vadd.f32 %v5248, %v5370
      %v5395 = vadd.f32 %v5249, %v5371
      %v5396 = vadd.f32 %v5250, %v5372
      %v5397 = vadd.f32 %v5251, %v5373
      %v5398 = vadd.f32 %v5252, %v5374
      %v5399 = vadd.f32 %v5253, %v5375
      %v5400 = vadd.f32 %v5254, %v5376
      %v5401 = vadd.f32 %v5255, %v5377
      %v5402 = vadd.f32 %v5256, %v5378
      %v5403 = vadd.f32 %v5257, %v5379
      %v5404 = vadd.f32 %v5258, %v5380
      %v5405 = vadd.f32 %v5259, %v5381
      %v5406 = vadd.f32 %v5260, %v5382
      %v5407 = vadd.f32 %v5261, %v5383
      %v5408 = vadd.f32 %v5262, %v5384
      %v5409 = vadd.f32 %v5263, %v5385
      %s5410 = sld [smem:[#allocation2 + %s2125]]
      %v5411 = vstv %s5410
      %v5412 = vmul.f32 %v5338, %v5411
      %v5413 = vmul.f32 %v5339, %v5411
      %v5414 = vmul.f32 %v5340, %v5411
      %v5415 = vmul.f32 %v5341, %v5411
      %v5416 = vmul.f32 %v5342, %v5411
      %v5417 = vmul.f32 %v5343, %v5411
      %v5418 = vmul.f32 %v5344, %v5411
      %v5419 = vmul.f32 %v5345, %v5411
      %v5420 = vmul.f32 %v5346, %v5411
      %v5421 = vmul.f32 %v5347, %v5411
      %v5422 = vmul.f32 %v5348, %v5411
      %v5423 = vmul.f32 %v5349, %v5411
      %v5424 = vmul.f32 %v5350, %v5411
      %v5425 = vmul.f32 %v5351, %v5411
      %v5426 = vmul.f32 %v5352, %v5411
      %v5427 = vmul.f32 %v5353, %v5411
      %v5428 = vmul.f32 %v5354, %v5411
      %v5429 = vmul.f32 %v5355, %v5411
      %v5430 = vmul.f32 %v5356, %v5411
      %v5431 = vmul.f32 %v5357, %v5411
      %v5432 = vmul.f32 %v5358, %v5411
      %v5433 = vmul.f32 %v5359, %v5411
      %v5434 = vmul.f32 %v5360, %v5411
      %v5435 = vmul.f32 %v5361, %v5411
      %v5436 = vadd.f32 %v5314, %v5412
      %v5437 = vadd.f32 %v5315, %v5413
      %v5438 = vadd.f32 %v5316, %v5414
      %v5439 = vadd.f32 %v5317, %v5415
      %v5440 = vadd.f32 %v5318, %v5416
      %v5441 = vadd.f32 %v5319, %v5417
      %v5442 = vadd.f32 %v5320, %v5418
      %v5443 = vadd.f32 %v5321, %v5419
      %v5444 = vadd.f32 %v5322, %v5420
      %v5445 = vadd.f32 %v5323, %v5421
      %v5446 = vadd.f32 %v5324, %v5422
      %v5447 = vadd.f32 %v5325, %v5423
      %v5448 = vadd.f32 %v5326, %v5424
      %v5449 = vadd.f32 %v5327, %v5425
      %v5450 = vadd.f32 %v5328, %v5426
      %v5451 = vadd.f32 %v5329, %v5427
      %v5452 = vadd.f32 %v5330, %v5428
      %v5453 = vadd.f32 %v5331, %v5429
      %v5454 = vadd.f32 %v5332, %v5430
      %v5455 = vadd.f32 %v5333, %v5431
      %v5456 = vadd.f32 %v5334, %v5432
      %v5457 = vadd.f32 %v5335, %v5433
      %v5458 = vadd.f32 %v5336, %v5434
      %v5459 = vadd.f32 %v5337, %v5435
      %v5460 = vld [vmem:[%s1978 + $0x1] sm:$0x3f]
      %v5461 = vld [vmem:[%s1978 + $0x9] sm:$0x3f]
      %v5462 = vld [vmem:[%s1978 + $0x11] sm:$0x3f]
      %v5463 = vld [vmem:[%s1978 + $0x19] sm:$0x3f]
      %v5464 = vld [vmem:[%s1978 + $0x21] sm:$0x3f]
      %v5465 = vld [vmem:[%s1978 + $0x29] sm:$0x3f]
      %v5466 = vld [vmem:[%s1978 + $0x31] sm:$0x3f]
      %v5467 = vld [vmem:[%s1978 + $0x39] sm:$0x3f]
      %v5468 = vld [vmem:[%s1978 + $0x41] sm:$0x3f]
      %v5469 = vld [vmem:[%s1978 + $0x49] sm:$0x3f]
      %v5470 = vld [vmem:[%s1978 + $0x51] sm:$0x3f]
      %v5471 = vld [vmem:[%s1978 + $0x59] sm:$0x3f]
      %v5472 = vld [vmem:[%s1978 + $0x61] sm:$0x3f]
      %v5473 = vld [vmem:[%s1978 + $0x69] sm:$0x3f]
      %v5474 = vld [vmem:[%s1978 + $0x71] sm:$0x3f]
      %v5475 = vld [vmem:[%s1978 + $0x79] sm:$0x3f]
      %v5476 = vld [vmem:[%s1978 + $0x81] sm:$0x3f]
      %v5477 = vld [vmem:[%s1978 + $0x89] sm:$0x3f]
      %v5478 = vld [vmem:[%s1978 + $0x91] sm:$0x3f]
      %v5479 = vld [vmem:[%s1978 + $0x99] sm:$0x3f]
      %v5480 = vld [vmem:[%s1978 + $0xa1] sm:$0x3f]
      %v5481 = vld [vmem:[%s1978 + $0xa9] sm:$0x3f]
      %v5482 = vld [vmem:[%s1978 + $0xb1] sm:$0x3f]
      %v5483 = vld [vmem:[%s1978 + $0xb9] sm:$0x3f]
      %v5484 = vmul.f32 %v5460, %v5411
      %v5485 = vmul.f32 %v5461, %v5411
      %v5486 = vmul.f32 %v5462, %v5411
      %v5487 = vmul.f32 %v5463, %v5411
      %v5488 = vmul.f32 %v5464, %v5411
      %v5489 = vmul.f32 %v5465, %v5411
      %v5490 = vmul.f32 %v5466, %v5411
      %v5491 = vmul.f32 %v5467, %v5411
      %v5492 = vmul.f32 %v5468, %v5411
      %v5493 = vmul.f32 %v5469, %v5411
      %v5494 = vmul.f32 %v5470, %v5411
      %v5495 = vmul.f32 %v5471, %v5411
      %v5496 = vmul.f32 %v5472, %v5411
      %v5497 = vmul.f32 %v5473, %v5411
      %v5498 = vmul.f32 %v5474, %v5411
      %v5499 = vmul.f32 %v5475, %v5411
      %v5500 = vmul.f32 %v5476, %v5411
      %v5501 = vmul.f32 %v5477, %v5411
      %v5502 = vmul.f32 %v5478, %v5411
      %v5503 = vmul.f32 %v5479, %v5411
      %v5504 = vmul.f32 %v5480, %v5411
      %v5505 = vmul.f32 %v5481, %v5411
      %v5506 = vmul.f32 %v5482, %v5411
      %v5507 = vmul.f32 %v5483, %v5411
      %v5508 = vadd.f32 %v5386, %v5484
      %v5509 = vadd.f32 %v5387, %v5485
      %v5510 = vadd.f32 %v5388, %v5486
      %v5511 = vadd.f32 %v5389, %v5487
      %v5512 = vadd.f32 %v5390, %v5488
      %v5513 = vadd.f32 %v5391, %v5489
      %v5514 = vadd.f32 %v5392, %v5490
      %v5515 = vadd.f32 %v5393, %v5491
      %v5516 = vadd.f32 %v5394, %v5492
      %v5517 = vadd.f32 %v5395, %v5493
      %v5518 = vadd.f32 %v5396, %v5494
      %v5519 = vadd.f32 %v5397, %v5495
      %v5520 = vadd.f32 %v5398, %v5496
      %v5521 = vadd.f32 %v5399, %v5497
      %v5522 = vadd.f32 %v5400, %v5498
      %v5523 = vadd.f32 %v5401, %v5499
      %v5524 = vadd.f32 %v5402, %v5500
      %v5525 = vadd.f32 %v5403, %v5501
      %v5526 = vadd.f32 %v5404, %v5502
      %v5527 = vadd.f32 %v5405, %v5503
      %v5528 = vadd.f32 %v5406, %v5504
      %v5529 = vadd.f32 %v5407, %v5505
      %v5530 = vadd.f32 %v5408, %v5506
      %v5531 = vadd.f32 %v5409, %v5507
      %s5532 = sld [smem:[#allocation2 + %s2249]]
      %v5533 = vstv %s5532
      %v5534 = vmul.f32 %v5460, %v5533
      %v5535 = vmul.f32 %v5461, %v5533
      %v5536 = vmul.f32 %v5462, %v5533
      %v5537 = vmul.f32 %v5463, %v5533
      %v5538 = vmul.f32 %v5464, %v5533
      %v5539 = vmul.f32 %v5465, %v5533
      %v5540 = vmul.f32 %v5466, %v5533
      %v5541 = vmul.f32 %v5467, %v5533
      %v5542 = vmul.f32 %v5468, %v5533
      %v5543 = vmul.f32 %v5469, %v5533
      %v5544 = vmul.f32 %v5470, %v5533
      %v5545 = vmul.f32 %v5471, %v5533
      %v5546 = vmul.f32 %v5472, %v5533
      %v5547 = vmul.f32 %v5473, %v5533
      %v5548 = vmul.f32 %v5474, %v5533
      %v5549 = vmul.f32 %v5475, %v5533
      %v5550 = vmul.f32 %v5476, %v5533
      %v5551 = vmul.f32 %v5477, %v5533
      %v5552 = vmul.f32 %v5478, %v5533
      %v5553 = vmul.f32 %v5479, %v5533
      %v5554 = vmul.f32 %v5480, %v5533
      %v5555 = vmul.f32 %v5481, %v5533
      %v5556 = vmul.f32 %v5482, %v5533
      %v5557 = vmul.f32 %v5483, %v5533
      %v5558 = vadd.f32 %v5436, %v5534
      %v5559 = vadd.f32 %v5437, %v5535
      %v5560 = vadd.f32 %v5438, %v5536
      %v5561 = vadd.f32 %v5439, %v5537
      %v5562 = vadd.f32 %v5440, %v5538
      %v5563 = vadd.f32 %v5441, %v5539
      %v5564 = vadd.f32 %v5442, %v5540
      %v5565 = vadd.f32 %v5443, %v5541
      %v5566 = vadd.f32 %v5444, %v5542
      %v5567 = vadd.f32 %v5445, %v5543
      %v5568 = vadd.f32 %v5446, %v5544
      %v5569 = vadd.f32 %v5447, %v5545
      %v5570 = vadd.f32 %v5448, %v5546
      %v5571 = vadd.f32 %v5449, %v5547
      %v5572 = vadd.f32 %v5450, %v5548
      %v5573 = vadd.f32 %v5451, %v5549
      %v5574 = vadd.f32 %v5452, %v5550
      %v5575 = vadd.f32 %v5453, %v5551
      %v5576 = vadd.f32 %v5454, %v5552
      %v5577 = vadd.f32 %v5455, %v5553
      %v5578 = vadd.f32 %v5456, %v5554
      %v5579 = vadd.f32 %v5457, %v5555
      %v5580 = vadd.f32 %v5458, %v5556
      %v5581 = vadd.f32 %v5459, %v5557
      %v5582 = vld [vmem:[%s2052 + $0x1] sm:$0x3f]
      %v5583 = vld [vmem:[%s2052 + $0x9] sm:$0x3f]
      %v5584 = vld [vmem:[%s2052 + $0x11] sm:$0x3f]
      %v5585 = vld [vmem:[%s2052 + $0x19] sm:$0x3f]
      %v5586 = vld [vmem:[%s2052 + $0x21] sm:$0x3f]
      %v5587 = vld [vmem:[%s2052 + $0x29] sm:$0x3f]
      %v5588 = vld [vmem:[%s2052 + $0x31] sm:$0x3f]
      %v5589 = vld [vmem:[%s2052 + $0x39] sm:$0x3f]
      %v5590 = vld [vmem:[%s2052 + $0x41] sm:$0x3f]
      %v5591 = vld [vmem:[%s2052 + $0x49] sm:$0x3f]
      %v5592 = vld [vmem:[%s2052 + $0x51] sm:$0x3f]
      %v5593 = vld [vmem:[%s2052 + $0x59] sm:$0x3f]
      %v5594 = vld [vmem:[%s2052 + $0x61] sm:$0x3f]
      %v5595 = vld [vmem:[%s2052 + $0x69] sm:$0x3f]
      %v5596 = vld [vmem:[%s2052 + $0x71] sm:$0x3f]
      %v5597 = vld [vmem:[%s2052 + $0x79] sm:$0x3f]
      %v5598 = vld [vmem:[%s2052 + $0x81] sm:$0x3f]
      %v5599 = vld [vmem:[%s2052 + $0x89] sm:$0x3f]
      %v5600 = vld [vmem:[%s2052 + $0x91] sm:$0x3f]
      %v5601 = vld [vmem:[%s2052 + $0x99] sm:$0x3f]
      %v5602 = vld [vmem:[%s2052 + $0xa1] sm:$0x3f]
      %v5603 = vld [vmem:[%s2052 + $0xa9] sm:$0x3f]
      %v5604 = vld [vmem:[%s2052 + $0xb1] sm:$0x3f]
      %v5605 = vld [vmem:[%s2052 + $0xb9] sm:$0x3f]
      %v5606 = vmul.f32 %v5582, %v5533
      %v5607 = vmul.f32 %v5583, %v5533
      %v5608 = vmul.f32 %v5584, %v5533
      %v5609 = vmul.f32 %v5585, %v5533
      %v5610 = vmul.f32 %v5586, %v5533
      %v5611 = vmul.f32 %v5587, %v5533
      %v5612 = vmul.f32 %v5588, %v5533
      %v5613 = vmul.f32 %v5589, %v5533
      %v5614 = vmul.f32 %v5590, %v5533
      %v5615 = vmul.f32 %v5591, %v5533
      %v5616 = vmul.f32 %v5592, %v5533
      %v5617 = vmul.f32 %v5593, %v5533
      %v5618 = vmul.f32 %v5594, %v5533
      %v5619 = vmul.f32 %v5595, %v5533
      %v5620 = vmul.f32 %v5596, %v5533
      %v5621 = vmul.f32 %v5597, %v5533
      %v5622 = vmul.f32 %v5598, %v5533
      %v5623 = vmul.f32 %v5599, %v5533
      %v5624 = vmul.f32 %v5600, %v5533
      %v5625 = vmul.f32 %v5601, %v5533
      %v5626 = vmul.f32 %v5602, %v5533
      %v5627 = vmul.f32 %v5603, %v5533
      %v5628 = vmul.f32 %v5604, %v5533
      %v5629 = vmul.f32 %v5605, %v5533
      %v5630 = vadd.f32 %v5508, %v5606
      %v5631 = vadd.f32 %v5509, %v5607
      %v5632 = vadd.f32 %v5510, %v5608
      %v5633 = vadd.f32 %v5511, %v5609
      %v5634 = vadd.f32 %v5512, %v5610
      %v5635 = vadd.f32 %v5513, %v5611
      %v5636 = vadd.f32 %v5514, %v5612
      %v5637 = vadd.f32 %v5515, %v5613
      %v5638 = vadd.f32 %v5516, %v5614
      %v5639 = vadd.f32 %v5517, %v5615
      %v5640 = vadd.f32 %v5518, %v5616
      %v5641 = vadd.f32 %v5519, %v5617
      %v5642 = vadd.f32 %v5520, %v5618
      %v5643 = vadd.f32 %v5521, %v5619
      %v5644 = vadd.f32 %v5522, %v5620
      %v5645 = vadd.f32 %v5523, %v5621
      %v5646 = vadd.f32 %v5524, %v5622
      %v5647 = vadd.f32 %v5525, %v5623
      %v5648 = vadd.f32 %v5526, %v5624
      %v5649 = vadd.f32 %v5527, %v5625
      %v5650 = vadd.f32 %v5528, %v5626
      %v5651 = vadd.f32 %v5529, %v5627
      %v5652 = vadd.f32 %v5530, %v5628
      %v5653 = vadd.f32 %v5531, %v5629
      %s5654 = sld [smem:[#allocation2 + %s2373]]
      %v5655 = vstv %s5654
      %v5656 = vmul.f32 %v5582, %v5655
      %v5657 = vmul.f32 %v5583, %v5655
      %v5658 = vmul.f32 %v5584, %v5655
      %v5659 = vmul.f32 %v5585, %v5655
      %v5660 = vmul.f32 %v5586, %v5655
      %v5661 = vmul.f32 %v5587, %v5655
      %v5662 = vmul.f32 %v5588, %v5655
      %v5663 = vmul.f32 %v5589, %v5655
      %v5664 = vmul.f32 %v5590, %v5655
      %v5665 = vmul.f32 %v5591, %v5655
      %v5666 = vmul.f32 %v5592, %v5655
      %v5667 = vmul.f32 %v5593, %v5655
      %v5668 = vmul.f32 %v5594, %v5655
      %v5669 = vmul.f32 %v5595, %v5655
      %v5670 = vmul.f32 %v5596, %v5655
      %v5671 = vmul.f32 %v5597, %v5655
      %v5672 = vmul.f32 %v5598, %v5655
      %v5673 = vmul.f32 %v5599, %v5655
      %v5674 = vmul.f32 %v5600, %v5655
      %v5675 = vmul.f32 %v5601, %v5655
      %v5676 = vmul.f32 %v5602, %v5655
      %v5677 = vmul.f32 %v5603, %v5655
      %v5678 = vmul.f32 %v5604, %v5655
      %v5679 = vmul.f32 %v5605, %v5655
      %v5680 = vadd.f32 %v5558, %v5656
      %v5681 = vadd.f32 %v5559, %v5657
      %v5682 = vadd.f32 %v5560, %v5658
      %v5683 = vadd.f32 %v5561, %v5659
      %v5684 = vadd.f32 %v5562, %v5660
      %v5685 = vadd.f32 %v5563, %v5661
      %v5686 = vadd.f32 %v5564, %v5662
      %v5687 = vadd.f32 %v5565, %v5663
      %v5688 = vadd.f32 %v5566, %v5664
      %v5689 = vadd.f32 %v5567, %v5665
      %v5690 = vadd.f32 %v5568, %v5666
      %v5691 = vadd.f32 %v5569, %v5667
      %v5692 = vadd.f32 %v5570, %v5668
      %v5693 = vadd.f32 %v5571, %v5669
      %v5694 = vadd.f32 %v5572, %v5670
      %v5695 = vadd.f32 %v5573, %v5671
      %v5696 = vadd.f32 %v5574, %v5672
      %v5697 = vadd.f32 %v5575, %v5673
      %v5698 = vadd.f32 %v5576, %v5674
      %v5699 = vadd.f32 %v5577, %v5675
      %v5700 = vadd.f32 %v5578, %v5676
      %v5701 = vadd.f32 %v5579, %v5677
      %v5702 = vadd.f32 %v5580, %v5678
      %v5703 = vadd.f32 %v5581, %v5679
      %v5704 = vld [vmem:[%s2176 + $0x1] sm:$0x3f]
      %v5705 = vld [vmem:[%s2176 + $0x9] sm:$0x3f]
      %v5706 = vld [vmem:[%s2176 + $0x11] sm:$0x3f]
      %v5707 = vld [vmem:[%s2176 + $0x19] sm:$0x3f]
      %v5708 = vld [vmem:[%s2176 + $0x21] sm:$0x3f]
      %v5709 = vld [vmem:[%s2176 + $0x29] sm:$0x3f]
      %v5710 = vld [vmem:[%s2176 + $0x31] sm:$0x3f]
      %v5711 = vld [vmem:[%s2176 + $0x39] sm:$0x3f]
      %v5712 = vld [vmem:[%s2176 + $0x41] sm:$0x3f]
      %v5713 = vld [vmem:[%s2176 + $0x49] sm:$0x3f]
      %v5714 = vld [vmem:[%s2176 + $0x51] sm:$0x3f]
      %v5715 = vld [vmem:[%s2176 + $0x59] sm:$0x3f]
      %v5716 = vld [vmem:[%s2176 + $0x61] sm:$0x3f]
      %v5717 = vld [vmem:[%s2176 + $0x69] sm:$0x3f]
      %v5718 = vld [vmem:[%s2176 + $0x71] sm:$0x3f]
      %v5719 = vld [vmem:[%s2176 + $0x79] sm:$0x3f]
      %v5720 = vld [vmem:[%s2176 + $0x81] sm:$0x3f]
      %v5721 = vld [vmem:[%s2176 + $0x89] sm:$0x3f]
      %v5722 = vld [vmem:[%s2176 + $0x91] sm:$0x3f]
      %v5723 = vld [vmem:[%s2176 + $0x99] sm:$0x3f]
      %v5724 = vld [vmem:[%s2176 + $0xa1] sm:$0x3f]
      %v5725 = vld [vmem:[%s2176 + $0xa9] sm:$0x3f]
      %v5726 = vld [vmem:[%s2176 + $0xb1] sm:$0x3f]
      %v5727 = vld [vmem:[%s2176 + $0xb9] sm:$0x3f]
      %v5728 = vmul.f32 %v5704, %v5655
      %v5729 = vmul.f32 %v5705, %v5655
      %v5730 = vmul.f32 %v5706, %v5655
      %v5731 = vmul.f32 %v5707, %v5655
      %v5732 = vmul.f32 %v5708, %v5655
      %v5733 = vmul.f32 %v5709, %v5655
      %v5734 = vmul.f32 %v5710, %v5655
      %v5735 = vmul.f32 %v5711, %v5655
      %v5736 = vmul.f32 %v5712, %v5655
      %v5737 = vmul.f32 %v5713, %v5655
      %v5738 = vmul.f32 %v5714, %v5655
      %v5739 = vmul.f32 %v5715, %v5655
      %v5740 = vmul.f32 %v5716, %v5655
      %v5741 = vmul.f32 %v5717, %v5655
      %v5742 = vmul.f32 %v5718, %v5655
      %v5743 = vmul.f32 %v5719, %v5655
      %v5744 = vmul.f32 %v5720, %v5655
      %v5745 = vmul.f32 %v5721, %v5655
      %v5746 = vmul.f32 %v5722, %v5655
      %v5747 = vmul.f32 %v5723, %v5655
      %v5748 = vmul.f32 %v5724, %v5655
      %v5749 = vmul.f32 %v5725, %v5655
      %v5750 = vmul.f32 %v5726, %v5655
      %v5751 = vmul.f32 %v5727, %v5655
      %v5752 = vadd.f32 %v5630, %v5728
      %v5753 = vadd.f32 %v5631, %v5729
      %v5754 = vadd.f32 %v5632, %v5730
      %v5755 = vadd.f32 %v5633, %v5731
      %v5756 = vadd.f32 %v5634, %v5732
      %v5757 = vadd.f32 %v5635, %v5733
      %v5758 = vadd.f32 %v5636, %v5734
      %v5759 = vadd.f32 %v5637, %v5735
      %v5760 = vadd.f32 %v5638, %v5736
      %v5761 = vadd.f32 %v5639, %v5737
      %v5762 = vadd.f32 %v5640, %v5738
      %v5763 = vadd.f32 %v5641, %v5739
      %v5764 = vadd.f32 %v5642, %v5740
      %v5765 = vadd.f32 %v5643, %v5741
      %v5766 = vadd.f32 %v5644, %v5742
      %v5767 = vadd.f32 %v5645, %v5743
      %v5768 = vadd.f32 %v5646, %v5744
      %v5769 = vadd.f32 %v5647, %v5745
      %v5770 = vadd.f32 %v5648, %v5746
      %v5771 = vadd.f32 %v5649, %v5747
      %v5772 = vadd.f32 %v5650, %v5748
      %v5773 = vadd.f32 %v5651, %v5749
      %v5774 = vadd.f32 %v5652, %v5750
      %v5775 = vadd.f32 %v5653, %v5751
      %s5776 = sld [smem:[#allocation2 + %s2496]]
      %v5777 = vstv %s5776
      %v5778 = vmul.f32 %v5704, %v5777
      %v5779 = vmul.f32 %v5705, %v5777
      %v5780 = vmul.f32 %v5706, %v5777
      %v5781 = vmul.f32 %v5707, %v5777
      %v5782 = vmul.f32 %v5708, %v5777
      %v5783 = vmul.f32 %v5709, %v5777
      %v5784 = vmul.f32 %v5710, %v5777
      %v5785 = vmul.f32 %v5711, %v5777
      %v5786 = vmul.f32 %v5712, %v5777
      %v5787 = vmul.f32 %v5713, %v5777
      %v5788 = vmul.f32 %v5714, %v5777
      %v5789 = vmul.f32 %v5715, %v5777
      %v5790 = vmul.f32 %v5716, %v5777
      %v5791 = vmul.f32 %v5717, %v5777
      %v5792 = vmul.f32 %v5718, %v5777
      %v5793 = vmul.f32 %v5719, %v5777
      %v5794 = vmul.f32 %v5720, %v5777
      %v5795 = vmul.f32 %v5721, %v5777
      %v5796 = vmul.f32 %v5722, %v5777
      %v5797 = vmul.f32 %v5723, %v5777
      %v5798 = vmul.f32 %v5724, %v5777
      %v5799 = vmul.f32 %v5725, %v5777
      %v5800 = vmul.f32 %v5726, %v5777
      %v5801 = vmul.f32 %v5727, %v5777
      %v5802 = vadd.f32 %v5680, %v5778
      %v5803 = vadd.f32 %v5681, %v5779
      %v5804 = vadd.f32 %v5682, %v5780
      %v5805 = vadd.f32 %v5683, %v5781
      %v5806 = vadd.f32 %v5684, %v5782
      %v5807 = vadd.f32 %v5685, %v5783
      %v5808 = vadd.f32 %v5686, %v5784
      %v5809 = vadd.f32 %v5687, %v5785
      %v5810 = vadd.f32 %v5688, %v5786
      %v5811 = vadd.f32 %v5689, %v5787
      %v5812 = vadd.f32 %v5690, %v5788
      %v5813 = vadd.f32 %v5691, %v5789
      %v5814 = vadd.f32 %v5692, %v5790
      %v5815 = vadd.f32 %v5693, %v5791
      %v5816 = vadd.f32 %v5694, %v5792
      %v5817 = vadd.f32 %v5695, %v5793
      %v5818 = vadd.f32 %v5696, %v5794
      %v5819 = vadd.f32 %v5697, %v5795
      %v5820 = vadd.f32 %v5698, %v5796
      %v5821 = vadd.f32 %v5699, %v5797
      %v5822 = vadd.f32 %v5700, %v5798
      %v5823 = vadd.f32 %v5701, %v5799
      %v5824 = vadd.f32 %v5702, %v5800
      %v5825 = vadd.f32 %v5703, %v5801
      %v5826 = vld [vmem:[%s2300 + $0x1] sm:$0x3f]
      %v5827 = vld [vmem:[%s2300 + $0x9] sm:$0x3f]
      %v5828 = vld [vmem:[%s2300 + $0x11] sm:$0x3f]
      %v5829 = vld [vmem:[%s2300 + $0x19] sm:$0x3f]
      %v5830 = vld [vmem:[%s2300 + $0x21] sm:$0x3f]
      %v5831 = vld [vmem:[%s2300 + $0x29] sm:$0x3f]
      %v5832 = vld [vmem:[%s2300 + $0x31] sm:$0x3f]
      %v5833 = vld [vmem:[%s2300 + $0x39] sm:$0x3f]
      %v5834 = vld [vmem:[%s2300 + $0x41] sm:$0x3f]
      %v5835 = vld [vmem:[%s2300 + $0x49] sm:$0x3f]
      %v5836 = vld [vmem:[%s2300 + $0x51] sm:$0x3f]
      %v5837 = vld [vmem:[%s2300 + $0x59] sm:$0x3f]
      %v5838 = vld [vmem:[%s2300 + $0x61] sm:$0x3f]
      %v5839 = vld [vmem:[%s2300 + $0x69] sm:$0x3f]
      %v5840 = vld [vmem:[%s2300 + $0x71] sm:$0x3f]
      %v5841 = vld [vmem:[%s2300 + $0x79] sm:$0x3f]
      %v5842 = vld [vmem:[%s2300 + $0x81] sm:$0x3f]
      %v5843 = vld [vmem:[%s2300 + $0x89] sm:$0x3f]
      %v5844 = vld [vmem:[%s2300 + $0x91] sm:$0x3f]
      %v5845 = vld [vmem:[%s2300 + $0x99] sm:$0x3f]
      %v5846 = vld [vmem:[%s2300 + $0xa1] sm:$0x3f]
      %v5847 = vld [vmem:[%s2300 + $0xa9] sm:$0x3f]
      %v5848 = vld [vmem:[%s2300 + $0xb1] sm:$0x3f]
      %v5849 = vld [vmem:[%s2300 + $0xb9] sm:$0x3f]
      %v5850 = vmul.f32 %v5826, %v5777
      %v5851 = vmul.f32 %v5827, %v5777
      %v5852 = vmul.f32 %v5828, %v5777
      %v5853 = vmul.f32 %v5829, %v5777
      %v5854 = vmul.f32 %v5830, %v5777
      %v5855 = vmul.f32 %v5831, %v5777
      %v5856 = vmul.f32 %v5832, %v5777
      %v5857 = vmul.f32 %v5833, %v5777
      %v5858 = vmul.f32 %v5834, %v5777
      %v5859 = vmul.f32 %v5835, %v5777
      %v5860 = vmul.f32 %v5836, %v5777
      %v5861 = vmul.f32 %v5837, %v5777
      %v5862 = vmul.f32 %v5838, %v5777
      %v5863 = vmul.f32 %v5839, %v5777
      %v5864 = vmul.f32 %v5840, %v5777
      %v5865 = vmul.f32 %v5841, %v5777
      %v5866 = vmul.f32 %v5842, %v5777
      %v5867 = vmul.f32 %v5843, %v5777
      %v5868 = vmul.f32 %v5844, %v5777
      %v5869 = vmul.f32 %v5845, %v5777
      %v5870 = vmul.f32 %v5846, %v5777
      %v5871 = vmul.f32 %v5847, %v5777
      %v5872 = vmul.f32 %v5848, %v5777
      %v5873 = vmul.f32 %v5849, %v5777
      %v5874 = vadd.f32 %v5752, %v5850
      %v5875 = vadd.f32 %v5753, %v5851
      %v5876 = vadd.f32 %v5754, %v5852
      %v5877 = vadd.f32 %v5755, %v5853
      %v5878 = vadd.f32 %v5756, %v5854
      %v5879 = vadd.f32 %v5757, %v5855
      %v5880 = vadd.f32 %v5758, %v5856
      %v5881 = vadd.f32 %v5759, %v5857
      %v5882 = vadd.f32 %v5760, %v5858
      %v5883 = vadd.f32 %v5761, %v5859
      %v5884 = vadd.f32 %v5762, %v5860
      %v5885 = vadd.f32 %v5763, %v5861
      %v5886 = vadd.f32 %v5764, %v5862
      %v5887 = vadd.f32 %v5765, %v5863
      %v5888 = vadd.f32 %v5766, %v5864
      %v5889 = vadd.f32 %v5767, %v5865
      %v5890 = vadd.f32 %v5768, %v5866
      %v5891 = vadd.f32 %v5769, %v5867
      %v5892 = vadd.f32 %v5770, %v5868
      %v5893 = vadd.f32 %v5771, %v5869
      %v5894 = vadd.f32 %v5772, %v5870
      %v5895 = vadd.f32 %v5773, %v5871
      %v5896 = vadd.f32 %v5774, %v5872
      %v5897 = vadd.f32 %v5775, %v5873
      %s5898 = sld [smem:[#allocation2 + %s2619]]
      %v5899 = vld [vmem:[%s2819] sm:$0x3f]
      %v5900 = vld [vmem:[%s2819 + $0x8] sm:$0x3f]
      %v5901 = vld [vmem:[%s2819 + $0x10] sm:$0x3f]
      %v5902 = vld [vmem:[%s2819 + $0x18] sm:$0x3f]
      %v5903 = vld [vmem:[%s2819 + $0x20] sm:$0x3f]
      %v5904 = vld [vmem:[%s2819 + $0x28] sm:$0x3f]
      %v5905 = vld [vmem:[%s2819 + $0x30] sm:$0x3f]
      %v5906 = vld [vmem:[%s2819 + $0x38] sm:$0x3f]
      %v5907 = vld [vmem:[%s2819 + $0x40] sm:$0x3f]
      %v5908 = vld [vmem:[%s2819 + $0x48] sm:$0x3f]
      %v5909 = vld [vmem:[%s2819 + $0x50] sm:$0x3f]
      %v5910 = vld [vmem:[%s2819 + $0x58] sm:$0x3f]
      %v5911 = vld [vmem:[%s2819 + $0x60] sm:$0x3f]
      %v5912 = vld [vmem:[%s2819 + $0x68] sm:$0x3f]
      %v5913 = vld [vmem:[%s2819 + $0x70] sm:$0x3f]
      %v5914 = vld [vmem:[%s2819 + $0x78] sm:$0x3f]
      %v5915 = vld [vmem:[%s2819 + $0x80] sm:$0x3f]
      %v5916 = vld [vmem:[%s2819 + $0x88] sm:$0x3f]
      %v5917 = vld [vmem:[%s2819 + $0x90] sm:$0x3f]
      %v5918 = vld [vmem:[%s2819 + $0x98] sm:$0x3f]
      %v5919 = vld [vmem:[%s2819 + $0xa0] sm:$0x3f]
      %v5920 = vld [vmem:[%s2819 + $0xa8] sm:$0x3f]
      %v5921 = vld [vmem:[%s2819 + $0xb0] sm:$0x3f]
      %v5922 = vld [vmem:[%s2819 + $0xb8] sm:$0x3f]
      %v5923 = vstv %s5898
      %v5924 = vmul.f32 %v5899, %v5923
      %v5925 = vmul.f32 %v5900, %v5923
      %v5926 = vmul.f32 %v5901, %v5923
      %v5927 = vmul.f32 %v5902, %v5923
      %v5928 = vmul.f32 %v5903, %v5923
      %v5929 = vmul.f32 %v5904, %v5923
      %v5930 = vmul.f32 %v5905, %v5923
      %v5931 = vmul.f32 %v5906, %v5923
      %v5932 = vmul.f32 %v5907, %v5923
      %v5933 = vmul.f32 %v5908, %v5923
      %v5934 = vmul.f32 %v5909, %v5923
      %v5935 = vmul.f32 %v5910, %v5923
      %v5936 = vmul.f32 %v5911, %v5923
      %v5937 = vmul.f32 %v5912, %v5923
      %v5938 = vmul.f32 %v5913, %v5923
      %v5939 = vmul.f32 %v5914, %v5923
      %v5940 = vmul.f32 %v5915, %v5923
      %v5941 = vmul.f32 %v5916, %v5923
      %v5942 = vmul.f32 %v5917, %v5923
      %v5943 = vmul.f32 %v5918, %v5923
      %v5944 = vmul.f32 %v5919, %v5923
      %v5945 = vmul.f32 %v5920, %v5923
      %v5946 = vmul.f32 %v5921, %v5923
      %v5947 = vmul.f32 %v5922, %v5923
      %v5948 = vadd.f32 %v5802, %v5924
      %v5949 = vadd.f32 %v5803, %v5925
      %v5950 = vadd.f32 %v5804, %v5926
      %v5951 = vadd.f32 %v5805, %v5927
      %v5952 = vadd.f32 %v5806, %v5928
      %v5953 = vadd.f32 %v5807, %v5929
      %v5954 = vadd.f32 %v5808, %v5930
      %v5955 = vadd.f32 %v5809, %v5931
      %v5956 = vadd.f32 %v5810, %v5932
      %v5957 = vadd.f32 %v5811, %v5933
      %v5958 = vadd.f32 %v5812, %v5934
      %v5959 = vadd.f32 %v5813, %v5935
      %v5960 = vadd.f32 %v5814, %v5936
      %v5961 = vadd.f32 %v5815, %v5937
      %v5962 = vadd.f32 %v5816, %v5938
      %v5963 = vadd.f32 %v5817, %v5939
      %v5964 = vadd.f32 %v5818, %v5940
      %v5965 = vadd.f32 %v5819, %v5941
      %v5966 = vadd.f32 %v5820, %v5942
      %v5967 = vadd.f32 %v5821, %v5943
      %v5968 = vadd.f32 %v5822, %v5944
      %v5969 = vadd.f32 %v5823, %v5945
      %v5970 = vadd.f32 %v5824, %v5946
      %v5971 = vadd.f32 %v5825, %v5947
      %v5972 = vld [vmem:[%s2943] sm:$0x3f]
      %v5973 = vld [vmem:[%s2943 + $0x8] sm:$0x3f]
      %v5974 = vld [vmem:[%s2943 + $0x10] sm:$0x3f]
      %v5975 = vld [vmem:[%s2943 + $0x18] sm:$0x3f]
      %v5976 = vld [vmem:[%s2943 + $0x20] sm:$0x3f]
      %v5977 = vld [vmem:[%s2943 + $0x28] sm:$0x3f]
      %v5978 = vld [vmem:[%s2943 + $0x30] sm:$0x3f]
      %v5979 = vld [vmem:[%s2943 + $0x38] sm:$0x3f]
      %v5980 = vld [vmem:[%s2943 + $0x40] sm:$0x3f]
      %v5981 = vld [vmem:[%s2943 + $0x48] sm:$0x3f]
      %v5982 = vld [vmem:[%s2943 + $0x50] sm:$0x3f]
      %v5983 = vld [vmem:[%s2943 + $0x58] sm:$0x3f]
      %v5984 = vld [vmem:[%s2943 + $0x60] sm:$0x3f]
      %v5985 = vld [vmem:[%s2943 + $0x68] sm:$0x3f]
      %v5986 = vld [vmem:[%s2943 + $0x70] sm:$0x3f]
      %v5987 = vld [vmem:[%s2943 + $0x78] sm:$0x3f]
      %v5988 = vld [vmem:[%s2943 + $0x80] sm:$0x3f]
      %v5989 = vld [vmem:[%s2943 + $0x88] sm:$0x3f]
      %v5990 = vld [vmem:[%s2943 + $0x90] sm:$0x3f]
      %v5991 = vld [vmem:[%s2943 + $0x98] sm:$0x3f]
      %v5992 = vld [vmem:[%s2943 + $0xa0] sm:$0x3f]
      %v5993 = vld [vmem:[%s2943 + $0xa8] sm:$0x3f]
      %v5994 = vld [vmem:[%s2943 + $0xb0] sm:$0x3f]
      %v5995 = vld [vmem:[%s2943 + $0xb8] sm:$0x3f]
      %v5996 = vmul.f32 %v5972, %v5923
      %v5997 = vmul.f32 %v5973, %v5923
      %v5998 = vmul.f32 %v5974, %v5923
      %v5999 = vmul.f32 %v5975, %v5923
      %v6000 = vmul.f32 %v5976, %v5923
      %v6001 = vmul.f32 %v5977, %v5923
      %v6002 = vmul.f32 %v5978, %v5923
      %v6003 = vmul.f32 %v5979, %v5923
      %v6004 = vmul.f32 %v5980, %v5923
      %v6005 = vmul.f32 %v5981, %v5923
      %v6006 = vmul.f32 %v5982, %v5923
      %v6007 = vmul.f32 %v5983, %v5923
      %v6008 = vmul.f32 %v5984, %v5923
      %v6009 = vmul.f32 %v5985, %v5923
      %v6010 = vmul.f32 %v5986, %v5923
      %v6011 = vmul.f32 %v5987, %v5923
      %v6012 = vmul.f32 %v5988, %v5923
      %v6013 = vmul.f32 %v5989, %v5923
      %v6014 = vmul.f32 %v5990, %v5923
      %v6015 = vmul.f32 %v5991, %v5923
      %v6016 = vmul.f32 %v5992, %v5923
      %v6017 = vmul.f32 %v5993, %v5923
      %v6018 = vmul.f32 %v5994, %v5923
      %v6019 = vmul.f32 %v5995, %v5923
      %v6020 = vadd.f32 %v5874, %v5996
      %v6021 = vadd.f32 %v5875, %v5997
      %v6022 = vadd.f32 %v5876, %v5998
      %v6023 = vadd.f32 %v5877, %v5999
      %v6024 = vadd.f32 %v5878, %v6000
      %v6025 = vadd.f32 %v5879, %v6001
      %v6026 = vadd.f32 %v5880, %v6002
      %v6027 = vadd.f32 %v5881, %v6003
      %v6028 = vadd.f32 %v5882, %v6004
      %v6029 = vadd.f32 %v5883, %v6005
      %v6030 = vadd.f32 %v5884, %v6006
      %v6031 = vadd.f32 %v5885, %v6007
      %v6032 = vadd.f32 %v5886, %v6008
      %v6033 = vadd.f32 %v5887, %v6009
      %v6034 = vadd.f32 %v5888, %v6010
      %v6035 = vadd.f32 %v5889, %v6011
      %v6036 = vadd.f32 %v5890, %v6012
      %v6037 = vadd.f32 %v5891, %v6013
      %v6038 = vadd.f32 %v5892, %v6014
      %v6039 = vadd.f32 %v5893, %v6015
      %v6040 = vadd.f32 %v5894, %v6016
      %v6041 = vadd.f32 %v5895, %v6017
      %v6042 = vadd.f32 %v5896, %v6018
      %v6043 = vadd.f32 %v5897, %v6019
      %s6044 = sld [smem:[#allocation2 + %s2768]]
      %v6045 = vstv %s6044
      %v6046 = vmul.f32 %v5972, %v6045
      %v6047 = vmul.f32 %v5973, %v6045
      %v6048 = vmul.f32 %v5974, %v6045
      %v6049 = vmul.f32 %v5975, %v6045
      %v6050 = vmul.f32 %v5976, %v6045
      %v6051 = vmul.f32 %v5977, %v6045
      %v6052 = vmul.f32 %v5978, %v6045
      %v6053 = vmul.f32 %v5979, %v6045
      %v6054 = vmul.f32 %v5980, %v6045
      %v6055 = vmul.f32 %v5981, %v6045
      %v6056 = vmul.f32 %v5982, %v6045
      %v6057 = vmul.f32 %v5983, %v6045
      %v6058 = vmul.f32 %v5984, %v6045
      %v6059 = vmul.f32 %v5985, %v6045
      %v6060 = vmul.f32 %v5986, %v6045
      %v6061 = vmul.f32 %v5987, %v6045
      %v6062 = vmul.f32 %v5988, %v6045
      %v6063 = vmul.f32 %v5989, %v6045
      %v6064 = vmul.f32 %v5990, %v6045
      %v6065 = vmul.f32 %v5991, %v6045
      %v6066 = vmul.f32 %v5992, %v6045
      %v6067 = vmul.f32 %v5993, %v6045
      %v6068 = vmul.f32 %v5994, %v6045
      %v6069 = vmul.f32 %v5995, %v6045
      %v6070 = vadd.f32 %v5948, %v6046
      %v6071 = vadd.f32 %v5949, %v6047
      %v6072 = vadd.f32 %v5950, %v6048
      %v6073 = vadd.f32 %v5951, %v6049
      %v6074 = vadd.f32 %v5952, %v6050
      %v6075 = vadd.f32 %v5953, %v6051
      %v6076 = vadd.f32 %v5954, %v6052
      %v6077 = vadd.f32 %v5955, %v6053
      %v6078 = vadd.f32 %v5956, %v6054
      %v6079 = vadd.f32 %v5957, %v6055
      %v6080 = vadd.f32 %v5958, %v6056
      %v6081 = vadd.f32 %v5959, %v6057
      %v6082 = vadd.f32 %v5960, %v6058
      %v6083 = vadd.f32 %v5961, %v6059
      %v6084 = vadd.f32 %v5962, %v6060
      %v6085 = vadd.f32 %v5963, %v6061
      %v6086 = vadd.f32 %v5964, %v6062
      %v6087 = vadd.f32 %v5965, %v6063
      %v6088 = vadd.f32 %v5966, %v6064
      %v6089 = vadd.f32 %v5967, %v6065
      %v6090 = vadd.f32 %v5968, %v6066
      %v6091 = vadd.f32 %v5969, %v6067
      %v6092 = vadd.f32 %v5970, %v6068
      %v6093 = vadd.f32 %v5971, %v6069
      %v6094 = vld [vmem:[%s2621 + $0x1] sm:$0x3f]
      %v6095 = vld [vmem:[%s2621 + $0x9] sm:$0x3f]
      %v6096 = vld [vmem:[%s2621 + $0x11] sm:$0x3f]
      %v6097 = vld [vmem:[%s2621 + $0x19] sm:$0x3f]
      %v6098 = vld [vmem:[%s2621 + $0x21] sm:$0x3f]
      %v6099 = vld [vmem:[%s2621 + $0x29] sm:$0x3f]
      %v6100 = vld [vmem:[%s2621 + $0x31] sm:$0x3f]
      %v6101 = vld [vmem:[%s2621 + $0x39] sm:$0x3f]
      %v6102 = vld [vmem:[%s2621 + $0x41] sm:$0x3f]
      %v6103 = vld [vmem:[%s2621 + $0x49] sm:$0x3f]
      %v6104 = vld [vmem:[%s2621 + $0x51] sm:$0x3f]
      %v6105 = vld [vmem:[%s2621 + $0x59] sm:$0x3f]
      %v6106 = vld [vmem:[%s2621 + $0x61] sm:$0x3f]
      %v6107 = vld [vmem:[%s2621 + $0x69] sm:$0x3f]
      %v6108 = vld [vmem:[%s2621 + $0x71] sm:$0x3f]
      %v6109 = vld [vmem:[%s2621 + $0x79] sm:$0x3f]
      %v6110 = vld [vmem:[%s2621 + $0x81] sm:$0x3f]
      %v6111 = vld [vmem:[%s2621 + $0x89] sm:$0x3f]
      %v6112 = vld [vmem:[%s2621 + $0x91] sm:$0x3f]
      %v6113 = vld [vmem:[%s2621 + $0x99] sm:$0x3f]
      %v6114 = vld [vmem:[%s2621 + $0xa1] sm:$0x3f]
      %v6115 = vld [vmem:[%s2621 + $0xa9] sm:$0x3f]
      %v6116 = vld [vmem:[%s2621 + $0xb1] sm:$0x3f]
      %v6117 = vld [vmem:[%s2621 + $0xb9] sm:$0x3f]
      %v6118 = vmul.f32 %v6094, %v6045
      %v6119 = vmul.f32 %v6095, %v6045
      %v6120 = vmul.f32 %v6096, %v6045
      %v6121 = vmul.f32 %v6097, %v6045
      %v6122 = vmul.f32 %v6098, %v6045
      %v6123 = vmul.f32 %v6099, %v6045
      %v6124 = vmul.f32 %v6100, %v6045
      %v6125 = vmul.f32 %v6101, %v6045
      %v6126 = vmul.f32 %v6102, %v6045
      %v6127 = vmul.f32 %v6103, %v6045
      %v6128 = vmul.f32 %v6104, %v6045
      %v6129 = vmul.f32 %v6105, %v6045
      %v6130 = vmul.f32 %v6106, %v6045
      %v6131 = vmul.f32 %v6107, %v6045
      %v6132 = vmul.f32 %v6108, %v6045
      %v6133 = vmul.f32 %v6109, %v6045
      %v6134 = vmul.f32 %v6110, %v6045
      %v6135 = vmul.f32 %v6111, %v6045
      %v6136 = vmul.f32 %v6112, %v6045
      %v6137 = vmul.f32 %v6113, %v6045
      %v6138 = vmul.f32 %v6114, %v6045
      %v6139 = vmul.f32 %v6115, %v6045
      %v6140 = vmul.f32 %v6116, %v6045
      %v6141 = vmul.f32 %v6117, %v6045
      %v6142 = vadd.f32 %v6020, %v6118
      %v6143 = vadd.f32 %v6021, %v6119
      %v6144 = vadd.f32 %v6022, %v6120
      %v6145 = vadd.f32 %v6023, %v6121
      %v6146 = vadd.f32 %v6024, %v6122
      %v6147 = vadd.f32 %v6025, %v6123
      %v6148 = vadd.f32 %v6026, %v6124
      %v6149 = vadd.f32 %v6027, %v6125
      %v6150 = vadd.f32 %v6028, %v6126
      %v6151 = vadd.f32 %v6029, %v6127
      %v6152 = vadd.f32 %v6030, %v6128
      %v6153 = vadd.f32 %v6031, %v6129
      %v6154 = vadd.f32 %v6032, %v6130
      %v6155 = vadd.f32 %v6033, %v6131
      %v6156 = vadd.f32 %v6034, %v6132
      %v6157 = vadd.f32 %v6035, %v6133
      %v6158 = vadd.f32 %v6036, %v6134
      %v6159 = vadd.f32 %v6037, %v6135
      %v6160 = vadd.f32 %v6038, %v6136
      %v6161 = vadd.f32 %v6039, %v6137
      %v6162 = vadd.f32 %v6040, %v6138
      %v6163 = vadd.f32 %v6041, %v6139
      %v6164 = vadd.f32 %v6042, %v6140
      %v6165 = vadd.f32 %v6043, %v6141
      %s6166 = sld [smem:[#allocation2 + %s2892]]
      %v6167 = vstv %s6166
      %v6168 = vmul.f32 %v6094, %v6167
      %v6169 = vmul.f32 %v6095, %v6167
      %v6170 = vmul.f32 %v6096, %v6167
      %v6171 = vmul.f32 %v6097, %v6167
      %v6172 = vmul.f32 %v6098, %v6167
      %v6173 = vmul.f32 %v6099, %v6167
      %v6174 = vmul.f32 %v6100, %v6167
      %v6175 = vmul.f32 %v6101, %v6167
      %v6176 = vmul.f32 %v6102, %v6167
      %v6177 = vmul.f32 %v6103, %v6167
      %v6178 = vmul.f32 %v6104, %v6167
      %v6179 = vmul.f32 %v6105, %v6167
      %v6180 = vmul.f32 %v6106, %v6167
      %v6181 = vmul.f32 %v6107, %v6167
      %v6182 = vmul.f32 %v6108, %v6167
      %v6183 = vmul.f32 %v6109, %v6167
      %v6184 = vmul.f32 %v6110, %v6167
      %v6185 = vmul.f32 %v6111, %v6167
      %v6186 = vmul.f32 %v6112, %v6167
      %v6187 = vmul.f32 %v6113, %v6167
      %v6188 = vmul.f32 %v6114, %v6167
      %v6189 = vmul.f32 %v6115, %v6167
      %v6190 = vmul.f32 %v6116, %v6167
      %v6191 = vmul.f32 %v6117, %v6167
      %v6192 = vadd.f32 %v6070, %v6168
      %v6193 = vadd.f32 %v6071, %v6169
      %v6194 = vadd.f32 %v6072, %v6170
      %v6195 = vadd.f32 %v6073, %v6171
      %v6196 = vadd.f32 %v6074, %v6172
      %v6197 = vadd.f32 %v6075, %v6173
      %v6198 = vadd.f32 %v6076, %v6174
      %v6199 = vadd.f32 %v6077, %v6175
      %v6200 = vadd.f32 %v6078, %v6176
      %v6201 = vadd.f32 %v6079, %v6177
      %v6202 = vadd.f32 %v6080, %v6178
      %v6203 = vadd.f32 %v6081, %v6179
      %v6204 = vadd.f32 %v6082, %v6180
      %v6205 = vadd.f32 %v6083, %v6181
      %v6206 = vadd.f32 %v6084, %v6182
      %v6207 = vadd.f32 %v6085, %v6183
      %v6208 = vadd.f32 %v6086, %v6184
      %v6209 = vadd.f32 %v6087, %v6185
      %v6210 = vadd.f32 %v6088, %v6186
      %v6211 = vadd.f32 %v6089, %v6187
      %v6212 = vadd.f32 %v6090, %v6188
      %v6213 = vadd.f32 %v6091, %v6189
      %v6214 = vadd.f32 %v6092, %v6190
      %v6215 = vadd.f32 %v6093, %v6191
      %v6216 = vld [vmem:[%s2695 + $0x1] sm:$0x3f]
      %v6217 = vld [vmem:[%s2695 + $0x9] sm:$0x3f]
      %v6218 = vld [vmem:[%s2695 + $0x11] sm:$0x3f]
      %v6219 = vld [vmem:[%s2695 + $0x19] sm:$0x3f]
      %v6220 = vld [vmem:[%s2695 + $0x21] sm:$0x3f]
      %v6221 = vld [vmem:[%s2695 + $0x29] sm:$0x3f]
      %v6222 = vld [vmem:[%s2695 + $0x31] sm:$0x3f]
      %v6223 = vld [vmem:[%s2695 + $0x39] sm:$0x3f]
      %v6224 = vld [vmem:[%s2695 + $0x41] sm:$0x3f]
      %v6225 = vld [vmem:[%s2695 + $0x49] sm:$0x3f]
      %v6226 = vld [vmem:[%s2695 + $0x51] sm:$0x3f]
      %v6227 = vld [vmem:[%s2695 + $0x59] sm:$0x3f]
      %v6228 = vld [vmem:[%s2695 + $0x61] sm:$0x3f]
      %v6229 = vld [vmem:[%s2695 + $0x69] sm:$0x3f]
      %v6230 = vld [vmem:[%s2695 + $0x71] sm:$0x3f]
      %v6231 = vld [vmem:[%s2695 + $0x79] sm:$0x3f]
      %v6232 = vld [vmem:[%s2695 + $0x81] sm:$0x3f]
      %v6233 = vld [vmem:[%s2695 + $0x89] sm:$0x3f]
      %v6234 = vld [vmem:[%s2695 + $0x91] sm:$0x3f]
      %v6235 = vld [vmem:[%s2695 + $0x99] sm:$0x3f]
      %v6236 = vld [vmem:[%s2695 + $0xa1] sm:$0x3f]
      %v6237 = vld [vmem:[%s2695 + $0xa9] sm:$0x3f]
      %v6238 = vld [vmem:[%s2695 + $0xb1] sm:$0x3f]
      %v6239 = vld [vmem:[%s2695 + $0xb9] sm:$0x3f]
      %v6240 = vmul.f32 %v6216, %v6167
      %v6241 = vmul.f32 %v6217, %v6167
      %v6242 = vmul.f32 %v6218, %v6167
      %v6243 = vmul.f32 %v6219, %v6167
      %v6244 = vmul.f32 %v6220, %v6167
      %v6245 = vmul.f32 %v6221, %v6167
      %v6246 = vmul.f32 %v6222, %v6167
      %v6247 = vmul.f32 %v6223, %v6167
      %v6248 = vmul.f32 %v6224, %v6167
      %v6249 = vmul.f32 %v6225, %v6167
      %v6250 = vmul.f32 %v6226, %v6167
      %v6251 = vmul.f32 %v6227, %v6167
      %v6252 = vmul.f32 %v6228, %v6167
      %v6253 = vmul.f32 %v6229, %v6167
      %v6254 = vmul.f32 %v6230, %v6167
      %v6255 = vmul.f32 %v6231, %v6167
      %v6256 = vmul.f32 %v6232, %v6167
      %v6257 = vmul.f32 %v6233, %v6167
      %v6258 = vmul.f32 %v6234, %v6167
      %v6259 = vmul.f32 %v6235, %v6167
      %v6260 = vmul.f32 %v6236, %v6167
      %v6261 = vmul.f32 %v6237, %v6167
      %v6262 = vmul.f32 %v6238, %v6167
      %v6263 = vmul.f32 %v6239, %v6167
      %v6264 = vadd.f32 %v6142, %v6240
      %v6265 = vadd.f32 %v6143, %v6241
      %v6266 = vadd.f32 %v6144, %v6242
      %v6267 = vadd.f32 %v6145, %v6243
      %v6268 = vadd.f32 %v6146, %v6244
      %v6269 = vadd.f32 %v6147, %v6245
      %v6270 = vadd.f32 %v6148, %v6246
      %v6271 = vadd.f32 %v6149, %v6247
      %v6272 = vadd.f32 %v6150, %v6248
      %v6273 = vadd.f32 %v6151, %v6249
      %v6274 = vadd.f32 %v6152, %v6250
      %v6275 = vadd.f32 %v6153, %v6251
      %v6276 = vadd.f32 %v6154, %v6252
      %v6277 = vadd.f32 %v6155, %v6253
      %v6278 = vadd.f32 %v6156, %v6254
      %v6279 = vadd.f32 %v6157, %v6255
      %v6280 = vadd.f32 %v6158, %v6256
      %v6281 = vadd.f32 %v6159, %v6257
      %v6282 = vadd.f32 %v6160, %v6258
      %v6283 = vadd.f32 %v6161, %v6259
      %v6284 = vadd.f32 %v6162, %v6260
      %v6285 = vadd.f32 %v6163, %v6261
      %v6286 = vadd.f32 %v6164, %v6262
      %v6287 = vadd.f32 %v6165, %v6263
      %s6288 = sld [smem:[#allocation2 + %s3016]]
      %v6289 = vstv %s6288
      %v6290 = vmul.f32 %v6216, %v6289
      %v6291 = vmul.f32 %v6217, %v6289
      %v6292 = vmul.f32 %v6218, %v6289
      %v6293 = vmul.f32 %v6219, %v6289
      %v6294 = vmul.f32 %v6220, %v6289
      %v6295 = vmul.f32 %v6221, %v6289
      %v6296 = vmul.f32 %v6222, %v6289
      %v6297 = vmul.f32 %v6223, %v6289
      %v6298 = vmul.f32 %v6224, %v6289
      %v6299 = vmul.f32 %v6225, %v6289
      %v6300 = vmul.f32 %v6226, %v6289
      %v6301 = vmul.f32 %v6227, %v6289
      %v6302 = vmul.f32 %v6228, %v6289
      %v6303 = vmul.f32 %v6229, %v6289
      %v6304 = vmul.f32 %v6230, %v6289
      %v6305 = vmul.f32 %v6231, %v6289
      %v6306 = vmul.f32 %v6232, %v6289
      %v6307 = vmul.f32 %v6233, %v6289
      %v6308 = vmul.f32 %v6234, %v6289
      %v6309 = vmul.f32 %v6235, %v6289
      %v6310 = vmul.f32 %v6236, %v6289
      %v6311 = vmul.f32 %v6237, %v6289
      %v6312 = vmul.f32 %v6238, %v6289
      %v6313 = vmul.f32 %v6239, %v6289
      %v6314 = vadd.f32 %v6192, %v6290
      %v6315 = vadd.f32 %v6193, %v6291
      %v6316 = vadd.f32 %v6194, %v6292
      %v6317 = vadd.f32 %v6195, %v6293
      %v6318 = vadd.f32 %v6196, %v6294
      %v6319 = vadd.f32 %v6197, %v6295
      %v6320 = vadd.f32 %v6198, %v6296
      %v6321 = vadd.f32 %v6199, %v6297
      %v6322 = vadd.f32 %v6200, %v6298
      %v6323 = vadd.f32 %v6201, %v6299
      %v6324 = vadd.f32 %v6202, %v6300
      %v6325 = vadd.f32 %v6203, %v6301
      %v6326 = vadd.f32 %v6204, %v6302
      %v6327 = vadd.f32 %v6205, %v6303
      %v6328 = vadd.f32 %v6206, %v6304
      %v6329 = vadd.f32 %v6207, %v6305
      %v6330 = vadd.f32 %v6208, %v6306
      %v6331 = vadd.f32 %v6209, %v6307
      %v6332 = vadd.f32 %v6210, %v6308
      %v6333 = vadd.f32 %v6211, %v6309
      %v6334 = vadd.f32 %v6212, %v6310
      %v6335 = vadd.f32 %v6213, %v6311
      %v6336 = vadd.f32 %v6214, %v6312
      %v6337 = vadd.f32 %v6215, %v6313
      %v6338 = vld [vmem:[%s2819 + $0x1] sm:$0x3f]
      %v6339 = vld [vmem:[%s2819 + $0x9] sm:$0x3f]
      %v6340 = vld [vmem:[%s2819 + $0x11] sm:$0x3f]
      %v6341 = vld [vmem:[%s2819 + $0x19] sm:$0x3f]
      %v6342 = vld [vmem:[%s2819 + $0x21] sm:$0x3f]
      %v6343 = vld [vmem:[%s2819 + $0x29] sm:$0x3f]
      %v6344 = vld [vmem:[%s2819 + $0x31] sm:$0x3f]
      %v6345 = vld [vmem:[%s2819 + $0x39] sm:$0x3f]
      %v6346 = vld [vmem:[%s2819 + $0x41] sm:$0x3f]
      %v6347 = vld [vmem:[%s2819 + $0x49] sm:$0x3f]
      %v6348 = vld [vmem:[%s2819 + $0x51] sm:$0x3f]
      %v6349 = vld [vmem:[%s2819 + $0x59] sm:$0x3f]
      %v6350 = vld [vmem:[%s2819 + $0x61] sm:$0x3f]
      %v6351 = vld [vmem:[%s2819 + $0x69] sm:$0x3f]
      %v6352 = vld [vmem:[%s2819 + $0x71] sm:$0x3f]
      %v6353 = vld [vmem:[%s2819 + $0x79] sm:$0x3f]
      %v6354 = vld [vmem:[%s2819 + $0x81] sm:$0x3f]
      %v6355 = vld [vmem:[%s2819 + $0x89] sm:$0x3f]
      %v6356 = vld [vmem:[%s2819 + $0x91] sm:$0x3f]
      %v6357 = vld [vmem:[%s2819 + $0x99] sm:$0x3f]
      %v6358 = vld [vmem:[%s2819 + $0xa1] sm:$0x3f]
      %v6359 = vld [vmem:[%s2819 + $0xa9] sm:$0x3f]
      %v6360 = vld [vmem:[%s2819 + $0xb1] sm:$0x3f]
      %v6361 = vld [vmem:[%s2819 + $0xb9] sm:$0x3f]
      %v6362 = vmul.f32 %v6338, %v6289
      %v6363 = vmul.f32 %v6339, %v6289
      %v6364 = vmul.f32 %v6340, %v6289
      %v6365 = vmul.f32 %v6341, %v6289
      %v6366 = vmul.f32 %v6342, %v6289
      %v6367 = vmul.f32 %v6343, %v6289
      %v6368 = vmul.f32 %v6344, %v6289
      %v6369 = vmul.f32 %v6345, %v6289
      %v6370 = vmul.f32 %v6346, %v6289
      %v6371 = vmul.f32 %v6347, %v6289
      %v6372 = vmul.f32 %v6348, %v6289
      %v6373 = vmul.f32 %v6349, %v6289
      %v6374 = vmul.f32 %v6350, %v6289
      %v6375 = vmul.f32 %v6351, %v6289
      %v6376 = vmul.f32 %v6352, %v6289
      %v6377 = vmul.f32 %v6353, %v6289
      %v6378 = vmul.f32 %v6354, %v6289
      %v6379 = vmul.f32 %v6355, %v6289
      %v6380 = vmul.f32 %v6356, %v6289
      %v6381 = vmul.f32 %v6357, %v6289
      %v6382 = vmul.f32 %v6358, %v6289
      %v6383 = vmul.f32 %v6359, %v6289
      %v6384 = vmul.f32 %v6360, %v6289
      %v6385 = vmul.f32 %v6361, %v6289
      %v6386 = vadd.f32 %v6264, %v6362
      %v6387 = vadd.f32 %v6265, %v6363
      %v6388 = vadd.f32 %v6266, %v6364
      %v6389 = vadd.f32 %v6267, %v6365
      %v6390 = vadd.f32 %v6268, %v6366
      %v6391 = vadd.f32 %v6269, %v6367
      %v6392 = vadd.f32 %v6270, %v6368
      %v6393 = vadd.f32 %v6271, %v6369
      %v6394 = vadd.f32 %v6272, %v6370
      %v6395 = vadd.f32 %v6273, %v6371
      %v6396 = vadd.f32 %v6274, %v6372
      %v6397 = vadd.f32 %v6275, %v6373
      %v6398 = vadd.f32 %v6276, %v6374
      %v6399 = vadd.f32 %v6277, %v6375
      %v6400 = vadd.f32 %v6278, %v6376
      %v6401 = vadd.f32 %v6279, %v6377
      %v6402 = vadd.f32 %v6280, %v6378
      %v6403 = vadd.f32 %v6281, %v6379
      %v6404 = vadd.f32 %v6282, %v6380
      %v6405 = vadd.f32 %v6283, %v6381
      %v6406 = vadd.f32 %v6284, %v6382
      %v6407 = vadd.f32 %v6285, %v6383
      %v6408 = vadd.f32 %v6286, %v6384
      %v6409 = vadd.f32 %v6287, %v6385
      %s6410 = sld [smem:[#allocation2 + %s3139]]
      %v6411 = vstv %s6410
      %v6412 = vmul.f32 %v6338, %v6411
      %v6413 = vmul.f32 %v6339, %v6411
      %v6414 = vmul.f32 %v6340, %v6411
      %v6415 = vmul.f32 %v6341, %v6411
      %v6416 = vmul.f32 %v6342, %v6411
      %v6417 = vmul.f32 %v6343, %v6411
      %v6418 = vmul.f32 %v6344, %v6411
      %v6419 = vmul.f32 %v6345, %v6411
      %v6420 = vmul.f32 %v6346, %v6411
      %v6421 = vmul.f32 %v6347, %v6411
      %v6422 = vmul.f32 %v6348, %v6411
      %v6423 = vmul.f32 %v6349, %v6411
      %v6424 = vmul.f32 %v6350, %v6411
      %v6425 = vmul.f32 %v6351, %v6411
      %v6426 = vmul.f32 %v6352, %v6411
      %v6427 = vmul.f32 %v6353, %v6411
      %v6428 = vmul.f32 %v6354, %v6411
      %v6429 = vmul.f32 %v6355, %v6411
      %v6430 = vmul.f32 %v6356, %v6411
      %v6431 = vmul.f32 %v6357, %v6411
      %v6432 = vmul.f32 %v6358, %v6411
      %v6433 = vmul.f32 %v6359, %v6411
      %v6434 = vmul.f32 %v6360, %v6411
      %v6435 = vmul.f32 %v6361, %v6411
      %v6436 = vadd.f32 %v6314, %v6412
      %v6437 = vadd.f32 %v6315, %v6413
      %v6438 = vadd.f32 %v6316, %v6414
      %v6439 = vadd.f32 %v6317, %v6415
      %v6440 = vadd.f32 %v6318, %v6416
      %v6441 = vadd.f32 %v6319, %v6417
      %v6442 = vadd.f32 %v6320, %v6418
      %v6443 = vadd.f32 %v6321, %v6419
      %v6444 = vadd.f32 %v6322, %v6420
      %v6445 = vadd.f32 %v6323, %v6421
      %v6446 = vadd.f32 %v6324, %v6422
      %v6447 = vadd.f32 %v6325, %v6423
      %v6448 = vadd.f32 %v6326, %v6424
      %v6449 = vadd.f32 %v6327, %v6425
      %v6450 = vadd.f32 %v6328, %v6426
      %v6451 = vadd.f32 %v6329, %v6427
      %v6452 = vadd.f32 %v6330, %v6428
      %v6453 = vadd.f32 %v6331, %v6429
      %v6454 = vadd.f32 %v6332, %v6430
      %v6455 = vadd.f32 %v6333, %v6431
      %v6456 = vadd.f32 %v6334, %v6432
      %v6457 = vadd.f32 %v6335, %v6433
      %v6458 = vadd.f32 %v6336, %v6434
      %v6459 = vadd.f32 %v6337, %v6435
      %v6460 = vld [vmem:[%s2943 + $0x1] sm:$0x3f]
      %v6461 = vld [vmem:[%s2943 + $0x9] sm:$0x3f]
      %v6462 = vld [vmem:[%s2943 + $0x11] sm:$0x3f]
      %v6463 = vld [vmem:[%s2943 + $0x19] sm:$0x3f]
      %v6464 = vld [vmem:[%s2943 + $0x21] sm:$0x3f]
      %v6465 = vld [vmem:[%s2943 + $0x29] sm:$0x3f]
      %v6466 = vld [vmem:[%s2943 + $0x31] sm:$0x3f]
      %v6467 = vld [vmem:[%s2943 + $0x39] sm:$0x3f]
      %v6468 = vld [vmem:[%s2943 + $0x41] sm:$0x3f]
      %v6469 = vld [vmem:[%s2943 + $0x49] sm:$0x3f]
      %v6470 = vld [vmem:[%s2943 + $0x51] sm:$0x3f]
      %v6471 = vld [vmem:[%s2943 + $0x59] sm:$0x3f]
      %v6472 = vld [vmem:[%s2943 + $0x61] sm:$0x3f]
      %v6473 = vld [vmem:[%s2943 + $0x69] sm:$0x3f]
      %v6474 = vld [vmem:[%s2943 + $0x71] sm:$0x3f]
      %v6475 = vld [vmem:[%s2943 + $0x79] sm:$0x3f]
      %v6476 = vld [vmem:[%s2943 + $0x81] sm:$0x3f]
      %v6477 = vld [vmem:[%s2943 + $0x89] sm:$0x3f]
      %v6478 = vld [vmem:[%s2943 + $0x91] sm:$0x3f]
      %v6479 = vld [vmem:[%s2943 + $0x99] sm:$0x3f]
      %v6480 = vld [vmem:[%s2943 + $0xa1] sm:$0x3f]
      %v6481 = vld [vmem:[%s2943 + $0xa9] sm:$0x3f]
      %v6482 = vld [vmem:[%s2943 + $0xb1] sm:$0x3f]
      %v6483 = vld [vmem:[%s2943 + $0xb9] sm:$0x3f]
      %v6484 = vmul.f32 %v6460, %v6411
      %v6485 = vmul.f32 %v6461, %v6411
      %v6486 = vmul.f32 %v6462, %v6411
      %v6487 = vmul.f32 %v6463, %v6411
      %v6488 = vmul.f32 %v6464, %v6411
      %v6489 = vmul.f32 %v6465, %v6411
      %v6490 = vmul.f32 %v6466, %v6411
      %v6491 = vmul.f32 %v6467, %v6411
      %v6492 = vmul.f32 %v6468, %v6411
      %v6493 = vmul.f32 %v6469, %v6411
      %v6494 = vmul.f32 %v6470, %v6411
      %v6495 = vmul.f32 %v6471, %v6411
      %v6496 = vmul.f32 %v6472, %v6411
      %v6497 = vmul.f32 %v6473, %v6411
      %v6498 = vmul.f32 %v6474, %v6411
      %v6499 = vmul.f32 %v6475, %v6411
      %v6500 = vmul.f32 %v6476, %v6411
      %v6501 = vmul.f32 %v6477, %v6411
      %v6502 = vmul.f32 %v6478, %v6411
      %v6503 = vmul.f32 %v6479, %v6411
      %v6504 = vmul.f32 %v6480, %v6411
      %v6505 = vmul.f32 %v6481, %v6411
      %v6506 = vmul.f32 %v6482, %v6411
      %v6507 = vmul.f32 %v6483, %v6411
      %v6508 = vadd.f32 %v6386, %v6484
      %v6509 = vadd.f32 %v6387, %v6485
      %v6510 = vadd.f32 %v6388, %v6486
      %v6511 = vadd.f32 %v6389, %v6487
      %v6512 = vadd.f32 %v6390, %v6488
      %v6513 = vadd.f32 %v6391, %v6489
      %v6514 = vadd.f32 %v6392, %v6490
      %v6515 = vadd.f32 %v6393, %v6491
      %v6516 = vadd.f32 %v6394, %v6492
      %v6517 = vadd.f32 %v6395, %v6493
      %v6518 = vadd.f32 %v6396, %v6494
      %v6519 = vadd.f32 %v6397, %v6495
      %v6520 = vadd.f32 %v6398, %v6496
      %v6521 = vadd.f32 %v6399, %v6497
      %v6522 = vadd.f32 %v6400, %v6498
      %v6523 = vadd.f32 %v6401, %v6499
      %v6524 = vadd.f32 %v6402, %v6500
      %v6525 = vadd.f32 %v6403, %v6501
      %v6526 = vadd.f32 %v6404, %v6502
      %v6527 = vadd.f32 %v6405, %v6503
      %v6528 = vadd.f32 %v6406, %v6504
      %v6529 = vadd.f32 %v6407, %v6505
      %v6530 = vadd.f32 %v6408, %v6506
      %v6531 = vadd.f32 %v6409, %v6507
      %v6532 = vmax.f32 %v6436, %v6508
      %v6533 = vmax.f32 %v6437, %v6509
      %v6534 = vmax.f32 %v6438, %v6510
      %v6535 = vmax.f32 %v6439, %v6511
      %v6536 = vmax.f32 %v6440, %v6512
      %v6537 = vmax.f32 %v6441, %v6513
      %v6538 = vmax.f32 %v6442, %v6514
      %v6539 = vmax.f32 %v6443, %v6515
      %v6540 = vmax.f32 %v6444, %v6516
      %v6541 = vmax.f32 %v6445, %v6517
      %v6542 = vmax.f32 %v6446, %v6518
      %v6543 = vmax.f32 %v6447, %v6519
      %v6544 = vmax.f32 %v6448, %v6520
      %v6545 = vmax.f32 %v6449, %v6521
      %v6546 = vmax.f32 %v6450, %v6522
      %v6547 = vmax.f32 %v6451, %v6523
      %v6548 = vmax.f32 %v6452, %v6524
      %v6549 = vmax.f32 %v6453, %v6525
      %v6550 = vmax.f32 %v6454, %v6526
      %v6551 = vmax.f32 %v6455, %v6527
      %v6552 = vmax.f32 %v6456, %v6528
      %v6553 = vmax.f32 %v6457, %v6529
      %v6554 = vmax.f32 %v6458, %v6530
      %v6555 = vmax.f32 %v6459, %v6531
      %v6556 = vsel %vm3286, %v6532, -inf
      %v6557 = vsel %vm3286, %v6533, -inf
      %v6558 = vmax.f32 %v6556, %v6557
      %v6559 = vsel %vm3286, %v6534, -inf
      %v6560 = vsel %vm3286, %v6535, -inf
      %v6561 = vmax.f32 %v6559, %v6560
      %v6562 = vsel %vm3286, %v6536, -inf
      %v6563 = vsel %vm3286, %v6537, -inf
      %v6564 = vmax.f32 %v6562, %v6563
      %v6565 = vsel %vm3286, %v6538, -inf
      %v6566 = vsel %vm3286, %v6539, -inf
      %v6567 = vmax.f32 %v6565, %v6566
      %v6568 = vsel %vm3286, %v6540, -inf
      %v6569 = vsel %vm3286, %v6541, -inf
      %v6570 = vmax.f32 %v6568, %v6569
      %v6571 = vsel %vm3286, %v6542, -inf
      %v6572 = vsel %vm3286, %v6543, -inf
      %v6573 = vmax.f32 %v6571, %v6572
      %v6574 = vsel %vm3286, %v6544, -inf
      %v6575 = vsel %vm3286, %v6545, -inf
      %v6576 = vmax.f32 %v6574, %v6575
      %v6577 = vsel %vm3286, %v6546, -inf
      %v6578 = vsel %vm3286, %v6547, -inf
      %v6579 = vmax.f32 %v6577, %v6578
      %v6580 = vsel %vm3286, %v6548, -inf
      %v6581 = vsel %vm3286, %v6549, -inf
      %v6582 = vmax.f32 %v6580, %v6581
      %v6583 = vsel %vm3286, %v6550, -inf
      %v6584 = vsel %vm3286, %v6551, -inf
      %v6585 = vmax.f32 %v6583, %v6584
      %v6586 = vsel %vm3286, %v6552, -inf
      %v6587 = vsel %vm3286, %v6553, -inf
      %v6588 = vmax.f32 %v6586, %v6587
      %v6589 = vsel %vm3286, %v6554, -inf
      %v6590 = vsel %vm3286, %v6555, -inf
      %v6591 = vmax.f32 %v6589, %v6590
      %v6592 = vadd.f32 %v6558, %v3323
      %v6593 = vadd.f32 %v6561, %v3323
      %v6594 = vadd.f32 %v6564, %v3323
      %v6595 = vadd.f32 %v6567, %v3323
      %v6596 = vadd.f32 %v6570, %v3323
      %v6597 = vadd.f32 %v6573, %v3323
      %v6598 = vadd.f32 %v6576, %v3323
      %v6599 = vadd.f32 %v6579, %v3323
      %v6600 = vadd.f32 %v6582, %v3323
      %v6601 = vadd.f32 %v6585, %v3323
      %v6602 = vadd.f32 %v6588, %v3323
      %v6603 = vadd.f32 %v6591, %v3323
      %v6604 = vmax.f32 %v6592, 0.0
      %v6605 = vmax.f32 %v6593, 0.0
      %v6606 = vmax.f32 %v6594, 0.0
      %v6607 = vmax.f32 %v6595, 0.0
      %v6608 = vmax.f32 %v6596, 0.0
      %v6609 = vmax.f32 %v6597, 0.0
      %v6610 = vmax.f32 %v6598, 0.0
      %v6611 = vmax.f32 %v6599, 0.0
      %v6612 = vmax.f32 %v6600, 0.0
      %v6613 = vmax.f32 %v6601, 0.0
      %v6614 = vmax.f32 %v6602, 0.0
      %v6615 = vmax.f32 %v6603, 0.0
      %s6616 = sadd.s32 %s3348, 960
      %s6617 = scalar_lea.vmem %s3, %s6616
      %6618 = vst [vmem:[%s6617] sm:$0x3f] %v6604
      %6619 = vst [vmem:[%s6617 + $0x8] sm:$0x3f] %v6605
      %6620 = vst [vmem:[%s6617 + $0x10] sm:$0x3f] %v6606
      %6621 = vst [vmem:[%s6617 + $0x18] sm:$0x3f] %v6607
      %6622 = vst [vmem:[%s6617 + $0x20] sm:$0x3f] %v6608
      %6623 = vst [vmem:[%s6617 + $0x28] sm:$0x3f] %v6609
      %6624 = vst [vmem:[%s6617 + $0x30] sm:$0x3f] %v6610
      %6625 = vst [vmem:[%s6617 + $0x38] sm:$0x3f] %v6611
      %6626 = vst [vmem:[%s6617 + $0x40] sm:$0x3f] %v6612
      %6627 = vst [vmem:[%s6617 + $0x48] sm:$0x3f] %v6613
      %6628 = vst [vmem:[%s6617 + $0x50] sm:$0x3f] %v6614
      %6629 = vst [vmem:[%s6617 + $0x58] sm:$0x3f] %v6615
    $region26: #{lenet1_forward.3} parent=1 // loop_footer
      %s46 = sadd.s32 1, %s42
    $region27: #{lenet1_forward.3} parent=1 // loop_footer_branch
      %41 = sbr.rel target = $region23
    $region28: #{lenet1_forward.3} parent=1 // loop_exit
      _
    // Predicated region
    $region29: #{lenet1_forward.3} parent=1 // pred_check
      _
    $region30: #{lenet1_forward.3} parent=1 // pred_check_branch
      %6631 = sbr.rel (0) target = $region32
    $region31: #{lenet1_forward.3} parent=1 // pred_region
      _
    $region32: #{lenet1_forward.3} parent=1 // pred_fallthru
      _
    // Predicated region
    $region33: #{lenet1_forward.3} parent=1 // pred_check
      _
    $region34: #{lenet1_forward.3} parent=1 // pred_check_branch
      %6633 = sbr.rel (0) target = $region36
    $region35: #{lenet1_forward.3} parent=1 // pred_region
      _
    $region36: #{lenet1_forward.3} parent=1 // pred_fallthru
      _
    %6634 = vsyncpa [#allocation3], 1
    %6635 = vsyncpa [#allocation5], 1

</llo_original>
